<compile_context>
chip_gen: v5e
topology: v5e:2x2
jax: 0.10.0
libtpu: 0.0.40
codegen_flags: <defaults>
</compile_context>

<pallas_src>
import functools

import jax
import jax.numpy as jnp
from jax.experimental import pallas as pl
from jax.experimental.pallas import tpu as pltpu

# ----------------------------------------------------------------------------
# Architecture constants (channel widths identical to the PyTorch module).
# ----------------------------------------------------------------------------
CLS_FC = [2048, 1024, 512, 512]
OBJ_MLPS = [[[16, 16, 32], [32, 32, 64]],
            [[64, 64, 128], [64, 96, 128]],
            [[128, 196, 256], [128, 196, 256]],
            [[256, 256, 512], [256, 384, 512]]]
SCENE_MLPS = [[[16, 16, 32], [32, 32, 64]],
              [[64, 64, 128], [64, 96, 128]],
              [[128, 196, 256], [128, 196, 256]],
              [[256, 256, 512], [256, 384, 512]],
              [[512, 768, 1024], [512, 768, 1024]],
              [[1024, 1024, 2048], [1024, 1536, 2048]]]
# Point counts scaled down for a small runnable demo
# (original: OBJ_NPOINTS=[512,256,128,1], SCENE_NPOINTS=[8192,2048,512,128,32,1]).
OBJ_NPOINTS = [64, 32, 16, 1]
SCENE_NPOINTS = [64, 32, 16, 8, 4, 1]
NSAMPLE = 32          # nsample per MSG branch (original uses 32 everywhere)
N_VOX_SMPL = 1024     # hard-coded 1024 samples per voxel in the reference forward


# ----------------------------------------------------------------------------
# Small helpers: alignment + VMEM budgeting.
# ----------------------------------------------------------------------------
def _round_up(x, m):
    return ((x + m - 1) // m) * m


@functools.lru_cache(maxsize=None)
def _vmem_limit_bytes():
    """~48 MiB on v7x (64 MiB VMEM), ~96 MiB on v5e/v6e (128 MiB VMEM)."""
    cap = 64 * 1024 * 1024
    try:
        info = pltpu.get_tpu_info()
        cap = int(getattr(info, "vmem_capacity_bytes", cap))
    except Exception:
        pass
    return int(min(cap * 3 // 4, 96 * 1024 * 1024))


def _tile_budget():
    return _vmem_limit_bytes() - (6 << 20)


def _stack_w_bytes(branches):
    """bf16 weights + f32 biases of a list of [(w, b), ...] branches."""
    return sum(int(w.size) * 2 + int(b.size) * 4
               for br in branches for (w, b) in br)


def _pick_tp(p, s_pad, k_pad, widths, out_ch, w_bytes, budget):
    """Point-tile so weights(x2) + blocks + intermediates fit the VMEM budget."""
    max_w = max(list(widths) + [k_pad])
    per_row = (2 * s_pad * k_pad * 2           # input block (bf16, double-buffered)
               + 2 * out_ch * 4                # output block (double-buffered)
               + s_pad * (k_pad + 2 * max_w) * 6)   # in-kernel intermediates (f32 acc + bf16)
    avail = budget - 2 * w_bytes               # weights conservatively counted twice
    tp = (avail // per_row) if avail > per_row else 8
    tp = int(min(p, 128, max(tp, 8)))
    if p >= 16:
        tp = max(16, (tp // 16) * 16)          # bf16 sublane packing = 16 rows
    else:
        tp = p                                 # block == full dim is always legal
    return tp


def _pick_tn(k, n, budget=12 << 20):
    """Output-channel tile (multiple of 128) so a double-buffered bf16 weight
    block stays within ~12 MiB."""
    if n <= 128:
        return n
    tn = min((n // 128) * 128, 512)
    while tn > 128 and k * tn * 4 > budget:
        tn -= 128
    return tn


# ----------------------------------------------------------------------------
# Pallas kernels.
# ----------------------------------------------------------------------------
def _fused_sa_kernel(x_ref, *refs, layer_counts):
    """Fused SharedMLP (1..2 MSG branches, 3 layers each) + max-over-nsample.

    x_ref : (tp, S_pad, K_pad) bf16 grouped points.
    refs  : [w, b] * sum(layer_counts) weight/bias refs, then the output ref
            (tp, sum(C_out)) bf16.
    """
    n_params = 2 * sum(layer_counts)
    p_refs = refs[:n_params]
    o_ref = refs[n_params]
    tp, s, k = x_ref.shape
    x2 = x_ref[...].reshape(tp * s, k)          # layout-preserving: s % 16 == 0

    idx = 0
    col = 0
    for nl in layer_counts:
        h = x2
        for li in range(nl):
            w = p_refs[idx][...]
            b = p_refs[idx + 1][...]
            idx += 2
            acc = jnp.dot(h, w, preferred_element_type=jnp.float32) + b
            acc = jnp.maximum(acc, 0.0)
            # keep the last layer in f32 for the pooling; bf16 feeds the MXU otherwise
            h = acc.astype(jnp.bfloat16) if li + 1 < nl else acc
        wd = h.shape[-1]
        pooled = jnp.max(h.reshape(tp, s, wd), axis=1)      # PointNet++ max pool
        o_ref[:, col:col + wd] = pooled.astype(o_ref.dtype)
        col += wd


def _mlp_stack_kernel(x_ref, *refs, relu_flags):
    """Fused stack of linear layers with all weights VMEM-resident."""
    n = len(relu_flags)
    p_refs = refs[:2 * n]
    o_ref = refs[2 * n]
    h = x_ref[...]
    for i in range(n):
        acc = jnp.dot(h, p_refs[2 * i][...],
                      preferred_element_type=jnp.float32) + p_refs[2 * i + 1][...]
        if relu_flags[i]:
            acc = jnp.maximum(acc, 0.0)
        h = acc.astype(jnp.bfloat16) if i + 1 < n else acc
    o_ref[...] = h.astype(o_ref.dtype)


def _linear_kernel(x_ref, w_ref, b_ref, o_ref, *, apply_relu):
    acc = jnp.dot(x_ref[...], w_ref[...],
                  preferred_element_type=jnp.float32) + b_ref[...]
    if apply_relu:
        acc = jnp.maximum(acc, 0.0)
    o_ref[...] = acc.astype(o_ref.dtype)


# ----------------------------------------------------------------------------
# Pallas wrappers.
# ----------------------------------------------------------------------------
def _fused_sa_call(grouped, branches, k_pad):
    """grouped: (P, S_pad, K_pad) bf16.  branches: list of [(w,b),...] stacks.
    Returns (P, sum C_out) bf16 pooled features."""
    p, s_pad, _ = grouped.shape
    flat, layer_counts, widths = [], [], []
    out_ch = 0
    for br in branches:
        layer_counts.append(len(br))
        for li, (w, b) in enumerate(br):
            if li == 0 and w.shape[0] != k_pad:
                w = jnp.pad(w, ((0, k_pad - w.shape[0]), (0, 0)))  # zero rows: exact math
            flat.append(w.astype(jnp.bfloat16))
            flat.append(b.reshape(1, -1).astype(jnp.float32))
            widths.append(int(w.shape[1]))
        out_ch += int(br[-1][0].shape[1])

    w_bytes = sum(int(a.size) * a.dtype.itemsize for a in flat)
    tp = _pick_tp(p, s_pad, k_pad, widths, out_ch, w_bytes, _tile_budget())

    in_specs = [pl.BlockSpec((tp, s_pad, k_pad), lambda i: (i, 0, 0))]
    in_specs += [pl.BlockSpec(a.shape, lambda i: (0, 0)) for a in flat]

    return pl.pallas_call(
        functools.partial(_fused_sa_kernel, layer_counts=tuple(layer_counts)),
        out_shape=jax.ShapeDtypeStruct((p, out_ch), jnp.bfloat16),
        grid=(pl.cdiv(p, tp),),
        in_specs=in_specs,
        out_specs=pl.BlockSpec((tp, out_ch), lambda i: (i, 0)),
        compiler_params=pltpu.CompilerParams(
            dimension_semantics=("parallel",),
            vmem_limit_bytes=_vmem_limit_bytes()),
    )(grouped, *flat)


def sa_mlp_maxpool(grouped, level_params):
    """Fused SharedMLP branches + max pooling for one SA level.
    grouped: (P, S, C_true) -> (P, sum C_out) bf16."""
    p, s, c = grouped.shape
    # Pad nsample by duplicating samples (max is unchanged; ball-query pads the
    # same way) so reshapes inside the kernel are layout-preserving.
    s_pad = _round_up(s, 16)
    if s_pad != s:
        grouped = grouped[:, jnp.arange(s_pad) % s, :]
    # Pad the contraction (channel) axis for aligned (8,128) layouts.
    k_pad = _round_up(c, 128) if c > 64 else _round_up(c, 8)
    if k_pad != c:
        grouped = jnp.pad(grouped, ((0, 0), (0, 0), (0, k_pad - c)))
    grouped = grouped.astype(jnp.bfloat16)

    # Fuse both MSG branches into one kernel (shared grouped-input read,
    # lane-dense concatenated output) when their weights fit VMEM; otherwise
    # (largest scene levels on v7x's 64 MiB VMEM) run one kernel per branch.
    if 2 * _stack_w_bytes(level_params) + (12 << 20) <= _tile_budget():
        groups = [list(level_params)]
    else:
        groups = [[br] for br in level_params]

    outs = [_fused_sa_call(grouped, g, k_pad) for g in groups]
    return outs[0] if len(outs) == 1 else jnp.concatenate(outs, axis=-1)


def mlp_stack(x, layers, relu_flags, out_dtype):
    """y = stack of (x @ w + b [,ReLU]) with all weights VMEM-resident.
    x: (Q, K) with K already 8/128-aligned."""
    q, k = x.shape
    flat = []
    for (w, b) in layers:
        flat.append(w.astype(jnp.bfloat16))
        flat.append(b.reshape(1, -1).astype(jnp.float32))
    n_out = int(layers[-1][0].shape[1])

    tq = q if q < 16 else min(128, (min(q, 128) // 16) * 16)
    in_specs = [pl.BlockSpec((tq, k), lambda i: (i, 0))]
    in_specs += [pl.BlockSpec(a.shape, lambda i: (0, 0)) for a in flat]

    return pl.pallas_call(
        functools.partial(_mlp_stack_kernel, relu_flags=tuple(relu_flags)),
        out_shape=jax.ShapeDtypeStruct((q, n_out), out_dtype),
        grid=(pl.cdiv(q, tq),),
        in_specs=in_specs,
        out_specs=pl.BlockSpec((tq, n_out), lambda i: (i, 0)),
        compiler_params=pltpu.CompilerParams(
            dimension_semantics=("parallel",),
            vmem_limit_bytes=_vmem_limit_bytes()),
    )(x, *flat)


def linear_tiled(x, w, b, *, relu, out_dtype):
    """y = act(x @ w + b), tiled over rows and output channels (2-D parallel
    grid).  Used for the large first cls-head layer so its weight streams in
    N tiles instead of being fully VMEM-resident."""
    m, k = x.shape
    _, n = w.shape
    tm = m if m < 16 else min(256, (min(m, 256) // 16) * 16)
    tn = _pick_tn(k, n)
    return pl.pallas_call(
        functools.partial(_linear_kernel, apply_relu=relu),
        out_shape=jax.ShapeDtypeStruct((m, n), out_dtype),
        grid=(pl.cdiv(m, tm), pl.cdiv(n, tn)),
        in_specs=[pl.BlockSpec((tm, k), lambda i, j: (i, 0)),
                  pl.BlockSpec((k, tn), lambda i, j: (0, j)),
                  pl.BlockSpec((1, tn), lambda i, j: (0, j))],
        out_specs=pl.BlockSpec((tm, tn), lambda i, j: (i, j)),
        compiler_params=pltpu.CompilerParams(
            dimension_semantics=("parallel", "parallel"),
            vmem_limit_bytes=_vmem_limit_bytes()),
    )(x, w, b)


# ----------------------------------------------------------------------------
# PointNet++ MSG set-abstraction module (simplified sampling/grouping).
# ----------------------------------------------------------------------------
def sa_module_msg(xyz, features, npoint, nsample, level_params):
    """xyz: (B, N, 3); features: (B, C, N) or None.  Returns new xyz/features."""
    b, n, _ = xyz.shape
    # TODO(synk): furthest-point sampling (CUDA op) replaced by deterministic stride subsample.
    stride = max(n // npoint, 1)
    cent_idx = jnp.arange(npoint) * stride
    new_xyz = xyz[:, cent_idx, :]                                   # (B, npoint, 3)

    # TODO(synk): ball-query-with-radius grouping (CUDA op) replaced by kNN grouping.
    k = min(nsample, n)
    d2 = jnp.sum((new_xyz[:, :, None, :] - xyz[:, None, :, :]) ** 2, axis=-1)
    _, nn_idx = jax.lax.top_k(-d2, k)                               # (B, npoint, k)
    batch_ix = jnp.arange(b)[:, None, None]
    # TODO(synk): gather could be moved into the Pallas pipeline via scalar-prefetch index_maps.
    grouped_xyz = xyz[batch_ix, nn_idx, :] - new_xyz[:, :, None, :]  # (B, np, k, 3)
    if features is not None:
        feats_nl = jnp.transpose(features, (0, 2, 1))               # (B, N, C)
        grouped_feats = feats_nl[batch_ix, nn_idx, :]               # (B, np, k, C)
        grouped = jnp.concatenate(
            [grouped_xyz.astype(grouped_feats.dtype), grouped_feats], axis=-1)  # use_xyz=True
    else:
        grouped = grouped_xyz
    c_in = grouped.shape[-1]

    # Fused SharedMLP (both MSG branches) + max-over-nsample in Pallas.
    pooled = sa_mlp_maxpool(grouped.reshape(b * npoint, k, c_in), level_params)
    new_feats = pooled.reshape(b, npoint, -1)                       # (B, npoint, sum C_out)
    return new_xyz, jnp.transpose(new_feats, (0, 2, 1))             # (B, C, npoint)


def break_up_pc(pc):
    xyz = pc[..., 0:3]
    feats = jnp.transpose(pc[..., 3:], (0, 2, 1)) if pc.shape[-1] > 3 else None
    return xyz, feats


def pointnet_features(pc, npoints, params):
    xyz, feats = break_up_pc(pc)
    for lvl in range(len(npoints)):
        xyz, feats = sa_module_msg(xyz, feats, npoints[lvl], NSAMPLE, params[lvl])
    return feats          # (B, C_final, 1)


def cls_head(x, params):
    """Conv1d stack (kernel size 1, bn=False) on (q, 5129) features -> (q,)."""
    q, c = x.shape
    k_pad = _round_up(c, 128)
    x = jnp.pad(x, ((0, 0), (0, k_pad - c))).astype(jnp.bfloat16)
    w0, b0 = params[0]
    w0 = jnp.pad(w0, ((0, k_pad - w0.shape[0]), (0, 0))).astype(jnp.bfloat16)
    # Big first layer (5129 -> 2048): N-tiled so its weight streams through VMEM.
    h = linear_tiled(x, w0, b0.astype(jnp.float32), relu=True, out_dtype=jnp.bfloat16)
    # TODO(synk): nn.Dropout(0.5) after the first layer treated as identity (eval mode).
    rest = params[1:]
    relu_flags = tuple(i < len(rest) - 1 for i in range(len(rest)))  # no act on last layer
    out = mlp_stack(h, rest, relu_flags, out_dtype=jnp.float32)      # (q, 1)
    return out[:, 0]


# ----------------------------------------------------------------------------
# Deterministic parameter construction.
# ----------------------------------------------------------------------------
def _init_linear(key, cin, cout):
    kw, kb = jax.random.split(key)
    w = (jax.random.normal(kw, (cin, cout), jnp.float32) / jnp.sqrt(float(cin)))
    b = jax.random.normal(kb, (1, cout), jnp.float32) * 0.01
    return w.astype(jnp.float32), b.astype(jnp.float32)


def build_sa_params(key, mlps_cfg, npoints):
    params = []
    channel_in = 0
    for lvl in range(len(npoints)):
        level = []
        channel_out = 0
        for branch_cfg in mlps_cfg[lvl]:
            spec = [channel_in + 3] + list(branch_cfg)   # use_xyz=True adds 3 channels
            layers = []
            for i in range(len(spec) - 1):
                key, sub = jax.random.split(key)
                layers.append(_init_linear(sub, spec[i], spec[i + 1]))
            level.append(layers)
            channel_out += branch_cfg[-1]
        params.append(level)
        channel_in = channel_out
    return params, key


def build_cls_params(key, pre_channel):
    dims = [pre_channel] + CLS_FC + [1]
    layers = []
    for i in range(len(dims) - 1):
        key, sub = jax.random.split(key)
        layers.append(_init_linear(sub, dims[i], dims[i + 1]))
    return layers, key


def build_voxel_grid(bounds, vox_size):
    if bool(jnp.allclose(vox_size, bounds[1] - bounds[0])):
        num_voxels = jnp.ones(3, dtype=jnp.int32)
    else:
        num_voxels = ((bounds[1] - bounds[0]) / (vox_size / 2) + 1).astype(jnp.int32)
    axes = [jnp.linspace(bounds[0, i], bounds[1, i], int(num_voxels[i]))
            for i in range(3)]
    grids = jnp.meshgrid(*axes, indexing="ij")
    return jnp.stack([g.reshape(-1) for g in grids], axis=1).astype(jnp.float32)


# ----------------------------------------------------------------------------
# Full forward pass (eager glue + Pallas hot path).
# ----------------------------------------------------------------------------
def pointnet_grid_forward(scene, obj, tr, rot, *, vox_centers, vox_size,
                          scene_params, obj_params, cls_params, sample_key):
    # scene: (1, Ns, 3), obj: (1, No, 3), tr: (T, 3), rot: (T, 6)
    pts = scene[0]
    mask = jnp.all(jnp.abs(pts[:, None, :] - vox_centers[None, :, :]) < vox_size / 2,
                   axis=-1)                                        # (Ns, V)
    counts = mask.sum(axis=0)                                      # (V,)
    nonzero = jnp.where(counts > 0)[0]                             # eager -> concrete
    val_counts = counts[nonzero]
    val_centers = vox_centers[nonzero]
    v_nz = int(nonzero.shape[0])

    smpl = jax.random.randint(sample_key, (N_VOX_SMPL, v_nz), 0,
                              scene.shape[1]) % val_counts
    offsets = jnp.roll(jnp.cumsum(val_counts), 1).at[0].set(0)
    smpl = smpl + offsets

    # per-voxel grouped point indices == torch.where(scene_vox_mask.T)[1]
    _, pt_idx = jnp.where(mask.T)
    gathered = pt_idx[smpl.reshape(-1)]
    scene_pts = scene[:, gathered].reshape(N_VOX_SMPL, v_nz, -1)   # (1024, Vnz, 3)
    norm_scene_pts = jnp.transpose(scene_pts - val_centers[None], (1, 0, 2))  # (Vnz,1024,3)

    tr_mask = jnp.all(jnp.abs(tr[:, None, :] - val_centers[None]) < vox_size / 2,
                      axis=-1)                                     # (T, Vnz)
    tr_val_inds, tr_vox_inds = jnp.where(tr_mask)
    norm_trans = tr[tr_val_inds] - val_centers[tr_vox_inds]        # (q, 3)
    q = int(norm_trans.shape[0])

    obj_feats = pointnet_features(obj, OBJ_NPOINTS, obj_params)        # (1, 1024, 1)
    scene_feats = pointnet_features(norm_scene_pts, SCENE_NPOINTS,
                                    scene_params)                      # (Vnz, 4096, 1)

    cls_in = jnp.concatenate(
        (jnp.broadcast_to(obj_feats, (q,) + obj_feats.shape[1:]),
         scene_feats[tr_vox_inds],
         norm_trans[:, :, None],
         rot[tr_val_inds][:, :, None]), axis=1)                        # (q, 5129, 1)

    pred_cls = cls_head(cls_in[:, :, 0], cls_params)                   # (q,)
    # Matches torch.zeros(q).scatter_add(0, tr_val_inds, pred_cls) / 8.0
    # (note: JAX drops out-of-range indices silently; torch would raise).
    return jnp.zeros(q, jnp.float32).at[tr_val_inds].add(pred_cls) / 8.0


# ----------------------------------------------------------------------------
if __name__ == "__main__":
    key = jax.random.PRNGKey(0)
    k_scene, k_obj, k_tr, k_rot, k_smpl = jax.random.split(key, 5)

    bounds = jnp.array([[-0.25, -0.25, -0.25], [0.25, 0.25, 0.25]], jnp.float32)
    vox_size = jnp.array([1.0, 1.0, 1.0], jnp.float32)
    vox_centers = build_voxel_grid(bounds, vox_size)       # (8, 3) grid of voxel centers

    pkey = jax.random.PRNGKey(42)
    scene_params, pkey = build_sa_params(pkey, SCENE_MLPS, SCENE_NPOINTS)
    obj_params, pkey = build_sa_params(pkey, OBJ_MLPS, OBJ_NPOINTS)
    cls_params, pkey = build_cls_params(pkey, 4096 + 1024 + 3 + 6)

    scene = jax.random.uniform(k_scene, (1, 512, 3), jnp.float32, -0.45, 0.45)
    obj = jax.random.uniform(k_obj, (1, 128, 3), jnp.float32, -0.05, 0.05)
    tr = jax.random.uniform(k_tr, (4, 3), jnp.float32, -0.2, 0.2)
    rot = jax.random.normal(k_rot, (4, 6), jnp.float32)

    out = pointnet_grid_forward(
        scene, obj, tr, rot,
        vox_centers=vox_centers, vox_size=vox_size,
        scene_params=scene_params, obj_params=obj_params,
        cls_params=cls_params, sample_key=k_smpl)
    jax.block_until_ready(out)
    print("KERNEL_OK")
</pallas_src>

<mosaic_0001>
module attributes {stable_mosaic.version = 11 : i64} {
  func.func @_fused_sa_kernel(%arg0: i32, %arg1: memref<64x32x8xbf16, #tpu.memory_space<vmem>>, %arg2: memref<8x16xbf16, #tpu.memory_space<vmem>>, %arg3: memref<1x16xf32, #tpu.memory_space<vmem>>, %arg4: memref<16x16xbf16, #tpu.memory_space<vmem>>, %arg5: memref<1x16xf32, #tpu.memory_space<vmem>>, %arg6: memref<16x32xbf16, #tpu.memory_space<vmem>>, %arg7: memref<1x32xf32, #tpu.memory_space<vmem>>, %arg8: memref<8x32xbf16, #tpu.memory_space<vmem>>, %arg9: memref<1x32xf32, #tpu.memory_space<vmem>>, %arg10: memref<32x32xbf16, #tpu.memory_space<vmem>>, %arg11: memref<1x32xf32, #tpu.memory_space<vmem>>, %arg12: memref<32x64xbf16, #tpu.memory_space<vmem>>, %arg13: memref<1x64xf32, #tpu.memory_space<vmem>>, %arg14: memref<64x96xbf16, #tpu.memory_space<vmem>>) attributes {dimension_semantics = [#tpu.dimension_semantics<parallel>], iteration_bounds = array<i64: 1>, scalar_prefetch = 0 : i64, scratch_operands = 0 : i64, tpu.core_type = #tpu.core_type<tc>, window_params = [{transform_indices = @transform_0, window_bounds = array<i64: 64, 32, 8>}, {pipeline_mode = #tpu.pipeline_mode<synchronous>, transform_indices = @transform_1, window_bounds = array<i64: 8, 16>}, {pipeline_mode = #tpu.pipeline_mode<synchronous>, transform_indices = @transform_2, window_bounds = array<i64: 1, 16>}, {pipeline_mode = #tpu.pipeline_mode<synchronous>, transform_indices = @transform_3, window_bounds = array<i64: 16, 16>}, {pipeline_mode = #tpu.pipeline_mode<synchronous>, transform_indices = @transform_4, window_bounds = array<i64: 1, 16>}, {pipeline_mode = #tpu.pipeline_mode<synchronous>, transform_indices = @transform_5, window_bounds = array<i64: 16, 32>}, {pipeline_mode = #tpu.pipeline_mode<synchronous>, transform_indices = @transform_6, window_bounds = array<i64: 1, 32>}, {pipeline_mode = #tpu.pipeline_mode<synchronous>, transform_indices = @transform_7, window_bounds = array<i64: 8, 32>}, {pipeline_mode = #tpu.pipeline_mode<synchronous>, transform_indices = @transform_8, window_bounds = array<i64: 1, 32>}, {pipeline_mode = #tpu.pipeline_mode<synchronous>, transform_indices = @transform_9, window_bounds = array<i64: 32, 32>}, {pipeline_mode = #tpu.pipeline_mode<synchronous>, transform_indices = @transform_10, window_bounds = array<i64: 1, 32>}, {pipeline_mode = #tpu.pipeline_mode<synchronous>, transform_indices = @transform_11, window_bounds = array<i64: 32, 64>}, {pipeline_mode = #tpu.pipeline_mode<synchronous>, transform_indices = @transform_12, window_bounds = array<i64: 1, 64>}, {transform_indices = @transform_13, window_bounds = array<i64: 64, 96>}]} {
    %c0 = arith.constant 0 : index
    %c0_0 = arith.constant 0 : index
    %c0_1 = arith.constant 0 : index
    %0 = vector.load %arg1[%c0, %c0_0, %c0_1] : memref<64x32x8xbf16, #tpu.memory_space<vmem>>, vector<64x32x8xbf16>
    %1 = vector.shape_cast %0 : vector<64x32x8xbf16> to vector<2048x8xbf16>
    %c0_2 = arith.constant 0 : index
    %c0_3 = arith.constant 0 : index
    %2 = vector.load %arg2[%c0_2, %c0_3] : memref<8x16xbf16, #tpu.memory_space<vmem>>, vector<8x16xbf16>
    %c0_4 = arith.constant 0 : index
    %c0_5 = arith.constant 0 : index
    %3 = vector.load %arg3[%c0_4, %c0_5] : memref<1x16xf32, #tpu.memory_space<vmem>>, vector<1x16xf32>
    %cst = arith.constant dense<0.000000e+00> : vector<2048x16xf32>
    %4 = tpu.matmul %1, %2, %cst {dimension_numbers = #tpu.dot_dimension_numbers<[1], [0], [0], [1], [0, 0, 1, 1], [], []>} : vector<2048x8xbf16>, vector<8x16xbf16>, vector<2048x16xf32> -> vector<2048x16xf32>
    %5 = vector.broadcast %3 : vector<1x16xf32> to vector<2048x16xf32>
    %6 = arith.addf %4, %5 : vector<2048x16xf32>
    %cst_6 = arith.constant 0.000000e+00 : f32
    %7 = vector.broadcast %cst_6 : f32 to vector<2048x16xf32>
    %8 = arith.maximumf %6, %7 : vector<2048x16xf32>
    %9 = arith.truncf %8 : vector<2048x16xf32> to vector<2048x16xbf16>
    %c0_7 = arith.constant 0 : index
    %c0_8 = arith.constant 0 : index
    %10 = vector.load %arg4[%c0_7, %c0_8] : memref<16x16xbf16, #tpu.memory_space<vmem>>, vector<16x16xbf16>
    %c0_9 = arith.constant 0 : index
    %c0_10 = arith.constant 0 : index
    %11 = vector.load %arg5[%c0_9, %c0_10] : memref<1x16xf32, #tpu.memory_space<vmem>>, vector<1x16xf32>
    %cst_11 = arith.constant dense<0.000000e+00> : vector<2048x16xf32>
    %12 = tpu.matmul %9, %10, %cst_11 {dimension_numbers = #tpu.dot_dimension_numbers<[1], [0], [0], [1], [0, 0, 1, 1], [], []>} : vector<2048x16xbf16>, vector<16x16xbf16>, vector<2048x16xf32> -> vector<2048x16xf32>
    %13 = vector.broadcast %11 : vector<1x16xf32> to vector<2048x16xf32>
    %14 = arith.addf %12, %13 : vector<2048x16xf32>
    %cst_12 = arith.constant 0.000000e+00 : f32
    %15 = vector.broadcast %cst_12 : f32 to vector<2048x16xf32>
    %16 = arith.maximumf %14, %15 : vector<2048x16xf32>
    %17 = arith.truncf %16 : vector<2048x16xf32> to vector<2048x16xbf16>
    %c0_13 = arith.constant 0 : index
    %c0_14 = arith.constant 0 : index
    %18 = vector.load %arg6[%c0_13, %c0_14] : memref<16x32xbf16, #tpu.memory_space<vmem>>, vector<16x32xbf16>
    %c0_15 = arith.constant 0 : index
    %c0_16 = arith.constant 0 : index
    %19 = vector.load %arg7[%c0_15, %c0_16] : memref<1x32xf32, #tpu.memory_space<vmem>>, vector<1x32xf32>
    %cst_17 = arith.constant dense<0.000000e+00> : vector<2048x32xf32>
    %20 = tpu.matmul %17, %18, %cst_17 {dimension_numbers = #tpu.dot_dimension_numbers<[1], [0], [0], [1], [0, 0, 1, 1], [], []>} : vector<2048x16xbf16>, vector<16x32xbf16>, vector<2048x32xf32> -> vector<2048x32xf32>
    %21 = vector.broadcast %19 : vector<1x32xf32> to vector<2048x32xf32>
    %22 = arith.addf %20, %21 : vector<2048x32xf32>
    %cst_18 = arith.constant 0.000000e+00 : f32
    %23 = vector.broadcast %cst_18 : f32 to vector<2048x32xf32>
    %24 = arith.maximumf %22, %23 : vector<2048x32xf32>
    %25 = vector.shape_cast %24 : vector<2048x32xf32> to vector<64x32x32xf32>
    %cst_19 = arith.constant dense<0xFF800000> : vector<64x32xf32>
    %26 = vector.multi_reduction <maximumf>, %25, %cst_19 [1] : vector<64x32x32xf32> to vector<64x32xf32>
    %27 = arith.truncf %26 : vector<64x32xf32> to vector<64x32xbf16>
    %c0_20 = arith.constant 0 : index
    %c0_21 = arith.constant 0 : index
    %28 = vector.load %arg14[%c0_20, %c0_21] : memref<64x96xbf16, #tpu.memory_space<vmem>>, vector<64x32xbf16>
    tpu.vector_store %arg14[%c0_20, %c0_21], %27 {strides = array<i32>} : memref<64x96xbf16, #tpu.memory_space<vmem>>, vector<64x32xbf16>,
    %c0_22 = arith.constant 0 : index
    %c0_23 = arith.constant 0 : index
    %29 = vector.load %arg8[%c0_22, %c0_23] : memref<8x32xbf16, #tpu.memory_space<vmem>>, vector<8x32xbf16>
    %c0_24 = arith.constant 0 : index
    %c0_25 = arith.constant 0 : index
    %30 = vector.load %arg9[%c0_24, %c0_25] : memref<1x32xf32, #tpu.memory_space<vmem>>, vector<1x32xf32>
    %cst_26 = arith.constant dense<0.000000e+00> : vector<2048x32xf32>
    %31 = tpu.matmul %1, %29, %cst_26 {dimension_numbers = #tpu.dot_dimension_numbers<[1], [0], [0], [1], [0, 0, 1, 1], [], []>} : vector<2048x8xbf16>, vector<8x32xbf16>, vector<2048x32xf32> -> vector<2048x32xf32>
    %32 = vector.broadcast %30 : vector<1x32xf32> to vector<2048x32xf32>
    %33 = arith.addf %31, %32 : vector<2048x32xf32>
    %cst_27 = arith.constant 0.000000e+00 : f32
    %34 = vector.broadcast %cst_27 : f32 to vector<2048x32xf32>
    %35 = arith.maximumf %33, %34 : vector<2048x32xf32>
    %36 = arith.truncf %35 : vector<2048x32xf32> to vector<2048x32xbf16>
    %c0_28 = arith.constant 0 : index
    %c0_29 = arith.constant 0 : index
    %37 = vector.load %arg10[%c0_28, %c0_29] : memref<32x32xbf16, #tpu.memory_space<vmem>>, vector<32x32xbf16>
    %c0_30 = arith.constant 0 : index
    %c0_31 = arith.constant 0 : index
    %38 = vector.load %arg11[%c0_30, %c0_31] : memref<1x32xf32, #tpu.memory_space<vmem>>, vector<1x32xf32>
    %cst_32 = arith.constant dense<0.000000e+00> : vector<2048x32xf32>
    %39 = tpu.matmul %36, %37, %cst_32 {dimension_numbers = #tpu.dot_dimension_numbers<[1], [0], [0], [1], [0, 0, 1, 1], [], []>} : vector<2048x32xbf16>, vector<32x32xbf16>, vector<2048x32xf32> -> vector<2048x32xf32>
    %40 = vector.broadcast %38 : vector<1x32xf32> to vector<2048x32xf32>
    %41 = arith.addf %39, %40 : vector<2048x32xf32>
    %cst_33 = arith.constant 0.000000e+00 : f32
    %42 = vector.broadcast %cst_33 : f32 to vector<2048x32xf32>
    %43 = arith.maximumf %41, %42 : vector<2048x32xf32>
    %44 = arith.truncf %43 : vector<2048x32xf32> to vector<2048x32xbf16>
    %c0_34 = arith.constant 0 : index
    %c0_35 = arith.constant 0 : index
    %45 = vector.load %arg12[%c0_34, %c0_35] : memref<32x64xbf16, #tpu.memory_space<vmem>>, vector<32x64xbf16>
    %c0_36 = arith.constant 0 : index
    %c0_37 = arith.constant 0 : index
    %46 = vector.load %arg13[%c0_36, %c0_37] : memref<1x64xf32, #tpu.memory_space<vmem>>, vector<1x64xf32>
    %cst_38 = arith.constant dense<0.000000e+00> : vector<2048x64xf32>
    %47 = tpu.matmul %44, %45, %cst_38 {dimension_numbers = #tpu.dot_dimension_numbers<[1], [0], [0], [1], [0, 0, 1, 1], [], []>} : vector<2048x32xbf16>, vector<32x64xbf16>, vector<2048x64xf32> -> vector<2048x64xf32>
    %48 = vector.broadcast %46 : vector<1x64xf32> to vector<2048x64xf32>
    %49 = arith.addf %47, %48 : vector<2048x64xf32>
    %cst_39 = arith.constant 0.000000e+00 : f32
    %50 = vector.broadcast %cst_39 : f32 to vector<2048x64xf32>
    %51 = arith.maximumf %49, %50 : vector<2048x64xf32>
    %52 = vector.shape_cast %51 : vector<2048x64xf32> to vector<64x32x64xf32>
    %cst_40 = arith.constant dense<0xFF800000> : vector<64x64xf32>
    %53 = vector.multi_reduction <maximumf>, %52, %cst_40 [1] : vector<64x32x64xf32> to vector<64x64xf32>
    %54 = arith.truncf %53 : vector<64x64xf32> to vector<64x64xbf16>
    %c0_41 = arith.constant 0 : index
    %c32 = arith.constant 32 : index
    %55 = vector.load %arg14[%c0_41, %c32] : memref<64x96xbf16, #tpu.memory_space<vmem>>, vector<64x64xbf16>
    tpu.vector_store %arg14[%c0_41, %c32], %54 {strides = array<i32>} : memref<64x96xbf16, #tpu.memory_space<vmem>>, vector<64x64xbf16>,
    return
  }
  func.func @transform_0(%arg0: i32) -> (i32, i32, i32) {
    %c0_i32 = arith.constant 0 : i32
    %c0_i32_0 = arith.constant 0 : i32
    %c0_i32_1 = arith.constant 0 : i32
    return %arg0, %c0_i32, %c0_i32_0 : i32, i32, i32
  }
  func.func @transform_1(%arg0: i32) -> (i32, i32) {
    %c0_i32 = arith.constant 0 : i32
    %c0_i32_0 = arith.constant 0 : i32
    %c0_i32_1 = arith.constant 0 : i32
    return %c0_i32, %c0_i32_0 : i32, i32
  }
  func.func @transform_2(%arg0: i32) -> (i32, i32) {
    %c0_i32 = arith.constant 0 : i32
    %c0_i32_0 = arith.constant 0 : i32
    %c0_i32_1 = arith.constant 0 : i32
    return %c0_i32, %c0_i32_0 : i32, i32
  }
  func.func @transform_3(%arg0: i32) -> (i32, i32) {
    %c0_i32 = arith.constant 0 : i32
    %c0_i32_0 = arith.constant 0 : i32
    %c0_i32_1 = arith.constant 0 : i32
    return %c0_i32, %c0_i32_0 : i32, i32
  }
  func.func @transform_4(%arg0: i32) -> (i32, i32) {
    %c0_i32 = arith.constant 0 : i32
    %c0_i32_0 = arith.constant 0 : i32
    %c0_i32_1 = arith.constant 0 : i32
    return %c0_i32, %c0_i32_0 : i32, i32
  }
  func.func @transform_5(%arg0: i32) -> (i32, i32) {
    %c0_i32 = arith.constant 0 : i32
    %c0_i32_0 = arith.constant 0 : i32
    %c0_i32_1 = arith.constant 0 : i32
    return %c0_i32, %c0_i32_0 : i32, i32
  }
  func.func @transform_6(%arg0: i32) -> (i32, i32) {
    %c0_i32 = arith.constant 0 : i32
    %c0_i32_0 = arith.constant 0 : i32
    %c0_i32_1 = arith.constant 0 : i32
    return %c0_i32, %c0_i32_0 : i32, i32
  }
  func.func @transform_7(%arg0: i32) -> (i32, i32) {
    %c0_i32 = arith.constant 0 : i32
    %c0_i32_0 = arith.constant 0 : i32
    %c0_i32_1 = arith.constant 0 : i32
    return %c0_i32, %c0_i32_0 : i32, i32
  }
  func.func @transform_8(%arg0: i32) -> (i32, i32) {
    %c0_i32 = arith.constant 0 : i32
    %c0_i32_0 = arith.constant 0 : i32
    %c0_i32_1 = arith.constant 0 : i32
    return %c0_i32, %c0_i32_0 : i32, i32
  }
  func.func @transform_9(%arg0: i32) -> (i32, i32) {
    %c0_i32 = arith.constant 0 : i32
    %c0_i32_0 = arith.constant 0 : i32
    %c0_i32_1 = arith.constant 0 : i32
    return %c0_i32, %c0_i32_0 : i32, i32
  }
  func.func @transform_10(%arg0: i32) -> (i32, i32) {
    %c0_i32 = arith.constant 0 : i32
    %c0_i32_0 = arith.constant 0 : i32
    %c0_i32_1 = arith.constant 0 : i32
    return %c0_i32, %c0_i32_0 : i32, i32
  }
  func.func @transform_11(%arg0: i32) -> (i32, i32) {
    %c0_i32 = arith.constant 0 : i32
    %c0_i32_0 = arith.constant 0 : i32
    %c0_i32_1 = arith.constant 0 : i32
    return %c0_i32, %c0_i32_0 : i32, i32
  }
  func.func @transform_12(%arg0: i32) -> (i32, i32) {
    %c0_i32 = arith.constant 0 : i32
    %c0_i32_0 = arith.constant 0 : i32
    %c0_i32_1 = arith.constant 0 : i32
    return %c0_i32, %c0_i32_0 : i32, i32
  }
  func.func @transform_13(%arg0: i32) -> (i32, i32) {
    %c0_i32 = arith.constant 0 : i32
    %c0_i32_0 = arith.constant 0 : i32
    return %arg0, %c0_i32 : i32, i32
  }
}

</mosaic_0001>

<llo_original>
// kernel: tpu_custom_call.1
$region0: #{tpu_custom_call.1}
  #allocation0 [shape = 'u32[]', space=smem, size = 0x4, offset = 0x4, fixed_abs, tag = 'smem constant byte address 0x4 - core index']
  #allocation1 [shape = 'u32[72,128]{1,0:T(1,128)}', space=vmem, size = 0x9000, scoped, tag = 'internal scratch']
  %s0 = inlined_call_operand.vmem [shape: bf16[64,32,8], index: 0, kind: input, shape index: {}]
  %s1 = inlined_call_operand.vmem [shape: bf16[8,16], index: 1, kind: input, shape index: {}]
  %s2 = inlined_call_operand.vmem [shape: f32[1,16], index: 2, kind: input, shape index: {}]
  %s3 = inlined_call_operand.vmem [shape: bf16[16,16], index: 3, kind: input, shape index: {}]
  %s4 = inlined_call_operand.vmem [shape: f32[1,16], index: 4, kind: input, shape index: {}]
  %s5 = inlined_call_operand.vmem [shape: bf16[16,32], index: 5, kind: input, shape index: {}]
  %s6 = inlined_call_operand.vmem [shape: f32[1,32], index: 6, kind: input, shape index: {}]
  %s7 = inlined_call_operand.vmem [shape: bf16[8,32], index: 7, kind: input, shape index: {}]
  %s8 = inlined_call_operand.vmem [shape: f32[1,32], index: 8, kind: input, shape index: {}]
  %s9 = inlined_call_operand.vmem [shape: bf16[32,32], index: 9, kind: input, shape index: {}]
  %s10 = inlined_call_operand.vmem [shape: f32[1,32], index: 10, kind: input, shape index: {}]
  %s11 = inlined_call_operand.vmem [shape: bf16[32,64], index: 11, kind: input, shape index: {}]
  %s12 = inlined_call_operand.vmem [shape: f32[1,64], index: 12, kind: input, shape index: {}]
  %s13 = inlined_call_operand.hbm [shape: bf16[64,96], index: 13, kind: output, shape index: {}]
  %s14 = sld [smem:[#allocation0]]
  $region62: #{tpu_custom_call.1} parent=0
    _
  %s16 = ssub.s32 1, %s14
  %s17 = scalar_select 0, %s16, %s14
  $region1: #{tpu_custom_call.1} parent=0
    #allocation2 [shape = 'u8[16384]{0}', space=vmem, size = 0x4000, scoped, tag = 'output window, operand 0, single buffered']
    #allocation3 [shape = 's32[1]{0}', space=sflag, size = 0x4, scoped, tag = 'scoped memory for tpu_custom_call.1']
    %18 = vsyncpa [#allocation3], 0
    // Predicated region
    $region2: #{tpu_custom_call.1} parent=1 // pred_check
      _
    $region3: #{tpu_custom_call.1} parent=1 // pred_check_branch
      %20 = sbr.rel (0) target = $region5
    $region4: #{tpu_custom_call.1} parent=1 // pred_region
      _
    $region5: #{tpu_custom_call.1} parent=1 // pred_fallthru
      _
    // Predicated region
    $region6: #{tpu_custom_call.1} parent=1 // pred_check
      _
    $region7: #{tpu_custom_call.1} parent=1 // pred_check_branch
      %22 = sbr.rel (0) target = $region9
    $region8: #{tpu_custom_call.1} parent=1 // pred_region
      _
    $region9: #{tpu_custom_call.1} parent=1 // pred_fallthru
      _
    // Predicated region
    $region10: #{tpu_custom_call.1} parent=1 // pred_check
      _
    $region11: #{tpu_custom_call.1} parent=1 // pred_check_branch
      %24 = sbr.rel (0) target = $region13
    $region12: #{tpu_custom_call.1} parent=1 // pred_region
      _
    $region13: #{tpu_custom_call.1} parent=1 // pred_fallthru
      _
    // Predicated region
    $region14: #{tpu_custom_call.1} parent=1 // pred_check
      _
    $region15: #{tpu_custom_call.1} parent=1 // pred_check_branch
      %26 = sbr.rel (0) target = $region17
    $region16: #{tpu_custom_call.1} parent=1 // pred_region
      _
    $region17: #{tpu_custom_call.1} parent=1 // pred_fallthru
      _
    // Predicated region
    $region18: #{tpu_custom_call.1} parent=1 // pred_check
      _
    $region19: #{tpu_custom_call.1} parent=1 // pred_check_branch
      %28 = sbr.rel (0) target = $region21
    $region20: #{tpu_custom_call.1} parent=1 // pred_region
      _
    $region21: #{tpu_custom_call.1} parent=1 // pred_fallthru
      _
    // Predicated region
    $region22: #{tpu_custom_call.1} parent=1 // pred_check
      _
    $region23: #{tpu_custom_call.1} parent=1 // pred_check_branch
      %30 = sbr.rel (0) target = $region25
    $region24: #{tpu_custom_call.1} parent=1 // pred_region
      _
    $region25: #{tpu_custom_call.1} parent=1 // pred_fallthru
      _
    // Predicated region
    $region26: #{tpu_custom_call.1} parent=1 // pred_check
      _
    $region27: #{tpu_custom_call.1} parent=1 // pred_check_branch
      %32 = sbr.rel (0) target = $region29
    $region28: #{tpu_custom_call.1} parent=1 // pred_region
      _
    $region29: #{tpu_custom_call.1} parent=1 // pred_fallthru
      _
    // Predicated region
    $region30: #{tpu_custom_call.1} parent=1 // pred_check
      _
    $region31: #{tpu_custom_call.1} parent=1 // pred_check_branch
      %34 = sbr.rel (0) target = $region33
    $region32: #{tpu_custom_call.1} parent=1 // pred_region
      _
    $region33: #{tpu_custom_call.1} parent=1 // pred_fallthru
      _
    // Predicated region
    $region34: #{tpu_custom_call.1} parent=1 // pred_check
      _
    $region35: #{tpu_custom_call.1} parent=1 // pred_check_branch
      %36 = sbr.rel (0) target = $region37
    $region36: #{tpu_custom_call.1} parent=1 // pred_region
      _
    $region37: #{tpu_custom_call.1} parent=1 // pred_fallthru
      _
    // Predicated region
    $region38: #{tpu_custom_call.1} parent=1 // pred_check
      _
    $region39: #{tpu_custom_call.1} parent=1 // pred_check_branch
      %38 = sbr.rel (0) target = $region41
    $region40: #{tpu_custom_call.1} parent=1 // pred_region
      _
    $region41: #{tpu_custom_call.1} parent=1 // pred_fallthru
      _
    // Predicated region
    $region42: #{tpu_custom_call.1} parent=1 // pred_check
      _
    $region43: #{tpu_custom_call.1} parent=1 // pred_check_branch
      %40 = sbr.rel (0) target = $region45
    $region44: #{tpu_custom_call.1} parent=1 // pred_region
      _
    $region45: #{tpu_custom_call.1} parent=1 // pred_fallthru
      _
    // Predicated region
    $region46: #{tpu_custom_call.1} parent=1 // pred_check
      _
    $region47: #{tpu_custom_call.1} parent=1 // pred_check_branch
      %42 = sbr.rel (0) target = $region49
    $region48: #{tpu_custom_call.1} parent=1 // pred_region
      _
    $region49: #{tpu_custom_call.1} parent=1 // pred_fallthru
      _
    // Predicated region
    $region50: #{tpu_custom_call.1} parent=1 // pred_check
      _
    $region51: #{tpu_custom_call.1} parent=1 // pred_check_branch
      %44 = sbr.rel (0) target = $region53
    $region52: #{tpu_custom_call.1} parent=1 // pred_region
      _
    $region53: #{tpu_custom_call.1} parent=1 // pred_fallthru
      _
    %v46 = vld [vmem:[%s0] sm:$0xf]
    %v47 = vld [vmem:[%s0 + $0x4] sm:$0xf]
    %v48 = vld [vmem:[%s0 + $0x8] sm:$0xf]
    %v49 = vld [vmem:[%s0 + $0xc] sm:$0xf]
    %v50 = vld [vmem:[%s0 + $0x10] sm:$0xf]
    %v51 = vld [vmem:[%s0 + $0x14] sm:$0xf]
    %v52 = vld [vmem:[%s0 + $0x18] sm:$0xf]
    %v53 = vld [vmem:[%s0 + $0x1c] sm:$0xf]
    %v54 = vld [vmem:[%s0 + $0x20] sm:$0xf]
    %v55 = vld [vmem:[%s0 + $0x24] sm:$0xf]
    %v56 = vld [vmem:[%s0 + $0x28] sm:$0xf]
    %v57 = vld [vmem:[%s0 + $0x2c] sm:$0xf]
    %v58 = vld [vmem:[%s0 + $0x30] sm:$0xf]
    %v59 = vld [vmem:[%s0 + $0x34] sm:$0xf]
    %v60 = vld [vmem:[%s0 + $0x38] sm:$0xf]
    %v61 = vld [vmem:[%s0 + $0x3c] sm:$0xf]
    %v62 = vld [vmem:[%s0 + $0x40] sm:$0xf]
    %v63 = vld [vmem:[%s0 + $0x44] sm:$0xf]
    %v64 = vld [vmem:[%s0 + $0x48] sm:$0xf]
    %v65 = vld [vmem:[%s0 + $0x4c] sm:$0xf]
    %v66 = vld [vmem:[%s0 + $0x50] sm:$0xf]
    %v67 = vld [vmem:[%s0 + $0x54] sm:$0xf]
    %v68 = vld [vmem:[%s0 + $0x58] sm:$0xf]
    %v69 = vld [vmem:[%s0 + $0x5c] sm:$0xf]
    %v70 = vld [vmem:[%s0 + $0x60] sm:$0xf]
    %v71 = vld [vmem:[%s0 + $0x64] sm:$0xf]
    %v72 = vld [vmem:[%s0 + $0x68] sm:$0xf]
    %v73 = vld [vmem:[%s0 + $0x6c] sm:$0xf]
    %v74 = vld [vmem:[%s0 + $0x70] sm:$0xf]
    %v75 = vld [vmem:[%s0 + $0x74] sm:$0xf]
    %v76 = vld [vmem:[%s0 + $0x78] sm:$0xf]
    %v77 = vld [vmem:[%s0 + $0x7c] sm:$0xf]
    %v78 = vld [vmem:[%s0 + $0x80] sm:$0xf]
    %v79 = vld [vmem:[%s0 + $0x84] sm:$0xf]
    %v80 = vld [vmem:[%s0 + $0x88] sm:$0xf]
    %v81 = vld [vmem:[%s0 + $0x8c] sm:$0xf]
    %v82 = vld [vmem:[%s0 + $0x90] sm:$0xf]
    %v83 = vld [vmem:[%s0 + $0x94] sm:$0xf]
    %v84 = vld [vmem:[%s0 + $0x98] sm:$0xf]
    %v85 = vld [vmem:[%s0 + $0x9c] sm:$0xf]
    %v86 = vld [vmem:[%s0 + $0xa0] sm:$0xf]
    %v87 = vld [vmem:[%s0 + $0xa4] sm:$0xf]
    %v88 = vld [vmem:[%s0 + $0xa8] sm:$0xf]
    %v89 = vld [vmem:[%s0 + $0xac] sm:$0xf]
    %v90 = vld [vmem:[%s0 + $0xb0] sm:$0xf]
    %v91 = vld [vmem:[%s0 + $0xb4] sm:$0xf]
    %v92 = vld [vmem:[%s0 + $0xb8] sm:$0xf]
    %v93 = vld [vmem:[%s0 + $0xbc] sm:$0xf]
    %v94 = vld [vmem:[%s0 + $0xc0] sm:$0xf]
    %v95 = vld [vmem:[%s0 + $0xc4] sm:$0xf]
    %v96 = vld [vmem:[%s0 + $0xc8] sm:$0xf]
    %v97 = vld [vmem:[%s0 + $0xcc] sm:$0xf]
    %v98 = vld [vmem:[%s0 + $0xd0] sm:$0xf]
    %v99 = vld [vmem:[%s0 + $0xd4] sm:$0xf]
    %v100 = vld [vmem:[%s0 + $0xd8] sm:$0xf]
    %v101 = vld [vmem:[%s0 + $0xdc] sm:$0xf]
    %v102 = vld [vmem:[%s0 + $0xe0] sm:$0xf]
    %v103 = vld [vmem:[%s0 + $0xe4] sm:$0xf]
    %v104 = vld [vmem:[%s0 + $0xe8] sm:$0xf]
    %v105 = vld [vmem:[%s0 + $0xec] sm:$0xf]
    %v106 = vld [vmem:[%s0 + $0xf0] sm:$0xf]
    %v107 = vld [vmem:[%s0 + $0xf4] sm:$0xf]
    %v108 = vld [vmem:[%s0 + $0xf8] sm:$0xf]
    %v109 = vld [vmem:[%s0 + $0xfc] sm:$0xf]
    %v110 = vld [vmem:[%s0 + $0x100] sm:$0xf]
    %v111 = vld [vmem:[%s0 + $0x104] sm:$0xf]
    %v112 = vld [vmem:[%s0 + $0x108] sm:$0xf]
    %v113 = vld [vmem:[%s0 + $0x10c] sm:$0xf]
    %v114 = vld [vmem:[%s0 + $0x110] sm:$0xf]
    %v115 = vld [vmem:[%s0 + $0x114] sm:$0xf]
    %v116 = vld [vmem:[%s0 + $0x118] sm:$0xf]
    %v117 = vld [vmem:[%s0 + $0x11c] sm:$0xf]
    %v118 = vld [vmem:[%s0 + $0x120] sm:$0xf]
    %v119 = vld [vmem:[%s0 + $0x124] sm:$0xf]
    %v120 = vld [vmem:[%s0 + $0x128] sm:$0xf]
    %v121 = vld [vmem:[%s0 + $0x12c] sm:$0xf]
    %v122 = vld [vmem:[%s0 + $0x130] sm:$0xf]
    %v123 = vld [vmem:[%s0 + $0x134] sm:$0xf]
    %v124 = vld [vmem:[%s0 + $0x138] sm:$0xf]
    %v125 = vld [vmem:[%s0 + $0x13c] sm:$0xf]
    %v126 = vld [vmem:[%s0 + $0x140] sm:$0xf]
    %v127 = vld [vmem:[%s0 + $0x144] sm:$0xf]
    %v128 = vld [vmem:[%s0 + $0x148] sm:$0xf]
    %v129 = vld [vmem:[%s0 + $0x14c] sm:$0xf]
    %v130 = vld [vmem:[%s0 + $0x150] sm:$0xf]
    %v131 = vld [vmem:[%s0 + $0x154] sm:$0xf]
    %v132 = vld [vmem:[%s0 + $0x158] sm:$0xf]
    %v133 = vld [vmem:[%s0 + $0x15c] sm:$0xf]
    %v134 = vld [vmem:[%s0 + $0x160] sm:$0xf]
    %v135 = vld [vmem:[%s0 + $0x164] sm:$0xf]
    %v136 = vld [vmem:[%s0 + $0x168] sm:$0xf]
    %v137 = vld [vmem:[%s0 + $0x16c] sm:$0xf]
    %v138 = vld [vmem:[%s0 + $0x170] sm:$0xf]
    %v139 = vld [vmem:[%s0 + $0x174] sm:$0xf]
    %v140 = vld [vmem:[%s0 + $0x178] sm:$0xf]
    %v141 = vld [vmem:[%s0 + $0x17c] sm:$0xf]
    %v142 = vld [vmem:[%s0 + $0x180] sm:$0xf]
    %v143 = vld [vmem:[%s0 + $0x184] sm:$0xf]
    %v144 = vld [vmem:[%s0 + $0x188] sm:$0xf]
    %v145 = vld [vmem:[%s0 + $0x18c] sm:$0xf]
    %v146 = vld [vmem:[%s0 + $0x190] sm:$0xf]
    %v147 = vld [vmem:[%s0 + $0x194] sm:$0xf]
    %v148 = vld [vmem:[%s0 + $0x198] sm:$0xf]
    %v149 = vld [vmem:[%s0 + $0x19c] sm:$0xf]
    %v150 = vld [vmem:[%s0 + $0x1a0] sm:$0xf]
    %v151 = vld [vmem:[%s0 + $0x1a4] sm:$0xf]
    %v152 = vld [vmem:[%s0 + $0x1a8] sm:$0xf]
    %v153 = vld [vmem:[%s0 + $0x1ac] sm:$0xf]
    %v154 = vld [vmem:[%s0 + $0x1b0] sm:$0xf]
    %v155 = vld [vmem:[%s0 + $0x1b4] sm:$0xf]
    %v156 = vld [vmem:[%s0 + $0x1b8] sm:$0xf]
    %v157 = vld [vmem:[%s0 + $0x1bc] sm:$0xf]
    %v158 = vld [vmem:[%s0 + $0x1c0] sm:$0xf]
    %v159 = vld [vmem:[%s0 + $0x1c4] sm:$0xf]
    %v160 = vld [vmem:[%s0 + $0x1c8] sm:$0xf]
    %v161 = vld [vmem:[%s0 + $0x1cc] sm:$0xf]
    %v162 = vld [vmem:[%s0 + $0x1d0] sm:$0xf]
    %v163 = vld [vmem:[%s0 + $0x1d4] sm:$0xf]
    %v164 = vld [vmem:[%s0 + $0x1d8] sm:$0xf]
    %v165 = vld [vmem:[%s0 + $0x1dc] sm:$0xf]
    %v166 = vld [vmem:[%s0 + $0x1e0] sm:$0xf]
    %v167 = vld [vmem:[%s0 + $0x1e4] sm:$0xf]
    %v168 = vld [vmem:[%s0 + $0x1e8] sm:$0xf]
    %v169 = vld [vmem:[%s0 + $0x1ec] sm:$0xf]
    %v170 = vld [vmem:[%s0 + $0x1f0] sm:$0xf]
    %v171 = vld [vmem:[%s0 + $0x1f4] sm:$0xf]
    %v172 = vld [vmem:[%s0 + $0x1f8] sm:$0xf]
    %v173 = vld [vmem:[%s0 + $0x1fc] sm:$0xf]
    %v174 = vld [vmem:[%s0 + $0x200] sm:$0xf]
    %v175 = vld [vmem:[%s0 + $0x204] sm:$0xf]
    %v176 = vld [vmem:[%s0 + $0x208] sm:$0xf]
    %v177 = vld [vmem:[%s0 + $0x20c] sm:$0xf]
    %v178 = vld [vmem:[%s0 + $0x210] sm:$0xf]
    %v179 = vld [vmem:[%s0 + $0x214] sm:$0xf]
    %v180 = vld [vmem:[%s0 + $0x218] sm:$0xf]
    %v181 = vld [vmem:[%s0 + $0x21c] sm:$0xf]
    %v182 = vld [vmem:[%s0 + $0x220] sm:$0xf]
    %v183 = vld [vmem:[%s0 + $0x224] sm:$0xf]
    %v184 = vld [vmem:[%s0 + $0x228] sm:$0xf]
    %v185 = vld [vmem:[%s0 + $0x22c] sm:$0xf]
    %v186 = vld [vmem:[%s0 + $0x230] sm:$0xf]
    %v187 = vld [vmem:[%s0 + $0x234] sm:$0xf]
    %v188 = vld [vmem:[%s0 + $0x238] sm:$0xf]
    %v189 = vld [vmem:[%s0 + $0x23c] sm:$0xf]
    %v190 = vld [vmem:[%s0 + $0x240] sm:$0xf]
    %v191 = vld [vmem:[%s0 + $0x244] sm:$0xf]
    %v192 = vld [vmem:[%s0 + $0x248] sm:$0xf]
    %v193 = vld [vmem:[%s0 + $0x24c] sm:$0xf]
    %v194 = vld [vmem:[%s0 + $0x250] sm:$0xf]
    %v195 = vld [vmem:[%s0 + $0x254] sm:$0xf]
    %v196 = vld [vmem:[%s0 + $0x258] sm:$0xf]
    %v197 = vld [vmem:[%s0 + $0x25c] sm:$0xf]
    %v198 = vld [vmem:[%s0 + $0x260] sm:$0xf]
    %v199 = vld [vmem:[%s0 + $0x264] sm:$0xf]
    %v200 = vld [vmem:[%s0 + $0x268] sm:$0xf]
    %v201 = vld [vmem:[%s0 + $0x26c] sm:$0xf]
    %v202 = vld [vmem:[%s0 + $0x270] sm:$0xf]
    %v203 = vld [vmem:[%s0 + $0x274] sm:$0xf]
    %v204 = vld [vmem:[%s0 + $0x278] sm:$0xf]
    %v205 = vld [vmem:[%s0 + $0x27c] sm:$0xf]
    %v206 = vld [vmem:[%s0 + $0x280] sm:$0xf]
    %v207 = vld [vmem:[%s0 + $0x284] sm:$0xf]
    %v208 = vld [vmem:[%s0 + $0x288] sm:$0xf]
    %v209 = vld [vmem:[%s0 + $0x28c] sm:$0xf]
    %v210 = vld [vmem:[%s0 + $0x290] sm:$0xf]
    %v211 = vld [vmem:[%s0 + $0x294] sm:$0xf]
    %v212 = vld [vmem:[%s0 + $0x298] sm:$0xf]
    %v213 = vld [vmem:[%s0 + $0x29c] sm:$0xf]
    %v214 = vld [vmem:[%s0 + $0x2a0] sm:$0xf]
    %v215 = vld [vmem:[%s0 + $0x2a4] sm:$0xf]
    %v216 = vld [vmem:[%s0 + $0x2a8] sm:$0xf]
    %v217 = vld [vmem:[%s0 + $0x2ac] sm:$0xf]
    %v218 = vld [vmem:[%s0 + $0x2b0] sm:$0xf]
    %v219 = vld [vmem:[%s0 + $0x2b4] sm:$0xf]
    %v220 = vld [vmem:[%s0 + $0x2b8] sm:$0xf]
    %v221 = vld [vmem:[%s0 + $0x2bc] sm:$0xf]
    %v222 = vld [vmem:[%s0 + $0x2c0] sm:$0xf]
    %v223 = vld [vmem:[%s0 + $0x2c4] sm:$0xf]
    %v224 = vld [vmem:[%s0 + $0x2c8] sm:$0xf]
    %v225 = vld [vmem:[%s0 + $0x2cc] sm:$0xf]
    %v226 = vld [vmem:[%s0 + $0x2d0] sm:$0xf]
    %v227 = vld [vmem:[%s0 + $0x2d4] sm:$0xf]
    %v228 = vld [vmem:[%s0 + $0x2d8] sm:$0xf]
    %v229 = vld [vmem:[%s0 + $0x2dc] sm:$0xf]
    %v230 = vld [vmem:[%s0 + $0x2e0] sm:$0xf]
    %v231 = vld [vmem:[%s0 + $0x2e4] sm:$0xf]
    %v232 = vld [vmem:[%s0 + $0x2e8] sm:$0xf]
    %v233 = vld [vmem:[%s0 + $0x2ec] sm:$0xf]
    %v234 = vld [vmem:[%s0 + $0x2f0] sm:$0xf]
    %v235 = vld [vmem:[%s0 + $0x2f4] sm:$0xf]
    %v236 = vld [vmem:[%s0 + $0x2f8] sm:$0xf]
    %v237 = vld [vmem:[%s0 + $0x2fc] sm:$0xf]
    %v238 = vld [vmem:[%s0 + $0x300] sm:$0xf]
    %v239 = vld [vmem:[%s0 + $0x304] sm:$0xf]
    %v240 = vld [vmem:[%s0 + $0x308] sm:$0xf]
    %v241 = vld [vmem:[%s0 + $0x30c] sm:$0xf]
    %v242 = vld [vmem:[%s0 + $0x310] sm:$0xf]
    %v243 = vld [vmem:[%s0 + $0x314] sm:$0xf]
    %v244 = vld [vmem:[%s0 + $0x318] sm:$0xf]
    %v245 = vld [vmem:[%s0 + $0x31c] sm:$0xf]
    %v246 = vld [vmem:[%s0 + $0x320] sm:$0xf]
    %v247 = vld [vmem:[%s0 + $0x324] sm:$0xf]
    %v248 = vld [vmem:[%s0 + $0x328] sm:$0xf]
    %v249 = vld [vmem:[%s0 + $0x32c] sm:$0xf]
    %v250 = vld [vmem:[%s0 + $0x330] sm:$0xf]
    %v251 = vld [vmem:[%s0 + $0x334] sm:$0xf]
    %v252 = vld [vmem:[%s0 + $0x338] sm:$0xf]
    %v253 = vld [vmem:[%s0 + $0x33c] sm:$0xf]
    %v254 = vld [vmem:[%s0 + $0x340] sm:$0xf]
    %v255 = vld [vmem:[%s0 + $0x344] sm:$0xf]
    %v256 = vld [vmem:[%s0 + $0x348] sm:$0xf]
    %v257 = vld [vmem:[%s0 + $0x34c] sm:$0xf]
    %v258 = vld [vmem:[%s0 + $0x350] sm:$0xf]
    %v259 = vld [vmem:[%s0 + $0x354] sm:$0xf]
    %v260 = vld [vmem:[%s0 + $0x358] sm:$0xf]
    %v261 = vld [vmem:[%s0 + $0x35c] sm:$0xf]
    %v262 = vld [vmem:[%s0 + $0x360] sm:$0xf]
    %v263 = vld [vmem:[%s0 + $0x364] sm:$0xf]
    %v264 = vld [vmem:[%s0 + $0x368] sm:$0xf]
    %v265 = vld [vmem:[%s0 + $0x36c] sm:$0xf]
    %v266 = vld [vmem:[%s0 + $0x370] sm:$0xf]
    %v267 = vld [vmem:[%s0 + $0x374] sm:$0xf]
    %v268 = vld [vmem:[%s0 + $0x378] sm:$0xf]
    %v269 = vld [vmem:[%s0 + $0x37c] sm:$0xf]
    %v270 = vld [vmem:[%s0 + $0x380] sm:$0xf]
    %v271 = vld [vmem:[%s0 + $0x384] sm:$0xf]
    %v272 = vld [vmem:[%s0 + $0x388] sm:$0xf]
    %v273 = vld [vmem:[%s0 + $0x38c] sm:$0xf]
    %v274 = vld [vmem:[%s0 + $0x390] sm:$0xf]
    %v275 = vld [vmem:[%s0 + $0x394] sm:$0xf]
    %v276 = vld [vmem:[%s0 + $0x398] sm:$0xf]
    %v277 = vld [vmem:[%s0 + $0x39c] sm:$0xf]
    %v278 = vld [vmem:[%s0 + $0x3a0] sm:$0xf]
    %v279 = vld [vmem:[%s0 + $0x3a4] sm:$0xf]
    %v280 = vld [vmem:[%s0 + $0x3a8] sm:$0xf]
    %v281 = vld [vmem:[%s0 + $0x3ac] sm:$0xf]
    %v282 = vld [vmem:[%s0 + $0x3b0] sm:$0xf]
    %v283 = vld [vmem:[%s0 + $0x3b4] sm:$0xf]
    %v284 = vld [vmem:[%s0 + $0x3b8] sm:$0xf]
    %v285 = vld [vmem:[%s0 + $0x3bc] sm:$0xf]
    %v286 = vld [vmem:[%s0 + $0x3c0] sm:$0xf]
    %v287 = vld [vmem:[%s0 + $0x3c4] sm:$0xf]
    %v288 = vld [vmem:[%s0 + $0x3c8] sm:$0xf]
    %v289 = vld [vmem:[%s0 + $0x3cc] sm:$0xf]
    %v290 = vld [vmem:[%s0 + $0x3d0] sm:$0xf]
    %v291 = vld [vmem:[%s0 + $0x3d4] sm:$0xf]
    %v292 = vld [vmem:[%s0 + $0x3d8] sm:$0xf]
    %v293 = vld [vmem:[%s0 + $0x3dc] sm:$0xf]
    %v294 = vld [vmem:[%s0 + $0x3e0] sm:$0xf]
    %v295 = vld [vmem:[%s0 + $0x3e4] sm:$0xf]
    %v296 = vld [vmem:[%s0 + $0x3e8] sm:$0xf]
    %v297 = vld [vmem:[%s0 + $0x3ec] sm:$0xf]
    %v298 = vld [vmem:[%s0 + $0x3f0] sm:$0xf]
    %v299 = vld [vmem:[%s0 + $0x3f4] sm:$0xf]
    %v300 = vld [vmem:[%s0 + $0x3f8] sm:$0xf]
    %v301 = vld [vmem:[%s0 + $0x3fc] sm:$0xf]
    %v302 = vld [vmem:[%s1] sm:$0xf]
    %v303 = vld [vmem:[%s2] sm:$0x1]
    %v305 = vperm.slane %v303, 0
    %v563 = vunpack.c.l.b16 %v46
    %v564 = vunpack.c.l.b16 %v47
    %v565 = vunpack.c.l.b16 %v48
    %v566 = vunpack.c.l.b16 %v49
    %v567 = vunpack.c.l.b16 %v50
    %v568 = vunpack.c.l.b16 %v51
    %v569 = vunpack.c.l.b16 %v52
    %v570 = vunpack.c.l.b16 %v53
    %v571 = vunpack.c.l.b16 %v54
    %v572 = vunpack.c.l.b16 %v55
    %v573 = vunpack.c.l.b16 %v56
    %v574 = vunpack.c.l.b16 %v57
    %v575 = vunpack.c.l.b16 %v58
    %v576 = vunpack.c.l.b16 %v59
    %v577 = vunpack.c.l.b16 %v60
    %v578 = vunpack.c.l.b16 %v61
    %v579 = vunpack.c.l.b16 %v62
    %v580 = vunpack.c.l.b16 %v63
    %v581 = vunpack.c.l.b16 %v64
    %v582 = vunpack.c.l.b16 %v65
    %v583 = vunpack.c.l.b16 %v66
    %v584 = vunpack.c.l.b16 %v67
    %v585 = vunpack.c.l.b16 %v68
    %v586 = vunpack.c.l.b16 %v69
    %v587 = vunpack.c.l.b16 %v70
    %v588 = vunpack.c.l.b16 %v71
    %v589 = vunpack.c.l.b16 %v72
    %v590 = vunpack.c.l.b16 %v73
    %v591 = vunpack.c.l.b16 %v74
    %v592 = vunpack.c.l.b16 %v75
    %v593 = vunpack.c.l.b16 %v76
    %v594 = vunpack.c.l.b16 %v77
    %v595 = vunpack.c.l.b16 %v78
    %v596 = vunpack.c.l.b16 %v79
    %v597 = vunpack.c.l.b16 %v80
    %v598 = vunpack.c.l.b16 %v81
    %v599 = vunpack.c.l.b16 %v82
    %v600 = vunpack.c.l.b16 %v83
    %v601 = vunpack.c.l.b16 %v84
    %v602 = vunpack.c.l.b16 %v85
    %v603 = vunpack.c.l.b16 %v86
    %v604 = vunpack.c.l.b16 %v87
    %v605 = vunpack.c.l.b16 %v88
    %v606 = vunpack.c.l.b16 %v89
    %v607 = vunpack.c.l.b16 %v90
    %v608 = vunpack.c.l.b16 %v91
    %v609 = vunpack.c.l.b16 %v92
    %v610 = vunpack.c.l.b16 %v93
    %v611 = vunpack.c.l.b16 %v94
    %v612 = vunpack.c.l.b16 %v95
    %v613 = vunpack.c.l.b16 %v96
    %v614 = vunpack.c.l.b16 %v97
    %v615 = vunpack.c.l.b16 %v98
    %v616 = vunpack.c.l.b16 %v99
    %v617 = vunpack.c.l.b16 %v100
    %v618 = vunpack.c.l.b16 %v101
    %v619 = vunpack.c.l.b16 %v102
    %v620 = vunpack.c.l.b16 %v103
    %v621 = vunpack.c.l.b16 %v104
    %v622 = vunpack.c.l.b16 %v105
    %v623 = vunpack.c.l.b16 %v106
    %v624 = vunpack.c.l.b16 %v107
    %v625 = vunpack.c.l.b16 %v108
    %v626 = vunpack.c.l.b16 %v109
    %v627 = vunpack.c.l.b16 %v110
    %v628 = vunpack.c.l.b16 %v111
    %v629 = vunpack.c.l.b16 %v112
    %v630 = vunpack.c.l.b16 %v113
    %v631 = vunpack.c.l.b16 %v114
    %v632 = vunpack.c.l.b16 %v115
    %v633 = vunpack.c.l.b16 %v116
    %v634 = vunpack.c.l.b16 %v117
    %v635 = vunpack.c.l.b16 %v118
    %v636 = vunpack.c.l.b16 %v119
    %v637 = vunpack.c.l.b16 %v120
    %v638 = vunpack.c.l.b16 %v121
    %v639 = vunpack.c.l.b16 %v122
    %v640 = vunpack.c.l.b16 %v123
    %v641 = vunpack.c.l.b16 %v124
    %v642 = vunpack.c.l.b16 %v125
    %v643 = vunpack.c.l.b16 %v126
    %v644 = vunpack.c.l.b16 %v127
    %v645 = vunpack.c.l.b16 %v128
    %v646 = vunpack.c.l.b16 %v129
    %v647 = vunpack.c.l.b16 %v130
    %v648 = vunpack.c.l.b16 %v131
    %v649 = vunpack.c.l.b16 %v132
    %v650 = vunpack.c.l.b16 %v133
    %v651 = vunpack.c.l.b16 %v134
    %v652 = vunpack.c.l.b16 %v135
    %v653 = vunpack.c.l.b16 %v136
    %v654 = vunpack.c.l.b16 %v137
    %v655 = vunpack.c.l.b16 %v138
    %v656 = vunpack.c.l.b16 %v139
    %v657 = vunpack.c.l.b16 %v140
    %v658 = vunpack.c.l.b16 %v141
    %v659 = vunpack.c.l.b16 %v142
    %v660 = vunpack.c.l.b16 %v143
    %v661 = vunpack.c.l.b16 %v144
    %v662 = vunpack.c.l.b16 %v145
    %v663 = vunpack.c.l.b16 %v146
    %v664 = vunpack.c.l.b16 %v147
    %v665 = vunpack.c.l.b16 %v148
    %v666 = vunpack.c.l.b16 %v149
    %v667 = vunpack.c.l.b16 %v150
    %v668 = vunpack.c.l.b16 %v151
    %v669 = vunpack.c.l.b16 %v152
    %v670 = vunpack.c.l.b16 %v153
    %v671 = vunpack.c.l.b16 %v154
    %v672 = vunpack.c.l.b16 %v155
    %v673 = vunpack.c.l.b16 %v156
    %v674 = vunpack.c.l.b16 %v157
    %v675 = vunpack.c.l.b16 %v158
    %v676 = vunpack.c.l.b16 %v159
    %v677 = vunpack.c.l.b16 %v160
    %v678 = vunpack.c.l.b16 %v161
    %v679 = vunpack.c.l.b16 %v162
    %v680 = vunpack.c.l.b16 %v163
    %v681 = vunpack.c.l.b16 %v164
    %v682 = vunpack.c.l.b16 %v165
    %v683 = vunpack.c.l.b16 %v166
    %v684 = vunpack.c.l.b16 %v167
    %v685 = vunpack.c.l.b16 %v168
    %v686 = vunpack.c.l.b16 %v169
    %v687 = vunpack.c.l.b16 %v170
    %v688 = vunpack.c.l.b16 %v171
    %v689 = vunpack.c.l.b16 %v172
    %v690 = vunpack.c.l.b16 %v173
    %v691 = vunpack.c.l.b16 %v174
    %v692 = vunpack.c.l.b16 %v175
    %v693 = vunpack.c.l.b16 %v176
    %v694 = vunpack.c.l.b16 %v177
    %v695 = vunpack.c.l.b16 %v178
    %v696 = vunpack.c.l.b16 %v179
    %v697 = vunpack.c.l.b16 %v180
    %v698 = vunpack.c.l.b16 %v181
    %v699 = vunpack.c.l.b16 %v182
    %v700 = vunpack.c.l.b16 %v183
    %v701 = vunpack.c.l.b16 %v184
    %v702 = vunpack.c.l.b16 %v185
    %v703 = vunpack.c.l.b16 %v186
    %v704 = vunpack.c.l.b16 %v187
    %v705 = vunpack.c.l.b16 %v188
    %v706 = vunpack.c.l.b16 %v189
    %v707 = vunpack.c.l.b16 %v190
    %v708 = vunpack.c.l.b16 %v191
    %v709 = vunpack.c.l.b16 %v192
    %v710 = vunpack.c.l.b16 %v193
    %v711 = vunpack.c.l.b16 %v194
    %v712 = vunpack.c.l.b16 %v195
    %v713 = vunpack.c.l.b16 %v196
    %v714 = vunpack.c.l.b16 %v197
    %v715 = vunpack.c.l.b16 %v198
    %v716 = vunpack.c.l.b16 %v199
    %v717 = vunpack.c.l.b16 %v200
    %v718 = vunpack.c.l.b16 %v201
    %v719 = vunpack.c.l.b16 %v202
    %v720 = vunpack.c.l.b16 %v203
    %v721 = vunpack.c.l.b16 %v204
    %v722 = vunpack.c.l.b16 %v205
    %v723 = vunpack.c.l.b16 %v206
    %v724 = vunpack.c.l.b16 %v207
    %v725 = vunpack.c.l.b16 %v208
    %v726 = vunpack.c.l.b16 %v209
    %v727 = vunpack.c.l.b16 %v210
    %v728 = vunpack.c.l.b16 %v211
    %v729 = vunpack.c.l.b16 %v212
    %v730 = vunpack.c.l.b16 %v213
    %v731 = vunpack.c.l.b16 %v214
    %v732 = vunpack.c.l.b16 %v215
    %v733 = vunpack.c.l.b16 %v216
    %v734 = vunpack.c.l.b16 %v217
    %v735 = vunpack.c.l.b16 %v218
    %v736 = vunpack.c.l.b16 %v219
    %v737 = vunpack.c.l.b16 %v220
    %v738 = vunpack.c.l.b16 %v221
    %v739 = vunpack.c.l.b16 %v222
    %v740 = vunpack.c.l.b16 %v223
    %v741 = vunpack.c.l.b16 %v224
    %v742 = vunpack.c.l.b16 %v225
    %v743 = vunpack.c.l.b16 %v226
    %v744 = vunpack.c.l.b16 %v227
    %v745 = vunpack.c.l.b16 %v228
    %v746 = vunpack.c.l.b16 %v229
    %v747 = vunpack.c.l.b16 %v230
    %v748 = vunpack.c.l.b16 %v231
    %v749 = vunpack.c.l.b16 %v232
    %v750 = vunpack.c.l.b16 %v233
    %v751 = vunpack.c.l.b16 %v234
    %v752 = vunpack.c.l.b16 %v235
    %v753 = vunpack.c.l.b16 %v236
    %v754 = vunpack.c.l.b16 %v237
    %v755 = vunpack.c.l.b16 %v238
    %v756 = vunpack.c.l.b16 %v239
    %v757 = vunpack.c.l.b16 %v240
    %v758 = vunpack.c.l.b16 %v241
    %v759 = vunpack.c.l.b16 %v242
    %v760 = vunpack.c.l.b16 %v243
    %v761 = vunpack.c.l.b16 %v244
    %v762 = vunpack.c.l.b16 %v245
    %v763 = vunpack.c.l.b16 %v246
    %v764 = vunpack.c.l.b16 %v247
    %v765 = vunpack.c.l.b16 %v248
    %v766 = vunpack.c.l.b16 %v249
    %v767 = vunpack.c.l.b16 %v250
    %v768 = vunpack.c.l.b16 %v251
    %v769 = vunpack.c.l.b16 %v252
    %v770 = vunpack.c.l.b16 %v253
    %v771 = vunpack.c.l.b16 %v254
    %v772 = vunpack.c.l.b16 %v255
    %v773 = vunpack.c.l.b16 %v256
    %v774 = vunpack.c.l.b16 %v257
    %v775 = vunpack.c.l.b16 %v258
    %v776 = vunpack.c.l.b16 %v259
    %v777 = vunpack.c.l.b16 %v260
    %v778 = vunpack.c.l.b16 %v261
    %v779 = vunpack.c.l.b16 %v262
    %v780 = vunpack.c.l.b16 %v263
    %v781 = vunpack.c.l.b16 %v264
    %v782 = vunpack.c.l.b16 %v265
    %v783 = vunpack.c.l.b16 %v266
    %v784 = vunpack.c.l.b16 %v267
    %v785 = vunpack.c.l.b16 %v268
    %v786 = vunpack.c.l.b16 %v269
    %v787 = vunpack.c.l.b16 %v270
    %v788 = vunpack.c.l.b16 %v271
    %v789 = vunpack.c.l.b16 %v272
    %v790 = vunpack.c.l.b16 %v273
    %v791 = vunpack.c.l.b16 %v274
    %v792 = vunpack.c.l.b16 %v275
    %v793 = vunpack.c.l.b16 %v276
    %v794 = vunpack.c.l.b16 %v277
    %v795 = vunpack.c.l.b16 %v278
    %v796 = vunpack.c.l.b16 %v279
    %v797 = vunpack.c.l.b16 %v280
    %v798 = vunpack.c.l.b16 %v281
    %v799 = vunpack.c.l.b16 %v282
    %v800 = vunpack.c.l.b16 %v283
    %v801 = vunpack.c.l.b16 %v284
    %v802 = vunpack.c.l.b16 %v285
    %v803 = vunpack.c.l.b16 %v286
    %v804 = vunpack.c.l.b16 %v287
    %v805 = vunpack.c.l.b16 %v288
    %v806 = vunpack.c.l.b16 %v289
    %v807 = vunpack.c.l.b16 %v290
    %v808 = vunpack.c.l.b16 %v291
    %v809 = vunpack.c.l.b16 %v292
    %v810 = vunpack.c.l.b16 %v293
    %v811 = vunpack.c.l.b16 %v294
    %v812 = vunpack.c.l.b16 %v295
    %v813 = vunpack.c.l.b16 %v296
    %v814 = vunpack.c.l.b16 %v297
    %v815 = vunpack.c.l.b16 %v298
    %v816 = vunpack.c.l.b16 %v299
    %v817 = vunpack.c.l.b16 %v300
    %v818 = vunpack.c.l.b16 %v301
    %v819 = vpack.c.b16 %v564, %v563
    %v820 = vpack.c.b16 %v566, %v565
    %v821 = vpack.c.b16 %v568, %v567
    %v822 = vpack.c.b16 %v570, %v569
    %v823 = vpack.c.b16 %v572, %v571
    %v824 = vpack.c.b16 %v574, %v573
    %v825 = vpack.c.b16 %v576, %v575
    %v826 = vpack.c.b16 %v578, %v577
    %v827 = vpack.c.b16 %v580, %v579
    %v828 = vpack.c.b16 %v582, %v581
    %v829 = vpack.c.b16 %v584, %v583
    %v830 = vpack.c.b16 %v586, %v585
    %v831 = vpack.c.b16 %v588, %v587
    %v832 = vpack.c.b16 %v590, %v589
    %v833 = vpack.c.b16 %v592, %v591
    %v834 = vpack.c.b16 %v594, %v593
    %v835 = vpack.c.b16 %v596, %v595
    %v836 = vpack.c.b16 %v598, %v597
    %v837 = vpack.c.b16 %v600, %v599
    %v838 = vpack.c.b16 %v602, %v601
    %v839 = vpack.c.b16 %v604, %v603
    %v840 = vpack.c.b16 %v606, %v605
    %v841 = vpack.c.b16 %v608, %v607
    %v842 = vpack.c.b16 %v610, %v609
    %v843 = vpack.c.b16 %v612, %v611
    %v844 = vpack.c.b16 %v614, %v613
    %v845 = vpack.c.b16 %v616, %v615
    %v846 = vpack.c.b16 %v618, %v617
    %v847 = vpack.c.b16 %v620, %v619
    %v848 = vpack.c.b16 %v622, %v621
    %v849 = vpack.c.b16 %v624, %v623
    %v850 = vpack.c.b16 %v626, %v625
    %v851 = vpack.c.b16 %v628, %v627
    %v852 = vpack.c.b16 %v630, %v629
    %v853 = vpack.c.b16 %v632, %v631
    %v854 = vpack.c.b16 %v634, %v633
    %v855 = vpack.c.b16 %v636, %v635
    %v856 = vpack.c.b16 %v638, %v637
    %v857 = vpack.c.b16 %v640, %v639
    %v858 = vpack.c.b16 %v642, %v641
    %v859 = vpack.c.b16 %v644, %v643
    %v860 = vpack.c.b16 %v646, %v645
    %v861 = vpack.c.b16 %v648, %v647
    %v862 = vpack.c.b16 %v650, %v649
    %v863 = vpack.c.b16 %v652, %v651
    %v864 = vpack.c.b16 %v654, %v653
    %v865 = vpack.c.b16 %v656, %v655
    %v866 = vpack.c.b16 %v658, %v657
    %v867 = vpack.c.b16 %v660, %v659
    %v868 = vpack.c.b16 %v662, %v661
    %v869 = vpack.c.b16 %v664, %v663
    %v870 = vpack.c.b16 %v666, %v665
    %v871 = vpack.c.b16 %v668, %v667
    %v872 = vpack.c.b16 %v670, %v669
    %v873 = vpack.c.b16 %v672, %v671
    %v874 = vpack.c.b16 %v674, %v673
    %v875 = vpack.c.b16 %v676, %v675
    %v876 = vpack.c.b16 %v678, %v677
    %v877 = vpack.c.b16 %v680, %v679
    %v878 = vpack.c.b16 %v682, %v681
    %v879 = vpack.c.b16 %v684, %v683
    %v880 = vpack.c.b16 %v686, %v685
    %v881 = vpack.c.b16 %v688, %v687
    %v882 = vpack.c.b16 %v690, %v689
    %v883 = vpack.c.b16 %v692, %v691
    %v884 = vpack.c.b16 %v694, %v693
    %v885 = vpack.c.b16 %v696, %v695
    %v886 = vpack.c.b16 %v698, %v697
    %v887 = vpack.c.b16 %v700, %v699
    %v888 = vpack.c.b16 %v702, %v701
    %v889 = vpack.c.b16 %v704, %v703
    %v890 = vpack.c.b16 %v706, %v705
    %v891 = vpack.c.b16 %v708, %v707
    %v892 = vpack.c.b16 %v710, %v709
    %v893 = vpack.c.b16 %v712, %v711
    %v894 = vpack.c.b16 %v714, %v713
    %v895 = vpack.c.b16 %v716, %v715
    %v896 = vpack.c.b16 %v718, %v717
    %v897 = vpack.c.b16 %v720, %v719
    %v898 = vpack.c.b16 %v722, %v721
    %v899 = vpack.c.b16 %v724, %v723
    %v900 = vpack.c.b16 %v726, %v725
    %v901 = vpack.c.b16 %v728, %v727
    %v902 = vpack.c.b16 %v730, %v729
    %v903 = vpack.c.b16 %v732, %v731
    %v904 = vpack.c.b16 %v734, %v733
    %v905 = vpack.c.b16 %v736, %v735
    %v906 = vpack.c.b16 %v738, %v737
    %v907 = vpack.c.b16 %v740, %v739
    %v908 = vpack.c.b16 %v742, %v741
    %v909 = vpack.c.b16 %v744, %v743
    %v910 = vpack.c.b16 %v746, %v745
    %v911 = vpack.c.b16 %v748, %v747
    %v912 = vpack.c.b16 %v750, %v749
    %v913 = vpack.c.b16 %v752, %v751
    %v914 = vpack.c.b16 %v754, %v753
    %v915 = vpack.c.b16 %v756, %v755
    %v916 = vpack.c.b16 %v758, %v757
    %v917 = vpack.c.b16 %v760, %v759
    %v918 = vpack.c.b16 %v762, %v761
    %v919 = vpack.c.b16 %v764, %v763
    %v920 = vpack.c.b16 %v766, %v765
    %v921 = vpack.c.b16 %v768, %v767
    %v922 = vpack.c.b16 %v770, %v769
    %v923 = vpack.c.b16 %v772, %v771
    %v924 = vpack.c.b16 %v774, %v773
    %v925 = vpack.c.b16 %v776, %v775
    %v926 = vpack.c.b16 %v778, %v777
    %v927 = vpack.c.b16 %v780, %v779
    %v928 = vpack.c.b16 %v782, %v781
    %v929 = vpack.c.b16 %v784, %v783
    %v930 = vpack.c.b16 %v786, %v785
    %v931 = vpack.c.b16 %v788, %v787
    %v932 = vpack.c.b16 %v790, %v789
    %v933 = vpack.c.b16 %v792, %v791
    %v934 = vpack.c.b16 %v794, %v793
    %v935 = vpack.c.b16 %v796, %v795
    %v936 = vpack.c.b16 %v798, %v797
    %v937 = vpack.c.b16 %v800, %v799
    %v938 = vpack.c.b16 %v802, %v801
    %v939 = vpack.c.b16 %v804, %v803
    %v940 = vpack.c.b16 %v806, %v805
    %v941 = vpack.c.b16 %v808, %v807
    %v942 = vpack.c.b16 %v810, %v809
    %v943 = vpack.c.b16 %v812, %v811
    %v944 = vpack.c.b16 %v814, %v813
    %v945 = vpack.c.b16 %v816, %v815
    %v946 = vpack.c.b16 %v818, %v817
    %vm947 = vcmask 64512
    %v949 = vsel %vm947, %v819, 0
    %v952 = vsel %vm947, %v820, 0
    %v955 = vsel %vm947, %v821, 0
    %v958 = vsel %vm947, %v822, 0
    %v961 = vsel %vm947, %v823, 0
    %v964 = vsel %vm947, %v824, 0
    %v967 = vsel %vm947, %v825, 0
    %v970 = vsel %vm947, %v826, 0
    %v973 = vsel %vm947, %v827, 0
    %v976 = vsel %vm947, %v828, 0
    %v979 = vsel %vm947, %v829, 0
    %v982 = vsel %vm947, %v830, 0
    %v985 = vsel %vm947, %v831, 0
    %v988 = vsel %vm947, %v832, 0
    %v991 = vsel %vm947, %v833, 0
    %v994 = vsel %vm947, %v834, 0
    %v997 = vsel %vm947, %v835, 0
    %v1000 = vsel %vm947, %v836, 0
    %v1003 = vsel %vm947, %v837, 0
    %v1006 = vsel %vm947, %v838, 0
    %v1009 = vsel %vm947, %v839, 0
    %v1012 = vsel %vm947, %v840, 0
    %v1015 = vsel %vm947, %v841, 0
    %v1018 = vsel %vm947, %v842, 0
    %v1021 = vsel %vm947, %v843, 0
    %v1024 = vsel %vm947, %v844, 0
    %v1027 = vsel %vm947, %v845, 0
    %v1030 = vsel %vm947, %v846, 0
    %v1033 = vsel %vm947, %v847, 0
    %v1036 = vsel %vm947, %v848, 0
    %v1039 = vsel %vm947, %v849, 0
    %v1042 = vsel %vm947, %v850, 0
    %v1045 = vsel %vm947, %v851, 0
    %v1048 = vsel %vm947, %v852, 0
    %v1051 = vsel %vm947, %v853, 0
    %v1054 = vsel %vm947, %v854, 0
    %v1057 = vsel %vm947, %v855, 0
    %v1060 = vsel %vm947, %v856, 0
    %v1063 = vsel %vm947, %v857, 0
    %v1066 = vsel %vm947, %v858, 0
    %v1069 = vsel %vm947, %v859, 0
    %v1072 = vsel %vm947, %v860, 0
    %v1075 = vsel %vm947, %v861, 0
    %v1078 = vsel %vm947, %v862, 0
    %v1081 = vsel %vm947, %v863, 0
    %v1084 = vsel %vm947, %v864, 0
    %v1087 = vsel %vm947, %v865, 0
    %v1090 = vsel %vm947, %v866, 0
    %v1093 = vsel %vm947, %v867, 0
    %v1096 = vsel %vm947, %v868, 0
    %v1099 = vsel %vm947, %v869, 0
    %v1102 = vsel %vm947, %v870, 0
    %v1105 = vsel %vm947, %v871, 0
    %v1108 = vsel %vm947, %v872, 0
    %v1111 = vsel %vm947, %v873, 0
    %v1114 = vsel %vm947, %v874, 0
    %v1117 = vsel %vm947, %v875, 0
    %v1120 = vsel %vm947, %v876, 0
    %v1123 = vsel %vm947, %v877, 0
    %v1126 = vsel %vm947, %v878, 0
    %v1129 = vsel %vm947, %v879, 0
    %v1132 = vsel %vm947, %v880, 0
    %v1135 = vsel %vm947, %v881, 0
    %v1138 = vsel %vm947, %v882, 0
    %v1141 = vsel %vm947, %v883, 0
    %v1144 = vsel %vm947, %v884, 0
    %v1147 = vsel %vm947, %v885, 0
    %v1150 = vsel %vm947, %v886, 0
    %v1153 = vsel %vm947, %v887, 0
    %v1156 = vsel %vm947, %v888, 0
    %v1159 = vsel %vm947, %v889, 0
    %v1162 = vsel %vm947, %v890, 0
    %v1165 = vsel %vm947, %v891, 0
    %v1168 = vsel %vm947, %v892, 0
    %v1171 = vsel %vm947, %v893, 0
    %v1174 = vsel %vm947, %v894, 0
    %v1177 = vsel %vm947, %v895, 0
    %v1180 = vsel %vm947, %v896, 0
    %v1183 = vsel %vm947, %v897, 0
    %v1186 = vsel %vm947, %v898, 0
    %v1189 = vsel %vm947, %v899, 0
    %v1192 = vsel %vm947, %v900, 0
    %v1195 = vsel %vm947, %v901, 0
    %v1198 = vsel %vm947, %v902, 0
    %v1201 = vsel %vm947, %v903, 0
    %v1204 = vsel %vm947, %v904, 0
    %v1207 = vsel %vm947, %v905, 0
    %v1210 = vsel %vm947, %v906, 0
    %v1213 = vsel %vm947, %v907, 0
    %v1216 = vsel %vm947, %v908, 0
    %v1219 = vsel %vm947, %v909, 0
    %v1222 = vsel %vm947, %v910, 0
    %v1225 = vsel %vm947, %v911, 0
    %v1228 = vsel %vm947, %v912, 0
    %v1231 = vsel %vm947, %v913, 0
    %v1234 = vsel %vm947, %v914, 0
    %v1237 = vsel %vm947, %v915, 0
    %v1240 = vsel %vm947, %v916, 0
    %v1243 = vsel %vm947, %v917, 0
    %v1246 = vsel %vm947, %v918, 0
    %v1249 = vsel %vm947, %v919, 0
    %v1252 = vsel %vm947, %v920, 0
    %v1255 = vsel %vm947, %v921, 0
    %v1258 = vsel %vm947, %v922, 0
    %v1261 = vsel %vm947, %v923, 0
    %v1264 = vsel %vm947, %v924, 0
    %v1267 = vsel %vm947, %v925, 0
    %v1270 = vsel %vm947, %v926, 0
    %v1273 = vsel %vm947, %v927, 0
    %v1276 = vsel %vm947, %v928, 0
    %v1279 = vsel %vm947, %v929, 0
    %v1282 = vsel %vm947, %v930, 0
    %v1285 = vsel %vm947, %v931, 0
    %v1288 = vsel %vm947, %v932, 0
    %v1291 = vsel %vm947, %v933, 0
    %v1294 = vsel %vm947, %v934, 0
    %v1297 = vsel %vm947, %v935, 0
    %v1300 = vsel %vm947, %v936, 0
    %v1303 = vsel %vm947, %v937, 0
    %v1306 = vsel %vm947, %v938, 0
    %v1309 = vsel %vm947, %v939, 0
    %v1312 = vsel %vm947, %v940, 0
    %v1315 = vsel %vm947, %v941, 0
    %v1318 = vsel %vm947, %v942, 0
    %v1321 = vsel %vm947, %v943, 0
    %v1324 = vsel %vm947, %v944, 0
    %v1327 = vsel %vm947, %v945, 0
    %v1330 = vsel %vm947, %v946, 0
    %vm1332 = vcmask 1043456
    %v1334 = vsel %vm1332, %v302, 0
    %1336 = vmatpush.bf16.msra.mxu0 0
    %1337 = vmatpush.bf16.msra.mxu0 0
    %1338 = vmatpush.bf16.msra.mxu0 0
    %1339 = vmatpush.bf16.msra.mxu0 0
    %1340 = vmatpush.bf16.msra.mxu0 0
    %1341 = vmatpush.bf16.msra.mxu0 0
    %1342 = vmatpush.bf16.msra.mxu0 0
    %1343 = vmatpush.bf16.msra.mxu0 %v1334
    %1344 = vmatmul.bf16.gmra.mxu0 %v949
    %v1345 = vpop.f32.mrf.mxu0
    %v1346 = vadd.f32 %v305, %v1345
    %v1347 = vpop.f32.mrf.mxu0
    %v1348 = vadd.f32 %v305, %v1347
    %1349 = vmatmul.bf16.gmra.mxu0 %v952
    %v1350 = vpop.f32.mrf.mxu0
    %v1351 = vadd.f32 %v305, %v1350
    %v1352 = vpop.f32.mrf.mxu0
    %v1353 = vadd.f32 %v305, %v1352
    %1354 = vmatmul.bf16.gmra.mxu0 %v955
    %v1355 = vpop.f32.mrf.mxu0
    %v1356 = vadd.f32 %v305, %v1355
    %v1357 = vpop.f32.mrf.mxu0
    %v1358 = vadd.f32 %v305, %v1357
    %1359 = vmatmul.bf16.gmra.mxu0 %v958
    %v1360 = vpop.f32.mrf.mxu0
    %v1361 = vadd.f32 %v305, %v1360
    %v1362 = vpop.f32.mrf.mxu0
    %v1363 = vadd.f32 %v305, %v1362
    %1364 = vmatmul.bf16.gmra.mxu0 %v961
    %v1365 = vpop.f32.mrf.mxu0
    %v1366 = vadd.f32 %v305, %v1365
    %v1367 = vpop.f32.mrf.mxu0
    %v1368 = vadd.f32 %v305, %v1367
    %1369 = vmatmul.bf16.gmra.mxu0 %v964
    %v1370 = vpop.f32.mrf.mxu0
    %v1371 = vadd.f32 %v305, %v1370
    %v1372 = vpop.f32.mrf.mxu0
    %v1373 = vadd.f32 %v305, %v1372
    %1374 = vmatmul.bf16.gmra.mxu0 %v967
    %v1375 = vpop.f32.mrf.mxu0
    %v1376 = vadd.f32 %v305, %v1375
    %v1377 = vpop.f32.mrf.mxu0
    %v1378 = vadd.f32 %v305, %v1377
    %1379 = vmatmul.bf16.gmra.mxu0 %v970
    %v1380 = vpop.f32.mrf.mxu0
    %v1381 = vadd.f32 %v305, %v1380
    %v1382 = vpop.f32.mrf.mxu0
    %v1383 = vadd.f32 %v305, %v1382
    %1384 = vmatmul.bf16.gmra.mxu0 %v973
    %v1385 = vpop.f32.mrf.mxu0
    %v1386 = vadd.f32 %v305, %v1385
    %v1387 = vpop.f32.mrf.mxu0
    %v1388 = vadd.f32 %v305, %v1387
    %1389 = vmatmul.bf16.gmra.mxu0 %v976
    %v1390 = vpop.f32.mrf.mxu0
    %v1391 = vadd.f32 %v305, %v1390
    %v1392 = vpop.f32.mrf.mxu0
    %v1393 = vadd.f32 %v305, %v1392
    %1394 = vmatmul.bf16.gmra.mxu0 %v979
    %v1395 = vpop.f32.mrf.mxu0
    %v1396 = vadd.f32 %v305, %v1395
    %v1397 = vpop.f32.mrf.mxu0
    %v1398 = vadd.f32 %v305, %v1397
    %1399 = vmatmul.bf16.gmra.mxu0 %v982
    %v1400 = vpop.f32.mrf.mxu0
    %v1401 = vadd.f32 %v305, %v1400
    %v1402 = vpop.f32.mrf.mxu0
    %v1403 = vadd.f32 %v305, %v1402
    %1404 = vmatmul.bf16.gmra.mxu0 %v985
    %v1405 = vpop.f32.mrf.mxu0
    %v1406 = vadd.f32 %v305, %v1405
    %v1407 = vpop.f32.mrf.mxu0
    %v1408 = vadd.f32 %v305, %v1407
    %1409 = vmatmul.bf16.gmra.mxu0 %v988
    %v1410 = vpop.f32.mrf.mxu0
    %v1411 = vadd.f32 %v305, %v1410
    %v1412 = vpop.f32.mrf.mxu0
    %v1413 = vadd.f32 %v305, %v1412
    %1414 = vmatmul.bf16.gmra.mxu0 %v991
    %v1415 = vpop.f32.mrf.mxu0
    %v1416 = vadd.f32 %v305, %v1415
    %v1417 = vpop.f32.mrf.mxu0
    %v1418 = vadd.f32 %v305, %v1417
    %1419 = vmatmul.bf16.gmra.mxu0 %v994
    %v1420 = vpop.f32.mrf.mxu0
    %v1421 = vadd.f32 %v305, %v1420
    %v1422 = vpop.f32.mrf.mxu0
    %v1423 = vadd.f32 %v305, %v1422
    %1424 = vmatmul.bf16.gmra.mxu0 %v997
    %v1425 = vpop.f32.mrf.mxu0
    %v1426 = vadd.f32 %v305, %v1425
    %v1427 = vpop.f32.mrf.mxu0
    %v1428 = vadd.f32 %v305, %v1427
    %1429 = vmatmul.bf16.gmra.mxu0 %v1000
    %v1430 = vpop.f32.mrf.mxu0
    %v1431 = vadd.f32 %v305, %v1430
    %v1432 = vpop.f32.mrf.mxu0
    %v1433 = vadd.f32 %v305, %v1432
    %1434 = vmatmul.bf16.gmra.mxu0 %v1003
    %v1435 = vpop.f32.mrf.mxu0
    %v1436 = vadd.f32 %v305, %v1435
    %v1437 = vpop.f32.mrf.mxu0
    %v1438 = vadd.f32 %v305, %v1437
    %1439 = vmatmul.bf16.gmra.mxu0 %v1006
    %v1440 = vpop.f32.mrf.mxu0
    %v1441 = vadd.f32 %v305, %v1440
    %v1442 = vpop.f32.mrf.mxu0
    %v1443 = vadd.f32 %v305, %v1442
    %1444 = vmatmul.bf16.gmra.mxu0 %v1009
    %v1445 = vpop.f32.mrf.mxu0
    %v1446 = vadd.f32 %v305, %v1445
    %v1447 = vpop.f32.mrf.mxu0
    %v1448 = vadd.f32 %v305, %v1447
    %1449 = vmatmul.bf16.gmra.mxu0 %v1012
    %v1450 = vpop.f32.mrf.mxu0
    %v1451 = vadd.f32 %v305, %v1450
    %v1452 = vpop.f32.mrf.mxu0
    %v1453 = vadd.f32 %v305, %v1452
    %1454 = vmatmul.bf16.gmra.mxu0 %v1015
    %v1455 = vpop.f32.mrf.mxu0
    %v1456 = vadd.f32 %v305, %v1455
    %v1457 = vpop.f32.mrf.mxu0
    %v1458 = vadd.f32 %v305, %v1457
    %1459 = vmatmul.bf16.gmra.mxu0 %v1018
    %v1460 = vpop.f32.mrf.mxu0
    %v1461 = vadd.f32 %v305, %v1460
    %v1462 = vpop.f32.mrf.mxu0
    %v1463 = vadd.f32 %v305, %v1462
    %1464 = vmatmul.bf16.gmra.mxu0 %v1021
    %v1465 = vpop.f32.mrf.mxu0
    %v1466 = vadd.f32 %v305, %v1465
    %v1467 = vpop.f32.mrf.mxu0
    %v1468 = vadd.f32 %v305, %v1467
    %1469 = vmatmul.bf16.gmra.mxu0 %v1024
    %v1470 = vpop.f32.mrf.mxu0
    %v1471 = vadd.f32 %v305, %v1470
    %v1472 = vpop.f32.mrf.mxu0
    %v1473 = vadd.f32 %v305, %v1472
    %1474 = vmatmul.bf16.gmra.mxu0 %v1027
    %v1475 = vpop.f32.mrf.mxu0
    %v1476 = vadd.f32 %v305, %v1475
    %v1477 = vpop.f32.mrf.mxu0
    %v1478 = vadd.f32 %v305, %v1477
    %1479 = vmatmul.bf16.gmra.mxu0 %v1030
    %v1480 = vpop.f32.mrf.mxu0
    %v1481 = vadd.f32 %v305, %v1480
    %v1482 = vpop.f32.mrf.mxu0
    %v1483 = vadd.f32 %v305, %v1482
    %1484 = vmatmul.bf16.gmra.mxu0 %v1033
    %v1485 = vpop.f32.mrf.mxu0
    %v1486 = vadd.f32 %v305, %v1485
    %v1487 = vpop.f32.mrf.mxu0
    %v1488 = vadd.f32 %v305, %v1487
    %1489 = vmatmul.bf16.gmra.mxu0 %v1036
    %v1490 = vpop.f32.mrf.mxu0
    %v1491 = vadd.f32 %v305, %v1490
    %v1492 = vpop.f32.mrf.mxu0
    %v1493 = vadd.f32 %v305, %v1492
    %1494 = vmatmul.bf16.gmra.mxu0 %v1039
    %v1495 = vpop.f32.mrf.mxu0
    %v1496 = vadd.f32 %v305, %v1495
    %v1497 = vpop.f32.mrf.mxu0
    %v1498 = vadd.f32 %v305, %v1497
    %1499 = vmatmul.bf16.gmra.mxu0 %v1042
    %v1500 = vpop.f32.mrf.mxu0
    %v1501 = vadd.f32 %v305, %v1500
    %v1502 = vpop.f32.mrf.mxu0
    %v1503 = vadd.f32 %v305, %v1502
    %1504 = vmatmul.bf16.gmra.mxu0 %v1045
    %v1505 = vpop.f32.mrf.mxu0
    %v1506 = vadd.f32 %v305, %v1505
    %v1507 = vpop.f32.mrf.mxu0
    %v1508 = vadd.f32 %v305, %v1507
    %1509 = vmatmul.bf16.gmra.mxu0 %v1048
    %v1510 = vpop.f32.mrf.mxu0
    %v1511 = vadd.f32 %v305, %v1510
    %v1512 = vpop.f32.mrf.mxu0
    %v1513 = vadd.f32 %v305, %v1512
    %1514 = vmatmul.bf16.gmra.mxu0 %v1051
    %v1515 = vpop.f32.mrf.mxu0
    %v1516 = vadd.f32 %v305, %v1515
    %v1517 = vpop.f32.mrf.mxu0
    %v1518 = vadd.f32 %v305, %v1517
    %1519 = vmatmul.bf16.gmra.mxu0 %v1054
    %v1520 = vpop.f32.mrf.mxu0
    %v1521 = vadd.f32 %v305, %v1520
    %v1522 = vpop.f32.mrf.mxu0
    %v1523 = vadd.f32 %v305, %v1522
    %1524 = vmatmul.bf16.gmra.mxu0 %v1057
    %v1525 = vpop.f32.mrf.mxu0
    %v1526 = vadd.f32 %v305, %v1525
    %v1527 = vpop.f32.mrf.mxu0
    %v1528 = vadd.f32 %v305, %v1527
    %1529 = vmatmul.bf16.gmra.mxu0 %v1060
    %v1530 = vpop.f32.mrf.mxu0
    %v1531 = vadd.f32 %v305, %v1530
    %v1532 = vpop.f32.mrf.mxu0
    %v1533 = vadd.f32 %v305, %v1532
    %1534 = vmatmul.bf16.gmra.mxu0 %v1063
    %v1535 = vpop.f32.mrf.mxu0
    %v1536 = vadd.f32 %v305, %v1535
    %v1537 = vpop.f32.mrf.mxu0
    %v1538 = vadd.f32 %v305, %v1537
    %1539 = vmatmul.bf16.gmra.mxu0 %v1066
    %v1540 = vpop.f32.mrf.mxu0
    %v1541 = vadd.f32 %v305, %v1540
    %v1542 = vpop.f32.mrf.mxu0
    %v1543 = vadd.f32 %v305, %v1542
    %1544 = vmatmul.bf16.gmra.mxu0 %v1069
    %v1545 = vpop.f32.mrf.mxu0
    %v1546 = vadd.f32 %v305, %v1545
    %v1547 = vpop.f32.mrf.mxu0
    %v1548 = vadd.f32 %v305, %v1547
    %1549 = vmatmul.bf16.gmra.mxu0 %v1072
    %v1550 = vpop.f32.mrf.mxu0
    %v1551 = vadd.f32 %v305, %v1550
    %v1552 = vpop.f32.mrf.mxu0
    %v1553 = vadd.f32 %v305, %v1552
    %1554 = vmatmul.bf16.gmra.mxu0 %v1075
    %v1555 = vpop.f32.mrf.mxu0
    %v1556 = vadd.f32 %v305, %v1555
    %v1557 = vpop.f32.mrf.mxu0
    %v1558 = vadd.f32 %v305, %v1557
    %1559 = vmatmul.bf16.gmra.mxu0 %v1078
    %v1560 = vpop.f32.mrf.mxu0
    %v1561 = vadd.f32 %v305, %v1560
    %v1562 = vpop.f32.mrf.mxu0
    %v1563 = vadd.f32 %v305, %v1562
    %1564 = vmatmul.bf16.gmra.mxu0 %v1081
    %v1565 = vpop.f32.mrf.mxu0
    %v1566 = vadd.f32 %v305, %v1565
    %v1567 = vpop.f32.mrf.mxu0
    %v1568 = vadd.f32 %v305, %v1567
    %1569 = vmatmul.bf16.gmra.mxu0 %v1084
    %v1570 = vpop.f32.mrf.mxu0
    %v1571 = vadd.f32 %v305, %v1570
    %v1572 = vpop.f32.mrf.mxu0
    %v1573 = vadd.f32 %v305, %v1572
    %1574 = vmatmul.bf16.gmra.mxu0 %v1087
    %v1575 = vpop.f32.mrf.mxu0
    %v1576 = vadd.f32 %v305, %v1575
    %v1577 = vpop.f32.mrf.mxu0
    %v1578 = vadd.f32 %v305, %v1577
    %1579 = vmatmul.bf16.gmra.mxu0 %v1090
    %v1580 = vpop.f32.mrf.mxu0
    %v1581 = vadd.f32 %v305, %v1580
    %v1582 = vpop.f32.mrf.mxu0
    %v1583 = vadd.f32 %v305, %v1582
    %1584 = vmatmul.bf16.gmra.mxu0 %v1093
    %v1585 = vpop.f32.mrf.mxu0
    %v1586 = vadd.f32 %v305, %v1585
    %v1587 = vpop.f32.mrf.mxu0
    %v1588 = vadd.f32 %v305, %v1587
    %1589 = vmatmul.bf16.gmra.mxu0 %v1096
    %v1590 = vpop.f32.mrf.mxu0
    %v1591 = vadd.f32 %v305, %v1590
    %v1592 = vpop.f32.mrf.mxu0
    %v1593 = vadd.f32 %v305, %v1592
    %1594 = vmatmul.bf16.gmra.mxu0 %v1099
    %v1595 = vpop.f32.mrf.mxu0
    %v1596 = vadd.f32 %v305, %v1595
    %v1597 = vpop.f32.mrf.mxu0
    %v1598 = vadd.f32 %v305, %v1597
    %1599 = vmatmul.bf16.gmra.mxu0 %v1102
    %v1600 = vpop.f32.mrf.mxu0
    %v1601 = vadd.f32 %v305, %v1600
    %v1602 = vpop.f32.mrf.mxu0
    %v1603 = vadd.f32 %v305, %v1602
    %1604 = vmatmul.bf16.gmra.mxu0 %v1105
    %v1605 = vpop.f32.mrf.mxu0
    %v1606 = vadd.f32 %v305, %v1605
    %v1607 = vpop.f32.mrf.mxu0
    %v1608 = vadd.f32 %v305, %v1607
    %1609 = vmatmul.bf16.gmra.mxu0 %v1108
    %v1610 = vpop.f32.mrf.mxu0
    %v1611 = vadd.f32 %v305, %v1610
    %v1612 = vpop.f32.mrf.mxu0
    %v1613 = vadd.f32 %v305, %v1612
    %1614 = vmatmul.bf16.gmra.mxu0 %v1111
    %v1615 = vpop.f32.mrf.mxu0
    %v1616 = vadd.f32 %v305, %v1615
    %v1617 = vpop.f32.mrf.mxu0
    %v1618 = vadd.f32 %v305, %v1617
    %1619 = vmatmul.bf16.gmra.mxu0 %v1114
    %v1620 = vpop.f32.mrf.mxu0
    %v1621 = vadd.f32 %v305, %v1620
    %v1622 = vpop.f32.mrf.mxu0
    %v1623 = vadd.f32 %v305, %v1622
    %1624 = vmatmul.bf16.gmra.mxu0 %v1117
    %v1625 = vpop.f32.mrf.mxu0
    %v1626 = vadd.f32 %v305, %v1625
    %v1627 = vpop.f32.mrf.mxu0
    %v1628 = vadd.f32 %v305, %v1627
    %1629 = vmatmul.bf16.gmra.mxu0 %v1120
    %v1630 = vpop.f32.mrf.mxu0
    %v1631 = vadd.f32 %v305, %v1630
    %v1632 = vpop.f32.mrf.mxu0
    %v1633 = vadd.f32 %v305, %v1632
    %1634 = vmatmul.bf16.gmra.mxu0 %v1123
    %v1635 = vpop.f32.mrf.mxu0
    %v1636 = vadd.f32 %v305, %v1635
    %v1637 = vpop.f32.mrf.mxu0
    %v1638 = vadd.f32 %v305, %v1637
    %1639 = vmatmul.bf16.gmra.mxu0 %v1126
    %v1640 = vpop.f32.mrf.mxu0
    %v1641 = vadd.f32 %v305, %v1640
    %v1642 = vpop.f32.mrf.mxu0
    %v1643 = vadd.f32 %v305, %v1642
    %1644 = vmatmul.bf16.gmra.mxu0 %v1129
    %v1645 = vpop.f32.mrf.mxu0
    %v1646 = vadd.f32 %v305, %v1645
    %v1647 = vpop.f32.mrf.mxu0
    %v1648 = vadd.f32 %v305, %v1647
    %1649 = vmatmul.bf16.gmra.mxu0 %v1132
    %v1650 = vpop.f32.mrf.mxu0
    %v1651 = vadd.f32 %v305, %v1650
    %v1652 = vpop.f32.mrf.mxu0
    %v1653 = vadd.f32 %v305, %v1652
    %1654 = vmatmul.bf16.gmra.mxu0 %v1135
    %v1655 = vpop.f32.mrf.mxu0
    %v1656 = vadd.f32 %v305, %v1655
    %v1657 = vpop.f32.mrf.mxu0
    %v1658 = vadd.f32 %v305, %v1657
    %1659 = vmatmul.bf16.gmra.mxu0 %v1138
    %v1660 = vpop.f32.mrf.mxu0
    %v1661 = vadd.f32 %v305, %v1660
    %v1662 = vpop.f32.mrf.mxu0
    %v1663 = vadd.f32 %v305, %v1662
    %1664 = vmatmul.bf16.gmra.mxu0 %v1141
    %v1665 = vpop.f32.mrf.mxu0
    %v1666 = vadd.f32 %v305, %v1665
    %v1667 = vpop.f32.mrf.mxu0
    %v1668 = vadd.f32 %v305, %v1667
    %1669 = vmatmul.bf16.gmra.mxu0 %v1144
    %v1670 = vpop.f32.mrf.mxu0
    %v1671 = vadd.f32 %v305, %v1670
    %v1672 = vpop.f32.mrf.mxu0
    %v1673 = vadd.f32 %v305, %v1672
    %1674 = vmatmul.bf16.gmra.mxu0 %v1147
    %v1675 = vpop.f32.mrf.mxu0
    %v1676 = vadd.f32 %v305, %v1675
    %v1677 = vpop.f32.mrf.mxu0
    %v1678 = vadd.f32 %v305, %v1677
    %1679 = vmatmul.bf16.gmra.mxu0 %v1150
    %v1680 = vpop.f32.mrf.mxu0
    %v1681 = vadd.f32 %v305, %v1680
    %v1682 = vpop.f32.mrf.mxu0
    %v1683 = vadd.f32 %v305, %v1682
    %1684 = vmatmul.bf16.gmra.mxu0 %v1153
    %v1685 = vpop.f32.mrf.mxu0
    %v1686 = vadd.f32 %v305, %v1685
    %v1687 = vpop.f32.mrf.mxu0
    %v1688 = vadd.f32 %v305, %v1687
    %1689 = vmatmul.bf16.gmra.mxu0 %v1156
    %v1690 = vpop.f32.mrf.mxu0
    %v1691 = vadd.f32 %v305, %v1690
    %v1692 = vpop.f32.mrf.mxu0
    %v1693 = vadd.f32 %v305, %v1692
    %1694 = vmatmul.bf16.gmra.mxu0 %v1159
    %v1695 = vpop.f32.mrf.mxu0
    %v1696 = vadd.f32 %v305, %v1695
    %v1697 = vpop.f32.mrf.mxu0
    %v1698 = vadd.f32 %v305, %v1697
    %1699 = vmatmul.bf16.gmra.mxu0 %v1162
    %v1700 = vpop.f32.mrf.mxu0
    %v1701 = vadd.f32 %v305, %v1700
    %v1702 = vpop.f32.mrf.mxu0
    %v1703 = vadd.f32 %v305, %v1702
    %1704 = vmatmul.bf16.gmra.mxu0 %v1165
    %v1705 = vpop.f32.mrf.mxu0
    %v1706 = vadd.f32 %v305, %v1705
    %v1707 = vpop.f32.mrf.mxu0
    %v1708 = vadd.f32 %v305, %v1707
    %1709 = vmatmul.bf16.gmra.mxu0 %v1168
    %v1710 = vpop.f32.mrf.mxu0
    %v1711 = vadd.f32 %v305, %v1710
    %v1712 = vpop.f32.mrf.mxu0
    %v1713 = vadd.f32 %v305, %v1712
    %1714 = vmatmul.bf16.gmra.mxu0 %v1171
    %v1715 = vpop.f32.mrf.mxu0
    %v1716 = vadd.f32 %v305, %v1715
    %v1717 = vpop.f32.mrf.mxu0
    %v1718 = vadd.f32 %v305, %v1717
    %1719 = vmatmul.bf16.gmra.mxu0 %v1174
    %v1720 = vpop.f32.mrf.mxu0
    %v1721 = vadd.f32 %v305, %v1720
    %v1722 = vpop.f32.mrf.mxu0
    %v1723 = vadd.f32 %v305, %v1722
    %1724 = vmatmul.bf16.gmra.mxu0 %v1177
    %v1725 = vpop.f32.mrf.mxu0
    %v1726 = vadd.f32 %v305, %v1725
    %v1727 = vpop.f32.mrf.mxu0
    %v1728 = vadd.f32 %v305, %v1727
    %1729 = vmatmul.bf16.gmra.mxu0 %v1180
    %v1730 = vpop.f32.mrf.mxu0
    %v1731 = vadd.f32 %v305, %v1730
    %v1732 = vpop.f32.mrf.mxu0
    %v1733 = vadd.f32 %v305, %v1732
    %1734 = vmatmul.bf16.gmra.mxu0 %v1183
    %v1735 = vpop.f32.mrf.mxu0
    %v1736 = vadd.f32 %v305, %v1735
    %v1737 = vpop.f32.mrf.mxu0
    %v1738 = vadd.f32 %v305, %v1737
    %1739 = vmatmul.bf16.gmra.mxu0 %v1186
    %v1740 = vpop.f32.mrf.mxu0
    %v1741 = vadd.f32 %v305, %v1740
    %v1742 = vpop.f32.mrf.mxu0
    %v1743 = vadd.f32 %v305, %v1742
    %1744 = vmatmul.bf16.gmra.mxu0 %v1189
    %v1745 = vpop.f32.mrf.mxu0
    %v1746 = vadd.f32 %v305, %v1745
    %v1747 = vpop.f32.mrf.mxu0
    %v1748 = vadd.f32 %v305, %v1747
    %1749 = vmatmul.bf16.gmra.mxu0 %v1192
    %v1750 = vpop.f32.mrf.mxu0
    %v1751 = vadd.f32 %v305, %v1750
    %v1752 = vpop.f32.mrf.mxu0
    %v1753 = vadd.f32 %v305, %v1752
    %1754 = vmatmul.bf16.gmra.mxu0 %v1195
    %v1755 = vpop.f32.mrf.mxu0
    %v1756 = vadd.f32 %v305, %v1755
    %v1757 = vpop.f32.mrf.mxu0
    %v1758 = vadd.f32 %v305, %v1757
    %1759 = vmatmul.bf16.gmra.mxu0 %v1198
    %v1760 = vpop.f32.mrf.mxu0
    %v1761 = vadd.f32 %v305, %v1760
    %v1762 = vpop.f32.mrf.mxu0
    %v1763 = vadd.f32 %v305, %v1762
    %1764 = vmatmul.bf16.gmra.mxu0 %v1201
    %v1765 = vpop.f32.mrf.mxu0
    %v1766 = vadd.f32 %v305, %v1765
    %v1767 = vpop.f32.mrf.mxu0
    %v1768 = vadd.f32 %v305, %v1767
    %1769 = vmatmul.bf16.gmra.mxu0 %v1204
    %v1770 = vpop.f32.mrf.mxu0
    %v1771 = vadd.f32 %v305, %v1770
    %v1772 = vpop.f32.mrf.mxu0
    %v1773 = vadd.f32 %v305, %v1772
    %1774 = vmatmul.bf16.gmra.mxu0 %v1207
    %v1775 = vpop.f32.mrf.mxu0
    %v1776 = vadd.f32 %v305, %v1775
    %v1777 = vpop.f32.mrf.mxu0
    %v1778 = vadd.f32 %v305, %v1777
    %1779 = vmatmul.bf16.gmra.mxu0 %v1210
    %v1780 = vpop.f32.mrf.mxu0
    %v1781 = vadd.f32 %v305, %v1780
    %v1782 = vpop.f32.mrf.mxu0
    %v1783 = vadd.f32 %v305, %v1782
    %1784 = vmatmul.bf16.gmra.mxu0 %v1213
    %v1785 = vpop.f32.mrf.mxu0
    %v1786 = vadd.f32 %v305, %v1785
    %v1787 = vpop.f32.mrf.mxu0
    %v1788 = vadd.f32 %v305, %v1787
    %1789 = vmatmul.bf16.gmra.mxu0 %v1216
    %v1790 = vpop.f32.mrf.mxu0
    %v1791 = vadd.f32 %v305, %v1790
    %v1792 = vpop.f32.mrf.mxu0
    %v1793 = vadd.f32 %v305, %v1792
    %1794 = vmatmul.bf16.gmra.mxu0 %v1219
    %v1795 = vpop.f32.mrf.mxu0
    %v1796 = vadd.f32 %v305, %v1795
    %v1797 = vpop.f32.mrf.mxu0
    %v1798 = vadd.f32 %v305, %v1797
    %1799 = vmatmul.bf16.gmra.mxu0 %v1222
    %v1800 = vpop.f32.mrf.mxu0
    %v1801 = vadd.f32 %v305, %v1800
    %v1802 = vpop.f32.mrf.mxu0
    %v1803 = vadd.f32 %v305, %v1802
    %1804 = vmatmul.bf16.gmra.mxu0 %v1225
    %v1805 = vpop.f32.mrf.mxu0
    %v1806 = vadd.f32 %v305, %v1805
    %v1807 = vpop.f32.mrf.mxu0
    %v1808 = vadd.f32 %v305, %v1807
    %1809 = vmatmul.bf16.gmra.mxu0 %v1228
    %v1810 = vpop.f32.mrf.mxu0
    %v1811 = vadd.f32 %v305, %v1810
    %v1812 = vpop.f32.mrf.mxu0
    %v1813 = vadd.f32 %v305, %v1812
    %1814 = vmatmul.bf16.gmra.mxu0 %v1231
    %v1815 = vpop.f32.mrf.mxu0
    %v1816 = vadd.f32 %v305, %v1815
    %v1817 = vpop.f32.mrf.mxu0
    %v1818 = vadd.f32 %v305, %v1817
    %1819 = vmatmul.bf16.gmra.mxu0 %v1234
    %v1820 = vpop.f32.mrf.mxu0
    %v1821 = vadd.f32 %v305, %v1820
    %v1822 = vpop.f32.mrf.mxu0
    %v1823 = vadd.f32 %v305, %v1822
    %1824 = vmatmul.bf16.gmra.mxu0 %v1237
    %v1825 = vpop.f32.mrf.mxu0
    %v1826 = vadd.f32 %v305, %v1825
    %v1827 = vpop.f32.mrf.mxu0
    %v1828 = vadd.f32 %v305, %v1827
    %1829 = vmatmul.bf16.gmra.mxu0 %v1240
    %v1830 = vpop.f32.mrf.mxu0
    %v1831 = vadd.f32 %v305, %v1830
    %v1832 = vpop.f32.mrf.mxu0
    %v1833 = vadd.f32 %v305, %v1832
    %1834 = vmatmul.bf16.gmra.mxu0 %v1243
    %v1835 = vpop.f32.mrf.mxu0
    %v1836 = vadd.f32 %v305, %v1835
    %v1837 = vpop.f32.mrf.mxu0
    %v1838 = vadd.f32 %v305, %v1837
    %1839 = vmatmul.bf16.gmra.mxu0 %v1246
    %v1840 = vpop.f32.mrf.mxu0
    %v1841 = vadd.f32 %v305, %v1840
    %v1842 = vpop.f32.mrf.mxu0
    %v1843 = vadd.f32 %v305, %v1842
    %1844 = vmatmul.bf16.gmra.mxu0 %v1249
    %v1845 = vpop.f32.mrf.mxu0
    %v1846 = vadd.f32 %v305, %v1845
    %v1847 = vpop.f32.mrf.mxu0
    %v1848 = vadd.f32 %v305, %v1847
    %1849 = vmatmul.bf16.gmra.mxu0 %v1252
    %v1850 = vpop.f32.mrf.mxu0
    %v1851 = vadd.f32 %v305, %v1850
    %v1852 = vpop.f32.mrf.mxu0
    %v1853 = vadd.f32 %v305, %v1852
    %1854 = vmatmul.bf16.gmra.mxu0 %v1255
    %v1855 = vpop.f32.mrf.mxu0
    %v1856 = vadd.f32 %v305, %v1855
    %v1857 = vpop.f32.mrf.mxu0
    %v1858 = vadd.f32 %v305, %v1857
    %1859 = vmatmul.bf16.gmra.mxu0 %v1258
    %v1860 = vpop.f32.mrf.mxu0
    %v1861 = vadd.f32 %v305, %v1860
    %v1862 = vpop.f32.mrf.mxu0
    %v1863 = vadd.f32 %v305, %v1862
    %1864 = vmatmul.bf16.gmra.mxu0 %v1261
    %v1865 = vpop.f32.mrf.mxu0
    %v1866 = vadd.f32 %v305, %v1865
    %v1867 = vpop.f32.mrf.mxu0
    %v1868 = vadd.f32 %v305, %v1867
    %1869 = vmatmul.bf16.gmra.mxu0 %v1264
    %v1870 = vpop.f32.mrf.mxu0
    %v1871 = vadd.f32 %v305, %v1870
    %v1872 = vpop.f32.mrf.mxu0
    %v1873 = vadd.f32 %v305, %v1872
    %1874 = vmatmul.bf16.gmra.mxu0 %v1267
    %v1875 = vpop.f32.mrf.mxu0
    %v1876 = vadd.f32 %v305, %v1875
    %v1877 = vpop.f32.mrf.mxu0
    %v1878 = vadd.f32 %v305, %v1877
    %1879 = vmatmul.bf16.gmra.mxu0 %v1270
    %v1880 = vpop.f32.mrf.mxu0
    %v1881 = vadd.f32 %v305, %v1880
    %v1882 = vpop.f32.mrf.mxu0
    %v1883 = vadd.f32 %v305, %v1882
    %1884 = vmatmul.bf16.gmra.mxu0 %v1273
    %v1885 = vpop.f32.mrf.mxu0
    %v1886 = vadd.f32 %v305, %v1885
    %v1887 = vpop.f32.mrf.mxu0
    %v1888 = vadd.f32 %v305, %v1887
    %1889 = vmatmul.bf16.gmra.mxu0 %v1276
    %v1890 = vpop.f32.mrf.mxu0
    %v1891 = vadd.f32 %v305, %v1890
    %v1892 = vpop.f32.mrf.mxu0
    %v1893 = vadd.f32 %v305, %v1892
    %1894 = vmatmul.bf16.gmra.mxu0 %v1279
    %v1895 = vpop.f32.mrf.mxu0
    %v1896 = vadd.f32 %v305, %v1895
    %v1897 = vpop.f32.mrf.mxu0
    %v1898 = vadd.f32 %v305, %v1897
    %1899 = vmatmul.bf16.gmra.mxu0 %v1282
    %v1900 = vpop.f32.mrf.mxu0
    %v1901 = vadd.f32 %v305, %v1900
    %v1902 = vpop.f32.mrf.mxu0
    %v1903 = vadd.f32 %v305, %v1902
    %1904 = vmatmul.bf16.gmra.mxu0 %v1285
    %v1905 = vpop.f32.mrf.mxu0
    %v1906 = vadd.f32 %v305, %v1905
    %v1907 = vpop.f32.mrf.mxu0
    %v1908 = vadd.f32 %v305, %v1907
    %1909 = vmatmul.bf16.gmra.mxu0 %v1288
    %v1910 = vpop.f32.mrf.mxu0
    %v1911 = vadd.f32 %v305, %v1910
    %v1912 = vpop.f32.mrf.mxu0
    %v1913 = vadd.f32 %v305, %v1912
    %1914 = vmatmul.bf16.gmra.mxu0 %v1291
    %v1915 = vpop.f32.mrf.mxu0
    %v1916 = vadd.f32 %v305, %v1915
    %v1917 = vpop.f32.mrf.mxu0
    %v1918 = vadd.f32 %v305, %v1917
    %1919 = vmatmul.bf16.gmra.mxu0 %v1294
    %v1920 = vpop.f32.mrf.mxu0
    %v1921 = vadd.f32 %v305, %v1920
    %v1922 = vpop.f32.mrf.mxu0
    %v1923 = vadd.f32 %v305, %v1922
    %1924 = vmatmul.bf16.gmra.mxu0 %v1297
    %v1925 = vpop.f32.mrf.mxu0
    %v1926 = vadd.f32 %v305, %v1925
    %v1927 = vpop.f32.mrf.mxu0
    %v1928 = vadd.f32 %v305, %v1927
    %1929 = vmatmul.bf16.gmra.mxu0 %v1300
    %v1930 = vpop.f32.mrf.mxu0
    %v1931 = vadd.f32 %v305, %v1930
    %v1932 = vpop.f32.mrf.mxu0
    %v1933 = vadd.f32 %v305, %v1932
    %1934 = vmatmul.bf16.gmra.mxu0 %v1303
    %v1935 = vpop.f32.mrf.mxu0
    %v1936 = vadd.f32 %v305, %v1935
    %v1937 = vpop.f32.mrf.mxu0
    %v1938 = vadd.f32 %v305, %v1937
    %1939 = vmatmul.bf16.gmra.mxu0 %v1306
    %v1940 = vpop.f32.mrf.mxu0
    %v1941 = vadd.f32 %v305, %v1940
    %v1942 = vpop.f32.mrf.mxu0
    %v1943 = vadd.f32 %v305, %v1942
    %1944 = vmatmul.bf16.gmra.mxu0 %v1309
    %v1945 = vpop.f32.mrf.mxu0
    %v1946 = vadd.f32 %v305, %v1945
    %v1947 = vpop.f32.mrf.mxu0
    %v1948 = vadd.f32 %v305, %v1947
    %1949 = vmatmul.bf16.gmra.mxu0 %v1312
    %v1950 = vpop.f32.mrf.mxu0
    %v1951 = vadd.f32 %v305, %v1950
    %v1952 = vpop.f32.mrf.mxu0
    %v1953 = vadd.f32 %v305, %v1952
    %1954 = vmatmul.bf16.gmra.mxu0 %v1315
    %v1955 = vpop.f32.mrf.mxu0
    %v1956 = vadd.f32 %v305, %v1955
    %v1957 = vpop.f32.mrf.mxu0
    %v1958 = vadd.f32 %v305, %v1957
    %1959 = vmatmul.bf16.gmra.mxu0 %v1318
    %v1960 = vpop.f32.mrf.mxu0
    %v1961 = vadd.f32 %v305, %v1960
    %v1962 = vpop.f32.mrf.mxu0
    %v1963 = vadd.f32 %v305, %v1962
    %1964 = vmatmul.bf16.gmra.mxu0 %v1321
    %v1965 = vpop.f32.mrf.mxu0
    %v1966 = vadd.f32 %v305, %v1965
    %v1967 = vpop.f32.mrf.mxu0
    %v1968 = vadd.f32 %v305, %v1967
    %1969 = vmatmul.bf16.gmra.mxu0 %v1324
    %v1970 = vpop.f32.mrf.mxu0
    %v1971 = vadd.f32 %v305, %v1970
    %v1972 = vpop.f32.mrf.mxu0
    %v1973 = vadd.f32 %v305, %v1972
    %1974 = vmatmul.bf16.gmra.mxu0 %v1327
    %v1975 = vpop.f32.mrf.mxu0
    %v1976 = vadd.f32 %v305, %v1975
    %v1977 = vpop.f32.mrf.mxu0
    %v1978 = vadd.f32 %v305, %v1977
    %1979 = vmatmul.bf16.gmra.mxu0 %v1330
    %v1980 = vpop.f32.mrf.mxu0
    %v1981 = vadd.f32 %v305, %v1980
    %v1982 = vpop.f32.mrf.mxu0
    %v1983 = vadd.f32 %v305, %v1982
    %1984 = vdwg.mxu0
    %v1985 = vmax.f32 %v1346, 0.0
    %v1986 = vmax.f32 %v1348, 0.0
    %v1987 = vmax.f32 %v1351, 0.0
    %v1988 = vmax.f32 %v1353, 0.0
    %v1989 = vmax.f32 %v1356, 0.0
    %v1990 = vmax.f32 %v1358, 0.0
    %v1991 = vmax.f32 %v1361, 0.0
    %v1992 = vmax.f32 %v1363, 0.0
    %v1993 = vmax.f32 %v1366, 0.0
    %v1994 = vmax.f32 %v1368, 0.0
    %v1995 = vmax.f32 %v1371, 0.0
    %v1996 = vmax.f32 %v1373, 0.0
    %v1997 = vmax.f32 %v1376, 0.0
    %v1998 = vmax.f32 %v1378, 0.0
    %v1999 = vmax.f32 %v1381, 0.0
    %v2000 = vmax.f32 %v1383, 0.0
    %v2001 = vmax.f32 %v1386, 0.0
    %v2002 = vmax.f32 %v1388, 0.0
    %v2003 = vmax.f32 %v1391, 0.0
    %v2004 = vmax.f32 %v1393, 0.0
    %v2005 = vmax.f32 %v1396, 0.0
    %v2006 = vmax.f32 %v1398, 0.0
    %v2007 = vmax.f32 %v1401, 0.0
    %v2008 = vmax.f32 %v1403, 0.0
    %v2009 = vmax.f32 %v1406, 0.0
    %v2010 = vmax.f32 %v1408, 0.0
    %v2011 = vmax.f32 %v1411, 0.0
    %v2012 = vmax.f32 %v1413, 0.0
    %v2013 = vmax.f32 %v1416, 0.0
    %v2014 = vmax.f32 %v1418, 0.0
    %v2015 = vmax.f32 %v1421, 0.0
    %v2016 = vmax.f32 %v1423, 0.0
    %v2017 = vmax.f32 %v1426, 0.0
    %v2018 = vmax.f32 %v1428, 0.0
    %v2019 = vmax.f32 %v1431, 0.0
    %v2020 = vmax.f32 %v1433, 0.0
    %v2021 = vmax.f32 %v1436, 0.0
    %v2022 = vmax.f32 %v1438, 0.0
    %v2023 = vmax.f32 %v1441, 0.0
    %v2024 = vmax.f32 %v1443, 0.0
    %v2025 = vmax.f32 %v1446, 0.0
    %v2026 = vmax.f32 %v1448, 0.0
    %v2027 = vmax.f32 %v1451, 0.0
    %v2028 = vmax.f32 %v1453, 0.0
    %v2029 = vmax.f32 %v1456, 0.0
    %v2030 = vmax.f32 %v1458, 0.0
    %v2031 = vmax.f32 %v1461, 0.0
    %v2032 = vmax.f32 %v1463, 0.0
    %v2033 = vmax.f32 %v1466, 0.0
    %v2034 = vmax.f32 %v1468, 0.0
    %v2035 = vmax.f32 %v1471, 0.0
    %v2036 = vmax.f32 %v1473, 0.0
    %v2037 = vmax.f32 %v1476, 0.0
    %v2038 = vmax.f32 %v1478, 0.0
    %v2039 = vmax.f32 %v1481, 0.0
    %v2040 = vmax.f32 %v1483, 0.0
    %v2041 = vmax.f32 %v1486, 0.0
    %v2042 = vmax.f32 %v1488, 0.0
    %v2043 = vmax.f32 %v1491, 0.0
    %v2044 = vmax.f32 %v1493, 0.0
    %v2045 = vmax.f32 %v1496, 0.0
    %v2046 = vmax.f32 %v1498, 0.0
    %v2047 = vmax.f32 %v1501, 0.0
    %v2048 = vmax.f32 %v1503, 0.0
    %v2049 = vmax.f32 %v1506, 0.0
    %v2050 = vmax.f32 %v1508, 0.0
    %v2051 = vmax.f32 %v1511, 0.0
    %v2052 = vmax.f32 %v1513, 0.0
    %v2053 = vmax.f32 %v1516, 0.0
    %v2054 = vmax.f32 %v1518, 0.0
    %v2055 = vmax.f32 %v1521, 0.0
    %v2056 = vmax.f32 %v1523, 0.0
    %v2057 = vmax.f32 %v1526, 0.0
    %v2058 = vmax.f32 %v1528, 0.0
    %v2059 = vmax.f32 %v1531, 0.0
    %v2060 = vmax.f32 %v1533, 0.0
    %v2061 = vmax.f32 %v1536, 0.0
    %v2062 = vmax.f32 %v1538, 0.0
    %v2063 = vmax.f32 %v1541, 0.0
    %v2064 = vmax.f32 %v1543, 0.0
    %v2065 = vmax.f32 %v1546, 0.0
    %v2066 = vmax.f32 %v1548, 0.0
    %v2067 = vmax.f32 %v1551, 0.0
    %v2068 = vmax.f32 %v1553, 0.0
    %v2069 = vmax.f32 %v1556, 0.0
    %v2070 = vmax.f32 %v1558, 0.0
    %v2071 = vmax.f32 %v1561, 0.0
    %v2072 = vmax.f32 %v1563, 0.0
    %v2073 = vmax.f32 %v1566, 0.0
    %v2074 = vmax.f32 %v1568, 0.0
    %v2075 = vmax.f32 %v1571, 0.0
    %v2076 = vmax.f32 %v1573, 0.0
    %v2077 = vmax.f32 %v1576, 0.0
    %v2078 = vmax.f32 %v1578, 0.0
    %v2079 = vmax.f32 %v1581, 0.0
    %v2080 = vmax.f32 %v1583, 0.0
    %v2081 = vmax.f32 %v1586, 0.0
    %v2082 = vmax.f32 %v1588, 0.0
    %v2083 = vmax.f32 %v1591, 0.0
    %v2084 = vmax.f32 %v1593, 0.0
    %v2085 = vmax.f32 %v1596, 0.0
    %v2086 = vmax.f32 %v1598, 0.0
    %v2087 = vmax.f32 %v1601, 0.0
    %v2088 = vmax.f32 %v1603, 0.0
    %v2089 = vmax.f32 %v1606, 0.0
    %v2090 = vmax.f32 %v1608, 0.0
    %v2091 = vmax.f32 %v1611, 0.0
    %v2092 = vmax.f32 %v1613, 0.0
    %v2093 = vmax.f32 %v1616, 0.0
    %v2094 = vmax.f32 %v1618, 0.0
    %v2095 = vmax.f32 %v1621, 0.0
    %v2096 = vmax.f32 %v1623, 0.0
    %v2097 = vmax.f32 %v1626, 0.0
    %v2098 = vmax.f32 %v1628, 0.0
    %v2099 = vmax.f32 %v1631, 0.0
    %v2100 = vmax.f32 %v1633, 0.0
    %v2101 = vmax.f32 %v1636, 0.0
    %v2102 = vmax.f32 %v1638, 0.0
    %v2103 = vmax.f32 %v1641, 0.0
    %v2104 = vmax.f32 %v1643, 0.0
    %v2105 = vmax.f32 %v1646, 0.0
    %v2106 = vmax.f32 %v1648, 0.0
    %v2107 = vmax.f32 %v1651, 0.0
    %v2108 = vmax.f32 %v1653, 0.0
    %v2109 = vmax.f32 %v1656, 0.0
    %v2110 = vmax.f32 %v1658, 0.0
    %v2111 = vmax.f32 %v1661, 0.0
    %v2112 = vmax.f32 %v1663, 0.0
    %v2113 = vmax.f32 %v1666, 0.0
    %v2114 = vmax.f32 %v1668, 0.0
    %v2115 = vmax.f32 %v1671, 0.0
    %v2116 = vmax.f32 %v1673, 0.0
    %v2117 = vmax.f32 %v1676, 0.0
    %v2118 = vmax.f32 %v1678, 0.0
    %v2119 = vmax.f32 %v1681, 0.0
    %v2120 = vmax.f32 %v1683, 0.0
    %v2121 = vmax.f32 %v1686, 0.0
    %v2122 = vmax.f32 %v1688, 0.0
    %v2123 = vmax.f32 %v1691, 0.0
    %v2124 = vmax.f32 %v1693, 0.0
    %v2125 = vmax.f32 %v1696, 0.0
    %v2126 = vmax.f32 %v1698, 0.0
    %v2127 = vmax.f32 %v1701, 0.0
    %v2128 = vmax.f32 %v1703, 0.0
    %v2129 = vmax.f32 %v1706, 0.0
    %v2130 = vmax.f32 %v1708, 0.0
    %v2131 = vmax.f32 %v1711, 0.0
    %v2132 = vmax.f32 %v1713, 0.0
    %v2133 = vmax.f32 %v1716, 0.0
    %v2134 = vmax.f32 %v1718, 0.0
    %v2135 = vmax.f32 %v1721, 0.0
    %v2136 = vmax.f32 %v1723, 0.0
    %v2137 = vmax.f32 %v1726, 0.0
    %v2138 = vmax.f32 %v1728, 0.0
    %v2139 = vmax.f32 %v1731, 0.0
    %v2140 = vmax.f32 %v1733, 0.0
    %v2141 = vmax.f32 %v1736, 0.0
    %v2142 = vmax.f32 %v1738, 0.0
    %v2143 = vmax.f32 %v1741, 0.0
    %v2144 = vmax.f32 %v1743, 0.0
    %v2145 = vmax.f32 %v1746, 0.0
    %v2146 = vmax.f32 %v1748, 0.0
    %v2147 = vmax.f32 %v1751, 0.0
    %v2148 = vmax.f32 %v1753, 0.0
    %v2149 = vmax.f32 %v1756, 0.0
    %v2150 = vmax.f32 %v1758, 0.0
    %v2151 = vmax.f32 %v1761, 0.0
    %v2152 = vmax.f32 %v1763, 0.0
    %v2153 = vmax.f32 %v1766, 0.0
    %v2154 = vmax.f32 %v1768, 0.0
    %v2155 = vmax.f32 %v1771, 0.0
    %v2156 = vmax.f32 %v1773, 0.0
    %v2157 = vmax.f32 %v1776, 0.0
    %v2158 = vmax.f32 %v1778, 0.0
    %v2159 = vmax.f32 %v1781, 0.0
    %v2160 = vmax.f32 %v1783, 0.0
    %v2161 = vmax.f32 %v1786, 0.0
    %v2162 = vmax.f32 %v1788, 0.0
    %v2163 = vmax.f32 %v1791, 0.0
    %v2164 = vmax.f32 %v1793, 0.0
    %v2165 = vmax.f32 %v1796, 0.0
    %v2166 = vmax.f32 %v1798, 0.0
    %v2167 = vmax.f32 %v1801, 0.0
    %v2168 = vmax.f32 %v1803, 0.0
    %v2169 = vmax.f32 %v1806, 0.0
    %v2170 = vmax.f32 %v1808, 0.0
    %v2171 = vmax.f32 %v1811, 0.0
    %v2172 = vmax.f32 %v1813, 0.0
    %v2173 = vmax.f32 %v1816, 0.0
    %v2174 = vmax.f32 %v1818, 0.0
    %v2175 = vmax.f32 %v1821, 0.0
    %v2176 = vmax.f32 %v1823, 0.0
    %v2177 = vmax.f32 %v1826, 0.0
    %v2178 = vmax.f32 %v1828, 0.0
    %v2179 = vmax.f32 %v1831, 0.0
    %v2180 = vmax.f32 %v1833, 0.0
    %v2181 = vmax.f32 %v1836, 0.0
    %v2182 = vmax.f32 %v1838, 0.0
    %v2183 = vmax.f32 %v1841, 0.0
    %v2184 = vmax.f32 %v1843, 0.0
    %v2185 = vmax.f32 %v1846, 0.0
    %v2186 = vmax.f32 %v1848, 0.0
    %v2187 = vmax.f32 %v1851, 0.0
    %v2188 = vmax.f32 %v1853, 0.0
    %v2189 = vmax.f32 %v1856, 0.0
    %v2190 = vmax.f32 %v1858, 0.0
    %v2191 = vmax.f32 %v1861, 0.0
    %v2192 = vmax.f32 %v1863, 0.0
    %v2193 = vmax.f32 %v1866, 0.0
    %v2194 = vmax.f32 %v1868, 0.0
    %v2195 = vmax.f32 %v1871, 0.0
    %v2196 = vmax.f32 %v1873, 0.0
    %v2197 = vmax.f32 %v1876, 0.0
    %v2198 = vmax.f32 %v1878, 0.0
    %v2199 = vmax.f32 %v1881, 0.0
    %v2200 = vmax.f32 %v1883, 0.0
    %v2201 = vmax.f32 %v1886, 0.0
    %v2202 = vmax.f32 %v1888, 0.0
    %v2203 = vmax.f32 %v1891, 0.0
    %v2204 = vmax.f32 %v1893, 0.0
    %v2205 = vmax.f32 %v1896, 0.0
    %v2206 = vmax.f32 %v1898, 0.0
    %v2207 = vmax.f32 %v1901, 0.0
    %v2208 = vmax.f32 %v1903, 0.0
    %v2209 = vmax.f32 %v1906, 0.0
    %v2210 = vmax.f32 %v1908, 0.0
    %v2211 = vmax.f32 %v1911, 0.0
    %v2212 = vmax.f32 %v1913, 0.0
    %v2213 = vmax.f32 %v1916, 0.0
    %v2214 = vmax.f32 %v1918, 0.0
    %v2215 = vmax.f32 %v1921, 0.0
    %v2216 = vmax.f32 %v1923, 0.0
    %v2217 = vmax.f32 %v1926, 0.0
    %v2218 = vmax.f32 %v1928, 0.0
    %v2219 = vmax.f32 %v1931, 0.0
    %v2220 = vmax.f32 %v1933, 0.0
    %v2221 = vmax.f32 %v1936, 0.0
    %v2222 = vmax.f32 %v1938, 0.0
    %v2223 = vmax.f32 %v1941, 0.0
    %v2224 = vmax.f32 %v1943, 0.0
    %v2225 = vmax.f32 %v1946, 0.0
    %v2226 = vmax.f32 %v1948, 0.0
    %v2227 = vmax.f32 %v1951, 0.0
    %v2228 = vmax.f32 %v1953, 0.0
    %v2229 = vmax.f32 %v1956, 0.0
    %v2230 = vmax.f32 %v1958, 0.0
    %v2231 = vmax.f32 %v1961, 0.0
    %v2232 = vmax.f32 %v1963, 0.0
    %v2233 = vmax.f32 %v1966, 0.0
    %v2234 = vmax.f32 %v1968, 0.0
    %v2235 = vmax.f32 %v1971, 0.0
    %v2236 = vmax.f32 %v1973, 0.0
    %v2237 = vmax.f32 %v1976, 0.0
    %v2238 = vmax.f32 %v1978, 0.0
    %v2239 = vmax.f32 %v1981, 0.0
    %v2240 = vmax.f32 %v1983, 0.0
    %v2241 = vpack.c.bf16 %v1986, %v1985
    %v2242 = vpack.c.bf16 %v1988, %v1987
    %v2243 = vpack.c.bf16 %v1990, %v1989
    %v2244 = vpack.c.bf16 %v1992, %v1991
    %v2245 = vpack.c.bf16 %v1994, %v1993
    %v2246 = vpack.c.bf16 %v1996, %v1995
    %v2247 = vpack.c.bf16 %v1998, %v1997
    %v2248 = vpack.c.bf16 %v2000, %v1999
    %v2249 = vpack.c.bf16 %v2002, %v2001
    %v2250 = vpack.c.bf16 %v2004, %v2003
    %v2251 = vpack.c.bf16 %v2006, %v2005
    %v2252 = vpack.c.bf16 %v2008, %v2007
    %v2253 = vpack.c.bf16 %v2010, %v2009
    %v2254 = vpack.c.bf16 %v2012, %v2011
    %v2255 = vpack.c.bf16 %v2014, %v2013
    %v2256 = vpack.c.bf16 %v2016, %v2015
    %v2257 = vpack.c.bf16 %v2018, %v2017
    %v2258 = vpack.c.bf16 %v2020, %v2019
    %v2259 = vpack.c.bf16 %v2022, %v2021
    %v2260 = vpack.c.bf16 %v2024, %v2023
    %v2261 = vpack.c.bf16 %v2026, %v2025
    %v2262 = vpack.c.bf16 %v2028, %v2027
    %v2263 = vpack.c.bf16 %v2030, %v2029
    %v2264 = vpack.c.bf16 %v2032, %v2031
    %v2265 = vpack.c.bf16 %v2034, %v2033
    %v2266 = vpack.c.bf16 %v2036, %v2035
    %v2267 = vpack.c.bf16 %v2038, %v2037
    %v2268 = vpack.c.bf16 %v2040, %v2039
    %v2269 = vpack.c.bf16 %v2042, %v2041
    %v2270 = vpack.c.bf16 %v2044, %v2043
    %v2271 = vpack.c.bf16 %v2046, %v2045
    %v2272 = vpack.c.bf16 %v2048, %v2047
    %v2273 = vpack.c.bf16 %v2050, %v2049
    %v2274 = vpack.c.bf16 %v2052, %v2051
    %v2275 = vpack.c.bf16 %v2054, %v2053
    %v2276 = vpack.c.bf16 %v2056, %v2055
    %v2277 = vpack.c.bf16 %v2058, %v2057
    %v2278 = vpack.c.bf16 %v2060, %v2059
    %v2279 = vpack.c.bf16 %v2062, %v2061
    %v2280 = vpack.c.bf16 %v2064, %v2063
    %v2281 = vpack.c.bf16 %v2066, %v2065
    %v2282 = vpack.c.bf16 %v2068, %v2067
    %v2283 = vpack.c.bf16 %v2070, %v2069
    %v2284 = vpack.c.bf16 %v2072, %v2071
    %v2285 = vpack.c.bf16 %v2074, %v2073
    %v2286 = vpack.c.bf16 %v2076, %v2075
    %v2287 = vpack.c.bf16 %v2078, %v2077
    %v2288 = vpack.c.bf16 %v2080, %v2079
    %v2289 = vpack.c.bf16 %v2082, %v2081
    %v2290 = vpack.c.bf16 %v2084, %v2083
    %v2291 = vpack.c.bf16 %v2086, %v2085
    %v2292 = vpack.c.bf16 %v2088, %v2087
    %v2293 = vpack.c.bf16 %v2090, %v2089
    %v2294 = vpack.c.bf16 %v2092, %v2091
    %v2295 = vpack.c.bf16 %v2094, %v2093
    %v2296 = vpack.c.bf16 %v2096, %v2095
    %v2297 = vpack.c.bf16 %v2098, %v2097
    %v2298 = vpack.c.bf16 %v2100, %v2099
    %v2299 = vpack.c.bf16 %v2102, %v2101
    %v2300 = vpack.c.bf16 %v2104, %v2103
    %v2301 = vpack.c.bf16 %v2106, %v2105
    %v2302 = vpack.c.bf16 %v2108, %v2107
    %v2303 = vpack.c.bf16 %v2110, %v2109
    %v2304 = vpack.c.bf16 %v2112, %v2111
    %v2305 = vpack.c.bf16 %v2114, %v2113
    %v2306 = vpack.c.bf16 %v2116, %v2115
    %v2307 = vpack.c.bf16 %v2118, %v2117
    %v2308 = vpack.c.bf16 %v2120, %v2119
    %v2309 = vpack.c.bf16 %v2122, %v2121
    %v2310 = vpack.c.bf16 %v2124, %v2123
    %v2311 = vpack.c.bf16 %v2126, %v2125
    %v2312 = vpack.c.bf16 %v2128, %v2127
    %v2313 = vpack.c.bf16 %v2130, %v2129
    %v2314 = vpack.c.bf16 %v2132, %v2131
    %v2315 = vpack.c.bf16 %v2134, %v2133
    %v2316 = vpack.c.bf16 %v2136, %v2135
    %v2317 = vpack.c.bf16 %v2138, %v2137
    %v2318 = vpack.c.bf16 %v2140, %v2139
    %v2319 = vpack.c.bf16 %v2142, %v2141
    %v2320 = vpack.c.bf16 %v2144, %v2143
    %v2321 = vpack.c.bf16 %v2146, %v2145
    %v2322 = vpack.c.bf16 %v2148, %v2147
    %v2323 = vpack.c.bf16 %v2150, %v2149
    %v2324 = vpack.c.bf16 %v2152, %v2151
    %v2325 = vpack.c.bf16 %v2154, %v2153
    %v2326 = vpack.c.bf16 %v2156, %v2155
    %v2327 = vpack.c.bf16 %v2158, %v2157
    %v2328 = vpack.c.bf16 %v2160, %v2159
    %v2329 = vpack.c.bf16 %v2162, %v2161
    %v2330 = vpack.c.bf16 %v2164, %v2163
    %v2331 = vpack.c.bf16 %v2166, %v2165
    %v2332 = vpack.c.bf16 %v2168, %v2167
    %v2333 = vpack.c.bf16 %v2170, %v2169
    %v2334 = vpack.c.bf16 %v2172, %v2171
    %v2335 = vpack.c.bf16 %v2174, %v2173
    %v2336 = vpack.c.bf16 %v2176, %v2175
    %v2337 = vpack.c.bf16 %v2178, %v2177
    %v2338 = vpack.c.bf16 %v2180, %v2179
    %v2339 = vpack.c.bf16 %v2182, %v2181
    %v2340 = vpack.c.bf16 %v2184, %v2183
    %v2341 = vpack.c.bf16 %v2186, %v2185
    %v2342 = vpack.c.bf16 %v2188, %v2187
    %v2343 = vpack.c.bf16 %v2190, %v2189
    %v2344 = vpack.c.bf16 %v2192, %v2191
    %v2345 = vpack.c.bf16 %v2194, %v2193
    %v2346 = vpack.c.bf16 %v2196, %v2195
    %v2347 = vpack.c.bf16 %v2198, %v2197
    %v2348 = vpack.c.bf16 %v2200, %v2199
    %v2349 = vpack.c.bf16 %v2202, %v2201
    %v2350 = vpack.c.bf16 %v2204, %v2203
    %v2351 = vpack.c.bf16 %v2206, %v2205
    %v2352 = vpack.c.bf16 %v2208, %v2207
    %v2353 = vpack.c.bf16 %v2210, %v2209
    %v2354 = vpack.c.bf16 %v2212, %v2211
    %v2355 = vpack.c.bf16 %v2214, %v2213
    %v2356 = vpack.c.bf16 %v2216, %v2215
    %v2357 = vpack.c.bf16 %v2218, %v2217
    %v2358 = vpack.c.bf16 %v2220, %v2219
    %v2359 = vpack.c.bf16 %v2222, %v2221
    %v2360 = vpack.c.bf16 %v2224, %v2223
    %v2361 = vpack.c.bf16 %v2226, %v2225
    %v2362 = vpack.c.bf16 %v2228, %v2227
    %v2363 = vpack.c.bf16 %v2230, %v2229
    %v2364 = vpack.c.bf16 %v2232, %v2231
    %v2365 = vpack.c.bf16 %v2234, %v2233
    %v2366 = vpack.c.bf16 %v2236, %v2235
    %v2367 = vpack.c.bf16 %v2238, %v2237
    %v2368 = vpack.c.bf16 %v2240, %v2239
    %v2369 = vld [vmem:[%s3] sm:$0xf]
    %v2370 = vld [vmem:[%s3 + $0x4] sm:$0xf]
    %v2371 = vld [vmem:[%s4] sm:$0x1]
    %v2373 = vperm.slane %v2371, 0
    %v2377 = vunpack.c.l.b16 %v2369
    %v2378 = vunpack.c.l.b16 %v2370
    %v2379 = vpack.c.b16 %v2378, %v2377
    %vm2381 = vcmask 130048
    %v2383 = vsel %vm2381, %v2241, 0
    %v2386 = vsel %vm2381, %v2242, 0
    %v2389 = vsel %vm2381, %v2243, 0
    %v2392 = vsel %vm2381, %v2244, 0
    %v2395 = vsel %vm2381, %v2245, 0
    %v2398 = vsel %vm2381, %v2246, 0
    %v2401 = vsel %vm2381, %v2247, 0
    %v2404 = vsel %vm2381, %v2248, 0
    %v2407 = vsel %vm2381, %v2249, 0
    %v2410 = vsel %vm2381, %v2250, 0
    %v2413 = vsel %vm2381, %v2251, 0
    %v2416 = vsel %vm2381, %v2252, 0
    %v2419 = vsel %vm2381, %v2253, 0
    %v2422 = vsel %vm2381, %v2254, 0
    %v2425 = vsel %vm2381, %v2255, 0
    %v2428 = vsel %vm2381, %v2256, 0
    %v2431 = vsel %vm2381, %v2257, 0
    %v2434 = vsel %vm2381, %v2258, 0
    %v2437 = vsel %vm2381, %v2259, 0
    %v2440 = vsel %vm2381, %v2260, 0
    %v2443 = vsel %vm2381, %v2261, 0
    %v2446 = vsel %vm2381, %v2262, 0
    %v2449 = vsel %vm2381, %v2263, 0
    %v2452 = vsel %vm2381, %v2264, 0
    %v2455 = vsel %vm2381, %v2265, 0
    %v2458 = vsel %vm2381, %v2266, 0
    %v2461 = vsel %vm2381, %v2267, 0
    %v2464 = vsel %vm2381, %v2268, 0
    %v2467 = vsel %vm2381, %v2269, 0
    %v2470 = vsel %vm2381, %v2270, 0
    %v2473 = vsel %vm2381, %v2271, 0
    %v2476 = vsel %vm2381, %v2272, 0
    %v2479 = vsel %vm2381, %v2273, 0
    %v2482 = vsel %vm2381, %v2274, 0
    %v2485 = vsel %vm2381, %v2275, 0
    %v2488 = vsel %vm2381, %v2276, 0
    %v2491 = vsel %vm2381, %v2277, 0
    %v2494 = vsel %vm2381, %v2278, 0
    %v2497 = vsel %vm2381, %v2279, 0
    %v2500 = vsel %vm2381, %v2280, 0
    %v2503 = vsel %vm2381, %v2281, 0
    %v2506 = vsel %vm2381, %v2282, 0
    %v2509 = vsel %vm2381, %v2283, 0
    %v2512 = vsel %vm2381, %v2284, 0
    %v2515 = vsel %vm2381, %v2285, 0
    %v2518 = vsel %vm2381, %v2286, 0
    %v2521 = vsel %vm2381, %v2287, 0
    %v2524 = vsel %vm2381, %v2288, 0
    %v2527 = vsel %vm2381, %v2289, 0
    %v2530 = vsel %vm2381, %v2290, 0
    %v2533 = vsel %vm2381, %v2291, 0
    %v2536 = vsel %vm2381, %v2292, 0
    %v2539 = vsel %vm2381, %v2293, 0
    %v2542 = vsel %vm2381, %v2294, 0
    %v2545 = vsel %vm2381, %v2295, 0
    %v2548 = vsel %vm2381, %v2296, 0
    %v2551 = vsel %vm2381, %v2297, 0
    %v2554 = vsel %vm2381, %v2298, 0
    %v2557 = vsel %vm2381, %v2299, 0
    %v2560 = vsel %vm2381, %v2300, 0
    %v2563 = vsel %vm2381, %v2301, 0
    %v2566 = vsel %vm2381, %v2302, 0
    %v2569 = vsel %vm2381, %v2303, 0
    %v2572 = vsel %vm2381, %v2304, 0
    %v2575 = vsel %vm2381, %v2305, 0
    %v2578 = vsel %vm2381, %v2306, 0
    %v2581 = vsel %vm2381, %v2307, 0
    %v2584 = vsel %vm2381, %v2308, 0
    %v2587 = vsel %vm2381, %v2309, 0
    %v2590 = vsel %vm2381, %v2310, 0
    %v2593 = vsel %vm2381, %v2311, 0
    %v2596 = vsel %vm2381, %v2312, 0
    %v2599 = vsel %vm2381, %v2313, 0
    %v2602 = vsel %vm2381, %v2314, 0
    %v2605 = vsel %vm2381, %v2315, 0
    %v2608 = vsel %vm2381, %v2316, 0
    %v2611 = vsel %vm2381, %v2317, 0
    %v2614 = vsel %vm2381, %v2318, 0
    %v2617 = vsel %vm2381, %v2319, 0
    %v2620 = vsel %vm2381, %v2320, 0
    %v2623 = vsel %vm2381, %v2321, 0
    %v2626 = vsel %vm2381, %v2322, 0
    %v2629 = vsel %vm2381, %v2323, 0
    %v2632 = vsel %vm2381, %v2324, 0
    %v2635 = vsel %vm2381, %v2325, 0
    %v2638 = vsel %vm2381, %v2326, 0
    %v2641 = vsel %vm2381, %v2327, 0
    %v2644 = vsel %vm2381, %v2328, 0
    %v2647 = vsel %vm2381, %v2329, 0
    %v2650 = vsel %vm2381, %v2330, 0
    %v2653 = vsel %vm2381, %v2331, 0
    %v2656 = vsel %vm2381, %v2332, 0
    %v2659 = vsel %vm2381, %v2333, 0
    %v2662 = vsel %vm2381, %v2334, 0
    %v2665 = vsel %vm2381, %v2335, 0
    %v2668 = vsel %vm2381, %v2336, 0
    %v2671 = vsel %vm2381, %v2337, 0
    %v2674 = vsel %vm2381, %v2338, 0
    %v2677 = vsel %vm2381, %v2339, 0
    %v2680 = vsel %vm2381, %v2340, 0
    %v2683 = vsel %vm2381, %v2341, 0
    %v2686 = vsel %vm2381, %v2342, 0
    %v2689 = vsel %vm2381, %v2343, 0
    %v2692 = vsel %vm2381, %v2344, 0
    %v2695 = vsel %vm2381, %v2345, 0
    %v2698 = vsel %vm2381, %v2346, 0
    %v2701 = vsel %vm2381, %v2347, 0
    %v2704 = vsel %vm2381, %v2348, 0
    %v2707 = vsel %vm2381, %v2349, 0
    %v2710 = vsel %vm2381, %v2350, 0
    %v2713 = vsel %vm2381, %v2351, 0
    %v2716 = vsel %vm2381, %v2352, 0
    %v2719 = vsel %vm2381, %v2353, 0
    %v2722 = vsel %vm2381, %v2354, 0
    %v2725 = vsel %vm2381, %v2355, 0
    %v2728 = vsel %vm2381, %v2356, 0
    %v2731 = vsel %vm2381, %v2357, 0
    %v2734 = vsel %vm2381, %v2358, 0
    %v2737 = vsel %vm2381, %v2359, 0
    %v2740 = vsel %vm2381, %v2360, 0
    %v2743 = vsel %vm2381, %v2361, 0
    %v2746 = vsel %vm2381, %v2362, 0
    %v2749 = vsel %vm2381, %v2363, 0
    %v2752 = vsel %vm2381, %v2364, 0
    %v2755 = vsel %vm2381, %v2365, 0
    %v2758 = vsel %vm2381, %v2366, 0
    %v2761 = vsel %vm2381, %v2367, 0
    %v2764 = vsel %vm2381, %v2368, 0
    %2766 = vmatpush.bf16.msra.mxu0 0
    %2767 = vmatpush.bf16.msra.mxu0 0
    %2768 = vmatpush.bf16.msra.mxu0 0
    %2769 = vmatpush.bf16.msra.mxu0 0
    %2770 = vmatpush.bf16.msra.mxu0 0
    %2771 = vmatpush.bf16.msra.mxu0 0
    %2772 = vmatpush.bf16.msra.mxu0 0
    %2773 = vmatpush.bf16.msra.mxu0 %v2379
    %2774 = vmatmul.bf16.gmra.mxu0 %v2383
    %v2775 = vpop.f32.mrf.mxu0
    %v2776 = vadd.f32 %v2373, %v2775
    %v2777 = vpop.f32.mrf.mxu0
    %v2778 = vadd.f32 %v2373, %v2777
    %2779 = vmatmul.bf16.gmra.mxu0 %v2386
    %v2780 = vpop.f32.mrf.mxu0
    %v2781 = vadd.f32 %v2373, %v2780
    %v2782 = vpop.f32.mrf.mxu0
    %v2783 = vadd.f32 %v2373, %v2782
    %2784 = vmatmul.bf16.gmra.mxu0 %v2389
    %v2785 = vpop.f32.mrf.mxu0
    %v2786 = vadd.f32 %v2373, %v2785
    %v2787 = vpop.f32.mrf.mxu0
    %v2788 = vadd.f32 %v2373, %v2787
    %2789 = vmatmul.bf16.gmra.mxu0 %v2392
    %v2790 = vpop.f32.mrf.mxu0
    %v2791 = vadd.f32 %v2373, %v2790
    %v2792 = vpop.f32.mrf.mxu0
    %v2793 = vadd.f32 %v2373, %v2792
    %2794 = vmatmul.bf16.gmra.mxu0 %v2395
    %v2795 = vpop.f32.mrf.mxu0
    %v2796 = vadd.f32 %v2373, %v2795
    %v2797 = vpop.f32.mrf.mxu0
    %v2798 = vadd.f32 %v2373, %v2797
    %2799 = vmatmul.bf16.gmra.mxu0 %v2398
    %v2800 = vpop.f32.mrf.mxu0
    %v2801 = vadd.f32 %v2373, %v2800
    %v2802 = vpop.f32.mrf.mxu0
    %v2803 = vadd.f32 %v2373, %v2802
    %2804 = vmatmul.bf16.gmra.mxu0 %v2401
    %v2805 = vpop.f32.mrf.mxu0
    %v2806 = vadd.f32 %v2373, %v2805
    %v2807 = vpop.f32.mrf.mxu0
    %v2808 = vadd.f32 %v2373, %v2807
    %2809 = vmatmul.bf16.gmra.mxu0 %v2404
    %v2810 = vpop.f32.mrf.mxu0
    %v2811 = vadd.f32 %v2373, %v2810
    %v2812 = vpop.f32.mrf.mxu0
    %v2813 = vadd.f32 %v2373, %v2812
    %2814 = vmatmul.bf16.gmra.mxu0 %v2407
    %v2815 = vpop.f32.mrf.mxu0
    %v2816 = vadd.f32 %v2373, %v2815
    %v2817 = vpop.f32.mrf.mxu0
    %v2818 = vadd.f32 %v2373, %v2817
    %2819 = vmatmul.bf16.gmra.mxu0 %v2410
    %v2820 = vpop.f32.mrf.mxu0
    %v2821 = vadd.f32 %v2373, %v2820
    %v2822 = vpop.f32.mrf.mxu0
    %v2823 = vadd.f32 %v2373, %v2822
    %2824 = vmatmul.bf16.gmra.mxu0 %v2413
    %v2825 = vpop.f32.mrf.mxu0
    %v2826 = vadd.f32 %v2373, %v2825
    %v2827 = vpop.f32.mrf.mxu0
    %v2828 = vadd.f32 %v2373, %v2827
    %2829 = vmatmul.bf16.gmra.mxu0 %v2416
    %v2830 = vpop.f32.mrf.mxu0
    %v2831 = vadd.f32 %v2373, %v2830
    %v2832 = vpop.f32.mrf.mxu0
    %v2833 = vadd.f32 %v2373, %v2832
    %2834 = vmatmul.bf16.gmra.mxu0 %v2419
    %v2835 = vpop.f32.mrf.mxu0
    %v2836 = vadd.f32 %v2373, %v2835
    %v2837 = vpop.f32.mrf.mxu0
    %v2838 = vadd.f32 %v2373, %v2837
    %2839 = vmatmul.bf16.gmra.mxu0 %v2422
    %v2840 = vpop.f32.mrf.mxu0
    %v2841 = vadd.f32 %v2373, %v2840
    %v2842 = vpop.f32.mrf.mxu0
    %v2843 = vadd.f32 %v2373, %v2842
    %2844 = vmatmul.bf16.gmra.mxu0 %v2425
    %v2845 = vpop.f32.mrf.mxu0
    %v2846 = vadd.f32 %v2373, %v2845
    %v2847 = vpop.f32.mrf.mxu0
    %v2848 = vadd.f32 %v2373, %v2847
    %2849 = vmatmul.bf16.gmra.mxu0 %v2428
    %v2850 = vpop.f32.mrf.mxu0
    %v2851 = vadd.f32 %v2373, %v2850
    %v2852 = vpop.f32.mrf.mxu0
    %v2853 = vadd.f32 %v2373, %v2852
    %2854 = vmatmul.bf16.gmra.mxu0 %v2431
    %v2855 = vpop.f32.mrf.mxu0
    %v2856 = vadd.f32 %v2373, %v2855
    %v2857 = vpop.f32.mrf.mxu0
    %v2858 = vadd.f32 %v2373, %v2857
    %2859 = vmatmul.bf16.gmra.mxu0 %v2434
    %v2860 = vpop.f32.mrf.mxu0
    %v2861 = vadd.f32 %v2373, %v2860
    %v2862 = vpop.f32.mrf.mxu0
    %v2863 = vadd.f32 %v2373, %v2862
    %2864 = vmatmul.bf16.gmra.mxu0 %v2437
    %v2865 = vpop.f32.mrf.mxu0
    %v2866 = vadd.f32 %v2373, %v2865
    %v2867 = vpop.f32.mrf.mxu0
    %v2868 = vadd.f32 %v2373, %v2867
    %2869 = vmatmul.bf16.gmra.mxu0 %v2440
    %v2870 = vpop.f32.mrf.mxu0
    %v2871 = vadd.f32 %v2373, %v2870
    %v2872 = vpop.f32.mrf.mxu0
    %v2873 = vadd.f32 %v2373, %v2872
    %2874 = vmatmul.bf16.gmra.mxu0 %v2443
    %v2875 = vpop.f32.mrf.mxu0
    %v2876 = vadd.f32 %v2373, %v2875
    %v2877 = vpop.f32.mrf.mxu0
    %v2878 = vadd.f32 %v2373, %v2877
    %2879 = vmatmul.bf16.gmra.mxu0 %v2446
    %v2880 = vpop.f32.mrf.mxu0
    %v2881 = vadd.f32 %v2373, %v2880
    %v2882 = vpop.f32.mrf.mxu0
    %v2883 = vadd.f32 %v2373, %v2882
    %2884 = vmatmul.bf16.gmra.mxu0 %v2449
    %v2885 = vpop.f32.mrf.mxu0
    %v2886 = vadd.f32 %v2373, %v2885
    %v2887 = vpop.f32.mrf.mxu0
    %v2888 = vadd.f32 %v2373, %v2887
    %2889 = vmatmul.bf16.gmra.mxu0 %v2452
    %v2890 = vpop.f32.mrf.mxu0
    %v2891 = vadd.f32 %v2373, %v2890
    %v2892 = vpop.f32.mrf.mxu0
    %v2893 = vadd.f32 %v2373, %v2892
    %2894 = vmatmul.bf16.gmra.mxu0 %v2455
    %v2895 = vpop.f32.mrf.mxu0
    %v2896 = vadd.f32 %v2373, %v2895
    %v2897 = vpop.f32.mrf.mxu0
    %v2898 = vadd.f32 %v2373, %v2897
    %2899 = vmatmul.bf16.gmra.mxu0 %v2458
    %v2900 = vpop.f32.mrf.mxu0
    %v2901 = vadd.f32 %v2373, %v2900
    %v2902 = vpop.f32.mrf.mxu0
    %v2903 = vadd.f32 %v2373, %v2902
    %2904 = vmatmul.bf16.gmra.mxu0 %v2461
    %v2905 = vpop.f32.mrf.mxu0
    %v2906 = vadd.f32 %v2373, %v2905
    %v2907 = vpop.f32.mrf.mxu0
    %v2908 = vadd.f32 %v2373, %v2907
    %2909 = vmatmul.bf16.gmra.mxu0 %v2464
    %v2910 = vpop.f32.mrf.mxu0
    %v2911 = vadd.f32 %v2373, %v2910
    %v2912 = vpop.f32.mrf.mxu0
    %v2913 = vadd.f32 %v2373, %v2912
    %2914 = vmatmul.bf16.gmra.mxu0 %v2467
    %v2915 = vpop.f32.mrf.mxu0
    %v2916 = vadd.f32 %v2373, %v2915
    %v2917 = vpop.f32.mrf.mxu0
    %v2918 = vadd.f32 %v2373, %v2917
    %2919 = vmatmul.bf16.gmra.mxu0 %v2470
    %v2920 = vpop.f32.mrf.mxu0
    %v2921 = vadd.f32 %v2373, %v2920
    %v2922 = vpop.f32.mrf.mxu0
    %v2923 = vadd.f32 %v2373, %v2922
    %2924 = vmatmul.bf16.gmra.mxu0 %v2473
    %v2925 = vpop.f32.mrf.mxu0
    %v2926 = vadd.f32 %v2373, %v2925
    %v2927 = vpop.f32.mrf.mxu0
    %v2928 = vadd.f32 %v2373, %v2927
    %2929 = vmatmul.bf16.gmra.mxu0 %v2476
    %v2930 = vpop.f32.mrf.mxu0
    %v2931 = vadd.f32 %v2373, %v2930
    %v2932 = vpop.f32.mrf.mxu0
    %v2933 = vadd.f32 %v2373, %v2932
    %2934 = vmatmul.bf16.gmra.mxu0 %v2479
    %v2935 = vpop.f32.mrf.mxu0
    %v2936 = vadd.f32 %v2373, %v2935
    %v2937 = vpop.f32.mrf.mxu0
    %v2938 = vadd.f32 %v2373, %v2937
    %2939 = vmatmul.bf16.gmra.mxu0 %v2482
    %v2940 = vpop.f32.mrf.mxu0
    %v2941 = vadd.f32 %v2373, %v2940
    %v2942 = vpop.f32.mrf.mxu0
    %v2943 = vadd.f32 %v2373, %v2942
    %2944 = vmatmul.bf16.gmra.mxu0 %v2485
    %v2945 = vpop.f32.mrf.mxu0
    %v2946 = vadd.f32 %v2373, %v2945
    %v2947 = vpop.f32.mrf.mxu0
    %v2948 = vadd.f32 %v2373, %v2947
    %2949 = vmatmul.bf16.gmra.mxu0 %v2488
    %v2950 = vpop.f32.mrf.mxu0
    %v2951 = vadd.f32 %v2373, %v2950
    %v2952 = vpop.f32.mrf.mxu0
    %v2953 = vadd.f32 %v2373, %v2952
    %2954 = vmatmul.bf16.gmra.mxu0 %v2491
    %v2955 = vpop.f32.mrf.mxu0
    %v2956 = vadd.f32 %v2373, %v2955
    %v2957 = vpop.f32.mrf.mxu0
    %v2958 = vadd.f32 %v2373, %v2957
    %2959 = vmatmul.bf16.gmra.mxu0 %v2494
    %v2960 = vpop.f32.mrf.mxu0
    %v2961 = vadd.f32 %v2373, %v2960
    %v2962 = vpop.f32.mrf.mxu0
    %v2963 = vadd.f32 %v2373, %v2962
    %2964 = vmatmul.bf16.gmra.mxu0 %v2497
    %v2965 = vpop.f32.mrf.mxu0
    %v2966 = vadd.f32 %v2373, %v2965
    %v2967 = vpop.f32.mrf.mxu0
    %v2968 = vadd.f32 %v2373, %v2967
    %2969 = vmatmul.bf16.gmra.mxu0 %v2500
    %v2970 = vpop.f32.mrf.mxu0
    %v2971 = vadd.f32 %v2373, %v2970
    %v2972 = vpop.f32.mrf.mxu0
    %v2973 = vadd.f32 %v2373, %v2972
    %2974 = vmatmul.bf16.gmra.mxu0 %v2503
    %v2975 = vpop.f32.mrf.mxu0
    %v2976 = vadd.f32 %v2373, %v2975
    %v2977 = vpop.f32.mrf.mxu0
    %v2978 = vadd.f32 %v2373, %v2977
    %2979 = vmatmul.bf16.gmra.mxu0 %v2506
    %v2980 = vpop.f32.mrf.mxu0
    %v2981 = vadd.f32 %v2373, %v2980
    %v2982 = vpop.f32.mrf.mxu0
    %v2983 = vadd.f32 %v2373, %v2982
    %2984 = vmatmul.bf16.gmra.mxu0 %v2509
    %v2985 = vpop.f32.mrf.mxu0
    %v2986 = vadd.f32 %v2373, %v2985
    %v2987 = vpop.f32.mrf.mxu0
    %v2988 = vadd.f32 %v2373, %v2987
    %2989 = vmatmul.bf16.gmra.mxu0 %v2512
    %v2990 = vpop.f32.mrf.mxu0
    %v2991 = vadd.f32 %v2373, %v2990
    %v2992 = vpop.f32.mrf.mxu0
    %v2993 = vadd.f32 %v2373, %v2992
    %2994 = vmatmul.bf16.gmra.mxu0 %v2515
    %v2995 = vpop.f32.mrf.mxu0
    %v2996 = vadd.f32 %v2373, %v2995
    %v2997 = vpop.f32.mrf.mxu0
    %v2998 = vadd.f32 %v2373, %v2997
    %2999 = vmatmul.bf16.gmra.mxu0 %v2518
    %v3000 = vpop.f32.mrf.mxu0
    %v3001 = vadd.f32 %v2373, %v3000
    %v3002 = vpop.f32.mrf.mxu0
    %v3003 = vadd.f32 %v2373, %v3002
    %3004 = vmatmul.bf16.gmra.mxu0 %v2521
    %v3005 = vpop.f32.mrf.mxu0
    %v3006 = vadd.f32 %v2373, %v3005
    %v3007 = vpop.f32.mrf.mxu0
    %v3008 = vadd.f32 %v2373, %v3007
    %3009 = vmatmul.bf16.gmra.mxu0 %v2524
    %v3010 = vpop.f32.mrf.mxu0
    %v3011 = vadd.f32 %v2373, %v3010
    %v3012 = vpop.f32.mrf.mxu0
    %v3013 = vadd.f32 %v2373, %v3012
    %3014 = vmatmul.bf16.gmra.mxu0 %v2527
    %v3015 = vpop.f32.mrf.mxu0
    %v3016 = vadd.f32 %v2373, %v3015
    %v3017 = vpop.f32.mrf.mxu0
    %v3018 = vadd.f32 %v2373, %v3017
    %3019 = vmatmul.bf16.gmra.mxu0 %v2530
    %v3020 = vpop.f32.mrf.mxu0
    %v3021 = vadd.f32 %v2373, %v3020
    %v3022 = vpop.f32.mrf.mxu0
    %v3023 = vadd.f32 %v2373, %v3022
    %3024 = vmatmul.bf16.gmra.mxu0 %v2533
    %v3025 = vpop.f32.mrf.mxu0
    %v3026 = vadd.f32 %v2373, %v3025
    %v3027 = vpop.f32.mrf.mxu0
    %v3028 = vadd.f32 %v2373, %v3027
    %3029 = vmatmul.bf16.gmra.mxu0 %v2536
    %v3030 = vpop.f32.mrf.mxu0
    %v3031 = vadd.f32 %v2373, %v3030
    %v3032 = vpop.f32.mrf.mxu0
    %v3033 = vadd.f32 %v2373, %v3032
    %3034 = vmatmul.bf16.gmra.mxu0 %v2539
    %v3035 = vpop.f32.mrf.mxu0
    %v3036 = vadd.f32 %v2373, %v3035
    %v3037 = vpop.f32.mrf.mxu0
    %v3038 = vadd.f32 %v2373, %v3037
    %3039 = vmatmul.bf16.gmra.mxu0 %v2542
    %v3040 = vpop.f32.mrf.mxu0
    %v3041 = vadd.f32 %v2373, %v3040
    %v3042 = vpop.f32.mrf.mxu0
    %v3043 = vadd.f32 %v2373, %v3042
    %3044 = vmatmul.bf16.gmra.mxu0 %v2545
    %v3045 = vpop.f32.mrf.mxu0
    %v3046 = vadd.f32 %v2373, %v3045
    %v3047 = vpop.f32.mrf.mxu0
    %v3048 = vadd.f32 %v2373, %v3047
    %3049 = vmatmul.bf16.gmra.mxu0 %v2548
    %v3050 = vpop.f32.mrf.mxu0
    %v3051 = vadd.f32 %v2373, %v3050
    %v3052 = vpop.f32.mrf.mxu0
    %v3053 = vadd.f32 %v2373, %v3052
    %3054 = vmatmul.bf16.gmra.mxu0 %v2551
    %v3055 = vpop.f32.mrf.mxu0
    %v3056 = vadd.f32 %v2373, %v3055
    %v3057 = vpop.f32.mrf.mxu0
    %v3058 = vadd.f32 %v2373, %v3057
    %3059 = vmatmul.bf16.gmra.mxu0 %v2554
    %v3060 = vpop.f32.mrf.mxu0
    %v3061 = vadd.f32 %v2373, %v3060
    %v3062 = vpop.f32.mrf.mxu0
    %v3063 = vadd.f32 %v2373, %v3062
    %3064 = vmatmul.bf16.gmra.mxu0 %v2557
    %v3065 = vpop.f32.mrf.mxu0
    %v3066 = vadd.f32 %v2373, %v3065
    %v3067 = vpop.f32.mrf.mxu0
    %v3068 = vadd.f32 %v2373, %v3067
    %3069 = vmatmul.bf16.gmra.mxu0 %v2560
    %v3070 = vpop.f32.mrf.mxu0
    %v3071 = vadd.f32 %v2373, %v3070
    %v3072 = vpop.f32.mrf.mxu0
    %v3073 = vadd.f32 %v2373, %v3072
    %3074 = vmatmul.bf16.gmra.mxu0 %v2563
    %v3075 = vpop.f32.mrf.mxu0
    %v3076 = vadd.f32 %v2373, %v3075
    %v3077 = vpop.f32.mrf.mxu0
    %v3078 = vadd.f32 %v2373, %v3077
    %3079 = vmatmul.bf16.gmra.mxu0 %v2566
    %v3080 = vpop.f32.mrf.mxu0
    %v3081 = vadd.f32 %v2373, %v3080
    %v3082 = vpop.f32.mrf.mxu0
    %v3083 = vadd.f32 %v2373, %v3082
    %3084 = vmatmul.bf16.gmra.mxu0 %v2569
    %v3085 = vpop.f32.mrf.mxu0
    %v3086 = vadd.f32 %v2373, %v3085
    %v3087 = vpop.f32.mrf.mxu0
    %v3088 = vadd.f32 %v2373, %v3087
    %3089 = vmatmul.bf16.gmra.mxu0 %v2572
    %v3090 = vpop.f32.mrf.mxu0
    %v3091 = vadd.f32 %v2373, %v3090
    %v3092 = vpop.f32.mrf.mxu0
    %v3093 = vadd.f32 %v2373, %v3092
    %3094 = vmatmul.bf16.gmra.mxu0 %v2575
    %v3095 = vpop.f32.mrf.mxu0
    %v3096 = vadd.f32 %v2373, %v3095
    %v3097 = vpop.f32.mrf.mxu0
    %v3098 = vadd.f32 %v2373, %v3097
    %3099 = vmatmul.bf16.gmra.mxu0 %v2578
    %v3100 = vpop.f32.mrf.mxu0
    %v3101 = vadd.f32 %v2373, %v3100
    %v3102 = vpop.f32.mrf.mxu0
    %v3103 = vadd.f32 %v2373, %v3102
    %3104 = vmatmul.bf16.gmra.mxu0 %v2581
    %v3105 = vpop.f32.mrf.mxu0
    %v3106 = vadd.f32 %v2373, %v3105
    %v3107 = vpop.f32.mrf.mxu0
    %v3108 = vadd.f32 %v2373, %v3107
    %3109 = vmatmul.bf16.gmra.mxu0 %v2584
    %v3110 = vpop.f32.mrf.mxu0
    %v3111 = vadd.f32 %v2373, %v3110
    %v3112 = vpop.f32.mrf.mxu0
    %v3113 = vadd.f32 %v2373, %v3112
    %3114 = vmatmul.bf16.gmra.mxu0 %v2587
    %v3115 = vpop.f32.mrf.mxu0
    %v3116 = vadd.f32 %v2373, %v3115
    %v3117 = vpop.f32.mrf.mxu0
    %v3118 = vadd.f32 %v2373, %v3117
    %3119 = vmatmul.bf16.gmra.mxu0 %v2590
    %v3120 = vpop.f32.mrf.mxu0
    %v3121 = vadd.f32 %v2373, %v3120
    %v3122 = vpop.f32.mrf.mxu0
    %v3123 = vadd.f32 %v2373, %v3122
    %3124 = vmatmul.bf16.gmra.mxu0 %v2593
    %v3125 = vpop.f32.mrf.mxu0
    %v3126 = vadd.f32 %v2373, %v3125
    %v3127 = vpop.f32.mrf.mxu0
    %v3128 = vadd.f32 %v2373, %v3127
    %3129 = vmatmul.bf16.gmra.mxu0 %v2596
    %v3130 = vpop.f32.mrf.mxu0
    %v3131 = vadd.f32 %v2373, %v3130
    %v3132 = vpop.f32.mrf.mxu0
    %v3133 = vadd.f32 %v2373, %v3132
    %3134 = vmatmul.bf16.gmra.mxu0 %v2599
    %v3135 = vpop.f32.mrf.mxu0
    %v3136 = vadd.f32 %v2373, %v3135
    %v3137 = vpop.f32.mrf.mxu0
    %v3138 = vadd.f32 %v2373, %v3137
    %3139 = vmatmul.bf16.gmra.mxu0 %v2602
    %v3140 = vpop.f32.mrf.mxu0
    %v3141 = vadd.f32 %v2373, %v3140
    %v3142 = vpop.f32.mrf.mxu0
    %v3143 = vadd.f32 %v2373, %v3142
    %3144 = vmatmul.bf16.gmra.mxu0 %v2605
    %v3145 = vpop.f32.mrf.mxu0
    %v3146 = vadd.f32 %v2373, %v3145
    %v3147 = vpop.f32.mrf.mxu0
    %v3148 = vadd.f32 %v2373, %v3147
    %3149 = vmatmul.bf16.gmra.mxu0 %v2608
    %v3150 = vpop.f32.mrf.mxu0
    %v3151 = vadd.f32 %v2373, %v3150
    %v3152 = vpop.f32.mrf.mxu0
    %v3153 = vadd.f32 %v2373, %v3152
    %3154 = vmatmul.bf16.gmra.mxu0 %v2611
    %v3155 = vpop.f32.mrf.mxu0
    %v3156 = vadd.f32 %v2373, %v3155
    %v3157 = vpop.f32.mrf.mxu0
    %v3158 = vadd.f32 %v2373, %v3157
    %3159 = vmatmul.bf16.gmra.mxu0 %v2614
    %v3160 = vpop.f32.mrf.mxu0
    %v3161 = vadd.f32 %v2373, %v3160
    %v3162 = vpop.f32.mrf.mxu0
    %v3163 = vadd.f32 %v2373, %v3162
    %3164 = vmatmul.bf16.gmra.mxu0 %v2617
    %v3165 = vpop.f32.mrf.mxu0
    %v3166 = vadd.f32 %v2373, %v3165
    %v3167 = vpop.f32.mrf.mxu0
    %v3168 = vadd.f32 %v2373, %v3167
    %3169 = vmatmul.bf16.gmra.mxu0 %v2620
    %v3170 = vpop.f32.mrf.mxu0
    %v3171 = vadd.f32 %v2373, %v3170
    %v3172 = vpop.f32.mrf.mxu0
    %v3173 = vadd.f32 %v2373, %v3172
    %3174 = vmatmul.bf16.gmra.mxu0 %v2623
    %v3175 = vpop.f32.mrf.mxu0
    %v3176 = vadd.f32 %v2373, %v3175
    %v3177 = vpop.f32.mrf.mxu0
    %v3178 = vadd.f32 %v2373, %v3177
    %3179 = vmatmul.bf16.gmra.mxu0 %v2626
    %v3180 = vpop.f32.mrf.mxu0
    %v3181 = vadd.f32 %v2373, %v3180
    %v3182 = vpop.f32.mrf.mxu0
    %v3183 = vadd.f32 %v2373, %v3182
    %3184 = vmatmul.bf16.gmra.mxu0 %v2629
    %v3185 = vpop.f32.mrf.mxu0
    %v3186 = vadd.f32 %v2373, %v3185
    %v3187 = vpop.f32.mrf.mxu0
    %v3188 = vadd.f32 %v2373, %v3187
    %3189 = vmatmul.bf16.gmra.mxu0 %v2632
    %v3190 = vpop.f32.mrf.mxu0
    %v3191 = vadd.f32 %v2373, %v3190
    %v3192 = vpop.f32.mrf.mxu0
    %v3193 = vadd.f32 %v2373, %v3192
    %3194 = vmatmul.bf16.gmra.mxu0 %v2635
    %v3195 = vpop.f32.mrf.mxu0
    %v3196 = vadd.f32 %v2373, %v3195
    %v3197 = vpop.f32.mrf.mxu0
    %v3198 = vadd.f32 %v2373, %v3197
    %3199 = vmatmul.bf16.gmra.mxu0 %v2638
    %v3200 = vpop.f32.mrf.mxu0
    %v3201 = vadd.f32 %v2373, %v3200
    %v3202 = vpop.f32.mrf.mxu0
    %v3203 = vadd.f32 %v2373, %v3202
    %3204 = vmatmul.bf16.gmra.mxu0 %v2641
    %v3205 = vpop.f32.mrf.mxu0
    %v3206 = vadd.f32 %v2373, %v3205
    %v3207 = vpop.f32.mrf.mxu0
    %v3208 = vadd.f32 %v2373, %v3207
    %3209 = vmatmul.bf16.gmra.mxu0 %v2644
    %v3210 = vpop.f32.mrf.mxu0
    %v3211 = vadd.f32 %v2373, %v3210
    %v3212 = vpop.f32.mrf.mxu0
    %v3213 = vadd.f32 %v2373, %v3212
    %3214 = vmatmul.bf16.gmra.mxu0 %v2647
    %v3215 = vpop.f32.mrf.mxu0
    %v3216 = vadd.f32 %v2373, %v3215
    %v3217 = vpop.f32.mrf.mxu0
    %v3218 = vadd.f32 %v2373, %v3217
    %3219 = vmatmul.bf16.gmra.mxu0 %v2650
    %v3220 = vpop.f32.mrf.mxu0
    %v3221 = vadd.f32 %v2373, %v3220
    %v3222 = vpop.f32.mrf.mxu0
    %v3223 = vadd.f32 %v2373, %v3222
    %3224 = vmatmul.bf16.gmra.mxu0 %v2653
    %v3225 = vpop.f32.mrf.mxu0
    %v3226 = vadd.f32 %v2373, %v3225
    %v3227 = vpop.f32.mrf.mxu0
    %v3228 = vadd.f32 %v2373, %v3227
    %3229 = vmatmul.bf16.gmra.mxu0 %v2656
    %v3230 = vpop.f32.mrf.mxu0
    %v3231 = vadd.f32 %v2373, %v3230
    %v3232 = vpop.f32.mrf.mxu0
    %v3233 = vadd.f32 %v2373, %v3232
    %3234 = vmatmul.bf16.gmra.mxu0 %v2659
    %v3235 = vpop.f32.mrf.mxu0
    %v3236 = vadd.f32 %v2373, %v3235
    %v3237 = vpop.f32.mrf.mxu0
    %v3238 = vadd.f32 %v2373, %v3237
    %3239 = vmatmul.bf16.gmra.mxu0 %v2662
    %v3240 = vpop.f32.mrf.mxu0
    %v3241 = vadd.f32 %v2373, %v3240
    %v3242 = vpop.f32.mrf.mxu0
    %v3243 = vadd.f32 %v2373, %v3242
    %3244 = vmatmul.bf16.gmra.mxu0 %v2665
    %v3245 = vpop.f32.mrf.mxu0
    %v3246 = vadd.f32 %v2373, %v3245
    %v3247 = vpop.f32.mrf.mxu0
    %v3248 = vadd.f32 %v2373, %v3247
    %3249 = vmatmul.bf16.gmra.mxu0 %v2668
    %v3250 = vpop.f32.mrf.mxu0
    %v3251 = vadd.f32 %v2373, %v3250
    %v3252 = vpop.f32.mrf.mxu0
    %v3253 = vadd.f32 %v2373, %v3252
    %3254 = vmatmul.bf16.gmra.mxu0 %v2671
    %v3255 = vpop.f32.mrf.mxu0
    %v3256 = vadd.f32 %v2373, %v3255
    %v3257 = vpop.f32.mrf.mxu0
    %v3258 = vadd.f32 %v2373, %v3257
    %3259 = vmatmul.bf16.gmra.mxu0 %v2674
    %v3260 = vpop.f32.mrf.mxu0
    %v3261 = vadd.f32 %v2373, %v3260
    %v3262 = vpop.f32.mrf.mxu0
    %v3263 = vadd.f32 %v2373, %v3262
    %3264 = vmatmul.bf16.gmra.mxu0 %v2677
    %v3265 = vpop.f32.mrf.mxu0
    %v3266 = vadd.f32 %v2373, %v3265
    %v3267 = vpop.f32.mrf.mxu0
    %v3268 = vadd.f32 %v2373, %v3267
    %3269 = vmatmul.bf16.gmra.mxu0 %v2680
    %v3270 = vpop.f32.mrf.mxu0
    %v3271 = vadd.f32 %v2373, %v3270
    %v3272 = vpop.f32.mrf.mxu0
    %v3273 = vadd.f32 %v2373, %v3272
    %3274 = vmatmul.bf16.gmra.mxu0 %v2683
    %v3275 = vpop.f32.mrf.mxu0
    %v3276 = vadd.f32 %v2373, %v3275
    %v3277 = vpop.f32.mrf.mxu0
    %v3278 = vadd.f32 %v2373, %v3277
    %3279 = vmatmul.bf16.gmra.mxu0 %v2686
    %v3280 = vpop.f32.mrf.mxu0
    %v3281 = vadd.f32 %v2373, %v3280
    %v3282 = vpop.f32.mrf.mxu0
    %v3283 = vadd.f32 %v2373, %v3282
    %3284 = vmatmul.bf16.gmra.mxu0 %v2689
    %v3285 = vpop.f32.mrf.mxu0
    %v3286 = vadd.f32 %v2373, %v3285
    %v3287 = vpop.f32.mrf.mxu0
    %v3288 = vadd.f32 %v2373, %v3287
    %3289 = vmatmul.bf16.gmra.mxu0 %v2692
    %v3290 = vpop.f32.mrf.mxu0
    %v3291 = vadd.f32 %v2373, %v3290
    %v3292 = vpop.f32.mrf.mxu0
    %v3293 = vadd.f32 %v2373, %v3292
    %3294 = vmatmul.bf16.gmra.mxu0 %v2695
    %v3295 = vpop.f32.mrf.mxu0
    %v3296 = vadd.f32 %v2373, %v3295
    %v3297 = vpop.f32.mrf.mxu0
    %v3298 = vadd.f32 %v2373, %v3297
    %3299 = vmatmul.bf16.gmra.mxu0 %v2698
    %v3300 = vpop.f32.mrf.mxu0
    %v3301 = vadd.f32 %v2373, %v3300
    %v3302 = vpop.f32.mrf.mxu0
    %v3303 = vadd.f32 %v2373, %v3302
    %3304 = vmatmul.bf16.gmra.mxu0 %v2701
    %v3305 = vpop.f32.mrf.mxu0
    %v3306 = vadd.f32 %v2373, %v3305
    %v3307 = vpop.f32.mrf.mxu0
    %v3308 = vadd.f32 %v2373, %v3307
    %3309 = vmatmul.bf16.gmra.mxu0 %v2704
    %v3310 = vpop.f32.mrf.mxu0
    %v3311 = vadd.f32 %v2373, %v3310
    %v3312 = vpop.f32.mrf.mxu0
    %v3313 = vadd.f32 %v2373, %v3312
    %3314 = vmatmul.bf16.gmra.mxu0 %v2707
    %v3315 = vpop.f32.mrf.mxu0
    %v3316 = vadd.f32 %v2373, %v3315
    %v3317 = vpop.f32.mrf.mxu0
    %v3318 = vadd.f32 %v2373, %v3317
    %3319 = vmatmul.bf16.gmra.mxu0 %v2710
    %v3320 = vpop.f32.mrf.mxu0
    %v3321 = vadd.f32 %v2373, %v3320
    %v3322 = vpop.f32.mrf.mxu0
    %v3323 = vadd.f32 %v2373, %v3322
    %3324 = vmatmul.bf16.gmra.mxu0 %v2713
    %v3325 = vpop.f32.mrf.mxu0
    %v3326 = vadd.f32 %v2373, %v3325
    %v3327 = vpop.f32.mrf.mxu0
    %v3328 = vadd.f32 %v2373, %v3327
    %3329 = vmatmul.bf16.gmra.mxu0 %v2716
    %v3330 = vpop.f32.mrf.mxu0
    %v3331 = vadd.f32 %v2373, %v3330
    %v3332 = vpop.f32.mrf.mxu0
    %v3333 = vadd.f32 %v2373, %v3332
    %3334 = vmatmul.bf16.gmra.mxu0 %v2719
    %v3335 = vpop.f32.mrf.mxu0
    %v3336 = vadd.f32 %v2373, %v3335
    %v3337 = vpop.f32.mrf.mxu0
    %v3338 = vadd.f32 %v2373, %v3337
    %3339 = vmatmul.bf16.gmra.mxu0 %v2722
    %v3340 = vpop.f32.mrf.mxu0
    %v3341 = vadd.f32 %v2373, %v3340
    %v3342 = vpop.f32.mrf.mxu0
    %v3343 = vadd.f32 %v2373, %v3342
    %3344 = vmatmul.bf16.gmra.mxu0 %v2725
    %v3345 = vpop.f32.mrf.mxu0
    %v3346 = vadd.f32 %v2373, %v3345
    %v3347 = vpop.f32.mrf.mxu0
    %v3348 = vadd.f32 %v2373, %v3347
    %3349 = vmatmul.bf16.gmra.mxu0 %v2728
    %v3350 = vpop.f32.mrf.mxu0
    %v3351 = vadd.f32 %v2373, %v3350
    %v3352 = vpop.f32.mrf.mxu0
    %v3353 = vadd.f32 %v2373, %v3352
    %3354 = vmatmul.bf16.gmra.mxu0 %v2731
    %v3355 = vpop.f32.mrf.mxu0
    %v3356 = vadd.f32 %v2373, %v3355
    %v3357 = vpop.f32.mrf.mxu0
    %v3358 = vadd.f32 %v2373, %v3357
    %3359 = vmatmul.bf16.gmra.mxu0 %v2734
    %v3360 = vpop.f32.mrf.mxu0
    %v3361 = vadd.f32 %v2373, %v3360
    %v3362 = vpop.f32.mrf.mxu0
    %v3363 = vadd.f32 %v2373, %v3362
    %3364 = vmatmul.bf16.gmra.mxu0 %v2737
    %v3365 = vpop.f32.mrf.mxu0
    %v3366 = vadd.f32 %v2373, %v3365
    %v3367 = vpop.f32.mrf.mxu0
    %v3368 = vadd.f32 %v2373, %v3367
    %3369 = vmatmul.bf16.gmra.mxu0 %v2740
    %v3370 = vpop.f32.mrf.mxu0
    %v3371 = vadd.f32 %v2373, %v3370
    %v3372 = vpop.f32.mrf.mxu0
    %v3373 = vadd.f32 %v2373, %v3372
    %3374 = vmatmul.bf16.gmra.mxu0 %v2743
    %v3375 = vpop.f32.mrf.mxu0
    %v3376 = vadd.f32 %v2373, %v3375
    %v3377 = vpop.f32.mrf.mxu0
    %v3378 = vadd.f32 %v2373, %v3377
    %3379 = vmatmul.bf16.gmra.mxu0 %v2746
    %v3380 = vpop.f32.mrf.mxu0
    %v3381 = vadd.f32 %v2373, %v3380
    %v3382 = vpop.f32.mrf.mxu0
    %v3383 = vadd.f32 %v2373, %v3382
    %3384 = vmatmul.bf16.gmra.mxu0 %v2749
    %v3385 = vpop.f32.mrf.mxu0
    %v3386 = vadd.f32 %v2373, %v3385
    %v3387 = vpop.f32.mrf.mxu0
    %v3388 = vadd.f32 %v2373, %v3387
    %3389 = vmatmul.bf16.gmra.mxu0 %v2752
    %v3390 = vpop.f32.mrf.mxu0
    %v3391 = vadd.f32 %v2373, %v3390
    %v3392 = vpop.f32.mrf.mxu0
    %v3393 = vadd.f32 %v2373, %v3392
    %3394 = vmatmul.bf16.gmra.mxu0 %v2755
    %v3395 = vpop.f32.mrf.mxu0
    %v3396 = vadd.f32 %v2373, %v3395
    %v3397 = vpop.f32.mrf.mxu0
    %v3398 = vadd.f32 %v2373, %v3397
    %3399 = vmatmul.bf16.gmra.mxu0 %v2758
    %v3400 = vpop.f32.mrf.mxu0
    %v3401 = vadd.f32 %v2373, %v3400
    %v3402 = vpop.f32.mrf.mxu0
    %v3403 = vadd.f32 %v2373, %v3402
    %3404 = vmatmul.bf16.gmra.mxu0 %v2761
    %v3405 = vpop.f32.mrf.mxu0
    %v3406 = vadd.f32 %v2373, %v3405
    %v3407 = vpop.f32.mrf.mxu0
    %v3408 = vadd.f32 %v2373, %v3407
    %3409 = vmatmul.bf16.gmra.mxu0 %v2764
    %v3410 = vpop.f32.mrf.mxu0
    %v3411 = vadd.f32 %v2373, %v3410
    %v3412 = vpop.f32.mrf.mxu0
    %v3413 = vadd.f32 %v2373, %v3412
    %3414 = vdwg.mxu0
    %v3415 = vmax.f32 %v2776, 0.0
    %v3416 = vmax.f32 %v2778, 0.0
    %v3417 = vmax.f32 %v2781, 0.0
    %v3418 = vmax.f32 %v2783, 0.0
    %v3419 = vmax.f32 %v2786, 0.0
    %v3420 = vmax.f32 %v2788, 0.0
    %v3421 = vmax.f32 %v2791, 0.0
    %v3422 = vmax.f32 %v2793, 0.0
    %v3423 = vmax.f32 %v2796, 0.0
    %v3424 = vmax.f32 %v2798, 0.0
    %v3425 = vmax.f32 %v2801, 0.0
    %v3426 = vmax.f32 %v2803, 0.0
    %v3427 = vmax.f32 %v2806, 0.0
    %v3428 = vmax.f32 %v2808, 0.0
    %v3429 = vmax.f32 %v2811, 0.0
    %v3430 = vmax.f32 %v2813, 0.0
    %v3431 = vmax.f32 %v2816, 0.0
    %v3432 = vmax.f32 %v2818, 0.0
    %v3433 = vmax.f32 %v2821, 0.0
    %v3434 = vmax.f32 %v2823, 0.0
    %v3435 = vmax.f32 %v2826, 0.0
    %v3436 = vmax.f32 %v2828, 0.0
    %v3437 = vmax.f32 %v2831, 0.0
    %v3438 = vmax.f32 %v2833, 0.0
    %v3439 = vmax.f32 %v2836, 0.0
    %v3440 = vmax.f32 %v2838, 0.0
    %v3441 = vmax.f32 %v2841, 0.0
    %v3442 = vmax.f32 %v2843, 0.0
    %v3443 = vmax.f32 %v2846, 0.0
    %v3444 = vmax.f32 %v2848, 0.0
    %v3445 = vmax.f32 %v2851, 0.0
    %v3446 = vmax.f32 %v2853, 0.0
    %v3447 = vmax.f32 %v2856, 0.0
    %v3448 = vmax.f32 %v2858, 0.0
    %v3449 = vmax.f32 %v2861, 0.0
    %v3450 = vmax.f32 %v2863, 0.0
    %v3451 = vmax.f32 %v2866, 0.0
    %v3452 = vmax.f32 %v2868, 0.0
    %v3453 = vmax.f32 %v2871, 0.0
    %v3454 = vmax.f32 %v2873, 0.0
    %v3455 = vmax.f32 %v2876, 0.0
    %v3456 = vmax.f32 %v2878, 0.0
    %v3457 = vmax.f32 %v2881, 0.0
    %v3458 = vmax.f32 %v2883, 0.0
    %v3459 = vmax.f32 %v2886, 0.0
    %v3460 = vmax.f32 %v2888, 0.0
    %v3461 = vmax.f32 %v2891, 0.0
    %v3462 = vmax.f32 %v2893, 0.0
    %v3463 = vmax.f32 %v2896, 0.0
    %v3464 = vmax.f32 %v2898, 0.0
    %v3465 = vmax.f32 %v2901, 0.0
    %v3466 = vmax.f32 %v2903, 0.0
    %v3467 = vmax.f32 %v2906, 0.0
    %v3468 = vmax.f32 %v2908, 0.0
    %v3469 = vmax.f32 %v2911, 0.0
    %v3470 = vmax.f32 %v2913, 0.0
    %v3471 = vmax.f32 %v2916, 0.0
    %v3472 = vmax.f32 %v2918, 0.0
    %v3473 = vmax.f32 %v2921, 0.0
    %v3474 = vmax.f32 %v2923, 0.0
    %v3475 = vmax.f32 %v2926, 0.0
    %v3476 = vmax.f32 %v2928, 0.0
    %v3477 = vmax.f32 %v2931, 0.0
    %v3478 = vmax.f32 %v2933, 0.0
    %v3479 = vmax.f32 %v2936, 0.0
    %v3480 = vmax.f32 %v2938, 0.0
    %v3481 = vmax.f32 %v2941, 0.0
    %v3482 = vmax.f32 %v2943, 0.0
    %v3483 = vmax.f32 %v2946, 0.0
    %v3484 = vmax.f32 %v2948, 0.0
    %v3485 = vmax.f32 %v2951, 0.0
    %v3486 = vmax.f32 %v2953, 0.0
    %v3487 = vmax.f32 %v2956, 0.0
    %v3488 = vmax.f32 %v2958, 0.0
    %v3489 = vmax.f32 %v2961, 0.0
    %v3490 = vmax.f32 %v2963, 0.0
    %v3491 = vmax.f32 %v2966, 0.0
    %v3492 = vmax.f32 %v2968, 0.0
    %v3493 = vmax.f32 %v2971, 0.0
    %v3494 = vmax.f32 %v2973, 0.0
    %v3495 = vmax.f32 %v2976, 0.0
    %v3496 = vmax.f32 %v2978, 0.0
    %v3497 = vmax.f32 %v2981, 0.0
    %v3498 = vmax.f32 %v2983, 0.0
    %v3499 = vmax.f32 %v2986, 0.0
    %v3500 = vmax.f32 %v2988, 0.0
    %v3501 = vmax.f32 %v2991, 0.0
    %v3502 = vmax.f32 %v2993, 0.0
    %v3503 = vmax.f32 %v2996, 0.0
    %v3504 = vmax.f32 %v2998, 0.0
    %v3505 = vmax.f32 %v3001, 0.0
    %v3506 = vmax.f32 %v3003, 0.0
    %v3507 = vmax.f32 %v3006, 0.0
    %v3508 = vmax.f32 %v3008, 0.0
    %v3509 = vmax.f32 %v3011, 0.0
    %v3510 = vmax.f32 %v3013, 0.0
    %v3511 = vmax.f32 %v3016, 0.0
    %v3512 = vmax.f32 %v3018, 0.0
    %v3513 = vmax.f32 %v3021, 0.0
    %v3514 = vmax.f32 %v3023, 0.0
    %v3515 = vmax.f32 %v3026, 0.0
    %v3516 = vmax.f32 %v3028, 0.0
    %v3517 = vmax.f32 %v3031, 0.0
    %v3518 = vmax.f32 %v3033, 0.0
    %v3519 = vmax.f32 %v3036, 0.0
    %v3520 = vmax.f32 %v3038, 0.0
    %v3521 = vmax.f32 %v3041, 0.0
    %v3522 = vmax.f32 %v3043, 0.0
    %v3523 = vmax.f32 %v3046, 0.0
    %v3524 = vmax.f32 %v3048, 0.0
    %v3525 = vmax.f32 %v3051, 0.0
    %v3526 = vmax.f32 %v3053, 0.0
    %v3527 = vmax.f32 %v3056, 0.0
    %v3528 = vmax.f32 %v3058, 0.0
    %v3529 = vmax.f32 %v3061, 0.0
    %v3530 = vmax.f32 %v3063, 0.0
    %v3531 = vmax.f32 %v3066, 0.0
    %v3532 = vmax.f32 %v3068, 0.0
    %v3533 = vmax.f32 %v3071, 0.0
    %v3534 = vmax.f32 %v3073, 0.0
    %v3535 = vmax.f32 %v3076, 0.0
    %v3536 = vmax.f32 %v3078, 0.0
    %v3537 = vmax.f32 %v3081, 0.0
    %v3538 = vmax.f32 %v3083, 0.0
    %v3539 = vmax.f32 %v3086, 0.0
    %v3540 = vmax.f32 %v3088, 0.0
    %v3541 = vmax.f32 %v3091, 0.0
    %v3542 = vmax.f32 %v3093, 0.0
    %v3543 = vmax.f32 %v3096, 0.0
    %v3544 = vmax.f32 %v3098, 0.0
    %v3545 = vmax.f32 %v3101, 0.0
    %v3546 = vmax.f32 %v3103, 0.0
    %v3547 = vmax.f32 %v3106, 0.0
    %v3548 = vmax.f32 %v3108, 0.0
    %v3549 = vmax.f32 %v3111, 0.0
    %v3550 = vmax.f32 %v3113, 0.0
    %v3551 = vmax.f32 %v3116, 0.0
    %v3552 = vmax.f32 %v3118, 0.0
    %v3553 = vmax.f32 %v3121, 0.0
    %v3554 = vmax.f32 %v3123, 0.0
    %v3555 = vmax.f32 %v3126, 0.0
    %v3556 = vmax.f32 %v3128, 0.0
    %v3557 = vmax.f32 %v3131, 0.0
    %v3558 = vmax.f32 %v3133, 0.0
    %v3559 = vmax.f32 %v3136, 0.0
    %v3560 = vmax.f32 %v3138, 0.0
    %v3561 = vmax.f32 %v3141, 0.0
    %v3562 = vmax.f32 %v3143, 0.0
    %v3563 = vmax.f32 %v3146, 0.0
    %v3564 = vmax.f32 %v3148, 0.0
    %v3565 = vmax.f32 %v3151, 0.0
    %v3566 = vmax.f32 %v3153, 0.0
    %v3567 = vmax.f32 %v3156, 0.0
    %v3568 = vmax.f32 %v3158, 0.0
    %v3569 = vmax.f32 %v3161, 0.0
    %v3570 = vmax.f32 %v3163, 0.0
    %v3571 = vmax.f32 %v3166, 0.0
    %v3572 = vmax.f32 %v3168, 0.0
    %v3573 = vmax.f32 %v3171, 0.0
    %v3574 = vmax.f32 %v3173, 0.0
    %v3575 = vmax.f32 %v3176, 0.0
    %v3576 = vmax.f32 %v3178, 0.0
    %v3577 = vmax.f32 %v3181, 0.0
    %v3578 = vmax.f32 %v3183, 0.0
    %v3579 = vmax.f32 %v3186, 0.0
    %v3580 = vmax.f32 %v3188, 0.0
    %v3581 = vmax.f32 %v3191, 0.0
    %v3582 = vmax.f32 %v3193, 0.0
    %v3583 = vmax.f32 %v3196, 0.0
    %v3584 = vmax.f32 %v3198, 0.0
    %v3585 = vmax.f32 %v3201, 0.0
    %v3586 = vmax.f32 %v3203, 0.0
    %v3587 = vmax.f32 %v3206, 0.0
    %v3588 = vmax.f32 %v3208, 0.0
    %v3589 = vmax.f32 %v3211, 0.0
    %v3590 = vmax.f32 %v3213, 0.0
    %v3591 = vmax.f32 %v3216, 0.0
    %v3592 = vmax.f32 %v3218, 0.0
    %v3593 = vmax.f32 %v3221, 0.0
    %v3594 = vmax.f32 %v3223, 0.0
    %v3595 = vmax.f32 %v3226, 0.0
    %v3596 = vmax.f32 %v3228, 0.0
    %v3597 = vmax.f32 %v3231, 0.0
    %v3598 = vmax.f32 %v3233, 0.0
    %v3599 = vmax.f32 %v3236, 0.0
    %v3600 = vmax.f32 %v3238, 0.0
    %v3601 = vmax.f32 %v3241, 0.0
    %v3602 = vmax.f32 %v3243, 0.0
    %v3603 = vmax.f32 %v3246, 0.0
    %v3604 = vmax.f32 %v3248, 0.0
    %v3605 = vmax.f32 %v3251, 0.0
    %v3606 = vmax.f32 %v3253, 0.0
    %v3607 = vmax.f32 %v3256, 0.0
    %v3608 = vmax.f32 %v3258, 0.0
    %v3609 = vmax.f32 %v3261, 0.0
    %v3610 = vmax.f32 %v3263, 0.0
    %v3611 = vmax.f32 %v3266, 0.0
    %v3612 = vmax.f32 %v3268, 0.0
    %v3613 = vmax.f32 %v3271, 0.0
    %v3614 = vmax.f32 %v3273, 0.0
    %v3615 = vmax.f32 %v3276, 0.0
    %v3616 = vmax.f32 %v3278, 0.0
    %v3617 = vmax.f32 %v3281, 0.0
    %v3618 = vmax.f32 %v3283, 0.0
    %v3619 = vmax.f32 %v3286, 0.0
    %v3620 = vmax.f32 %v3288, 0.0
    %v3621 = vmax.f32 %v3291, 0.0
    %v3622 = vmax.f32 %v3293, 0.0
    %v3623 = vmax.f32 %v3296, 0.0
    %v3624 = vmax.f32 %v3298, 0.0
    %v3625 = vmax.f32 %v3301, 0.0
    %v3626 = vmax.f32 %v3303, 0.0
    %v3627 = vmax.f32 %v3306, 0.0
    %v3628 = vmax.f32 %v3308, 0.0
    %v3629 = vmax.f32 %v3311, 0.0
    %v3630 = vmax.f32 %v3313, 0.0
    %v3631 = vmax.f32 %v3316, 0.0
    %v3632 = vmax.f32 %v3318, 0.0
    %v3633 = vmax.f32 %v3321, 0.0
    %v3634 = vmax.f32 %v3323, 0.0
    %v3635 = vmax.f32 %v3326, 0.0
    %v3636 = vmax.f32 %v3328, 0.0
    %v3637 = vmax.f32 %v3331, 0.0
    %v3638 = vmax.f32 %v3333, 0.0
    %v3639 = vmax.f32 %v3336, 0.0
    %v3640 = vmax.f32 %v3338, 0.0
    %v3641 = vmax.f32 %v3341, 0.0
    %v3642 = vmax.f32 %v3343, 0.0
    %v3643 = vmax.f32 %v3346, 0.0
    %v3644 = vmax.f32 %v3348, 0.0
    %v3645 = vmax.f32 %v3351, 0.0
    %v3646 = vmax.f32 %v3353, 0.0
    %v3647 = vmax.f32 %v3356, 0.0
    %v3648 = vmax.f32 %v3358, 0.0
    %v3649 = vmax.f32 %v3361, 0.0
    %v3650 = vmax.f32 %v3363, 0.0
    %v3651 = vmax.f32 %v3366, 0.0
    %v3652 = vmax.f32 %v3368, 0.0
    %v3653 = vmax.f32 %v3371, 0.0
    %v3654 = vmax.f32 %v3373, 0.0
    %v3655 = vmax.f32 %v3376, 0.0
    %v3656 = vmax.f32 %v3378, 0.0
    %v3657 = vmax.f32 %v3381, 0.0
    %v3658 = vmax.f32 %v3383, 0.0
    %v3659 = vmax.f32 %v3386, 0.0
    %v3660 = vmax.f32 %v3388, 0.0
    %v3661 = vmax.f32 %v3391, 0.0
    %v3662 = vmax.f32 %v3393, 0.0
    %v3663 = vmax.f32 %v3396, 0.0
    %v3664 = vmax.f32 %v3398, 0.0
    %v3665 = vmax.f32 %v3401, 0.0
    %v3666 = vmax.f32 %v3403, 0.0
    %v3667 = vmax.f32 %v3406, 0.0
    %v3668 = vmax.f32 %v3408, 0.0
    %v3669 = vmax.f32 %v3411, 0.0
    %v3670 = vmax.f32 %v3413, 0.0
    %v3671 = vpack.c.bf16 %v3416, %v3415
    %v3672 = vpack.c.bf16 %v3418, %v3417
    %v3673 = vpack.c.bf16 %v3420, %v3419
    %v3674 = vpack.c.bf16 %v3422, %v3421
    %v3675 = vpack.c.bf16 %v3424, %v3423
    %v3676 = vpack.c.bf16 %v3426, %v3425
    %v3677 = vpack.c.bf16 %v3428, %v3427
    %v3678 = vpack.c.bf16 %v3430, %v3429
    %v3679 = vpack.c.bf16 %v3432, %v3431
    %v3680 = vpack.c.bf16 %v3434, %v3433
    %v3681 = vpack.c.bf16 %v3436, %v3435
    %v3682 = vpack.c.bf16 %v3438, %v3437
    %v3683 = vpack.c.bf16 %v3440, %v3439
    %v3684 = vpack.c.bf16 %v3442, %v3441
    %v3685 = vpack.c.bf16 %v3444, %v3443
    %v3686 = vpack.c.bf16 %v3446, %v3445
    %v3687 = vpack.c.bf16 %v3448, %v3447
    %v3688 = vpack.c.bf16 %v3450, %v3449
    %v3689 = vpack.c.bf16 %v3452, %v3451
    %v3690 = vpack.c.bf16 %v3454, %v3453
    %v3691 = vpack.c.bf16 %v3456, %v3455
    %v3692 = vpack.c.bf16 %v3458, %v3457
    %v3693 = vpack.c.bf16 %v3460, %v3459
    %v3694 = vpack.c.bf16 %v3462, %v3461
    %v3695 = vpack.c.bf16 %v3464, %v3463
    %v3696 = vpack.c.bf16 %v3466, %v3465
    %v3697 = vpack.c.bf16 %v3468, %v3467
    %v3698 = vpack.c.bf16 %v3470, %v3469
    %v3699 = vpack.c.bf16 %v3472, %v3471
    %v3700 = vpack.c.bf16 %v3474, %v3473
    %v3701 = vpack.c.bf16 %v3476, %v3475
    %v3702 = vpack.c.bf16 %v3478, %v3477
    %v3703 = vpack.c.bf16 %v3480, %v3479
    %v3704 = vpack.c.bf16 %v3482, %v3481
    %v3705 = vpack.c.bf16 %v3484, %v3483
    %v3706 = vpack.c.bf16 %v3486, %v3485
    %v3707 = vpack.c.bf16 %v3488, %v3487
    %v3708 = vpack.c.bf16 %v3490, %v3489
    %v3709 = vpack.c.bf16 %v3492, %v3491
    %v3710 = vpack.c.bf16 %v3494, %v3493
    %v3711 = vpack.c.bf16 %v3496, %v3495
    %v3712 = vpack.c.bf16 %v3498, %v3497
    %v3713 = vpack.c.bf16 %v3500, %v3499
    %v3714 = vpack.c.bf16 %v3502, %v3501
    %v3715 = vpack.c.bf16 %v3504, %v3503
    %v3716 = vpack.c.bf16 %v3506, %v3505
    %v3717 = vpack.c.bf16 %v3508, %v3507
    %v3718 = vpack.c.bf16 %v3510, %v3509
    %v3719 = vpack.c.bf16 %v3512, %v3511
    %v3720 = vpack.c.bf16 %v3514, %v3513
    %v3721 = vpack.c.bf16 %v3516, %v3515
    %v3722 = vpack.c.bf16 %v3518, %v3517
    %v3723 = vpack.c.bf16 %v3520, %v3519
    %v3724 = vpack.c.bf16 %v3522, %v3521
    %v3725 = vpack.c.bf16 %v3524, %v3523
    %v3726 = vpack.c.bf16 %v3526, %v3525
    %v3727 = vpack.c.bf16 %v3528, %v3527
    %v3728 = vpack.c.bf16 %v3530, %v3529
    %v3729 = vpack.c.bf16 %v3532, %v3531
    %v3730 = vpack.c.bf16 %v3534, %v3533
    %v3731 = vpack.c.bf16 %v3536, %v3535
    %v3732 = vpack.c.bf16 %v3538, %v3537
    %v3733 = vpack.c.bf16 %v3540, %v3539
    %v3734 = vpack.c.bf16 %v3542, %v3541
    %v3735 = vpack.c.bf16 %v3544, %v3543
    %v3736 = vpack.c.bf16 %v3546, %v3545
    %v3737 = vpack.c.bf16 %v3548, %v3547
    %v3738 = vpack.c.bf16 %v3550, %v3549
    %v3739 = vpack.c.bf16 %v3552, %v3551
    %v3740 = vpack.c.bf16 %v3554, %v3553
    %v3741 = vpack.c.bf16 %v3556, %v3555
    %v3742 = vpack.c.bf16 %v3558, %v3557
    %v3743 = vpack.c.bf16 %v3560, %v3559
    %v3744 = vpack.c.bf16 %v3562, %v3561
    %v3745 = vpack.c.bf16 %v3564, %v3563
    %v3746 = vpack.c.bf16 %v3566, %v3565
    %v3747 = vpack.c.bf16 %v3568, %v3567
    %v3748 = vpack.c.bf16 %v3570, %v3569
    %v3749 = vpack.c.bf16 %v3572, %v3571
    %v3750 = vpack.c.bf16 %v3574, %v3573
    %v3751 = vpack.c.bf16 %v3576, %v3575
    %v3752 = vpack.c.bf16 %v3578, %v3577
    %v3753 = vpack.c.bf16 %v3580, %v3579
    %v3754 = vpack.c.bf16 %v3582, %v3581
    %v3755 = vpack.c.bf16 %v3584, %v3583
    %v3756 = vpack.c.bf16 %v3586, %v3585
    %v3757 = vpack.c.bf16 %v3588, %v3587
    %v3758 = vpack.c.bf16 %v3590, %v3589
    %v3759 = vpack.c.bf16 %v3592, %v3591
    %v3760 = vpack.c.bf16 %v3594, %v3593
    %v3761 = vpack.c.bf16 %v3596, %v3595
    %v3762 = vpack.c.bf16 %v3598, %v3597
    %v3763 = vpack.c.bf16 %v3600, %v3599
    %v3764 = vpack.c.bf16 %v3602, %v3601
    %v3765 = vpack.c.bf16 %v3604, %v3603
    %v3766 = vpack.c.bf16 %v3606, %v3605
    %v3767 = vpack.c.bf16 %v3608, %v3607
    %v3768 = vpack.c.bf16 %v3610, %v3609
    %v3769 = vpack.c.bf16 %v3612, %v3611
    %v3770 = vpack.c.bf16 %v3614, %v3613
    %v3771 = vpack.c.bf16 %v3616, %v3615
    %v3772 = vpack.c.bf16 %v3618, %v3617
    %v3773 = vpack.c.bf16 %v3620, %v3619
    %v3774 = vpack.c.bf16 %v3622, %v3621
    %v3775 = vpack.c.bf16 %v3624, %v3623
    %v3776 = vpack.c.bf16 %v3626, %v3625
    %v3777 = vpack.c.bf16 %v3628, %v3627
    %v3778 = vpack.c.bf16 %v3630, %v3629
    %v3779 = vpack.c.bf16 %v3632, %v3631
    %v3780 = vpack.c.bf16 %v3634, %v3633
    %v3781 = vpack.c.bf16 %v3636, %v3635
    %v3782 = vpack.c.bf16 %v3638, %v3637
    %v3783 = vpack.c.bf16 %v3640, %v3639
    %v3784 = vpack.c.bf16 %v3642, %v3641
    %v3785 = vpack.c.bf16 %v3644, %v3643
    %v3786 = vpack.c.bf16 %v3646, %v3645
    %v3787 = vpack.c.bf16 %v3648, %v3647
    %v3788 = vpack.c.bf16 %v3650, %v3649
    %v3789 = vpack.c.bf16 %v3652, %v3651
    %v3790 = vpack.c.bf16 %v3654, %v3653
    %v3791 = vpack.c.bf16 %v3656, %v3655
    %v3792 = vpack.c.bf16 %v3658, %v3657
    %v3793 = vpack.c.bf16 %v3660, %v3659
    %v3794 = vpack.c.bf16 %v3662, %v3661
    %v3795 = vpack.c.bf16 %v3664, %v3663
    %v3796 = vpack.c.bf16 %v3666, %v3665
    %v3797 = vpack.c.bf16 %v3668, %v3667
    %v3798 = vpack.c.bf16 %v3670, %v3669
    %v3799 = vld [vmem:[%s5] sm:$0xf]
    %v3800 = vld [vmem:[%s5 + $0x4] sm:$0xf]
    %v3801 = vld [vmem:[%s6] sm:$0x1]
    %v3803 = vperm.slane %v3801, 0
    %v3807 = vunpack.c.l.b16 %v3799
    %v3808 = vunpack.c.l.b16 %v3800
    %v3809 = vpack.c.b16 %v3808, %v3807
    %v3812 = vsel %vm2381, %v3671, 0
    %v3815 = vsel %vm2381, %v3672, 0
    %v3818 = vsel %vm2381, %v3673, 0
    %v3821 = vsel %vm2381, %v3674, 0
    %v3824 = vsel %vm2381, %v3675, 0
    %v3827 = vsel %vm2381, %v3676, 0
    %v3830 = vsel %vm2381, %v3677, 0
    %v3833 = vsel %vm2381, %v3678, 0
    %v3836 = vsel %vm2381, %v3679, 0
    %v3839 = vsel %vm2381, %v3680, 0
    %v3842 = vsel %vm2381, %v3681, 0
    %v3845 = vsel %vm2381, %v3682, 0
    %v3848 = vsel %vm2381, %v3683, 0
    %v3851 = vsel %vm2381, %v3684, 0
    %v3854 = vsel %vm2381, %v3685, 0
    %v3857 = vsel %vm2381, %v3686, 0
    %v3860 = vsel %vm2381, %v3687, 0
    %v3863 = vsel %vm2381, %v3688, 0
    %v3866 = vsel %vm2381, %v3689, 0
    %v3869 = vsel %vm2381, %v3690, 0
    %v3872 = vsel %vm2381, %v3691, 0
    %v3875 = vsel %vm2381, %v3692, 0
    %v3878 = vsel %vm2381, %v3693, 0
    %v3881 = vsel %vm2381, %v3694, 0
    %v3884 = vsel %vm2381, %v3695, 0
    %v3887 = vsel %vm2381, %v3696, 0
    %v3890 = vsel %vm2381, %v3697, 0
    %v3893 = vsel %vm2381, %v3698, 0
    %v3896 = vsel %vm2381, %v3699, 0
    %v3899 = vsel %vm2381, %v3700, 0
    %v3902 = vsel %vm2381, %v3701, 0
    %v3905 = vsel %vm2381, %v3702, 0
    %v3908 = vsel %vm2381, %v3703, 0
    %v3911 = vsel %vm2381, %v3704, 0
    %v3914 = vsel %vm2381, %v3705, 0
    %v3917 = vsel %vm2381, %v3706, 0
    %v3920 = vsel %vm2381, %v3707, 0
    %v3923 = vsel %vm2381, %v3708, 0
    %v3926 = vsel %vm2381, %v3709, 0
    %v3929 = vsel %vm2381, %v3710, 0
    %v3932 = vsel %vm2381, %v3711, 0
    %v3935 = vsel %vm2381, %v3712, 0
    %v3938 = vsel %vm2381, %v3713, 0
    %v3941 = vsel %vm2381, %v3714, 0
    %v3944 = vsel %vm2381, %v3715, 0
    %v3947 = vsel %vm2381, %v3716, 0
    %v3950 = vsel %vm2381, %v3717, 0
    %v3953 = vsel %vm2381, %v3718, 0
    %v3956 = vsel %vm2381, %v3719, 0
    %v3959 = vsel %vm2381, %v3720, 0
    %v3962 = vsel %vm2381, %v3721, 0
    %v3965 = vsel %vm2381, %v3722, 0
    %v3968 = vsel %vm2381, %v3723, 0
    %v3971 = vsel %vm2381, %v3724, 0
    %v3974 = vsel %vm2381, %v3725, 0
    %v3977 = vsel %vm2381, %v3726, 0
    %v3980 = vsel %vm2381, %v3727, 0
    %v3983 = vsel %vm2381, %v3728, 0
    %v3986 = vsel %vm2381, %v3729, 0
    %v3989 = vsel %vm2381, %v3730, 0
    %v3992 = vsel %vm2381, %v3731, 0
    %v3995 = vsel %vm2381, %v3732, 0
    %v3998 = vsel %vm2381, %v3733, 0
    %v4001 = vsel %vm2381, %v3734, 0
    %v4004 = vsel %vm2381, %v3735, 0
    %v4007 = vsel %vm2381, %v3736, 0
    %v4010 = vsel %vm2381, %v3737, 0
    %v4013 = vsel %vm2381, %v3738, 0
    %v4016 = vsel %vm2381, %v3739, 0
    %v4019 = vsel %vm2381, %v3740, 0
    %v4022 = vsel %vm2381, %v3741, 0
    %v4025 = vsel %vm2381, %v3742, 0
    %v4028 = vsel %vm2381, %v3743, 0
    %v4031 = vsel %vm2381, %v3744, 0
    %v4034 = vsel %vm2381, %v3745, 0
    %v4037 = vsel %vm2381, %v3746, 0
    %v4040 = vsel %vm2381, %v3747, 0
    %v4043 = vsel %vm2381, %v3748, 0
    %v4046 = vsel %vm2381, %v3749, 0
    %v4049 = vsel %vm2381, %v3750, 0
    %v4052 = vsel %vm2381, %v3751, 0
    %v4055 = vsel %vm2381, %v3752, 0
    %v4058 = vsel %vm2381, %v3753, 0
    %v4061 = vsel %vm2381, %v3754, 0
    %v4064 = vsel %vm2381, %v3755, 0
    %v4067 = vsel %vm2381, %v3756, 0
    %v4070 = vsel %vm2381, %v3757, 0
    %v4073 = vsel %vm2381, %v3758, 0
    %v4076 = vsel %vm2381, %v3759, 0
    %v4079 = vsel %vm2381, %v3760, 0
    %v4082 = vsel %vm2381, %v3761, 0
    %v4085 = vsel %vm2381, %v3762, 0
    %v4088 = vsel %vm2381, %v3763, 0
    %v4091 = vsel %vm2381, %v3764, 0
    %v4094 = vsel %vm2381, %v3765, 0
    %v4097 = vsel %vm2381, %v3766, 0
    %v4100 = vsel %vm2381, %v3767, 0
    %v4103 = vsel %vm2381, %v3768, 0
    %v4106 = vsel %vm2381, %v3769, 0
    %v4109 = vsel %vm2381, %v3770, 0
    %v4112 = vsel %vm2381, %v3771, 0
    %v4115 = vsel %vm2381, %v3772, 0
    %v4118 = vsel %vm2381, %v3773, 0
    %v4121 = vsel %vm2381, %v3774, 0
    %v4124 = vsel %vm2381, %v3775, 0
    %v4127 = vsel %vm2381, %v3776, 0
    %v4130 = vsel %vm2381, %v3777, 0
    %v4133 = vsel %vm2381, %v3778, 0
    %v4136 = vsel %vm2381, %v3779, 0
    %v4139 = vsel %vm2381, %v3780, 0
    %v4142 = vsel %vm2381, %v3781, 0
    %v4145 = vsel %vm2381, %v3782, 0
    %v4148 = vsel %vm2381, %v3783, 0
    %v4151 = vsel %vm2381, %v3784, 0
    %v4154 = vsel %vm2381, %v3785, 0
    %v4157 = vsel %vm2381, %v3786, 0
    %v4160 = vsel %vm2381, %v3787, 0
    %v4163 = vsel %vm2381, %v3788, 0
    %v4166 = vsel %vm2381, %v3789, 0
    %v4169 = vsel %vm2381, %v3790, 0
    %v4172 = vsel %vm2381, %v3791, 0
    %v4175 = vsel %vm2381, %v3792, 0
    %v4178 = vsel %vm2381, %v3793, 0
    %v4181 = vsel %vm2381, %v3794, 0
    %v4184 = vsel %vm2381, %v3795, 0
    %v4187 = vsel %vm2381, %v3796, 0
    %v4190 = vsel %vm2381, %v3797, 0
    %v4193 = vsel %vm2381, %v3798, 0
    %4195 = vmatpush.bf16.msra.mxu0 0
    %4196 = vmatpush.bf16.msra.mxu0 0
    %4197 = vmatpush.bf16.msra.mxu0 0
    %4198 = vmatpush.bf16.msra.mxu0 0
    %4199 = vmatpush.bf16.msra.mxu0 0
    %4200 = vmatpush.bf16.msra.mxu0 0
    %4201 = vmatpush.bf16.msra.mxu0 0
    %4202 = vmatpush.bf16.msra.mxu0 %v3809
    %4203 = vmatmul.bf16.gmra.mxu0 %v3812
    %v4204 = vpop.f32.mrf.mxu0
    %v4205 = vadd.f32 %v3803, %v4204
    %v4206 = vpop.f32.mrf.mxu0
    %v4207 = vadd.f32 %v3803, %v4206
    %4208 = vmatmul.bf16.gmra.mxu0 %v3815
    %v4209 = vpop.f32.mrf.mxu0
    %v4210 = vadd.f32 %v3803, %v4209
    %v4211 = vpop.f32.mrf.mxu0
    %v4212 = vadd.f32 %v3803, %v4211
    %4213 = vmatmul.bf16.gmra.mxu0 %v3818
    %v4214 = vpop.f32.mrf.mxu0
    %v4215 = vadd.f32 %v3803, %v4214
    %v4216 = vpop.f32.mrf.mxu0
    %v4217 = vadd.f32 %v3803, %v4216
    %4218 = vmatmul.bf16.gmra.mxu0 %v3821
    %v4219 = vpop.f32.mrf.mxu0
    %v4220 = vadd.f32 %v3803, %v4219
    %v4221 = vpop.f32.mrf.mxu0
    %v4222 = vadd.f32 %v3803, %v4221
    %4223 = vmatmul.bf16.gmra.mxu0 %v3824
    %v4224 = vpop.f32.mrf.mxu0
    %v4225 = vadd.f32 %v3803, %v4224
    %v4226 = vpop.f32.mrf.mxu0
    %v4227 = vadd.f32 %v3803, %v4226
    %4228 = vmatmul.bf16.gmra.mxu0 %v3827
    %v4229 = vpop.f32.mrf.mxu0
    %v4230 = vadd.f32 %v3803, %v4229
    %v4231 = vpop.f32.mrf.mxu0
    %v4232 = vadd.f32 %v3803, %v4231
    %4233 = vmatmul.bf16.gmra.mxu0 %v3830
    %v4234 = vpop.f32.mrf.mxu0
    %v4235 = vadd.f32 %v3803, %v4234
    %v4236 = vpop.f32.mrf.mxu0
    %v4237 = vadd.f32 %v3803, %v4236
    %4238 = vmatmul.bf16.gmra.mxu0 %v3833
    %v4239 = vpop.f32.mrf.mxu0
    %v4240 = vadd.f32 %v3803, %v4239
    %v4241 = vpop.f32.mrf.mxu0
    %v4242 = vadd.f32 %v3803, %v4241
    %4243 = vmatmul.bf16.gmra.mxu0 %v3836
    %v4244 = vpop.f32.mrf.mxu0
    %v4245 = vadd.f32 %v3803, %v4244
    %v4246 = vpop.f32.mrf.mxu0
    %v4247 = vadd.f32 %v3803, %v4246
    %4248 = vmatmul.bf16.gmra.mxu0 %v3839
    %v4249 = vpop.f32.mrf.mxu0
    %v4250 = vadd.f32 %v3803, %v4249
    %v4251 = vpop.f32.mrf.mxu0
    %v4252 = vadd.f32 %v3803, %v4251
    %4253 = vmatmul.bf16.gmra.mxu0 %v3842
    %v4254 = vpop.f32.mrf.mxu0
    %v4255 = vadd.f32 %v3803, %v4254
    %v4256 = vpop.f32.mrf.mxu0
    %v4257 = vadd.f32 %v3803, %v4256
    %4258 = vmatmul.bf16.gmra.mxu0 %v3845
    %v4259 = vpop.f32.mrf.mxu0
    %v4260 = vadd.f32 %v3803, %v4259
    %v4261 = vpop.f32.mrf.mxu0
    %v4262 = vadd.f32 %v3803, %v4261
    %4263 = vmatmul.bf16.gmra.mxu0 %v3848
    %v4264 = vpop.f32.mrf.mxu0
    %v4265 = vadd.f32 %v3803, %v4264
    %v4266 = vpop.f32.mrf.mxu0
    %v4267 = vadd.f32 %v3803, %v4266
    %4268 = vmatmul.bf16.gmra.mxu0 %v3851
    %v4269 = vpop.f32.mrf.mxu0
    %v4270 = vadd.f32 %v3803, %v4269
    %v4271 = vpop.f32.mrf.mxu0
    %v4272 = vadd.f32 %v3803, %v4271
    %4273 = vmatmul.bf16.gmra.mxu0 %v3854
    %v4274 = vpop.f32.mrf.mxu0
    %v4275 = vadd.f32 %v3803, %v4274
    %v4276 = vpop.f32.mrf.mxu0
    %v4277 = vadd.f32 %v3803, %v4276
    %4278 = vmatmul.bf16.gmra.mxu0 %v3857
    %v4279 = vpop.f32.mrf.mxu0
    %v4280 = vadd.f32 %v3803, %v4279
    %v4281 = vpop.f32.mrf.mxu0
    %v4282 = vadd.f32 %v3803, %v4281
    %4283 = vmatmul.bf16.gmra.mxu0 %v3860
    %v4284 = vpop.f32.mrf.mxu0
    %v4285 = vadd.f32 %v3803, %v4284
    %v4286 = vpop.f32.mrf.mxu0
    %v4287 = vadd.f32 %v3803, %v4286
    %4288 = vmatmul.bf16.gmra.mxu0 %v3863
    %v4289 = vpop.f32.mrf.mxu0
    %v4290 = vadd.f32 %v3803, %v4289
    %v4291 = vpop.f32.mrf.mxu0
    %v4292 = vadd.f32 %v3803, %v4291
    %4293 = vmatmul.bf16.gmra.mxu0 %v3866
    %v4294 = vpop.f32.mrf.mxu0
    %v4295 = vadd.f32 %v3803, %v4294
    %v4296 = vpop.f32.mrf.mxu0
    %v4297 = vadd.f32 %v3803, %v4296
    %4298 = vmatmul.bf16.gmra.mxu0 %v3869
    %v4299 = vpop.f32.mrf.mxu0
    %v4300 = vadd.f32 %v3803, %v4299
    %v4301 = vpop.f32.mrf.mxu0
    %v4302 = vadd.f32 %v3803, %v4301
    %4303 = vmatmul.bf16.gmra.mxu0 %v3872
    %v4304 = vpop.f32.mrf.mxu0
    %v4305 = vadd.f32 %v3803, %v4304
    %v4306 = vpop.f32.mrf.mxu0
    %v4307 = vadd.f32 %v3803, %v4306
    %4308 = vmatmul.bf16.gmra.mxu0 %v3875
    %v4309 = vpop.f32.mrf.mxu0
    %v4310 = vadd.f32 %v3803, %v4309
    %v4311 = vpop.f32.mrf.mxu0
    %v4312 = vadd.f32 %v3803, %v4311
    %4313 = vmatmul.bf16.gmra.mxu0 %v3878
    %v4314 = vpop.f32.mrf.mxu0
    %v4315 = vadd.f32 %v3803, %v4314
    %v4316 = vpop.f32.mrf.mxu0
    %v4317 = vadd.f32 %v3803, %v4316
    %4318 = vmatmul.bf16.gmra.mxu0 %v3881
    %v4319 = vpop.f32.mrf.mxu0
    %v4320 = vadd.f32 %v3803, %v4319
    %v4321 = vpop.f32.mrf.mxu0
    %v4322 = vadd.f32 %v3803, %v4321
    %4323 = vmatmul.bf16.gmra.mxu0 %v3884
    %v4324 = vpop.f32.mrf.mxu0
    %v4325 = vadd.f32 %v3803, %v4324
    %v4326 = vpop.f32.mrf.mxu0
    %v4327 = vadd.f32 %v3803, %v4326
    %4328 = vmatmul.bf16.gmra.mxu0 %v3887
    %v4329 = vpop.f32.mrf.mxu0
    %v4330 = vadd.f32 %v3803, %v4329
    %v4331 = vpop.f32.mrf.mxu0
    %v4332 = vadd.f32 %v3803, %v4331
    %4333 = vmatmul.bf16.gmra.mxu0 %v3890
    %v4334 = vpop.f32.mrf.mxu0
    %v4335 = vadd.f32 %v3803, %v4334
    %v4336 = vpop.f32.mrf.mxu0
    %v4337 = vadd.f32 %v3803, %v4336
    %4338 = vmatmul.bf16.gmra.mxu0 %v3893
    %v4339 = vpop.f32.mrf.mxu0
    %v4340 = vadd.f32 %v3803, %v4339
    %v4341 = vpop.f32.mrf.mxu0
    %v4342 = vadd.f32 %v3803, %v4341
    %4343 = vmatmul.bf16.gmra.mxu0 %v3896
    %v4344 = vpop.f32.mrf.mxu0
    %v4345 = vadd.f32 %v3803, %v4344
    %v4346 = vpop.f32.mrf.mxu0
    %v4347 = vadd.f32 %v3803, %v4346
    %4348 = vmatmul.bf16.gmra.mxu0 %v3899
    %v4349 = vpop.f32.mrf.mxu0
    %v4350 = vadd.f32 %v3803, %v4349
    %v4351 = vpop.f32.mrf.mxu0
    %v4352 = vadd.f32 %v3803, %v4351
    %4353 = vmatmul.bf16.gmra.mxu0 %v3902
    %v4354 = vpop.f32.mrf.mxu0
    %v4355 = vadd.f32 %v3803, %v4354
    %v4356 = vpop.f32.mrf.mxu0
    %v4357 = vadd.f32 %v3803, %v4356
    %4358 = vmatmul.bf16.gmra.mxu0 %v3905
    %v4359 = vpop.f32.mrf.mxu0
    %v4360 = vadd.f32 %v3803, %v4359
    %v4361 = vpop.f32.mrf.mxu0
    %v4362 = vadd.f32 %v3803, %v4361
    %4363 = vmatmul.bf16.gmra.mxu0 %v3908
    %v4364 = vpop.f32.mrf.mxu0
    %v4365 = vadd.f32 %v3803, %v4364
    %v4366 = vpop.f32.mrf.mxu0
    %v4367 = vadd.f32 %v3803, %v4366
    %4368 = vmatmul.bf16.gmra.mxu0 %v3911
    %v4369 = vpop.f32.mrf.mxu0
    %v4370 = vadd.f32 %v3803, %v4369
    %v4371 = vpop.f32.mrf.mxu0
    %v4372 = vadd.f32 %v3803, %v4371
    %4373 = vmatmul.bf16.gmra.mxu0 %v3914
    %v4374 = vpop.f32.mrf.mxu0
    %v4375 = vadd.f32 %v3803, %v4374
    %v4376 = vpop.f32.mrf.mxu0
    %v4377 = vadd.f32 %v3803, %v4376
    %4378 = vmatmul.bf16.gmra.mxu0 %v3917
    %v4379 = vpop.f32.mrf.mxu0
    %v4380 = vadd.f32 %v3803, %v4379
    %v4381 = vpop.f32.mrf.mxu0
    %v4382 = vadd.f32 %v3803, %v4381
    %4383 = vmatmul.bf16.gmra.mxu0 %v3920
    %v4384 = vpop.f32.mrf.mxu0
    %v4385 = vadd.f32 %v3803, %v4384
    %v4386 = vpop.f32.mrf.mxu0
    %v4387 = vadd.f32 %v3803, %v4386
    %4388 = vmatmul.bf16.gmra.mxu0 %v3923
    %v4389 = vpop.f32.mrf.mxu0
    %v4390 = vadd.f32 %v3803, %v4389
    %v4391 = vpop.f32.mrf.mxu0
    %v4392 = vadd.f32 %v3803, %v4391
    %4393 = vmatmul.bf16.gmra.mxu0 %v3926
    %v4394 = vpop.f32.mrf.mxu0
    %v4395 = vadd.f32 %v3803, %v4394
    %v4396 = vpop.f32.mrf.mxu0
    %v4397 = vadd.f32 %v3803, %v4396
    %4398 = vmatmul.bf16.gmra.mxu0 %v3929
    %v4399 = vpop.f32.mrf.mxu0
    %v4400 = vadd.f32 %v3803, %v4399
    %v4401 = vpop.f32.mrf.mxu0
    %v4402 = vadd.f32 %v3803, %v4401
    %4403 = vmatmul.bf16.gmra.mxu0 %v3932
    %v4404 = vpop.f32.mrf.mxu0
    %v4405 = vadd.f32 %v3803, %v4404
    %v4406 = vpop.f32.mrf.mxu0
    %v4407 = vadd.f32 %v3803, %v4406
    %4408 = vmatmul.bf16.gmra.mxu0 %v3935
    %v4409 = vpop.f32.mrf.mxu0
    %v4410 = vadd.f32 %v3803, %v4409
    %v4411 = vpop.f32.mrf.mxu0
    %v4412 = vadd.f32 %v3803, %v4411
    %4413 = vmatmul.bf16.gmra.mxu0 %v3938
    %v4414 = vpop.f32.mrf.mxu0
    %v4415 = vadd.f32 %v3803, %v4414
    %v4416 = vpop.f32.mrf.mxu0
    %v4417 = vadd.f32 %v3803, %v4416
    %4418 = vmatmul.bf16.gmra.mxu0 %v3941
    %v4419 = vpop.f32.mrf.mxu0
    %v4420 = vadd.f32 %v3803, %v4419
    %v4421 = vpop.f32.mrf.mxu0
    %v4422 = vadd.f32 %v3803, %v4421
    %4423 = vmatmul.bf16.gmra.mxu0 %v3944
    %v4424 = vpop.f32.mrf.mxu0
    %v4425 = vadd.f32 %v3803, %v4424
    %v4426 = vpop.f32.mrf.mxu0
    %v4427 = vadd.f32 %v3803, %v4426
    %4428 = vmatmul.bf16.gmra.mxu0 %v3947
    %v4429 = vpop.f32.mrf.mxu0
    %v4430 = vadd.f32 %v3803, %v4429
    %v4431 = vpop.f32.mrf.mxu0
    %v4432 = vadd.f32 %v3803, %v4431
    %4433 = vmatmul.bf16.gmra.mxu0 %v3950
    %v4434 = vpop.f32.mrf.mxu0
    %v4435 = vadd.f32 %v3803, %v4434
    %v4436 = vpop.f32.mrf.mxu0
    %v4437 = vadd.f32 %v3803, %v4436
    %4438 = vmatmul.bf16.gmra.mxu0 %v3953
    %v4439 = vpop.f32.mrf.mxu0
    %v4440 = vadd.f32 %v3803, %v4439
    %v4441 = vpop.f32.mrf.mxu0
    %v4442 = vadd.f32 %v3803, %v4441
    %4443 = vmatmul.bf16.gmra.mxu0 %v3956
    %v4444 = vpop.f32.mrf.mxu0
    %v4445 = vadd.f32 %v3803, %v4444
    %v4446 = vpop.f32.mrf.mxu0
    %v4447 = vadd.f32 %v3803, %v4446
    %4448 = vmatmul.bf16.gmra.mxu0 %v3959
    %v4449 = vpop.f32.mrf.mxu0
    %v4450 = vadd.f32 %v3803, %v4449
    %v4451 = vpop.f32.mrf.mxu0
    %v4452 = vadd.f32 %v3803, %v4451
    %4453 = vmatmul.bf16.gmra.mxu0 %v3962
    %v4454 = vpop.f32.mrf.mxu0
    %v4455 = vadd.f32 %v3803, %v4454
    %v4456 = vpop.f32.mrf.mxu0
    %v4457 = vadd.f32 %v3803, %v4456
    %4458 = vmatmul.bf16.gmra.mxu0 %v3965
    %v4459 = vpop.f32.mrf.mxu0
    %v4460 = vadd.f32 %v3803, %v4459
    %v4461 = vpop.f32.mrf.mxu0
    %v4462 = vadd.f32 %v3803, %v4461
    %4463 = vmatmul.bf16.gmra.mxu0 %v3968
    %v4464 = vpop.f32.mrf.mxu0
    %v4465 = vadd.f32 %v3803, %v4464
    %v4466 = vpop.f32.mrf.mxu0
    %v4467 = vadd.f32 %v3803, %v4466
    %4468 = vmatmul.bf16.gmra.mxu0 %v3971
    %v4469 = vpop.f32.mrf.mxu0
    %v4470 = vadd.f32 %v3803, %v4469
    %v4471 = vpop.f32.mrf.mxu0
    %v4472 = vadd.f32 %v3803, %v4471
    %4473 = vmatmul.bf16.gmra.mxu0 %v3974
    %v4474 = vpop.f32.mrf.mxu0
    %v4475 = vadd.f32 %v3803, %v4474
    %v4476 = vpop.f32.mrf.mxu0
    %v4477 = vadd.f32 %v3803, %v4476
    %4478 = vmatmul.bf16.gmra.mxu0 %v3977
    %v4479 = vpop.f32.mrf.mxu0
    %v4480 = vadd.f32 %v3803, %v4479
    %v4481 = vpop.f32.mrf.mxu0
    %v4482 = vadd.f32 %v3803, %v4481
    %4483 = vmatmul.bf16.gmra.mxu0 %v3980
    %v4484 = vpop.f32.mrf.mxu0
    %v4485 = vadd.f32 %v3803, %v4484
    %v4486 = vpop.f32.mrf.mxu0
    %v4487 = vadd.f32 %v3803, %v4486
    %4488 = vmatmul.bf16.gmra.mxu0 %v3983
    %v4489 = vpop.f32.mrf.mxu0
    %v4490 = vadd.f32 %v3803, %v4489
    %v4491 = vpop.f32.mrf.mxu0
    %v4492 = vadd.f32 %v3803, %v4491
    %4493 = vmatmul.bf16.gmra.mxu0 %v3986
    %v4494 = vpop.f32.mrf.mxu0
    %v4495 = vadd.f32 %v3803, %v4494
    %v4496 = vpop.f32.mrf.mxu0
    %v4497 = vadd.f32 %v3803, %v4496
    %4498 = vmatmul.bf16.gmra.mxu0 %v3989
    %v4499 = vpop.f32.mrf.mxu0
    %v4500 = vadd.f32 %v3803, %v4499
    %v4501 = vpop.f32.mrf.mxu0
    %v4502 = vadd.f32 %v3803, %v4501
    %4503 = vmatmul.bf16.gmra.mxu0 %v3992
    %v4504 = vpop.f32.mrf.mxu0
    %v4505 = vadd.f32 %v3803, %v4504
    %v4506 = vpop.f32.mrf.mxu0
    %v4507 = vadd.f32 %v3803, %v4506
    %4508 = vmatmul.bf16.gmra.mxu0 %v3995
    %v4509 = vpop.f32.mrf.mxu0
    %v4510 = vadd.f32 %v3803, %v4509
    %v4511 = vpop.f32.mrf.mxu0
    %v4512 = vadd.f32 %v3803, %v4511
    %4513 = vmatmul.bf16.gmra.mxu0 %v3998
    %v4514 = vpop.f32.mrf.mxu0
    %v4515 = vadd.f32 %v3803, %v4514
    %v4516 = vpop.f32.mrf.mxu0
    %v4517 = vadd.f32 %v3803, %v4516
    %4518 = vmatmul.bf16.gmra.mxu0 %v4001
    %v4519 = vpop.f32.mrf.mxu0
    %v4520 = vadd.f32 %v3803, %v4519
    %v4521 = vpop.f32.mrf.mxu0
    %v4522 = vadd.f32 %v3803, %v4521
    %4523 = vmatmul.bf16.gmra.mxu0 %v4004
    %v4524 = vpop.f32.mrf.mxu0
    %v4525 = vadd.f32 %v3803, %v4524
    %v4526 = vpop.f32.mrf.mxu0
    %v4527 = vadd.f32 %v3803, %v4526
    %4528 = vmatmul.bf16.gmra.mxu0 %v4007
    %v4529 = vpop.f32.mrf.mxu0
    %v4530 = vadd.f32 %v3803, %v4529
    %v4531 = vpop.f32.mrf.mxu0
    %v4532 = vadd.f32 %v3803, %v4531
    %4533 = vmatmul.bf16.gmra.mxu0 %v4010
    %v4534 = vpop.f32.mrf.mxu0
    %v4535 = vadd.f32 %v3803, %v4534
    %v4536 = vpop.f32.mrf.mxu0
    %v4537 = vadd.f32 %v3803, %v4536
    %4538 = vmatmul.bf16.gmra.mxu0 %v4013
    %v4539 = vpop.f32.mrf.mxu0
    %v4540 = vadd.f32 %v3803, %v4539
    %v4541 = vpop.f32.mrf.mxu0
    %v4542 = vadd.f32 %v3803, %v4541
    %4543 = vmatmul.bf16.gmra.mxu0 %v4016
    %v4544 = vpop.f32.mrf.mxu0
    %v4545 = vadd.f32 %v3803, %v4544
    %v4546 = vpop.f32.mrf.mxu0
    %v4547 = vadd.f32 %v3803, %v4546
    %4548 = vmatmul.bf16.gmra.mxu0 %v4019
    %v4549 = vpop.f32.mrf.mxu0
    %v4550 = vadd.f32 %v3803, %v4549
    %v4551 = vpop.f32.mrf.mxu0
    %v4552 = vadd.f32 %v3803, %v4551
    %4553 = vmatmul.bf16.gmra.mxu0 %v4022
    %v4554 = vpop.f32.mrf.mxu0
    %v4555 = vadd.f32 %v3803, %v4554
    %v4556 = vpop.f32.mrf.mxu0
    %v4557 = vadd.f32 %v3803, %v4556
    %4558 = vmatmul.bf16.gmra.mxu0 %v4025
    %v4559 = vpop.f32.mrf.mxu0
    %v4560 = vadd.f32 %v3803, %v4559
    %v4561 = vpop.f32.mrf.mxu0
    %v4562 = vadd.f32 %v3803, %v4561
    %4563 = vmatmul.bf16.gmra.mxu0 %v4028
    %v4564 = vpop.f32.mrf.mxu0
    %v4565 = vadd.f32 %v3803, %v4564
    %v4566 = vpop.f32.mrf.mxu0
    %v4567 = vadd.f32 %v3803, %v4566
    %4568 = vmatmul.bf16.gmra.mxu0 %v4031
    %v4569 = vpop.f32.mrf.mxu0
    %v4570 = vadd.f32 %v3803, %v4569
    %v4571 = vpop.f32.mrf.mxu0
    %v4572 = vadd.f32 %v3803, %v4571
    %4573 = vmatmul.bf16.gmra.mxu0 %v4034
    %v4574 = vpop.f32.mrf.mxu0
    %v4575 = vadd.f32 %v3803, %v4574
    %v4576 = vpop.f32.mrf.mxu0
    %v4577 = vadd.f32 %v3803, %v4576
    %4578 = vmatmul.bf16.gmra.mxu0 %v4037
    %v4579 = vpop.f32.mrf.mxu0
    %v4580 = vadd.f32 %v3803, %v4579
    %v4581 = vpop.f32.mrf.mxu0
    %v4582 = vadd.f32 %v3803, %v4581
    %4583 = vmatmul.bf16.gmra.mxu0 %v4040
    %v4584 = vpop.f32.mrf.mxu0
    %v4585 = vadd.f32 %v3803, %v4584
    %v4586 = vpop.f32.mrf.mxu0
    %v4587 = vadd.f32 %v3803, %v4586
    %4588 = vmatmul.bf16.gmra.mxu0 %v4043
    %v4589 = vpop.f32.mrf.mxu0
    %v4590 = vadd.f32 %v3803, %v4589
    %v4591 = vpop.f32.mrf.mxu0
    %v4592 = vadd.f32 %v3803, %v4591
    %4593 = vmatmul.bf16.gmra.mxu0 %v4046
    %v4594 = vpop.f32.mrf.mxu0
    %v4595 = vadd.f32 %v3803, %v4594
    %v4596 = vpop.f32.mrf.mxu0
    %v4597 = vadd.f32 %v3803, %v4596
    %4598 = vmatmul.bf16.gmra.mxu0 %v4049
    %v4599 = vpop.f32.mrf.mxu0
    %v4600 = vadd.f32 %v3803, %v4599
    %v4601 = vpop.f32.mrf.mxu0
    %v4602 = vadd.f32 %v3803, %v4601
    %4603 = vmatmul.bf16.gmra.mxu0 %v4052
    %v4604 = vpop.f32.mrf.mxu0
    %v4605 = vadd.f32 %v3803, %v4604
    %v4606 = vpop.f32.mrf.mxu0
    %v4607 = vadd.f32 %v3803, %v4606
    %4608 = vmatmul.bf16.gmra.mxu0 %v4055
    %v4609 = vpop.f32.mrf.mxu0
    %v4610 = vadd.f32 %v3803, %v4609
    %v4611 = vpop.f32.mrf.mxu0
    %v4612 = vadd.f32 %v3803, %v4611
    %4613 = vmatmul.bf16.gmra.mxu0 %v4058
    %v4614 = vpop.f32.mrf.mxu0
    %v4615 = vadd.f32 %v3803, %v4614
    %v4616 = vpop.f32.mrf.mxu0
    %v4617 = vadd.f32 %v3803, %v4616
    %4618 = vmatmul.bf16.gmra.mxu0 %v4061
    %v4619 = vpop.f32.mrf.mxu0
    %v4620 = vadd.f32 %v3803, %v4619
    %v4621 = vpop.f32.mrf.mxu0
    %v4622 = vadd.f32 %v3803, %v4621
    %4623 = vmatmul.bf16.gmra.mxu0 %v4064
    %v4624 = vpop.f32.mrf.mxu0
    %v4625 = vadd.f32 %v3803, %v4624
    %v4626 = vpop.f32.mrf.mxu0
    %v4627 = vadd.f32 %v3803, %v4626
    %4628 = vmatmul.bf16.gmra.mxu0 %v4067
    %v4629 = vpop.f32.mrf.mxu0
    %v4630 = vadd.f32 %v3803, %v4629
    %v4631 = vpop.f32.mrf.mxu0
    %v4632 = vadd.f32 %v3803, %v4631
    %4633 = vmatmul.bf16.gmra.mxu0 %v4070
    %v4634 = vpop.f32.mrf.mxu0
    %v4635 = vadd.f32 %v3803, %v4634
    %v4636 = vpop.f32.mrf.mxu0
    %v4637 = vadd.f32 %v3803, %v4636
    %4638 = vmatmul.bf16.gmra.mxu0 %v4073
    %v4639 = vpop.f32.mrf.mxu0
    %v4640 = vadd.f32 %v3803, %v4639
    %v4641 = vpop.f32.mrf.mxu0
    %v4642 = vadd.f32 %v3803, %v4641
    %4643 = vmatmul.bf16.gmra.mxu0 %v4076
    %v4644 = vpop.f32.mrf.mxu0
    %v4645 = vadd.f32 %v3803, %v4644
    %v4646 = vpop.f32.mrf.mxu0
    %v4647 = vadd.f32 %v3803, %v4646
    %4648 = vmatmul.bf16.gmra.mxu0 %v4079
    %v4649 = vpop.f32.mrf.mxu0
    %v4650 = vadd.f32 %v3803, %v4649
    %v4651 = vpop.f32.mrf.mxu0
    %v4652 = vadd.f32 %v3803, %v4651
    %4653 = vmatmul.bf16.gmra.mxu0 %v4082
    %v4654 = vpop.f32.mrf.mxu0
    %v4655 = vadd.f32 %v3803, %v4654
    %v4656 = vpop.f32.mrf.mxu0
    %v4657 = vadd.f32 %v3803, %v4656
    %4658 = vmatmul.bf16.gmra.mxu0 %v4085
    %v4659 = vpop.f32.mrf.mxu0
    %v4660 = vadd.f32 %v3803, %v4659
    %v4661 = vpop.f32.mrf.mxu0
    %v4662 = vadd.f32 %v3803, %v4661
    %4663 = vmatmul.bf16.gmra.mxu0 %v4088
    %v4664 = vpop.f32.mrf.mxu0
    %v4665 = vadd.f32 %v3803, %v4664
    %v4666 = vpop.f32.mrf.mxu0
    %v4667 = vadd.f32 %v3803, %v4666
    %4668 = vmatmul.bf16.gmra.mxu0 %v4091
    %v4669 = vpop.f32.mrf.mxu0
    %v4670 = vadd.f32 %v3803, %v4669
    %v4671 = vpop.f32.mrf.mxu0
    %v4672 = vadd.f32 %v3803, %v4671
    %4673 = vmatmul.bf16.gmra.mxu0 %v4094
    %v4674 = vpop.f32.mrf.mxu0
    %v4675 = vadd.f32 %v3803, %v4674
    %v4676 = vpop.f32.mrf.mxu0
    %v4677 = vadd.f32 %v3803, %v4676
    %4678 = vmatmul.bf16.gmra.mxu0 %v4097
    %v4679 = vpop.f32.mrf.mxu0
    %v4680 = vadd.f32 %v3803, %v4679
    %v4681 = vpop.f32.mrf.mxu0
    %v4682 = vadd.f32 %v3803, %v4681
    %4683 = vmatmul.bf16.gmra.mxu0 %v4100
    %v4684 = vpop.f32.mrf.mxu0
    %v4685 = vadd.f32 %v3803, %v4684
    %v4686 = vpop.f32.mrf.mxu0
    %v4687 = vadd.f32 %v3803, %v4686
    %4688 = vmatmul.bf16.gmra.mxu0 %v4103
    %v4689 = vpop.f32.mrf.mxu0
    %v4690 = vadd.f32 %v3803, %v4689
    %v4691 = vpop.f32.mrf.mxu0
    %v4692 = vadd.f32 %v3803, %v4691
    %4693 = vmatmul.bf16.gmra.mxu0 %v4106
    %v4694 = vpop.f32.mrf.mxu0
    %v4695 = vadd.f32 %v3803, %v4694
    %v4696 = vpop.f32.mrf.mxu0
    %v4697 = vadd.f32 %v3803, %v4696
    %4698 = vmatmul.bf16.gmra.mxu0 %v4109
    %v4699 = vpop.f32.mrf.mxu0
    %v4700 = vadd.f32 %v3803, %v4699
    %v4701 = vpop.f32.mrf.mxu0
    %v4702 = vadd.f32 %v3803, %v4701
    %4703 = vmatmul.bf16.gmra.mxu0 %v4112
    %v4704 = vpop.f32.mrf.mxu0
    %v4705 = vadd.f32 %v3803, %v4704
    %v4706 = vpop.f32.mrf.mxu0
    %v4707 = vadd.f32 %v3803, %v4706
    %4708 = vmatmul.bf16.gmra.mxu0 %v4115
    %v4709 = vpop.f32.mrf.mxu0
    %v4710 = vadd.f32 %v3803, %v4709
    %v4711 = vpop.f32.mrf.mxu0
    %v4712 = vadd.f32 %v3803, %v4711
    %4713 = vmatmul.bf16.gmra.mxu0 %v4118
    %v4714 = vpop.f32.mrf.mxu0
    %v4715 = vadd.f32 %v3803, %v4714
    %v4716 = vpop.f32.mrf.mxu0
    %v4717 = vadd.f32 %v3803, %v4716
    %4718 = vmatmul.bf16.gmra.mxu0 %v4121
    %v4719 = vpop.f32.mrf.mxu0
    %v4720 = vadd.f32 %v3803, %v4719
    %v4721 = vpop.f32.mrf.mxu0
    %v4722 = vadd.f32 %v3803, %v4721
    %4723 = vmatmul.bf16.gmra.mxu0 %v4124
    %v4724 = vpop.f32.mrf.mxu0
    %v4725 = vadd.f32 %v3803, %v4724
    %v4726 = vpop.f32.mrf.mxu0
    %v4727 = vadd.f32 %v3803, %v4726
    %4728 = vmatmul.bf16.gmra.mxu0 %v4127
    %v4729 = vpop.f32.mrf.mxu0
    %v4730 = vadd.f32 %v3803, %v4729
    %v4731 = vpop.f32.mrf.mxu0
    %v4732 = vadd.f32 %v3803, %v4731
    %4733 = vmatmul.bf16.gmra.mxu0 %v4130
    %v4734 = vpop.f32.mrf.mxu0
    %v4735 = vadd.f32 %v3803, %v4734
    %v4736 = vpop.f32.mrf.mxu0
    %v4737 = vadd.f32 %v3803, %v4736
    %4738 = vmatmul.bf16.gmra.mxu0 %v4133
    %v4739 = vpop.f32.mrf.mxu0
    %v4740 = vadd.f32 %v3803, %v4739
    %v4741 = vpop.f32.mrf.mxu0
    %v4742 = vadd.f32 %v3803, %v4741
    %4743 = vmatmul.bf16.gmra.mxu0 %v4136
    %v4744 = vpop.f32.mrf.mxu0
    %v4745 = vadd.f32 %v3803, %v4744
    %v4746 = vpop.f32.mrf.mxu0
    %v4747 = vadd.f32 %v3803, %v4746
    %4748 = vmatmul.bf16.gmra.mxu0 %v4139
    %v4749 = vpop.f32.mrf.mxu0
    %v4750 = vadd.f32 %v3803, %v4749
    %v4751 = vpop.f32.mrf.mxu0
    %v4752 = vadd.f32 %v3803, %v4751
    %4753 = vmatmul.bf16.gmra.mxu0 %v4142
    %v4754 = vpop.f32.mrf.mxu0
    %v4755 = vadd.f32 %v3803, %v4754
    %v4756 = vpop.f32.mrf.mxu0
    %v4757 = vadd.f32 %v3803, %v4756
    %4758 = vmatmul.bf16.gmra.mxu0 %v4145
    %v4759 = vpop.f32.mrf.mxu0
    %v4760 = vadd.f32 %v3803, %v4759
    %v4761 = vpop.f32.mrf.mxu0
    %v4762 = vadd.f32 %v3803, %v4761
    %4763 = vmatmul.bf16.gmra.mxu0 %v4148
    %v4764 = vpop.f32.mrf.mxu0
    %v4765 = vadd.f32 %v3803, %v4764
    %v4766 = vpop.f32.mrf.mxu0
    %v4767 = vadd.f32 %v3803, %v4766
    %4768 = vmatmul.bf16.gmra.mxu0 %v4151
    %v4769 = vpop.f32.mrf.mxu0
    %v4770 = vadd.f32 %v3803, %v4769
    %v4771 = vpop.f32.mrf.mxu0
    %v4772 = vadd.f32 %v3803, %v4771
    %4773 = vmatmul.bf16.gmra.mxu0 %v4154
    %v4774 = vpop.f32.mrf.mxu0
    %v4775 = vadd.f32 %v3803, %v4774
    %v4776 = vpop.f32.mrf.mxu0
    %v4777 = vadd.f32 %v3803, %v4776
    %4778 = vmatmul.bf16.gmra.mxu0 %v4157
    %v4779 = vpop.f32.mrf.mxu0
    %v4780 = vadd.f32 %v3803, %v4779
    %v4781 = vpop.f32.mrf.mxu0
    %v4782 = vadd.f32 %v3803, %v4781
    %4783 = vmatmul.bf16.gmra.mxu0 %v4160
    %v4784 = vpop.f32.mrf.mxu0
    %v4785 = vadd.f32 %v3803, %v4784
    %v4786 = vpop.f32.mrf.mxu0
    %v4787 = vadd.f32 %v3803, %v4786
    %4788 = vmatmul.bf16.gmra.mxu0 %v4163
    %v4789 = vpop.f32.mrf.mxu0
    %v4790 = vadd.f32 %v3803, %v4789
    %v4791 = vpop.f32.mrf.mxu0
    %v4792 = vadd.f32 %v3803, %v4791
    %4793 = vmatmul.bf16.gmra.mxu0 %v4166
    %v4794 = vpop.f32.mrf.mxu0
    %v4795 = vadd.f32 %v3803, %v4794
    %v4796 = vpop.f32.mrf.mxu0
    %v4797 = vadd.f32 %v3803, %v4796
    %4798 = vmatmul.bf16.gmra.mxu0 %v4169
    %v4799 = vpop.f32.mrf.mxu0
    %v4800 = vadd.f32 %v3803, %v4799
    %v4801 = vpop.f32.mrf.mxu0
    %v4802 = vadd.f32 %v3803, %v4801
    %4803 = vmatmul.bf16.gmra.mxu0 %v4172
    %v4804 = vpop.f32.mrf.mxu0
    %v4805 = vadd.f32 %v3803, %v4804
    %v4806 = vpop.f32.mrf.mxu0
    %v4807 = vadd.f32 %v3803, %v4806
    %4808 = vmatmul.bf16.gmra.mxu0 %v4175
    %v4809 = vpop.f32.mrf.mxu0
    %v4810 = vadd.f32 %v3803, %v4809
    %v4811 = vpop.f32.mrf.mxu0
    %v4812 = vadd.f32 %v3803, %v4811
    %4813 = vmatmul.bf16.gmra.mxu0 %v4178
    %v4814 = vpop.f32.mrf.mxu0
    %v4815 = vadd.f32 %v3803, %v4814
    %v4816 = vpop.f32.mrf.mxu0
    %v4817 = vadd.f32 %v3803, %v4816
    %4818 = vmatmul.bf16.gmra.mxu0 %v4181
    %v4819 = vpop.f32.mrf.mxu0
    %v4820 = vadd.f32 %v3803, %v4819
    %v4821 = vpop.f32.mrf.mxu0
    %v4822 = vadd.f32 %v3803, %v4821
    %4823 = vmatmul.bf16.gmra.mxu0 %v4184
    %v4824 = vpop.f32.mrf.mxu0
    %v4825 = vadd.f32 %v3803, %v4824
    %v4826 = vpop.f32.mrf.mxu0
    %v4827 = vadd.f32 %v3803, %v4826
    %4828 = vmatmul.bf16.gmra.mxu0 %v4187
    %v4829 = vpop.f32.mrf.mxu0
    %v4830 = vadd.f32 %v3803, %v4829
    %v4831 = vpop.f32.mrf.mxu0
    %v4832 = vadd.f32 %v3803, %v4831
    %4833 = vmatmul.bf16.gmra.mxu0 %v4190
    %v4834 = vpop.f32.mrf.mxu0
    %v4835 = vadd.f32 %v3803, %v4834
    %v4836 = vpop.f32.mrf.mxu0
    %v4837 = vadd.f32 %v3803, %v4836
    %4838 = vmatmul.bf16.gmra.mxu0 %v4193
    %v4839 = vpop.f32.mrf.mxu0
    %v4840 = vadd.f32 %v3803, %v4839
    %v4841 = vpop.f32.mrf.mxu0
    %v4842 = vadd.f32 %v3803, %v4841
    %4843 = vdwg.mxu0
    %v4844 = vmax.f32 %v4205, 0.0
    %v4845 = vmax.f32 %v4207, 0.0
    %v4846 = vmax.f32 %v4210, 0.0
    %v4847 = vmax.f32 %v4212, 0.0
    %v4848 = vmax.f32 %v4215, 0.0
    %v4849 = vmax.f32 %v4217, 0.0
    %v4850 = vmax.f32 %v4220, 0.0
    %v4851 = vmax.f32 %v4222, 0.0
    %v4852 = vmax.f32 %v4225, 0.0
    %v4853 = vmax.f32 %v4227, 0.0
    %v4854 = vmax.f32 %v4230, 0.0
    %v4855 = vmax.f32 %v4232, 0.0
    %v4856 = vmax.f32 %v4235, 0.0
    %v4857 = vmax.f32 %v4237, 0.0
    %v4858 = vmax.f32 %v4240, 0.0
    %v4859 = vmax.f32 %v4242, 0.0
    %v4860 = vmax.f32 %v4245, 0.0
    %v4861 = vmax.f32 %v4247, 0.0
    %v4862 = vmax.f32 %v4250, 0.0
    %v4863 = vmax.f32 %v4252, 0.0
    %v4864 = vmax.f32 %v4255, 0.0
    %v4865 = vmax.f32 %v4257, 0.0
    %v4866 = vmax.f32 %v4260, 0.0
    %v4867 = vmax.f32 %v4262, 0.0
    %v4868 = vmax.f32 %v4265, 0.0
    %v4869 = vmax.f32 %v4267, 0.0
    %v4870 = vmax.f32 %v4270, 0.0
    %v4871 = vmax.f32 %v4272, 0.0
    %v4872 = vmax.f32 %v4275, 0.0
    %v4873 = vmax.f32 %v4277, 0.0
    %v4874 = vmax.f32 %v4280, 0.0
    %v4875 = vmax.f32 %v4282, 0.0
    %v4876 = vmax.f32 %v4285, 0.0
    %v4877 = vmax.f32 %v4287, 0.0
    %v4878 = vmax.f32 %v4290, 0.0
    %v4879 = vmax.f32 %v4292, 0.0
    %v4880 = vmax.f32 %v4295, 0.0
    %v4881 = vmax.f32 %v4297, 0.0
    %v4882 = vmax.f32 %v4300, 0.0
    %v4883 = vmax.f32 %v4302, 0.0
    %v4884 = vmax.f32 %v4305, 0.0
    %v4885 = vmax.f32 %v4307, 0.0
    %v4886 = vmax.f32 %v4310, 0.0
    %v4887 = vmax.f32 %v4312, 0.0
    %v4888 = vmax.f32 %v4315, 0.0
    %v4889 = vmax.f32 %v4317, 0.0
    %v4890 = vmax.f32 %v4320, 0.0
    %v4891 = vmax.f32 %v4322, 0.0
    %v4892 = vmax.f32 %v4325, 0.0
    %v4893 = vmax.f32 %v4327, 0.0
    %v4894 = vmax.f32 %v4330, 0.0
    %v4895 = vmax.f32 %v4332, 0.0
    %v4896 = vmax.f32 %v4335, 0.0
    %v4897 = vmax.f32 %v4337, 0.0
    %v4898 = vmax.f32 %v4340, 0.0
    %v4899 = vmax.f32 %v4342, 0.0
    %v4900 = vmax.f32 %v4345, 0.0
    %v4901 = vmax.f32 %v4347, 0.0
    %v4902 = vmax.f32 %v4350, 0.0
    %v4903 = vmax.f32 %v4352, 0.0
    %v4904 = vmax.f32 %v4355, 0.0
    %v4905 = vmax.f32 %v4357, 0.0
    %v4906 = vmax.f32 %v4360, 0.0
    %v4907 = vmax.f32 %v4362, 0.0
    %v4908 = vmax.f32 %v4365, 0.0
    %v4909 = vmax.f32 %v4367, 0.0
    %v4910 = vmax.f32 %v4370, 0.0
    %v4911 = vmax.f32 %v4372, 0.0
    %v4912 = vmax.f32 %v4375, 0.0
    %v4913 = vmax.f32 %v4377, 0.0
    %v4914 = vmax.f32 %v4380, 0.0
    %v4915 = vmax.f32 %v4382, 0.0
    %v4916 = vmax.f32 %v4385, 0.0
    %v4917 = vmax.f32 %v4387, 0.0
    %v4918 = vmax.f32 %v4390, 0.0
    %v4919 = vmax.f32 %v4392, 0.0
    %v4920 = vmax.f32 %v4395, 0.0
    %v4921 = vmax.f32 %v4397, 0.0
    %v4922 = vmax.f32 %v4400, 0.0
    %v4923 = vmax.f32 %v4402, 0.0
    %v4924 = vmax.f32 %v4405, 0.0
    %v4925 = vmax.f32 %v4407, 0.0
    %v4926 = vmax.f32 %v4410, 0.0
    %v4927 = vmax.f32 %v4412, 0.0
    %v4928 = vmax.f32 %v4415, 0.0
    %v4929 = vmax.f32 %v4417, 0.0
    %v4930 = vmax.f32 %v4420, 0.0
    %v4931 = vmax.f32 %v4422, 0.0
    %v4932 = vmax.f32 %v4425, 0.0
    %v4933 = vmax.f32 %v4427, 0.0
    %v4934 = vmax.f32 %v4430, 0.0
    %v4935 = vmax.f32 %v4432, 0.0
    %v4936 = vmax.f32 %v4435, 0.0
    %v4937 = vmax.f32 %v4437, 0.0
    %v4938 = vmax.f32 %v4440, 0.0
    %v4939 = vmax.f32 %v4442, 0.0
    %v4940 = vmax.f32 %v4445, 0.0
    %v4941 = vmax.f32 %v4447, 0.0
    %v4942 = vmax.f32 %v4450, 0.0
    %v4943 = vmax.f32 %v4452, 0.0
    %v4944 = vmax.f32 %v4455, 0.0
    %v4945 = vmax.f32 %v4457, 0.0
    %v4946 = vmax.f32 %v4460, 0.0
    %v4947 = vmax.f32 %v4462, 0.0
    %v4948 = vmax.f32 %v4465, 0.0
    %v4949 = vmax.f32 %v4467, 0.0
    %v4950 = vmax.f32 %v4470, 0.0
    %v4951 = vmax.f32 %v4472, 0.0
    %v4952 = vmax.f32 %v4475, 0.0
    %v4953 = vmax.f32 %v4477, 0.0
    %v4954 = vmax.f32 %v4480, 0.0
    %v4955 = vmax.f32 %v4482, 0.0
    %v4956 = vmax.f32 %v4485, 0.0
    %v4957 = vmax.f32 %v4487, 0.0
    %v4958 = vmax.f32 %v4490, 0.0
    %v4959 = vmax.f32 %v4492, 0.0
    %v4960 = vmax.f32 %v4495, 0.0
    %v4961 = vmax.f32 %v4497, 0.0
    %v4962 = vmax.f32 %v4500, 0.0
    %v4963 = vmax.f32 %v4502, 0.0
    %v4964 = vmax.f32 %v4505, 0.0
    %v4965 = vmax.f32 %v4507, 0.0
    %v4966 = vmax.f32 %v4510, 0.0
    %v4967 = vmax.f32 %v4512, 0.0
    %v4968 = vmax.f32 %v4515, 0.0
    %v4969 = vmax.f32 %v4517, 0.0
    %v4970 = vmax.f32 %v4520, 0.0
    %v4971 = vmax.f32 %v4522, 0.0
    %v4972 = vmax.f32 %v4525, 0.0
    %v4973 = vmax.f32 %v4527, 0.0
    %v4974 = vmax.f32 %v4530, 0.0
    %v4975 = vmax.f32 %v4532, 0.0
    %v4976 = vmax.f32 %v4535, 0.0
    %v4977 = vmax.f32 %v4537, 0.0
    %v4978 = vmax.f32 %v4540, 0.0
    %v4979 = vmax.f32 %v4542, 0.0
    %v4980 = vmax.f32 %v4545, 0.0
    %v4981 = vmax.f32 %v4547, 0.0
    %v4982 = vmax.f32 %v4550, 0.0
    %v4983 = vmax.f32 %v4552, 0.0
    %v4984 = vmax.f32 %v4555, 0.0
    %v4985 = vmax.f32 %v4557, 0.0
    %v4986 = vmax.f32 %v4560, 0.0
    %v4987 = vmax.f32 %v4562, 0.0
    %v4988 = vmax.f32 %v4565, 0.0
    %v4989 = vmax.f32 %v4567, 0.0
    %v4990 = vmax.f32 %v4570, 0.0
    %v4991 = vmax.f32 %v4572, 0.0
    %v4992 = vmax.f32 %v4575, 0.0
    %v4993 = vmax.f32 %v4577, 0.0
    %v4994 = vmax.f32 %v4580, 0.0
    %v4995 = vmax.f32 %v4582, 0.0
    %v4996 = vmax.f32 %v4585, 0.0
    %v4997 = vmax.f32 %v4587, 0.0
    %v4998 = vmax.f32 %v4590, 0.0
    %v4999 = vmax.f32 %v4592, 0.0
    %v5000 = vmax.f32 %v4595, 0.0
    %v5001 = vmax.f32 %v4597, 0.0
    %v5002 = vmax.f32 %v4600, 0.0
    %v5003 = vmax.f32 %v4602, 0.0
    %v5004 = vmax.f32 %v4605, 0.0
    %v5005 = vmax.f32 %v4607, 0.0
    %v5006 = vmax.f32 %v4610, 0.0
    %v5007 = vmax.f32 %v4612, 0.0
    %v5008 = vmax.f32 %v4615, 0.0
    %v5009 = vmax.f32 %v4617, 0.0
    %v5010 = vmax.f32 %v4620, 0.0
    %v5011 = vmax.f32 %v4622, 0.0
    %v5012 = vmax.f32 %v4625, 0.0
    %v5013 = vmax.f32 %v4627, 0.0
    %v5014 = vmax.f32 %v4630, 0.0
    %v5015 = vmax.f32 %v4632, 0.0
    %v5016 = vmax.f32 %v4635, 0.0
    %v5017 = vmax.f32 %v4637, 0.0
    %v5018 = vmax.f32 %v4640, 0.0
    %v5019 = vmax.f32 %v4642, 0.0
    %v5020 = vmax.f32 %v4645, 0.0
    %v5021 = vmax.f32 %v4647, 0.0
    %v5022 = vmax.f32 %v4650, 0.0
    %v5023 = vmax.f32 %v4652, 0.0
    %v5024 = vmax.f32 %v4655, 0.0
    %v5025 = vmax.f32 %v4657, 0.0
    %v5026 = vmax.f32 %v4660, 0.0
    %v5027 = vmax.f32 %v4662, 0.0
    %v5028 = vmax.f32 %v4665, 0.0
    %v5029 = vmax.f32 %v4667, 0.0
    %v5030 = vmax.f32 %v4670, 0.0
    %v5031 = vmax.f32 %v4672, 0.0
    %v5032 = vmax.f32 %v4675, 0.0
    %v5033 = vmax.f32 %v4677, 0.0
    %v5034 = vmax.f32 %v4680, 0.0
    %v5035 = vmax.f32 %v4682, 0.0
    %v5036 = vmax.f32 %v4685, 0.0
    %v5037 = vmax.f32 %v4687, 0.0
    %v5038 = vmax.f32 %v4690, 0.0
    %v5039 = vmax.f32 %v4692, 0.0
    %v5040 = vmax.f32 %v4695, 0.0
    %v5041 = vmax.f32 %v4697, 0.0
    %v5042 = vmax.f32 %v4700, 0.0
    %v5043 = vmax.f32 %v4702, 0.0
    %v5044 = vmax.f32 %v4705, 0.0
    %v5045 = vmax.f32 %v4707, 0.0
    %v5046 = vmax.f32 %v4710, 0.0
    %v5047 = vmax.f32 %v4712, 0.0
    %v5048 = vmax.f32 %v4715, 0.0
    %v5049 = vmax.f32 %v4717, 0.0
    %v5050 = vmax.f32 %v4720, 0.0
    %v5051 = vmax.f32 %v4722, 0.0
    %v5052 = vmax.f32 %v4725, 0.0
    %v5053 = vmax.f32 %v4727, 0.0
    %v5054 = vmax.f32 %v4730, 0.0
    %v5055 = vmax.f32 %v4732, 0.0
    %v5056 = vmax.f32 %v4735, 0.0
    %v5057 = vmax.f32 %v4737, 0.0
    %v5058 = vmax.f32 %v4740, 0.0
    %v5059 = vmax.f32 %v4742, 0.0
    %v5060 = vmax.f32 %v4745, 0.0
    %v5061 = vmax.f32 %v4747, 0.0
    %v5062 = vmax.f32 %v4750, 0.0
    %v5063 = vmax.f32 %v4752, 0.0
    %v5064 = vmax.f32 %v4755, 0.0
    %v5065 = vmax.f32 %v4757, 0.0
    %v5066 = vmax.f32 %v4760, 0.0
    %v5067 = vmax.f32 %v4762, 0.0
    %v5068 = vmax.f32 %v4765, 0.0
    %v5069 = vmax.f32 %v4767, 0.0
    %v5070 = vmax.f32 %v4770, 0.0
    %v5071 = vmax.f32 %v4772, 0.0
    %v5072 = vmax.f32 %v4775, 0.0
    %v5073 = vmax.f32 %v4777, 0.0
    %v5074 = vmax.f32 %v4780, 0.0
    %v5075 = vmax.f32 %v4782, 0.0
    %v5076 = vmax.f32 %v4785, 0.0
    %v5077 = vmax.f32 %v4787, 0.0
    %v5078 = vmax.f32 %v4790, 0.0
    %v5079 = vmax.f32 %v4792, 0.0
    %v5080 = vmax.f32 %v4795, 0.0
    %v5081 = vmax.f32 %v4797, 0.0
    %v5082 = vmax.f32 %v4800, 0.0
    %v5083 = vmax.f32 %v4802, 0.0
    %v5084 = vmax.f32 %v4805, 0.0
    %v5085 = vmax.f32 %v4807, 0.0
    %v5086 = vmax.f32 %v4810, 0.0
    %v5087 = vmax.f32 %v4812, 0.0
    %v5088 = vmax.f32 %v4815, 0.0
    %v5089 = vmax.f32 %v4817, 0.0
    %v5090 = vmax.f32 %v4820, 0.0
    %v5091 = vmax.f32 %v4822, 0.0
    %v5092 = vmax.f32 %v4825, 0.0
    %v5093 = vmax.f32 %v4827, 0.0
    %v5094 = vmax.f32 %v4830, 0.0
    %v5095 = vmax.f32 %v4832, 0.0
    %v5096 = vmax.f32 %v4835, 0.0
    %v5097 = vmax.f32 %v4837, 0.0
    %v5098 = vmax.f32 %v4840, 0.0
    %v5099 = vmax.f32 %v4842, 0.0
    %vm5100 = vcmask 261120
    %v5101 = vsel %vm5100, %v4844, -inf
    %v5102 = vsel %vm5100, %v4845, -inf
    %v5103 = vmax.f32 %v5101, %v5102
    %v5104 = vsel %vm5100, %v4846, -inf
    %v5105 = vmax.f32 %v5103, %v5104
    %v5106 = vsel %vm5100, %v4847, -inf
    %v5107 = vmax.f32 %v5105, %v5106
    %v5108 = vrot.slane %v5107, 4
    %v5109 = vmax.f32 %v5107, %v5108
    %v5110 = vrot.slane %v5109, 2
    %v5111 = vmax.f32 %v5109, %v5110
    %v5112 = vrot.slane %v5111, 1
    %v5113 = vmax.f32 %v5111, %v5112
    %v5114 = vsel %vm5100, %v4848, -inf
    %v5115 = vsel %vm5100, %v4849, -inf
    %v5116 = vmax.f32 %v5114, %v5115
    %v5117 = vsel %vm5100, %v4850, -inf
    %v5118 = vmax.f32 %v5116, %v5117
    %v5119 = vsel %vm5100, %v4851, -inf
    %v5120 = vmax.f32 %v5118, %v5119
    %v5121 = vrot.slane %v5120, 4
    %v5122 = vmax.f32 %v5120, %v5121
    %v5123 = vrot.slane %v5122, 2
    %v5124 = vmax.f32 %v5122, %v5123
    %v5125 = vrot.slane %v5124, 1
    %v5126 = vmax.f32 %v5124, %v5125
    %v5127 = vsel %vm5100, %v4852, -inf
    %v5128 = vsel %vm5100, %v4853, -inf
    %v5129 = vmax.f32 %v5127, %v5128
    %v5130 = vsel %vm5100, %v4854, -inf
    %v5131 = vmax.f32 %v5129, %v5130
    %v5132 = vsel %vm5100, %v4855, -inf
    %v5133 = vmax.f32 %v5131, %v5132
    %v5134 = vrot.slane %v5133, 4
    %v5135 = vmax.f32 %v5133, %v5134
    %v5136 = vrot.slane %v5135, 2
    %v5137 = vmax.f32 %v5135, %v5136
    %v5138 = vrot.slane %v5137, 1
    %v5139 = vmax.f32 %v5137, %v5138
    %v5140 = vsel %vm5100, %v4856, -inf
    %v5141 = vsel %vm5100, %v4857, -inf
    %v5142 = vmax.f32 %v5140, %v5141
    %v5143 = vsel %vm5100, %v4858, -inf
    %v5144 = vmax.f32 %v5142, %v5143
    %v5145 = vsel %vm5100, %v4859, -inf
    %v5146 = vmax.f32 %v5144, %v5145
    %v5147 = vrot.slane %v5146, 4
    %v5148 = vmax.f32 %v5146, %v5147
    %v5149 = vrot.slane %v5148, 2
    %v5150 = vmax.f32 %v5148, %v5149
    %v5151 = vrot.slane %v5150, 1
    %v5152 = vmax.f32 %v5150, %v5151
    %v5153 = vsel %vm5100, %v4860, -inf
    %v5154 = vsel %vm5100, %v4861, -inf
    %v5155 = vmax.f32 %v5153, %v5154
    %v5156 = vsel %vm5100, %v4862, -inf
    %v5157 = vmax.f32 %v5155, %v5156
    %v5158 = vsel %vm5100, %v4863, -inf
    %v5159 = vmax.f32 %v5157, %v5158
    %v5160 = vrot.slane %v5159, 4
    %v5161 = vmax.f32 %v5159, %v5160
    %v5162 = vrot.slane %v5161, 2
    %v5163 = vmax.f32 %v5161, %v5162
    %v5164 = vrot.slane %v5163, 1
    %v5165 = vmax.f32 %v5163, %v5164
    %v5166 = vsel %vm5100, %v4864, -inf
    %v5167 = vsel %vm5100, %v4865, -inf
    %v5168 = vmax.f32 %v5166, %v5167
    %v5169 = vsel %vm5100, %v4866, -inf
    %v5170 = vmax.f32 %v5168, %v5169
    %v5171 = vsel %vm5100, %v4867, -inf
    %v5172 = vmax.f32 %v5170, %v5171
    %v5173 = vrot.slane %v5172, 4
    %v5174 = vmax.f32 %v5172, %v5173
    %v5175 = vrot.slane %v5174, 2
    %v5176 = vmax.f32 %v5174, %v5175
    %v5177 = vrot.slane %v5176, 1
    %v5178 = vmax.f32 %v5176, %v5177
    %v5179 = vsel %vm5100, %v4868, -inf
    %v5180 = vsel %vm5100, %v4869, -inf
    %v5181 = vmax.f32 %v5179, %v5180
    %v5182 = vsel %vm5100, %v4870, -inf
    %v5183 = vmax.f32 %v5181, %v5182
    %v5184 = vsel %vm5100, %v4871, -inf
    %v5185 = vmax.f32 %v5183, %v5184
    %v5186 = vrot.slane %v5185, 4
    %v5187 = vmax.f32 %v5185, %v5186
    %v5188 = vrot.slane %v5187, 2
    %v5189 = vmax.f32 %v5187, %v5188
    %v5190 = vrot.slane %v5189, 1
    %v5191 = vmax.f32 %v5189, %v5190
    %v5192 = vsel %vm5100, %v4872, -inf
    %v5193 = vsel %vm5100, %v4873, -inf
    %v5194 = vmax.f32 %v5192, %v5193
    %v5195 = vsel %vm5100, %v4874, -inf
    %v5196 = vmax.f32 %v5194, %v5195
    %v5197 = vsel %vm5100, %v4875, -inf
    %v5198 = vmax.f32 %v5196, %v5197
    %v5199 = vrot.slane %v5198, 4
    %v5200 = vmax.f32 %v5198, %v5199
    %v5201 = vrot.slane %v5200, 2
    %v5202 = vmax.f32 %v5200, %v5201
    %v5203 = vrot.slane %v5202, 1
    %v5204 = vmax.f32 %v5202, %v5203
    %v5205 = vsel %vm5100, %v4876, -inf
    %v5206 = vsel %vm5100, %v4877, -inf
    %v5207 = vmax.f32 %v5205, %v5206
    %v5208 = vsel %vm5100, %v4878, -inf
    %v5209 = vmax.f32 %v5207, %v5208
    %v5210 = vsel %vm5100, %v4879, -inf
    %v5211 = vmax.f32 %v5209, %v5210
    %v5212 = vrot.slane %v5211, 4
    %v5213 = vmax.f32 %v5211, %v5212
    %v5214 = vrot.slane %v5213, 2
    %v5215 = vmax.f32 %v5213, %v5214
    %v5216 = vrot.slane %v5215, 1
    %v5217 = vmax.f32 %v5215, %v5216
    %v5218 = vsel %vm5100, %v4880, -inf
    %v5219 = vsel %vm5100, %v4881, -inf
    %v5220 = vmax.f32 %v5218, %v5219
    %v5221 = vsel %vm5100, %v4882, -inf
    %v5222 = vmax.f32 %v5220, %v5221
    %v5223 = vsel %vm5100, %v4883, -inf
    %v5224 = vmax.f32 %v5222, %v5223
    %v5225 = vrot.slane %v5224, 4
    %v5226 = vmax.f32 %v5224, %v5225
    %v5227 = vrot.slane %v5226, 2
    %v5228 = vmax.f32 %v5226, %v5227
    %v5229 = vrot.slane %v5228, 1
    %v5230 = vmax.f32 %v5228, %v5229
    %v5231 = vsel %vm5100, %v4884, -inf
    %v5232 = vsel %vm5100, %v4885, -inf
    %v5233 = vmax.f32 %v5231, %v5232
    %v5234 = vsel %vm5100, %v4886, -inf
    %v5235 = vmax.f32 %v5233, %v5234
    %v5236 = vsel %vm5100, %v4887, -inf
    %v5237 = vmax.f32 %v5235, %v5236
    %v5238 = vrot.slane %v5237, 4
    %v5239 = vmax.f32 %v5237, %v5238
    %v5240 = vrot.slane %v5239, 2
    %v5241 = vmax.f32 %v5239, %v5240
    %v5242 = vrot.slane %v5241, 1
    %v5243 = vmax.f32 %v5241, %v5242
    %v5244 = vsel %vm5100, %v4888, -inf
    %v5245 = vsel %vm5100, %v4889, -inf
    %v5246 = vmax.f32 %v5244, %v5245
    %v5247 = vsel %vm5100, %v4890, -inf
    %v5248 = vmax.f32 %v5246, %v5247
    %v5249 = vsel %vm5100, %v4891, -inf
    %v5250 = vmax.f32 %v5248, %v5249
    %v5251 = vrot.slane %v5250, 4
    %v5252 = vmax.f32 %v5250, %v5251
    %v5253 = vrot.slane %v5252, 2
    %v5254 = vmax.f32 %v5252, %v5253
    %v5255 = vrot.slane %v5254, 1
    %v5256 = vmax.f32 %v5254, %v5255
    %v5257 = vsel %vm5100, %v4892, -inf
    %v5258 = vsel %vm5100, %v4893, -inf
    %v5259 = vmax.f32 %v5257, %v5258
    %v5260 = vsel %vm5100, %v4894, -inf
    %v5261 = vmax.f32 %v5259, %v5260
    %v5262 = vsel %vm5100, %v4895, -inf
    %v5263 = vmax.f32 %v5261, %v5262
    %v5264 = vrot.slane %v5263, 4
    %v5265 = vmax.f32 %v5263, %v5264
    %v5266 = vrot.slane %v5265, 2
    %v5267 = vmax.f32 %v5265, %v5266
    %v5268 = vrot.slane %v5267, 1
    %v5269 = vmax.f32 %v5267, %v5268
    %v5270 = vsel %vm5100, %v4896, -inf
    %v5271 = vsel %vm5100, %v4897, -inf
    %v5272 = vmax.f32 %v5270, %v5271
    %v5273 = vsel %vm5100, %v4898, -inf
    %v5274 = vmax.f32 %v5272, %v5273
    %v5275 = vsel %vm5100, %v4899, -inf
    %v5276 = vmax.f32 %v5274, %v5275
    %v5277 = vrot.slane %v5276, 4
    %v5278 = vmax.f32 %v5276, %v5277
    %v5279 = vrot.slane %v5278, 2
    %v5280 = vmax.f32 %v5278, %v5279
    %v5281 = vrot.slane %v5280, 1
    %v5282 = vmax.f32 %v5280, %v5281
    %v5283 = vsel %vm5100, %v4900, -inf
    %v5284 = vsel %vm5100, %v4901, -inf
    %v5285 = vmax.f32 %v5283, %v5284
    %v5286 = vsel %vm5100, %v4902, -inf
    %v5287 = vmax.f32 %v5285, %v5286
    %v5288 = vsel %vm5100, %v4903, -inf
    %v5289 = vmax.f32 %v5287, %v5288
    %v5290 = vrot.slane %v5289, 4
    %v5291 = vmax.f32 %v5289, %v5290
    %v5292 = vrot.slane %v5291, 2
    %v5293 = vmax.f32 %v5291, %v5292
    %v5294 = vrot.slane %v5293, 1
    %v5295 = vmax.f32 %v5293, %v5294
    %v5296 = vsel %vm5100, %v4904, -inf
    %v5297 = vsel %vm5100, %v4905, -inf
    %v5298 = vmax.f32 %v5296, %v5297
    %v5299 = vsel %vm5100, %v4906, -inf
    %v5300 = vmax.f32 %v5298, %v5299
    %v5301 = vsel %vm5100, %v4907, -inf
    %v5302 = vmax.f32 %v5300, %v5301
    %v5303 = vrot.slane %v5302, 4
    %v5304 = vmax.f32 %v5302, %v5303
    %v5305 = vrot.slane %v5304, 2
    %v5306 = vmax.f32 %v5304, %v5305
    %v5307 = vrot.slane %v5306, 1
    %v5308 = vmax.f32 %v5306, %v5307
    %v5309 = vsel %vm5100, %v4908, -inf
    %v5310 = vsel %vm5100, %v4909, -inf
    %v5311 = vmax.f32 %v5309, %v5310
    %v5312 = vsel %vm5100, %v4910, -inf
    %v5313 = vmax.f32 %v5311, %v5312
    %v5314 = vsel %vm5100, %v4911, -inf
    %v5315 = vmax.f32 %v5313, %v5314
    %v5316 = vrot.slane %v5315, 4
    %v5317 = vmax.f32 %v5315, %v5316
    %v5318 = vrot.slane %v5317, 2
    %v5319 = vmax.f32 %v5317, %v5318
    %v5320 = vrot.slane %v5319, 1
    %v5321 = vmax.f32 %v5319, %v5320
    %v5322 = vsel %vm5100, %v4912, -inf
    %v5323 = vsel %vm5100, %v4913, -inf
    %v5324 = vmax.f32 %v5322, %v5323
    %v5325 = vsel %vm5100, %v4914, -inf
    %v5326 = vmax.f32 %v5324, %v5325
    %v5327 = vsel %vm5100, %v4915, -inf
    %v5328 = vmax.f32 %v5326, %v5327
    %v5329 = vrot.slane %v5328, 4
    %v5330 = vmax.f32 %v5328, %v5329
    %v5331 = vrot.slane %v5330, 2
    %v5332 = vmax.f32 %v5330, %v5331
    %v5333 = vrot.slane %v5332, 1
    %v5334 = vmax.f32 %v5332, %v5333
    %v5335 = vsel %vm5100, %v4916, -inf
    %v5336 = vsel %vm5100, %v4917, -inf
    %v5337 = vmax.f32 %v5335, %v5336
    %v5338 = vsel %vm5100, %v4918, -inf
    %v5339 = vmax.f32 %v5337, %v5338
    %v5340 = vsel %vm5100, %v4919, -inf
    %v5341 = vmax.f32 %v5339, %v5340
    %v5342 = vrot.slane %v5341, 4
    %v5343 = vmax.f32 %v5341, %v5342
    %v5344 = vrot.slane %v5343, 2
    %v5345 = vmax.f32 %v5343, %v5344
    %v5346 = vrot.slane %v5345, 1
    %v5347 = vmax.f32 %v5345, %v5346
    %v5348 = vsel %vm5100, %v4920, -inf
    %v5349 = vsel %vm5100, %v4921, -inf
    %v5350 = vmax.f32 %v5348, %v5349
    %v5351 = vsel %vm5100, %v4922, -inf
    %v5352 = vmax.f32 %v5350, %v5351
    %v5353 = vsel %vm5100, %v4923, -inf
    %v5354 = vmax.f32 %v5352, %v5353
    %v5355 = vrot.slane %v5354, 4
    %v5356 = vmax.f32 %v5354, %v5355
    %v5357 = vrot.slane %v5356, 2
    %v5358 = vmax.f32 %v5356, %v5357
    %v5359 = vrot.slane %v5358, 1
    %v5360 = vmax.f32 %v5358, %v5359
    %v5361 = vsel %vm5100, %v4924, -inf
    %v5362 = vsel %vm5100, %v4925, -inf
    %v5363 = vmax.f32 %v5361, %v5362
    %v5364 = vsel %vm5100, %v4926, -inf
    %v5365 = vmax.f32 %v5363, %v5364
    %v5366 = vsel %vm5100, %v4927, -inf
    %v5367 = vmax.f32 %v5365, %v5366
    %v5368 = vrot.slane %v5367, 4
    %v5369 = vmax.f32 %v5367, %v5368
    %v5370 = vrot.slane %v5369, 2
    %v5371 = vmax.f32 %v5369, %v5370
    %v5372 = vrot.slane %v5371, 1
    %v5373 = vmax.f32 %v5371, %v5372
    %v5374 = vsel %vm5100, %v4928, -inf
    %v5375 = vsel %vm5100, %v4929, -inf
    %v5376 = vmax.f32 %v5374, %v5375
    %v5377 = vsel %vm5100, %v4930, -inf
    %v5378 = vmax.f32 %v5376, %v5377
    %v5379 = vsel %vm5100, %v4931, -inf
    %v5380 = vmax.f32 %v5378, %v5379
    %v5381 = vrot.slane %v5380, 4
    %v5382 = vmax.f32 %v5380, %v5381
    %v5383 = vrot.slane %v5382, 2
    %v5384 = vmax.f32 %v5382, %v5383
    %v5385 = vrot.slane %v5384, 1
    %v5386 = vmax.f32 %v5384, %v5385
    %v5387 = vsel %vm5100, %v4932, -inf
    %v5388 = vsel %vm5100, %v4933, -inf
    %v5389 = vmax.f32 %v5387, %v5388
    %v5390 = vsel %vm5100, %v4934, -inf
    %v5391 = vmax.f32 %v5389, %v5390
    %v5392 = vsel %vm5100, %v4935, -inf
    %v5393 = vmax.f32 %v5391, %v5392
    %v5394 = vrot.slane %v5393, 4
    %v5395 = vmax.f32 %v5393, %v5394
    %v5396 = vrot.slane %v5395, 2
    %v5397 = vmax.f32 %v5395, %v5396
    %v5398 = vrot.slane %v5397, 1
    %v5399 = vmax.f32 %v5397, %v5398
    %v5400 = vsel %vm5100, %v4936, -inf
    %v5401 = vsel %vm5100, %v4937, -inf
    %v5402 = vmax.f32 %v5400, %v5401
    %v5403 = vsel %vm5100, %v4938, -inf
    %v5404 = vmax.f32 %v5402, %v5403
    %v5405 = vsel %vm5100, %v4939, -inf
    %v5406 = vmax.f32 %v5404, %v5405
    %v5407 = vrot.slane %v5406, 4
    %v5408 = vmax.f32 %v5406, %v5407
    %v5409 = vrot.slane %v5408, 2
    %v5410 = vmax.f32 %v5408, %v5409
    %v5411 = vrot.slane %v5410, 1
    %v5412 = vmax.f32 %v5410, %v5411
    %v5413 = vsel %vm5100, %v4940, -inf
    %v5414 = vsel %vm5100, %v4941, -inf
    %v5415 = vmax.f32 %v5413, %v5414
    %v5416 = vsel %vm5100, %v4942, -inf
    %v5417 = vmax.f32 %v5415, %v5416
    %v5418 = vsel %vm5100, %v4943, -inf
    %v5419 = vmax.f32 %v5417, %v5418
    %v5420 = vrot.slane %v5419, 4
    %v5421 = vmax.f32 %v5419, %v5420
    %v5422 = vrot.slane %v5421, 2
    %v5423 = vmax.f32 %v5421, %v5422
    %v5424 = vrot.slane %v5423, 1
    %v5425 = vmax.f32 %v5423, %v5424
    %v5426 = vsel %vm5100, %v4944, -inf
    %v5427 = vsel %vm5100, %v4945, -inf
    %v5428 = vmax.f32 %v5426, %v5427
    %v5429 = vsel %vm5100, %v4946, -inf
    %v5430 = vmax.f32 %v5428, %v5429
    %v5431 = vsel %vm5100, %v4947, -inf
    %v5432 = vmax.f32 %v5430, %v5431
    %v5433 = vrot.slane %v5432, 4
    %v5434 = vmax.f32 %v5432, %v5433
    %v5435 = vrot.slane %v5434, 2
    %v5436 = vmax.f32 %v5434, %v5435
    %v5437 = vrot.slane %v5436, 1
    %v5438 = vmax.f32 %v5436, %v5437
    %v5439 = vsel %vm5100, %v4948, -inf
    %v5440 = vsel %vm5100, %v4949, -inf
    %v5441 = vmax.f32 %v5439, %v5440
    %v5442 = vsel %vm5100, %v4950, -inf
    %v5443 = vmax.f32 %v5441, %v5442
    %v5444 = vsel %vm5100, %v4951, -inf
    %v5445 = vmax.f32 %v5443, %v5444
    %v5446 = vrot.slane %v5445, 4
    %v5447 = vmax.f32 %v5445, %v5446
    %v5448 = vrot.slane %v5447, 2
    %v5449 = vmax.f32 %v5447, %v5448
    %v5450 = vrot.slane %v5449, 1
    %v5451 = vmax.f32 %v5449, %v5450
    %v5452 = vsel %vm5100, %v4952, -inf
    %v5453 = vsel %vm5100, %v4953, -inf
    %v5454 = vmax.f32 %v5452, %v5453
    %v5455 = vsel %vm5100, %v4954, -inf
    %v5456 = vmax.f32 %v5454, %v5455
    %v5457 = vsel %vm5100, %v4955, -inf
    %v5458 = vmax.f32 %v5456, %v5457
    %v5459 = vrot.slane %v5458, 4
    %v5460 = vmax.f32 %v5458, %v5459
    %v5461 = vrot.slane %v5460, 2
    %v5462 = vmax.f32 %v5460, %v5461
    %v5463 = vrot.slane %v5462, 1
    %v5464 = vmax.f32 %v5462, %v5463
    %v5465 = vsel %vm5100, %v4956, -inf
    %v5466 = vsel %vm5100, %v4957, -inf
    %v5467 = vmax.f32 %v5465, %v5466
    %v5468 = vsel %vm5100, %v4958, -inf
    %v5469 = vmax.f32 %v5467, %v5468
    %v5470 = vsel %vm5100, %v4959, -inf
    %v5471 = vmax.f32 %v5469, %v5470
    %v5472 = vrot.slane %v5471, 4
    %v5473 = vmax.f32 %v5471, %v5472
    %v5474 = vrot.slane %v5473, 2
    %v5475 = vmax.f32 %v5473, %v5474
    %v5476 = vrot.slane %v5475, 1
    %v5477 = vmax.f32 %v5475, %v5476
    %v5478 = vsel %vm5100, %v4960, -inf
    %v5479 = vsel %vm5100, %v4961, -inf
    %v5480 = vmax.f32 %v5478, %v5479
    %v5481 = vsel %vm5100, %v4962, -inf
    %v5482 = vmax.f32 %v5480, %v5481
    %v5483 = vsel %vm5100, %v4963, -inf
    %v5484 = vmax.f32 %v5482, %v5483
    %v5485 = vrot.slane %v5484, 4
    %v5486 = vmax.f32 %v5484, %v5485
    %v5487 = vrot.slane %v5486, 2
    %v5488 = vmax.f32 %v5486, %v5487
    %v5489 = vrot.slane %v5488, 1
    %v5490 = vmax.f32 %v5488, %v5489
    %v5491 = vsel %vm5100, %v4964, -inf
    %v5492 = vsel %vm5100, %v4965, -inf
    %v5493 = vmax.f32 %v5491, %v5492
    %v5494 = vsel %vm5100, %v4966, -inf
    %v5495 = vmax.f32 %v5493, %v5494
    %v5496 = vsel %vm5100, %v4967, -inf
    %v5497 = vmax.f32 %v5495, %v5496
    %v5498 = vrot.slane %v5497, 4
    %v5499 = vmax.f32 %v5497, %v5498
    %v5500 = vrot.slane %v5499, 2
    %v5501 = vmax.f32 %v5499, %v5500
    %v5502 = vrot.slane %v5501, 1
    %v5503 = vmax.f32 %v5501, %v5502
    %v5504 = vsel %vm5100, %v4968, -inf
    %v5505 = vsel %vm5100, %v4969, -inf
    %v5506 = vmax.f32 %v5504, %v5505
    %v5507 = vsel %vm5100, %v4970, -inf
    %v5508 = vmax.f32 %v5506, %v5507
    %v5509 = vsel %vm5100, %v4971, -inf
    %v5510 = vmax.f32 %v5508, %v5509
    %v5511 = vrot.slane %v5510, 4
    %v5512 = vmax.f32 %v5510, %v5511
    %v5513 = vrot.slane %v5512, 2
    %v5514 = vmax.f32 %v5512, %v5513
    %v5515 = vrot.slane %v5514, 1
    %v5516 = vmax.f32 %v5514, %v5515
    %v5517 = vsel %vm5100, %v4972, -inf
    %v5518 = vsel %vm5100, %v4973, -inf
    %v5519 = vmax.f32 %v5517, %v5518
    %v5520 = vsel %vm5100, %v4974, -inf
    %v5521 = vmax.f32 %v5519, %v5520
    %v5522 = vsel %vm5100, %v4975, -inf
    %v5523 = vmax.f32 %v5521, %v5522
    %v5524 = vrot.slane %v5523, 4
    %v5525 = vmax.f32 %v5523, %v5524
    %v5526 = vrot.slane %v5525, 2
    %v5527 = vmax.f32 %v5525, %v5526
    %v5528 = vrot.slane %v5527, 1
    %v5529 = vmax.f32 %v5527, %v5528
    %v5530 = vsel %vm5100, %v4976, -inf
    %v5531 = vsel %vm5100, %v4977, -inf
    %v5532 = vmax.f32 %v5530, %v5531
    %v5533 = vsel %vm5100, %v4978, -inf
    %v5534 = vmax.f32 %v5532, %v5533
    %v5535 = vsel %vm5100, %v4979, -inf
    %v5536 = vmax.f32 %v5534, %v5535
    %v5537 = vrot.slane %v5536, 4
    %v5538 = vmax.f32 %v5536, %v5537
    %v5539 = vrot.slane %v5538, 2
    %v5540 = vmax.f32 %v5538, %v5539
    %v5541 = vrot.slane %v5540, 1
    %v5542 = vmax.f32 %v5540, %v5541
    %v5543 = vsel %vm5100, %v4980, -inf
    %v5544 = vsel %vm5100, %v4981, -inf
    %v5545 = vmax.f32 %v5543, %v5544
    %v5546 = vsel %vm5100, %v4982, -inf
    %v5547 = vmax.f32 %v5545, %v5546
    %v5548 = vsel %vm5100, %v4983, -inf
    %v5549 = vmax.f32 %v5547, %v5548
    %v5550 = vrot.slane %v5549, 4
    %v5551 = vmax.f32 %v5549, %v5550
    %v5552 = vrot.slane %v5551, 2
    %v5553 = vmax.f32 %v5551, %v5552
    %v5554 = vrot.slane %v5553, 1
    %v5555 = vmax.f32 %v5553, %v5554
    %v5556 = vsel %vm5100, %v4984, -inf
    %v5557 = vsel %vm5100, %v4985, -inf
    %v5558 = vmax.f32 %v5556, %v5557
    %v5559 = vsel %vm5100, %v4986, -inf
    %v5560 = vmax.f32 %v5558, %v5559
    %v5561 = vsel %vm5100, %v4987, -inf
    %v5562 = vmax.f32 %v5560, %v5561
    %v5563 = vrot.slane %v5562, 4
    %v5564 = vmax.f32 %v5562, %v5563
    %v5565 = vrot.slane %v5564, 2
    %v5566 = vmax.f32 %v5564, %v5565
    %v5567 = vrot.slane %v5566, 1
    %v5568 = vmax.f32 %v5566, %v5567
    %v5569 = vsel %vm5100, %v4988, -inf
    %v5570 = vsel %vm5100, %v4989, -inf
    %v5571 = vmax.f32 %v5569, %v5570
    %v5572 = vsel %vm5100, %v4990, -inf
    %v5573 = vmax.f32 %v5571, %v5572
    %v5574 = vsel %vm5100, %v4991, -inf
    %v5575 = vmax.f32 %v5573, %v5574
    %v5576 = vrot.slane %v5575, 4
    %v5577 = vmax.f32 %v5575, %v5576
    %v5578 = vrot.slane %v5577, 2
    %v5579 = vmax.f32 %v5577, %v5578
    %v5580 = vrot.slane %v5579, 1
    %v5581 = vmax.f32 %v5579, %v5580
    %v5582 = vsel %vm5100, %v4992, -inf
    %v5583 = vsel %vm5100, %v4993, -inf
    %v5584 = vmax.f32 %v5582, %v5583
    %v5585 = vsel %vm5100, %v4994, -inf
    %v5586 = vmax.f32 %v5584, %v5585
    %v5587 = vsel %vm5100, %v4995, -inf
    %v5588 = vmax.f32 %v5586, %v5587
    %v5589 = vrot.slane %v5588, 4
    %v5590 = vmax.f32 %v5588, %v5589
    %v5591 = vrot.slane %v5590, 2
    %v5592 = vmax.f32 %v5590, %v5591
    %v5593 = vrot.slane %v5592, 1
    %v5594 = vmax.f32 %v5592, %v5593
    %v5595 = vsel %vm5100, %v4996, -inf
    %v5596 = vsel %vm5100, %v4997, -inf
    %v5597 = vmax.f32 %v5595, %v5596
    %v5598 = vsel %vm5100, %v4998, -inf
    %v5599 = vmax.f32 %v5597, %v5598
    %v5600 = vsel %vm5100, %v4999, -inf
    %v5601 = vmax.f32 %v5599, %v5600
    %v5602 = vrot.slane %v5601, 4
    %v5603 = vmax.f32 %v5601, %v5602
    %v5604 = vrot.slane %v5603, 2
    %v5605 = vmax.f32 %v5603, %v5604
    %v5606 = vrot.slane %v5605, 1
    %v5607 = vmax.f32 %v5605, %v5606
    %v5608 = vsel %vm5100, %v5000, -inf
    %v5609 = vsel %vm5100, %v5001, -inf
    %v5610 = vmax.f32 %v5608, %v5609
    %v5611 = vsel %vm5100, %v5002, -inf
    %v5612 = vmax.f32 %v5610, %v5611
    %v5613 = vsel %vm5100, %v5003, -inf
    %v5614 = vmax.f32 %v5612, %v5613
    %v5615 = vrot.slane %v5614, 4
    %v5616 = vmax.f32 %v5614, %v5615
    %v5617 = vrot.slane %v5616, 2
    %v5618 = vmax.f32 %v5616, %v5617
    %v5619 = vrot.slane %v5618, 1
    %v5620 = vmax.f32 %v5618, %v5619
    %v5621 = vsel %vm5100, %v5004, -inf
    %v5622 = vsel %vm5100, %v5005, -inf
    %v5623 = vmax.f32 %v5621, %v5622
    %v5624 = vsel %vm5100, %v5006, -inf
    %v5625 = vmax.f32 %v5623, %v5624
    %v5626 = vsel %vm5100, %v5007, -inf
    %v5627 = vmax.f32 %v5625, %v5626
    %v5628 = vrot.slane %v5627, 4
    %v5629 = vmax.f32 %v5627, %v5628
    %v5630 = vrot.slane %v5629, 2
    %v5631 = vmax.f32 %v5629, %v5630
    %v5632 = vrot.slane %v5631, 1
    %v5633 = vmax.f32 %v5631, %v5632
    %v5634 = vsel %vm5100, %v5008, -inf
    %v5635 = vsel %vm5100, %v5009, -inf
    %v5636 = vmax.f32 %v5634, %v5635
    %v5637 = vsel %vm5100, %v5010, -inf
    %v5638 = vmax.f32 %v5636, %v5637
    %v5639 = vsel %vm5100, %v5011, -inf
    %v5640 = vmax.f32 %v5638, %v5639
    %v5641 = vrot.slane %v5640, 4
    %v5642 = vmax.f32 %v5640, %v5641
    %v5643 = vrot.slane %v5642, 2
    %v5644 = vmax.f32 %v5642, %v5643
    %v5645 = vrot.slane %v5644, 1
    %v5646 = vmax.f32 %v5644, %v5645
    %v5647 = vsel %vm5100, %v5012, -inf
    %v5648 = vsel %vm5100, %v5013, -inf
    %v5649 = vmax.f32 %v5647, %v5648
    %v5650 = vsel %vm5100, %v5014, -inf
    %v5651 = vmax.f32 %v5649, %v5650
    %v5652 = vsel %vm5100, %v5015, -inf
    %v5653 = vmax.f32 %v5651, %v5652
    %v5654 = vrot.slane %v5653, 4
    %v5655 = vmax.f32 %v5653, %v5654
    %v5656 = vrot.slane %v5655, 2
    %v5657 = vmax.f32 %v5655, %v5656
    %v5658 = vrot.slane %v5657, 1
    %v5659 = vmax.f32 %v5657, %v5658
    %v5660 = vsel %vm5100, %v5016, -inf
    %v5661 = vsel %vm5100, %v5017, -inf
    %v5662 = vmax.f32 %v5660, %v5661
    %v5663 = vsel %vm5100, %v5018, -inf
    %v5664 = vmax.f32 %v5662, %v5663
    %v5665 = vsel %vm5100, %v5019, -inf
    %v5666 = vmax.f32 %v5664, %v5665
    %v5667 = vrot.slane %v5666, 4
    %v5668 = vmax.f32 %v5666, %v5667
    %v5669 = vrot.slane %v5668, 2
    %v5670 = vmax.f32 %v5668, %v5669
    %v5671 = vrot.slane %v5670, 1
    %v5672 = vmax.f32 %v5670, %v5671
    %v5673 = vsel %vm5100, %v5020, -inf
    %v5674 = vsel %vm5100, %v5021, -inf
    %v5675 = vmax.f32 %v5673, %v5674
    %v5676 = vsel %vm5100, %v5022, -inf
    %v5677 = vmax.f32 %v5675, %v5676
    %v5678 = vsel %vm5100, %v5023, -inf
    %v5679 = vmax.f32 %v5677, %v5678
    %v5680 = vrot.slane %v5679, 4
    %v5681 = vmax.f32 %v5679, %v5680
    %v5682 = vrot.slane %v5681, 2
    %v5683 = vmax.f32 %v5681, %v5682
    %v5684 = vrot.slane %v5683, 1
    %v5685 = vmax.f32 %v5683, %v5684
    %v5686 = vsel %vm5100, %v5024, -inf
    %v5687 = vsel %vm5100, %v5025, -inf
    %v5688 = vmax.f32 %v5686, %v5687
    %v5689 = vsel %vm5100, %v5026, -inf
    %v5690 = vmax.f32 %v5688, %v5689
    %v5691 = vsel %vm5100, %v5027, -inf
    %v5692 = vmax.f32 %v5690, %v5691
    %v5693 = vrot.slane %v5692, 4
    %v5694 = vmax.f32 %v5692, %v5693
    %v5695 = vrot.slane %v5694, 2
    %v5696 = vmax.f32 %v5694, %v5695
    %v5697 = vrot.slane %v5696, 1
    %v5698 = vmax.f32 %v5696, %v5697
    %v5699 = vsel %vm5100, %v5028, -inf
    %v5700 = vsel %vm5100, %v5029, -inf
    %v5701 = vmax.f32 %v5699, %v5700
    %v5702 = vsel %vm5100, %v5030, -inf
    %v5703 = vmax.f32 %v5701, %v5702
    %v5704 = vsel %vm5100, %v5031, -inf
    %v5705 = vmax.f32 %v5703, %v5704
    %v5706 = vrot.slane %v5705, 4
    %v5707 = vmax.f32 %v5705, %v5706
    %v5708 = vrot.slane %v5707, 2
    %v5709 = vmax.f32 %v5707, %v5708
    %v5710 = vrot.slane %v5709, 1
    %v5711 = vmax.f32 %v5709, %v5710
    %v5712 = vsel %vm5100, %v5032, -inf
    %v5713 = vsel %vm5100, %v5033, -inf
    %v5714 = vmax.f32 %v5712, %v5713
    %v5715 = vsel %vm5100, %v5034, -inf
    %v5716 = vmax.f32 %v5714, %v5715
    %v5717 = vsel %vm5100, %v5035, -inf
    %v5718 = vmax.f32 %v5716, %v5717
    %v5719 = vrot.slane %v5718, 4
    %v5720 = vmax.f32 %v5718, %v5719
    %v5721 = vrot.slane %v5720, 2
    %v5722 = vmax.f32 %v5720, %v5721
    %v5723 = vrot.slane %v5722, 1
    %v5724 = vmax.f32 %v5722, %v5723
    %v5725 = vsel %vm5100, %v5036, -inf
    %v5726 = vsel %vm5100, %v5037, -inf
    %v5727 = vmax.f32 %v5725, %v5726
    %v5728 = vsel %vm5100, %v5038, -inf
    %v5729 = vmax.f32 %v5727, %v5728
    %v5730 = vsel %vm5100, %v5039, -inf
    %v5731 = vmax.f32 %v5729, %v5730
    %v5732 = vrot.slane %v5731, 4
    %v5733 = vmax.f32 %v5731, %v5732
    %v5734 = vrot.slane %v5733, 2
    %v5735 = vmax.f32 %v5733, %v5734
    %v5736 = vrot.slane %v5735, 1
    %v5737 = vmax.f32 %v5735, %v5736
    %v5738 = vsel %vm5100, %v5040, -inf
    %v5739 = vsel %vm5100, %v5041, -inf
    %v5740 = vmax.f32 %v5738, %v5739
    %v5741 = vsel %vm5100, %v5042, -inf
    %v5742 = vmax.f32 %v5740, %v5741
    %v5743 = vsel %vm5100, %v5043, -inf
    %v5744 = vmax.f32 %v5742, %v5743
    %v5745 = vrot.slane %v5744, 4
    %v5746 = vmax.f32 %v5744, %v5745
    %v5747 = vrot.slane %v5746, 2
    %v5748 = vmax.f32 %v5746, %v5747
    %v5749 = vrot.slane %v5748, 1
    %v5750 = vmax.f32 %v5748, %v5749
    %v5751 = vsel %vm5100, %v5044, -inf
    %v5752 = vsel %vm5100, %v5045, -inf
    %v5753 = vmax.f32 %v5751, %v5752
    %v5754 = vsel %vm5100, %v5046, -inf
    %v5755 = vmax.f32 %v5753, %v5754
    %v5756 = vsel %vm5100, %v5047, -inf
    %v5757 = vmax.f32 %v5755, %v5756
    %v5758 = vrot.slane %v5757, 4
    %v5759 = vmax.f32 %v5757, %v5758
    %v5760 = vrot.slane %v5759, 2
    %v5761 = vmax.f32 %v5759, %v5760
    %v5762 = vrot.slane %v5761, 1
    %v5763 = vmax.f32 %v5761, %v5762
    %v5764 = vsel %vm5100, %v5048, -inf
    %v5765 = vsel %vm5100, %v5049, -inf
    %v5766 = vmax.f32 %v5764, %v5765
    %v5767 = vsel %vm5100, %v5050, -inf
    %v5768 = vmax.f32 %v5766, %v5767
    %v5769 = vsel %vm5100, %v5051, -inf
    %v5770 = vmax.f32 %v5768, %v5769
    %v5771 = vrot.slane %v5770, 4
    %v5772 = vmax.f32 %v5770, %v5771
    %v5773 = vrot.slane %v5772, 2
    %v5774 = vmax.f32 %v5772, %v5773
    %v5775 = vrot.slane %v5774, 1
    %v5776 = vmax.f32 %v5774, %v5775
    %v5777 = vsel %vm5100, %v5052, -inf
    %v5778 = vsel %vm5100, %v5053, -inf
    %v5779 = vmax.f32 %v5777, %v5778
    %v5780 = vsel %vm5100, %v5054, -inf
    %v5781 = vmax.f32 %v5779, %v5780
    %v5782 = vsel %vm5100, %v5055, -inf
    %v5783 = vmax.f32 %v5781, %v5782
    %v5784 = vrot.slane %v5783, 4
    %v5785 = vmax.f32 %v5783, %v5784
    %v5786 = vrot.slane %v5785, 2
    %v5787 = vmax.f32 %v5785, %v5786
    %v5788 = vrot.slane %v5787, 1
    %v5789 = vmax.f32 %v5787, %v5788
    %v5790 = vsel %vm5100, %v5056, -inf
    %v5791 = vsel %vm5100, %v5057, -inf
    %v5792 = vmax.f32 %v5790, %v5791
    %v5793 = vsel %vm5100, %v5058, -inf
    %v5794 = vmax.f32 %v5792, %v5793
    %v5795 = vsel %vm5100, %v5059, -inf
    %v5796 = vmax.f32 %v5794, %v5795
    %v5797 = vrot.slane %v5796, 4
    %v5798 = vmax.f32 %v5796, %v5797
    %v5799 = vrot.slane %v5798, 2
    %v5800 = vmax.f32 %v5798, %v5799
    %v5801 = vrot.slane %v5800, 1
    %v5802 = vmax.f32 %v5800, %v5801
    %v5803 = vsel %vm5100, %v5060, -inf
    %v5804 = vsel %vm5100, %v5061, -inf
    %v5805 = vmax.f32 %v5803, %v5804
    %v5806 = vsel %vm5100, %v5062, -inf
    %v5807 = vmax.f32 %v5805, %v5806
    %v5808 = vsel %vm5100, %v5063, -inf
    %v5809 = vmax.f32 %v5807, %v5808
    %v5810 = vrot.slane %v5809, 4
    %v5811 = vmax.f32 %v5809, %v5810
    %v5812 = vrot.slane %v5811, 2
    %v5813 = vmax.f32 %v5811, %v5812
    %v5814 = vrot.slane %v5813, 1
    %v5815 = vmax.f32 %v5813, %v5814
    %v5816 = vsel %vm5100, %v5064, -inf
    %v5817 = vsel %vm5100, %v5065, -inf
    %v5818 = vmax.f32 %v5816, %v5817
    %v5819 = vsel %vm5100, %v5066, -inf
    %v5820 = vmax.f32 %v5818, %v5819
    %v5821 = vsel %vm5100, %v5067, -inf
    %v5822 = vmax.f32 %v5820, %v5821
    %v5823 = vrot.slane %v5822, 4
    %v5824 = vmax.f32 %v5822, %v5823
    %v5825 = vrot.slane %v5824, 2
    %v5826 = vmax.f32 %v5824, %v5825
    %v5827 = vrot.slane %v5826, 1
    %v5828 = vmax.f32 %v5826, %v5827
    %v5829 = vsel %vm5100, %v5068, -inf
    %v5830 = vsel %vm5100, %v5069, -inf
    %v5831 = vmax.f32 %v5829, %v5830
    %v5832 = vsel %vm5100, %v5070, -inf
    %v5833 = vmax.f32 %v5831, %v5832
    %v5834 = vsel %vm5100, %v5071, -inf
    %v5835 = vmax.f32 %v5833, %v5834
    %v5836 = vrot.slane %v5835, 4
    %v5837 = vmax.f32 %v5835, %v5836
    %v5838 = vrot.slane %v5837, 2
    %v5839 = vmax.f32 %v5837, %v5838
    %v5840 = vrot.slane %v5839, 1
    %v5841 = vmax.f32 %v5839, %v5840
    %v5842 = vsel %vm5100, %v5072, -inf
    %v5843 = vsel %vm5100, %v5073, -inf
    %v5844 = vmax.f32 %v5842, %v5843
    %v5845 = vsel %vm5100, %v5074, -inf
    %v5846 = vmax.f32 %v5844, %v5845
    %v5847 = vsel %vm5100, %v5075, -inf
    %v5848 = vmax.f32 %v5846, %v5847
    %v5849 = vrot.slane %v5848, 4
    %v5850 = vmax.f32 %v5848, %v5849
    %v5851 = vrot.slane %v5850, 2
    %v5852 = vmax.f32 %v5850, %v5851
    %v5853 = vrot.slane %v5852, 1
    %v5854 = vmax.f32 %v5852, %v5853
    %v5855 = vsel %vm5100, %v5076, -inf
    %v5856 = vsel %vm5100, %v5077, -inf
    %v5857 = vmax.f32 %v5855, %v5856
    %v5858 = vsel %vm5100, %v5078, -inf
    %v5859 = vmax.f32 %v5857, %v5858
    %v5860 = vsel %vm5100, %v5079, -inf
    %v5861 = vmax.f32 %v5859, %v5860
    %v5862 = vrot.slane %v5861, 4
    %v5863 = vmax.f32 %v5861, %v5862
    %v5864 = vrot.slane %v5863, 2
    %v5865 = vmax.f32 %v5863, %v5864
    %v5866 = vrot.slane %v5865, 1
    %v5867 = vmax.f32 %v5865, %v5866
    %v5868 = vsel %vm5100, %v5080, -inf
    %v5869 = vsel %vm5100, %v5081, -inf
    %v5870 = vmax.f32 %v5868, %v5869
    %v5871 = vsel %vm5100, %v5082, -inf
    %v5872 = vmax.f32 %v5870, %v5871
    %v5873 = vsel %vm5100, %v5083, -inf
    %v5874 = vmax.f32 %v5872, %v5873
    %v5875 = vrot.slane %v5874, 4
    %v5876 = vmax.f32 %v5874, %v5875
    %v5877 = vrot.slane %v5876, 2
    %v5878 = vmax.f32 %v5876, %v5877
    %v5879 = vrot.slane %v5878, 1
    %v5880 = vmax.f32 %v5878, %v5879
    %v5881 = vsel %vm5100, %v5084, -inf
    %v5882 = vsel %vm5100, %v5085, -inf
    %v5883 = vmax.f32 %v5881, %v5882
    %v5884 = vsel %vm5100, %v5086, -inf
    %v5885 = vmax.f32 %v5883, %v5884
    %v5886 = vsel %vm5100, %v5087, -inf
    %v5887 = vmax.f32 %v5885, %v5886
    %v5888 = vrot.slane %v5887, 4
    %v5889 = vmax.f32 %v5887, %v5888
    %v5890 = vrot.slane %v5889, 2
    %v5891 = vmax.f32 %v5889, %v5890
    %v5892 = vrot.slane %v5891, 1
    %v5893 = vmax.f32 %v5891, %v5892
    %v5894 = vsel %vm5100, %v5088, -inf
    %v5895 = vsel %vm5100, %v5089, -inf
    %v5896 = vmax.f32 %v5894, %v5895
    %v5897 = vsel %vm5100, %v5090, -inf
    %v5898 = vmax.f32 %v5896, %v5897
    %v5899 = vsel %vm5100, %v5091, -inf
    %v5900 = vmax.f32 %v5898, %v5899
    %v5901 = vrot.slane %v5900, 4
    %v5902 = vmax.f32 %v5900, %v5901
    %v5903 = vrot.slane %v5902, 2
    %v5904 = vmax.f32 %v5902, %v5903
    %v5905 = vrot.slane %v5904, 1
    %v5906 = vmax.f32 %v5904, %v5905
    %v5907 = vsel %vm5100, %v5092, -inf
    %v5908 = vsel %vm5100, %v5093, -inf
    %v5909 = vmax.f32 %v5907, %v5908
    %v5910 = vsel %vm5100, %v5094, -inf
    %v5911 = vmax.f32 %v5909, %v5910
    %v5912 = vsel %vm5100, %v5095, -inf
    %v5913 = vmax.f32 %v5911, %v5912
    %v5914 = vrot.slane %v5913, 4
    %v5915 = vmax.f32 %v5913, %v5914
    %v5916 = vrot.slane %v5915, 2
    %v5917 = vmax.f32 %v5915, %v5916
    %v5918 = vrot.slane %v5917, 1
    %v5919 = vmax.f32 %v5917, %v5918
    %v5920 = vsel %vm5100, %v5096, -inf
    %v5921 = vsel %vm5100, %v5097, -inf
    %v5922 = vmax.f32 %v5920, %v5921
    %v5923 = vsel %vm5100, %v5098, -inf
    %v5924 = vmax.f32 %v5922, %v5923
    %v5925 = vsel %vm5100, %v5099, -inf
    %v5926 = vmax.f32 %v5924, %v5925
    %v5927 = vrot.slane %v5926, 4
    %v5928 = vmax.f32 %v5926, %v5927
    %v5929 = vrot.slane %v5928, 2
    %v5930 = vmax.f32 %v5928, %v5929
    %v5931 = vrot.slane %v5930, 1
    %v5932 = vmax.f32 %v5930, %v5931
    %v5933 = vpack.c.bf16 %v5113, %v5113
    %v5934 = vpack.c.bf16 %v5126, %v5126
    %v5935 = vpack.c.bf16 %v5139, %v5139
    %v5936 = vpack.c.bf16 %v5152, %v5152
    %v5937 = vpack.c.bf16 %v5165, %v5165
    %v5938 = vpack.c.bf16 %v5178, %v5178
    %v5939 = vpack.c.bf16 %v5191, %v5191
    %v5940 = vpack.c.bf16 %v5204, %v5204
    %v5941 = vpack.c.bf16 %v5217, %v5217
    %v5942 = vpack.c.bf16 %v5230, %v5230
    %v5943 = vpack.c.bf16 %v5243, %v5243
    %v5944 = vpack.c.bf16 %v5256, %v5256
    %v5945 = vpack.c.bf16 %v5269, %v5269
    %v5946 = vpack.c.bf16 %v5282, %v5282
    %v5947 = vpack.c.bf16 %v5295, %v5295
    %v5948 = vpack.c.bf16 %v5308, %v5308
    %v5949 = vpack.c.bf16 %v5321, %v5321
    %v5950 = vpack.c.bf16 %v5334, %v5334
    %v5951 = vpack.c.bf16 %v5347, %v5347
    %v5952 = vpack.c.bf16 %v5360, %v5360
    %v5953 = vpack.c.bf16 %v5373, %v5373
    %v5954 = vpack.c.bf16 %v5386, %v5386
    %v5955 = vpack.c.bf16 %v5399, %v5399
    %v5956 = vpack.c.bf16 %v5412, %v5412
    %v5957 = vpack.c.bf16 %v5425, %v5425
    %v5958 = vpack.c.bf16 %v5438, %v5438
    %v5959 = vpack.c.bf16 %v5451, %v5451
    %v5960 = vpack.c.bf16 %v5464, %v5464
    %v5961 = vpack.c.bf16 %v5477, %v5477
    %v5962 = vpack.c.bf16 %v5490, %v5490
    %v5963 = vpack.c.bf16 %v5503, %v5503
    %v5964 = vpack.c.bf16 %v5516, %v5516
    %v5965 = vpack.c.bf16 %v5529, %v5529
    %v5966 = vpack.c.bf16 %v5542, %v5542
    %v5967 = vpack.c.bf16 %v5555, %v5555
    %v5968 = vpack.c.bf16 %v5568, %v5568
    %v5969 = vpack.c.bf16 %v5581, %v5581
    %v5970 = vpack.c.bf16 %v5594, %v5594
    %v5971 = vpack.c.bf16 %v5607, %v5607
    %v5972 = vpack.c.bf16 %v5620, %v5620
    %v5973 = vpack.c.bf16 %v5633, %v5633
    %v5974 = vpack.c.bf16 %v5646, %v5646
    %v5975 = vpack.c.bf16 %v5659, %v5659
    %v5976 = vpack.c.bf16 %v5672, %v5672
    %v5977 = vpack.c.bf16 %v5685, %v5685
    %v5978 = vpack.c.bf16 %v5698, %v5698
    %v5979 = vpack.c.bf16 %v5711, %v5711
    %v5980 = vpack.c.bf16 %v5724, %v5724
    %v5981 = vpack.c.bf16 %v5737, %v5737
    %v5982 = vpack.c.bf16 %v5750, %v5750
    %v5983 = vpack.c.bf16 %v5763, %v5763
    %v5984 = vpack.c.bf16 %v5776, %v5776
    %v5985 = vpack.c.bf16 %v5789, %v5789
    %v5986 = vpack.c.bf16 %v5802, %v5802
    %v5987 = vpack.c.bf16 %v5815, %v5815
    %v5988 = vpack.c.bf16 %v5828, %v5828
    %v5989 = vpack.c.bf16 %v5841, %v5841
    %v5990 = vpack.c.bf16 %v5854, %v5854
    %v5991 = vpack.c.bf16 %v5867, %v5867
    %v5992 = vpack.c.bf16 %v5880, %v5880
    %v5993 = vpack.c.bf16 %v5893, %v5893
    %v5994 = vpack.c.bf16 %v5906, %v5906
    %v5995 = vpack.c.bf16 %v5919, %v5919
    %v5996 = vpack.c.bf16 %v5932, %v5932
    %v6061 = vunpack.c.l.b16 %v5933
    %v6062 = vunpack.c.l.b16 %v5934
    %v6063 = vunpack.c.l.b16 %v5935
    %v6064 = vunpack.c.l.b16 %v5936
    %v6065 = vunpack.c.l.b16 %v5937
    %v6066 = vunpack.c.l.b16 %v5938
    %v6067 = vunpack.c.l.b16 %v5939
    %v6068 = vunpack.c.l.b16 %v5940
    %v6069 = vunpack.c.l.b16 %v5941
    %v6070 = vunpack.c.l.b16 %v5942
    %v6071 = vunpack.c.l.b16 %v5943
    %v6072 = vunpack.c.l.b16 %v5944
    %v6073 = vunpack.c.l.b16 %v5945
    %v6074 = vunpack.c.l.b16 %v5946
    %v6075 = vunpack.c.l.b16 %v5947
    %v6076 = vunpack.c.l.b16 %v5948
    %v6077 = vunpack.c.l.b16 %v5949
    %v6078 = vunpack.c.l.b16 %v5950
    %v6079 = vunpack.c.l.b16 %v5951
    %v6080 = vunpack.c.l.b16 %v5952
    %v6081 = vunpack.c.l.b16 %v5953
    %v6082 = vunpack.c.l.b16 %v5954
    %v6083 = vunpack.c.l.b16 %v5955
    %v6084 = vunpack.c.l.b16 %v5956
    %v6085 = vunpack.c.l.b16 %v5957
    %v6086 = vunpack.c.l.b16 %v5958
    %v6087 = vunpack.c.l.b16 %v5959
    %v6088 = vunpack.c.l.b16 %v5960
    %v6089 = vunpack.c.l.b16 %v5961
    %v6090 = vunpack.c.l.b16 %v5962
    %v6091 = vunpack.c.l.b16 %v5963
    %v6092 = vunpack.c.l.b16 %v5964
    %v6093 = vunpack.c.l.b16 %v5965
    %v6094 = vunpack.c.l.b16 %v5966
    %v6095 = vunpack.c.l.b16 %v5967
    %v6096 = vunpack.c.l.b16 %v5968
    %v6097 = vunpack.c.l.b16 %v5969
    %v6098 = vunpack.c.l.b16 %v5970
    %v6099 = vunpack.c.l.b16 %v5971
    %v6100 = vunpack.c.l.b16 %v5972
    %v6101 = vunpack.c.l.b16 %v5973
    %v6102 = vunpack.c.l.b16 %v5974
    %v6103 = vunpack.c.l.b16 %v5975
    %v6104 = vunpack.c.l.b16 %v5976
    %v6105 = vunpack.c.l.b16 %v5977
    %v6106 = vunpack.c.l.b16 %v5978
    %v6107 = vunpack.c.l.b16 %v5979
    %v6108 = vunpack.c.l.b16 %v5980
    %v6109 = vunpack.c.l.b16 %v5981
    %v6110 = vunpack.c.l.b16 %v5982
    %v6111 = vunpack.c.l.b16 %v5983
    %v6112 = vunpack.c.l.b16 %v5984
    %v6113 = vunpack.c.l.b16 %v5985
    %v6114 = vunpack.c.l.b16 %v5986
    %v6115 = vunpack.c.l.b16 %v5987
    %v6116 = vunpack.c.l.b16 %v5988
    %v6117 = vunpack.c.l.b16 %v5989
    %v6118 = vunpack.c.l.b16 %v5990
    %v6119 = vunpack.c.l.b16 %v5991
    %v6120 = vunpack.c.l.b16 %v5992
    %v6121 = vunpack.c.l.b16 %v5993
    %v6122 = vunpack.c.l.b16 %v5994
    %v6123 = vunpack.c.l.b16 %v5995
    %v6124 = vunpack.c.l.b16 %v5996
    %vm6125 = vcmask 1041409
    %v6126 = vsel %vm6125, %v6062, %v6061
    %vm6127 = vcmask 1042434
    %v6128 = vsel %vm6127, %v6063, %v6126
    %vm6129 = vcmask 1043459
    %v6130 = vsel %vm6129, %v6064, %v6128
    %vm6131 = vcmask 1044484
    %v6132 = vsel %vm6131, %v6065, %v6130
    %vm6133 = vcmask 1045509
    %v6134 = vsel %vm6133, %v6066, %v6132
    %vm6135 = vcmask 1046534
    %v6136 = vsel %vm6135, %v6067, %v6134
    %vm6137 = vcmask 1047559
    %v6138 = vsel %vm6137, %v6068, %v6136
    %v6139 = vsel %vm6125, %v6070, %v6069
    %v6140 = vsel %vm6127, %v6071, %v6139
    %v6141 = vsel %vm6129, %v6072, %v6140
    %v6142 = vsel %vm6131, %v6073, %v6141
    %v6143 = vsel %vm6133, %v6074, %v6142
    %v6144 = vsel %vm6135, %v6075, %v6143
    %v6145 = vsel %vm6137, %v6076, %v6144
    %v6146 = vsel %vm6125, %v6078, %v6077
    %v6147 = vsel %vm6127, %v6079, %v6146
    %v6148 = vsel %vm6129, %v6080, %v6147
    %v6149 = vsel %vm6131, %v6081, %v6148
    %v6150 = vsel %vm6133, %v6082, %v6149
    %v6151 = vsel %vm6135, %v6083, %v6150
    %v6152 = vsel %vm6137, %v6084, %v6151
    %v6153 = vsel %vm6125, %v6086, %v6085
    %v6154 = vsel %vm6127, %v6087, %v6153
    %v6155 = vsel %vm6129, %v6088, %v6154
    %v6156 = vsel %vm6131, %v6089, %v6155
    %v6157 = vsel %vm6133, %v6090, %v6156
    %v6158 = vsel %vm6135, %v6091, %v6157
    %v6159 = vsel %vm6137, %v6092, %v6158
    %v6160 = vsel %vm6125, %v6094, %v6093
    %v6161 = vsel %vm6127, %v6095, %v6160
    %v6162 = vsel %vm6129, %v6096, %v6161
    %v6163 = vsel %vm6131, %v6097, %v6162
    %v6164 = vsel %vm6133, %v6098, %v6163
    %v6165 = vsel %vm6135, %v6099, %v6164
    %v6166 = vsel %vm6137, %v6100, %v6165
    %v6167 = vsel %vm6125, %v6102, %v6101
    %v6168 = vsel %vm6127, %v6103, %v6167
    %v6169 = vsel %vm6129, %v6104, %v6168
    %v6170 = vsel %vm6131, %v6105, %v6169
    %v6171 = vsel %vm6133, %v6106, %v6170
    %v6172 = vsel %vm6135, %v6107, %v6171
    %v6173 = vsel %vm6137, %v6108, %v6172
    %v6174 = vsel %vm6125, %v6110, %v6109
    %v6175 = vsel %vm6127, %v6111, %v6174
    %v6176 = vsel %vm6129, %v6112, %v6175
    %v6177 = vsel %vm6131, %v6113, %v6176
    %v6178 = vsel %vm6133, %v6114, %v6177
    %v6179 = vsel %vm6135, %v6115, %v6178
    %v6180 = vsel %vm6137, %v6116, %v6179
    %v6181 = vsel %vm6125, %v6118, %v6117
    %v6182 = vsel %vm6127, %v6119, %v6181
    %v6183 = vsel %vm6129, %v6120, %v6182
    %v6184 = vsel %vm6131, %v6121, %v6183
    %v6185 = vsel %vm6133, %v6122, %v6184
    %v6186 = vsel %vm6135, %v6123, %v6185
    %v6187 = vsel %vm6137, %v6124, %v6186
    %v6188 = vpack.c.b16 %v6138, %v6138
    %v6189 = vpack.c.b16 %v6145, %v6145
    %v6190 = vpack.c.b16 %v6152, %v6152
    %v6191 = vpack.c.b16 %v6159, %v6159
    %v6192 = vpack.c.b16 %v6166, %v6166
    %v6193 = vpack.c.b16 %v6173, %v6173
    %v6194 = vpack.c.b16 %v6180, %v6180
    %v6195 = vpack.c.b16 %v6187, %v6187
    %vm6204 = vcmask 257024
    %6205 = vst.msk [vmem:[#allocation2] sm:$0xf] %vm6204, %v6188
    %6206 = vst.msk [vmem:[#allocation2 + $0x4] sm:$0xf] %vm6204, %v6189
    %6207 = vst.msk [vmem:[#allocation2 + $0x8] sm:$0xf] %vm6204, %v6190
    %6208 = vst.msk [vmem:[#allocation2 + $0xc] sm:$0xf] %vm6204, %v6191
    %6209 = vst.msk [vmem:[#allocation2 + $0x10] sm:$0xf] %vm6204, %v6192
    %6210 = vst.msk [vmem:[#allocation2 + $0x14] sm:$0xf] %vm6204, %v6193
    %6211 = vst.msk [vmem:[#allocation2 + $0x18] sm:$0xf] %vm6204, %v6194
    %6212 = vst.msk [vmem:[#allocation2 + $0x1c] sm:$0xf] %vm6204, %v6195
    %v6213 = vld [vmem:[%s7] sm:$0xf]
    %v6214 = vld [vmem:[%s8] sm:$0x1]
    %v6216 = vperm.slane %v6214, 0
    %v6219 = vsel %vm1332, %v6213, 0
    %6221 = vmatpush.bf16.msra.mxu0 0
    %6222 = vmatpush.bf16.msra.mxu0 0
    %6223 = vmatpush.bf16.msra.mxu0 0
    %6224 = vmatpush.bf16.msra.mxu0 0
    %6225 = vmatpush.bf16.msra.mxu0 0
    %6226 = vmatpush.bf16.msra.mxu0 0
    %6227 = vmatpush.bf16.msra.mxu0 0
    %6228 = vmatpush.bf16.msra.mxu0 %v6219
    %6229 = vmatmul.bf16.gmra.mxu0 %v949
    %v6230 = vpop.f32.mrf.mxu0
    %v6231 = vadd.f32 %v6216, %v6230
    %v6232 = vpop.f32.mrf.mxu0
    %v6233 = vadd.f32 %v6216, %v6232
    %6234 = vmatmul.bf16.gmra.mxu0 %v952
    %v6235 = vpop.f32.mrf.mxu0
    %v6236 = vadd.f32 %v6216, %v6235
    %v6237 = vpop.f32.mrf.mxu0
    %v6238 = vadd.f32 %v6216, %v6237
    %6239 = vmatmul.bf16.gmra.mxu0 %v955
    %v6240 = vpop.f32.mrf.mxu0
    %v6241 = vadd.f32 %v6216, %v6240
    %v6242 = vpop.f32.mrf.mxu0
    %v6243 = vadd.f32 %v6216, %v6242
    %6244 = vmatmul.bf16.gmra.mxu0 %v958
    %v6245 = vpop.f32.mrf.mxu0
    %v6246 = vadd.f32 %v6216, %v6245
    %v6247 = vpop.f32.mrf.mxu0
    %v6248 = vadd.f32 %v6216, %v6247
    %6249 = vmatmul.bf16.gmra.mxu0 %v961
    %v6250 = vpop.f32.mrf.mxu0
    %v6251 = vadd.f32 %v6216, %v6250
    %v6252 = vpop.f32.mrf.mxu0
    %v6253 = vadd.f32 %v6216, %v6252
    %6254 = vmatmul.bf16.gmra.mxu0 %v964
    %v6255 = vpop.f32.mrf.mxu0
    %v6256 = vadd.f32 %v6216, %v6255
    %v6257 = vpop.f32.mrf.mxu0
    %v6258 = vadd.f32 %v6216, %v6257
    %6259 = vmatmul.bf16.gmra.mxu0 %v967
    %v6260 = vpop.f32.mrf.mxu0
    %v6261 = vadd.f32 %v6216, %v6260
    %v6262 = vpop.f32.mrf.mxu0
    %v6263 = vadd.f32 %v6216, %v6262
    %6264 = vmatmul.bf16.gmra.mxu0 %v970
    %v6265 = vpop.f32.mrf.mxu0
    %v6266 = vadd.f32 %v6216, %v6265
    %v6267 = vpop.f32.mrf.mxu0
    %v6268 = vadd.f32 %v6216, %v6267
    %6269 = vmatmul.bf16.gmra.mxu0 %v973
    %v6270 = vpop.f32.mrf.mxu0
    %v6271 = vadd.f32 %v6216, %v6270
    %v6272 = vpop.f32.mrf.mxu0
    %v6273 = vadd.f32 %v6216, %v6272
    %6274 = vmatmul.bf16.gmra.mxu0 %v976
    %v6275 = vpop.f32.mrf.mxu0
    %v6276 = vadd.f32 %v6216, %v6275
    %v6277 = vpop.f32.mrf.mxu0
    %v6278 = vadd.f32 %v6216, %v6277
    %6279 = vmatmul.bf16.gmra.mxu0 %v979
    %v6280 = vpop.f32.mrf.mxu0
    %v6281 = vadd.f32 %v6216, %v6280
    %v6282 = vpop.f32.mrf.mxu0
    %v6283 = vadd.f32 %v6216, %v6282
    %6284 = vmatmul.bf16.gmra.mxu0 %v982
    %v6285 = vpop.f32.mrf.mxu0
    %v6286 = vadd.f32 %v6216, %v6285
    %v6287 = vpop.f32.mrf.mxu0
    %v6288 = vadd.f32 %v6216, %v6287
    %6289 = vmatmul.bf16.gmra.mxu0 %v985
    %v6290 = vpop.f32.mrf.mxu0
    %v6291 = vadd.f32 %v6216, %v6290
    %v6292 = vpop.f32.mrf.mxu0
    %v6293 = vadd.f32 %v6216, %v6292
    %6294 = vmatmul.bf16.gmra.mxu0 %v988
    %v6295 = vpop.f32.mrf.mxu0
    %v6296 = vadd.f32 %v6216, %v6295
    %v6297 = vpop.f32.mrf.mxu0
    %v6298 = vadd.f32 %v6216, %v6297
    %6299 = vmatmul.bf16.gmra.mxu0 %v991
    %v6300 = vpop.f32.mrf.mxu0
    %v6301 = vadd.f32 %v6216, %v6300
    %v6302 = vpop.f32.mrf.mxu0
    %v6303 = vadd.f32 %v6216, %v6302
    %6304 = vmatmul.bf16.gmra.mxu0 %v994
    %v6305 = vpop.f32.mrf.mxu0
    %v6306 = vadd.f32 %v6216, %v6305
    %v6307 = vpop.f32.mrf.mxu0
    %v6308 = vadd.f32 %v6216, %v6307
    %6309 = vmatmul.bf16.gmra.mxu0 %v997
    %v6310 = vpop.f32.mrf.mxu0
    %v6311 = vadd.f32 %v6216, %v6310
    %v6312 = vpop.f32.mrf.mxu0
    %v6313 = vadd.f32 %v6216, %v6312
    %6314 = vmatmul.bf16.gmra.mxu0 %v1000
    %v6315 = vpop.f32.mrf.mxu0
    %v6316 = vadd.f32 %v6216, %v6315
    %v6317 = vpop.f32.mrf.mxu0
    %v6318 = vadd.f32 %v6216, %v6317
    %6319 = vmatmul.bf16.gmra.mxu0 %v1003
    %v6320 = vpop.f32.mrf.mxu0
    %v6321 = vadd.f32 %v6216, %v6320
    %v6322 = vpop.f32.mrf.mxu0
    %v6323 = vadd.f32 %v6216, %v6322
    %6324 = vmatmul.bf16.gmra.mxu0 %v1006
    %v6325 = vpop.f32.mrf.mxu0
    %v6326 = vadd.f32 %v6216, %v6325
    %v6327 = vpop.f32.mrf.mxu0
    %v6328 = vadd.f32 %v6216, %v6327
    %6329 = vmatmul.bf16.gmra.mxu0 %v1009
    %v6330 = vpop.f32.mrf.mxu0
    %v6331 = vadd.f32 %v6216, %v6330
    %v6332 = vpop.f32.mrf.mxu0
    %v6333 = vadd.f32 %v6216, %v6332
    %6334 = vmatmul.bf16.gmra.mxu0 %v1012
    %v6335 = vpop.f32.mrf.mxu0
    %v6336 = vadd.f32 %v6216, %v6335
    %v6337 = vpop.f32.mrf.mxu0
    %v6338 = vadd.f32 %v6216, %v6337
    %6339 = vmatmul.bf16.gmra.mxu0 %v1015
    %v6340 = vpop.f32.mrf.mxu0
    %v6341 = vadd.f32 %v6216, %v6340
    %v6342 = vpop.f32.mrf.mxu0
    %v6343 = vadd.f32 %v6216, %v6342
    %6344 = vmatmul.bf16.gmra.mxu0 %v1018
    %v6345 = vpop.f32.mrf.mxu0
    %v6346 = vadd.f32 %v6216, %v6345
    %v6347 = vpop.f32.mrf.mxu0
    %v6348 = vadd.f32 %v6216, %v6347
    %6349 = vmatmul.bf16.gmra.mxu0 %v1021
    %v6350 = vpop.f32.mrf.mxu0
    %v6351 = vadd.f32 %v6216, %v6350
    %v6352 = vpop.f32.mrf.mxu0
    %v6353 = vadd.f32 %v6216, %v6352
    %6354 = vmatmul.bf16.gmra.mxu0 %v1024
    %v6355 = vpop.f32.mrf.mxu0
    %v6356 = vadd.f32 %v6216, %v6355
    %v6357 = vpop.f32.mrf.mxu0
    %v6358 = vadd.f32 %v6216, %v6357
    %6359 = vmatmul.bf16.gmra.mxu0 %v1027
    %v6360 = vpop.f32.mrf.mxu0
    %v6361 = vadd.f32 %v6216, %v6360
    %v6362 = vpop.f32.mrf.mxu0
    %v6363 = vadd.f32 %v6216, %v6362
    %6364 = vmatmul.bf16.gmra.mxu0 %v1030
    %v6365 = vpop.f32.mrf.mxu0
    %v6366 = vadd.f32 %v6216, %v6365
    %v6367 = vpop.f32.mrf.mxu0
    %v6368 = vadd.f32 %v6216, %v6367
    %6369 = vmatmul.bf16.gmra.mxu0 %v1033
    %v6370 = vpop.f32.mrf.mxu0
    %v6371 = vadd.f32 %v6216, %v6370
    %v6372 = vpop.f32.mrf.mxu0
    %v6373 = vadd.f32 %v6216, %v6372
    %6374 = vmatmul.bf16.gmra.mxu0 %v1036
    %v6375 = vpop.f32.mrf.mxu0
    %v6376 = vadd.f32 %v6216, %v6375
    %v6377 = vpop.f32.mrf.mxu0
    %v6378 = vadd.f32 %v6216, %v6377
    %6379 = vmatmul.bf16.gmra.mxu0 %v1039
    %v6380 = vpop.f32.mrf.mxu0
    %v6381 = vadd.f32 %v6216, %v6380
    %v6382 = vpop.f32.mrf.mxu0
    %v6383 = vadd.f32 %v6216, %v6382
    %6384 = vmatmul.bf16.gmra.mxu0 %v1042
    %v6385 = vpop.f32.mrf.mxu0
    %v6386 = vadd.f32 %v6216, %v6385
    %v6387 = vpop.f32.mrf.mxu0
    %v6388 = vadd.f32 %v6216, %v6387
    %6389 = vmatmul.bf16.gmra.mxu0 %v1045
    %v6390 = vpop.f32.mrf.mxu0
    %v6391 = vadd.f32 %v6216, %v6390
    %v6392 = vpop.f32.mrf.mxu0
    %v6393 = vadd.f32 %v6216, %v6392
    %6394 = vmatmul.bf16.gmra.mxu0 %v1048
    %v6395 = vpop.f32.mrf.mxu0
    %v6396 = vadd.f32 %v6216, %v6395
    %v6397 = vpop.f32.mrf.mxu0
    %v6398 = vadd.f32 %v6216, %v6397
    %6399 = vmatmul.bf16.gmra.mxu0 %v1051
    %v6400 = vpop.f32.mrf.mxu0
    %v6401 = vadd.f32 %v6216, %v6400
    %v6402 = vpop.f32.mrf.mxu0
    %v6403 = vadd.f32 %v6216, %v6402
    %6404 = vmatmul.bf16.gmra.mxu0 %v1054
    %v6405 = vpop.f32.mrf.mxu0
    %v6406 = vadd.f32 %v6216, %v6405
    %v6407 = vpop.f32.mrf.mxu0
    %v6408 = vadd.f32 %v6216, %v6407
    %6409 = vmatmul.bf16.gmra.mxu0 %v1057
    %v6410 = vpop.f32.mrf.mxu0
    %v6411 = vadd.f32 %v6216, %v6410
    %v6412 = vpop.f32.mrf.mxu0
    %v6413 = vadd.f32 %v6216, %v6412
    %6414 = vmatmul.bf16.gmra.mxu0 %v1060
    %v6415 = vpop.f32.mrf.mxu0
    %v6416 = vadd.f32 %v6216, %v6415
    %v6417 = vpop.f32.mrf.mxu0
    %v6418 = vadd.f32 %v6216, %v6417
    %6419 = vmatmul.bf16.gmra.mxu0 %v1063
    %v6420 = vpop.f32.mrf.mxu0
    %v6421 = vadd.f32 %v6216, %v6420
    %v6422 = vpop.f32.mrf.mxu0
    %v6423 = vadd.f32 %v6216, %v6422
    %6424 = vmatmul.bf16.gmra.mxu0 %v1066
    %v6425 = vpop.f32.mrf.mxu0
    %v6426 = vadd.f32 %v6216, %v6425
    %v6427 = vpop.f32.mrf.mxu0
    %v6428 = vadd.f32 %v6216, %v6427
    %6429 = vmatmul.bf16.gmra.mxu0 %v1069
    %v6430 = vpop.f32.mrf.mxu0
    %v6431 = vadd.f32 %v6216, %v6430
    %v6432 = vpop.f32.mrf.mxu0
    %v6433 = vadd.f32 %v6216, %v6432
    %6434 = vmatmul.bf16.gmra.mxu0 %v1072
    %v6435 = vpop.f32.mrf.mxu0
    %v6436 = vadd.f32 %v6216, %v6435
    %v6437 = vpop.f32.mrf.mxu0
    %v6438 = vadd.f32 %v6216, %v6437
    %6439 = vmatmul.bf16.gmra.mxu0 %v1075
    %v6440 = vpop.f32.mrf.mxu0
    %v6441 = vadd.f32 %v6216, %v6440
    %v6442 = vpop.f32.mrf.mxu0
    %v6443 = vadd.f32 %v6216, %v6442
    %6444 = vmatmul.bf16.gmra.mxu0 %v1078
    %v6445 = vpop.f32.mrf.mxu0
    %v6446 = vadd.f32 %v6216, %v6445
    %v6447 = vpop.f32.mrf.mxu0
    %v6448 = vadd.f32 %v6216, %v6447
    %6449 = vmatmul.bf16.gmra.mxu0 %v1081
    %v6450 = vpop.f32.mrf.mxu0
    %v6451 = vadd.f32 %v6216, %v6450
    %v6452 = vpop.f32.mrf.mxu0
    %v6453 = vadd.f32 %v6216, %v6452
    %6454 = vmatmul.bf16.gmra.mxu0 %v1084
    %v6455 = vpop.f32.mrf.mxu0
    %v6456 = vadd.f32 %v6216, %v6455
    %v6457 = vpop.f32.mrf.mxu0
    %v6458 = vadd.f32 %v6216, %v6457
    %6459 = vmatmul.bf16.gmra.mxu0 %v1087
    %v6460 = vpop.f32.mrf.mxu0
    %v6461 = vadd.f32 %v6216, %v6460
    %v6462 = vpop.f32.mrf.mxu0
    %v6463 = vadd.f32 %v6216, %v6462
    %6464 = vmatmul.bf16.gmra.mxu0 %v1090
    %v6465 = vpop.f32.mrf.mxu0
    %v6466 = vadd.f32 %v6216, %v6465
    %v6467 = vpop.f32.mrf.mxu0
    %v6468 = vadd.f32 %v6216, %v6467
    %6469 = vmatmul.bf16.gmra.mxu0 %v1093
    %v6470 = vpop.f32.mrf.mxu0
    %v6471 = vadd.f32 %v6216, %v6470
    %v6472 = vpop.f32.mrf.mxu0
    %v6473 = vadd.f32 %v6216, %v6472
    %6474 = vmatmul.bf16.gmra.mxu0 %v1096
    %v6475 = vpop.f32.mrf.mxu0
    %v6476 = vadd.f32 %v6216, %v6475
    %v6477 = vpop.f32.mrf.mxu0
    %v6478 = vadd.f32 %v6216, %v6477
    %6479 = vmatmul.bf16.gmra.mxu0 %v1099
    %v6480 = vpop.f32.mrf.mxu0
    %v6481 = vadd.f32 %v6216, %v6480
    %v6482 = vpop.f32.mrf.mxu0
    %v6483 = vadd.f32 %v6216, %v6482
    %6484 = vmatmul.bf16.gmra.mxu0 %v1102
    %v6485 = vpop.f32.mrf.mxu0
    %v6486 = vadd.f32 %v6216, %v6485
    %v6487 = vpop.f32.mrf.mxu0
    %v6488 = vadd.f32 %v6216, %v6487
    %6489 = vmatmul.bf16.gmra.mxu0 %v1105
    %v6490 = vpop.f32.mrf.mxu0
    %v6491 = vadd.f32 %v6216, %v6490
    %v6492 = vpop.f32.mrf.mxu0
    %v6493 = vadd.f32 %v6216, %v6492
    %6494 = vmatmul.bf16.gmra.mxu0 %v1108
    %v6495 = vpop.f32.mrf.mxu0
    %v6496 = vadd.f32 %v6216, %v6495
    %v6497 = vpop.f32.mrf.mxu0
    %v6498 = vadd.f32 %v6216, %v6497
    %6499 = vmatmul.bf16.gmra.mxu0 %v1111
    %v6500 = vpop.f32.mrf.mxu0
    %v6501 = vadd.f32 %v6216, %v6500
    %v6502 = vpop.f32.mrf.mxu0
    %v6503 = vadd.f32 %v6216, %v6502
    %6504 = vmatmul.bf16.gmra.mxu0 %v1114
    %v6505 = vpop.f32.mrf.mxu0
    %v6506 = vadd.f32 %v6216, %v6505
    %v6507 = vpop.f32.mrf.mxu0
    %v6508 = vadd.f32 %v6216, %v6507
    %6509 = vmatmul.bf16.gmra.mxu0 %v1117
    %v6510 = vpop.f32.mrf.mxu0
    %v6511 = vadd.f32 %v6216, %v6510
    %v6512 = vpop.f32.mrf.mxu0
    %v6513 = vadd.f32 %v6216, %v6512
    %6514 = vmatmul.bf16.gmra.mxu0 %v1120
    %v6515 = vpop.f32.mrf.mxu0
    %v6516 = vadd.f32 %v6216, %v6515
    %v6517 = vpop.f32.mrf.mxu0
    %v6518 = vadd.f32 %v6216, %v6517
    %6519 = vmatmul.bf16.gmra.mxu0 %v1123
    %v6520 = vpop.f32.mrf.mxu0
    %v6521 = vadd.f32 %v6216, %v6520
    %v6522 = vpop.f32.mrf.mxu0
    %v6523 = vadd.f32 %v6216, %v6522
    %6524 = vmatmul.bf16.gmra.mxu0 %v1126
    %v6525 = vpop.f32.mrf.mxu0
    %v6526 = vadd.f32 %v6216, %v6525
    %v6527 = vpop.f32.mrf.mxu0
    %v6528 = vadd.f32 %v6216, %v6527
    %6529 = vmatmul.bf16.gmra.mxu0 %v1129
    %v6530 = vpop.f32.mrf.mxu0
    %v6531 = vadd.f32 %v6216, %v6530
    %v6532 = vpop.f32.mrf.mxu0
    %v6533 = vadd.f32 %v6216, %v6532
    %6534 = vmatmul.bf16.gmra.mxu0 %v1132
    %v6535 = vpop.f32.mrf.mxu0
    %v6536 = vadd.f32 %v6216, %v6535
    %v6537 = vpop.f32.mrf.mxu0
    %v6538 = vadd.f32 %v6216, %v6537
    %6539 = vmatmul.bf16.gmra.mxu0 %v1135
    %v6540 = vpop.f32.mrf.mxu0
    %v6541 = vadd.f32 %v6216, %v6540
    %v6542 = vpop.f32.mrf.mxu0
    %v6543 = vadd.f32 %v6216, %v6542
    %6544 = vmatmul.bf16.gmra.mxu0 %v1138
    %v6545 = vpop.f32.mrf.mxu0
    %v6546 = vadd.f32 %v6216, %v6545
    %v6547 = vpop.f32.mrf.mxu0
    %v6548 = vadd.f32 %v6216, %v6547
    %6549 = vmatmul.bf16.gmra.mxu0 %v1141
    %v6550 = vpop.f32.mrf.mxu0
    %v6551 = vadd.f32 %v6216, %v6550
    %v6552 = vpop.f32.mrf.mxu0
    %v6553 = vadd.f32 %v6216, %v6552
    %6554 = vmatmul.bf16.gmra.mxu0 %v1144
    %v6555 = vpop.f32.mrf.mxu0
    %v6556 = vadd.f32 %v6216, %v6555
    %v6557 = vpop.f32.mrf.mxu0
    %v6558 = vadd.f32 %v6216, %v6557
    %6559 = vmatmul.bf16.gmra.mxu0 %v1147
    %v6560 = vpop.f32.mrf.mxu0
    %v6561 = vadd.f32 %v6216, %v6560
    %v6562 = vpop.f32.mrf.mxu0
    %v6563 = vadd.f32 %v6216, %v6562
    %6564 = vmatmul.bf16.gmra.mxu0 %v1150
    %v6565 = vpop.f32.mrf.mxu0
    %v6566 = vadd.f32 %v6216, %v6565
    %v6567 = vpop.f32.mrf.mxu0
    %v6568 = vadd.f32 %v6216, %v6567
    %6569 = vmatmul.bf16.gmra.mxu0 %v1153
    %v6570 = vpop.f32.mrf.mxu0
    %v6571 = vadd.f32 %v6216, %v6570
    %v6572 = vpop.f32.mrf.mxu0
    %v6573 = vadd.f32 %v6216, %v6572
    %6574 = vmatmul.bf16.gmra.mxu0 %v1156
    %v6575 = vpop.f32.mrf.mxu0
    %v6576 = vadd.f32 %v6216, %v6575
    %v6577 = vpop.f32.mrf.mxu0
    %v6578 = vadd.f32 %v6216, %v6577
    %6579 = vmatmul.bf16.gmra.mxu0 %v1159
    %v6580 = vpop.f32.mrf.mxu0
    %v6581 = vadd.f32 %v6216, %v6580
    %v6582 = vpop.f32.mrf.mxu0
    %v6583 = vadd.f32 %v6216, %v6582
    %6584 = vmatmul.bf16.gmra.mxu0 %v1162
    %v6585 = vpop.f32.mrf.mxu0
    %v6586 = vadd.f32 %v6216, %v6585
    %v6587 = vpop.f32.mrf.mxu0
    %v6588 = vadd.f32 %v6216, %v6587
    %6589 = vmatmul.bf16.gmra.mxu0 %v1165
    %v6590 = vpop.f32.mrf.mxu0
    %v6591 = vadd.f32 %v6216, %v6590
    %v6592 = vpop.f32.mrf.mxu0
    %v6593 = vadd.f32 %v6216, %v6592
    %6594 = vmatmul.bf16.gmra.mxu0 %v1168
    %v6595 = vpop.f32.mrf.mxu0
    %v6596 = vadd.f32 %v6216, %v6595
    %v6597 = vpop.f32.mrf.mxu0
    %v6598 = vadd.f32 %v6216, %v6597
    %6599 = vmatmul.bf16.gmra.mxu0 %v1171
    %v6600 = vpop.f32.mrf.mxu0
    %v6601 = vadd.f32 %v6216, %v6600
    %v6602 = vpop.f32.mrf.mxu0
    %v6603 = vadd.f32 %v6216, %v6602
    %6604 = vmatmul.bf16.gmra.mxu0 %v1174
    %v6605 = vpop.f32.mrf.mxu0
    %v6606 = vadd.f32 %v6216, %v6605
    %v6607 = vpop.f32.mrf.mxu0
    %v6608 = vadd.f32 %v6216, %v6607
    %6609 = vmatmul.bf16.gmra.mxu0 %v1177
    %v6610 = vpop.f32.mrf.mxu0
    %v6611 = vadd.f32 %v6216, %v6610
    %v6612 = vpop.f32.mrf.mxu0
    %v6613 = vadd.f32 %v6216, %v6612
    %6614 = vmatmul.bf16.gmra.mxu0 %v1180
    %v6615 = vpop.f32.mrf.mxu0
    %v6616 = vadd.f32 %v6216, %v6615
    %v6617 = vpop.f32.mrf.mxu0
    %v6618 = vadd.f32 %v6216, %v6617
    %6619 = vmatmul.bf16.gmra.mxu0 %v1183
    %v6620 = vpop.f32.mrf.mxu0
    %v6621 = vadd.f32 %v6216, %v6620
    %v6622 = vpop.f32.mrf.mxu0
    %v6623 = vadd.f32 %v6216, %v6622
    %6624 = vmatmul.bf16.gmra.mxu0 %v1186
    %v6625 = vpop.f32.mrf.mxu0
    %v6626 = vadd.f32 %v6216, %v6625
    %v6627 = vpop.f32.mrf.mxu0
    %v6628 = vadd.f32 %v6216, %v6627
    %6629 = vmatmul.bf16.gmra.mxu0 %v1189
    %v6630 = vpop.f32.mrf.mxu0
    %v6631 = vadd.f32 %v6216, %v6630
    %v6632 = vpop.f32.mrf.mxu0
    %v6633 = vadd.f32 %v6216, %v6632
    %6634 = vmatmul.bf16.gmra.mxu0 %v1192
    %v6635 = vpop.f32.mrf.mxu0
    %v6636 = vadd.f32 %v6216, %v6635
    %v6637 = vpop.f32.mrf.mxu0
    %v6638 = vadd.f32 %v6216, %v6637
    %6639 = vmatmul.bf16.gmra.mxu0 %v1195
    %v6640 = vpop.f32.mrf.mxu0
    %v6641 = vadd.f32 %v6216, %v6640
    %v6642 = vpop.f32.mrf.mxu0
    %v6643 = vadd.f32 %v6216, %v6642
    %6644 = vmatmul.bf16.gmra.mxu0 %v1198
    %v6645 = vpop.f32.mrf.mxu0
    %v6646 = vadd.f32 %v6216, %v6645
    %v6647 = vpop.f32.mrf.mxu0
    %v6648 = vadd.f32 %v6216, %v6647
    %6649 = vmatmul.bf16.gmra.mxu0 %v1201
    %v6650 = vpop.f32.mrf.mxu0
    %v6651 = vadd.f32 %v6216, %v6650
    %v6652 = vpop.f32.mrf.mxu0
    %v6653 = vadd.f32 %v6216, %v6652
    %6654 = vmatmul.bf16.gmra.mxu0 %v1204
    %v6655 = vpop.f32.mrf.mxu0
    %v6656 = vadd.f32 %v6216, %v6655
    %v6657 = vpop.f32.mrf.mxu0
    %v6658 = vadd.f32 %v6216, %v6657
    %6659 = vmatmul.bf16.gmra.mxu0 %v1207
    %v6660 = vpop.f32.mrf.mxu0
    %v6661 = vadd.f32 %v6216, %v6660
    %v6662 = vpop.f32.mrf.mxu0
    %v6663 = vadd.f32 %v6216, %v6662
    %6664 = vmatmul.bf16.gmra.mxu0 %v1210
    %v6665 = vpop.f32.mrf.mxu0
    %v6666 = vadd.f32 %v6216, %v6665
    %v6667 = vpop.f32.mrf.mxu0
    %v6668 = vadd.f32 %v6216, %v6667
    %6669 = vmatmul.bf16.gmra.mxu0 %v1213
    %v6670 = vpop.f32.mrf.mxu0
    %v6671 = vadd.f32 %v6216, %v6670
    %v6672 = vpop.f32.mrf.mxu0
    %v6673 = vadd.f32 %v6216, %v6672
    %6674 = vmatmul.bf16.gmra.mxu0 %v1216
    %v6675 = vpop.f32.mrf.mxu0
    %v6676 = vadd.f32 %v6216, %v6675
    %v6677 = vpop.f32.mrf.mxu0
    %v6678 = vadd.f32 %v6216, %v6677
    %6679 = vmatmul.bf16.gmra.mxu0 %v1219
    %v6680 = vpop.f32.mrf.mxu0
    %v6681 = vadd.f32 %v6216, %v6680
    %v6682 = vpop.f32.mrf.mxu0
    %v6683 = vadd.f32 %v6216, %v6682
    %6684 = vmatmul.bf16.gmra.mxu0 %v1222
    %v6685 = vpop.f32.mrf.mxu0
    %v6686 = vadd.f32 %v6216, %v6685
    %v6687 = vpop.f32.mrf.mxu0
    %v6688 = vadd.f32 %v6216, %v6687
    %6689 = vmatmul.bf16.gmra.mxu0 %v1225
    %v6690 = vpop.f32.mrf.mxu0
    %v6691 = vadd.f32 %v6216, %v6690
    %v6692 = vpop.f32.mrf.mxu0
    %v6693 = vadd.f32 %v6216, %v6692
    %6694 = vmatmul.bf16.gmra.mxu0 %v1228
    %v6695 = vpop.f32.mrf.mxu0
    %v6696 = vadd.f32 %v6216, %v6695
    %v6697 = vpop.f32.mrf.mxu0
    %v6698 = vadd.f32 %v6216, %v6697
    %6699 = vmatmul.bf16.gmra.mxu0 %v1231
    %v6700 = vpop.f32.mrf.mxu0
    %v6701 = vadd.f32 %v6216, %v6700
    %v6702 = vpop.f32.mrf.mxu0
    %v6703 = vadd.f32 %v6216, %v6702
    %6704 = vmatmul.bf16.gmra.mxu0 %v1234
    %v6705 = vpop.f32.mrf.mxu0
    %v6706 = vadd.f32 %v6216, %v6705
    %v6707 = vpop.f32.mrf.mxu0
    %v6708 = vadd.f32 %v6216, %v6707
    %6709 = vmatmul.bf16.gmra.mxu0 %v1237
    %v6710 = vpop.f32.mrf.mxu0
    %v6711 = vadd.f32 %v6216, %v6710
    %v6712 = vpop.f32.mrf.mxu0
    %v6713 = vadd.f32 %v6216, %v6712
    %6714 = vmatmul.bf16.gmra.mxu0 %v1240
    %v6715 = vpop.f32.mrf.mxu0
    %v6716 = vadd.f32 %v6216, %v6715
    %v6717 = vpop.f32.mrf.mxu0
    %v6718 = vadd.f32 %v6216, %v6717
    %6719 = vmatmul.bf16.gmra.mxu0 %v1243
    %v6720 = vpop.f32.mrf.mxu0
    %v6721 = vadd.f32 %v6216, %v6720
    %v6722 = vpop.f32.mrf.mxu0
    %v6723 = vadd.f32 %v6216, %v6722
    %6724 = vmatmul.bf16.gmra.mxu0 %v1246
    %v6725 = vpop.f32.mrf.mxu0
    %v6726 = vadd.f32 %v6216, %v6725
    %v6727 = vpop.f32.mrf.mxu0
    %v6728 = vadd.f32 %v6216, %v6727
    %6729 = vmatmul.bf16.gmra.mxu0 %v1249
    %v6730 = vpop.f32.mrf.mxu0
    %v6731 = vadd.f32 %v6216, %v6730
    %v6732 = vpop.f32.mrf.mxu0
    %v6733 = vadd.f32 %v6216, %v6732
    %6734 = vmatmul.bf16.gmra.mxu0 %v1252
    %v6735 = vpop.f32.mrf.mxu0
    %v6736 = vadd.f32 %v6216, %v6735
    %v6737 = vpop.f32.mrf.mxu0
    %v6738 = vadd.f32 %v6216, %v6737
    %6739 = vmatmul.bf16.gmra.mxu0 %v1255
    %v6740 = vpop.f32.mrf.mxu0
    %v6741 = vadd.f32 %v6216, %v6740
    %v6742 = vpop.f32.mrf.mxu0
    %v6743 = vadd.f32 %v6216, %v6742
    %6744 = vmatmul.bf16.gmra.mxu0 %v1258
    %v6745 = vpop.f32.mrf.mxu0
    %v6746 = vadd.f32 %v6216, %v6745
    %v6747 = vpop.f32.mrf.mxu0
    %v6748 = vadd.f32 %v6216, %v6747
    %6749 = vmatmul.bf16.gmra.mxu0 %v1261
    %v6750 = vpop.f32.mrf.mxu0
    %v6751 = vadd.f32 %v6216, %v6750
    %v6752 = vpop.f32.mrf.mxu0
    %v6753 = vadd.f32 %v6216, %v6752
    %6754 = vmatmul.bf16.gmra.mxu0 %v1264
    %v6755 = vpop.f32.mrf.mxu0
    %v6756 = vadd.f32 %v6216, %v6755
    %v6757 = vpop.f32.mrf.mxu0
    %v6758 = vadd.f32 %v6216, %v6757
    %6759 = vmatmul.bf16.gmra.mxu0 %v1267
    %v6760 = vpop.f32.mrf.mxu0
    %v6761 = vadd.f32 %v6216, %v6760
    %v6762 = vpop.f32.mrf.mxu0
    %v6763 = vadd.f32 %v6216, %v6762
    %6764 = vmatmul.bf16.gmra.mxu0 %v1270
    %v6765 = vpop.f32.mrf.mxu0
    %v6766 = vadd.f32 %v6216, %v6765
    %v6767 = vpop.f32.mrf.mxu0
    %v6768 = vadd.f32 %v6216, %v6767
    %6769 = vmatmul.bf16.gmra.mxu0 %v1273
    %v6770 = vpop.f32.mrf.mxu0
    %v6771 = vadd.f32 %v6216, %v6770
    %v6772 = vpop.f32.mrf.mxu0
    %v6773 = vadd.f32 %v6216, %v6772
    %6774 = vmatmul.bf16.gmra.mxu0 %v1276
    %v6775 = vpop.f32.mrf.mxu0
    %v6776 = vadd.f32 %v6216, %v6775
    %v6777 = vpop.f32.mrf.mxu0
    %v6778 = vadd.f32 %v6216, %v6777
    %6779 = vmatmul.bf16.gmra.mxu0 %v1279
    %v6780 = vpop.f32.mrf.mxu0
    %v6781 = vadd.f32 %v6216, %v6780
    %v6782 = vpop.f32.mrf.mxu0
    %v6783 = vadd.f32 %v6216, %v6782
    %6784 = vmatmul.bf16.gmra.mxu0 %v1282
    %v6785 = vpop.f32.mrf.mxu0
    %v6786 = vadd.f32 %v6216, %v6785
    %v6787 = vpop.f32.mrf.mxu0
    %v6788 = vadd.f32 %v6216, %v6787
    %6789 = vmatmul.bf16.gmra.mxu0 %v1285
    %v6790 = vpop.f32.mrf.mxu0
    %v6791 = vadd.f32 %v6216, %v6790
    %v6792 = vpop.f32.mrf.mxu0
    %v6793 = vadd.f32 %v6216, %v6792
    %6794 = vmatmul.bf16.gmra.mxu0 %v1288
    %v6795 = vpop.f32.mrf.mxu0
    %v6796 = vadd.f32 %v6216, %v6795
    %v6797 = vpop.f32.mrf.mxu0
    %v6798 = vadd.f32 %v6216, %v6797
    %6799 = vmatmul.bf16.gmra.mxu0 %v1291
    %v6800 = vpop.f32.mrf.mxu0
    %v6801 = vadd.f32 %v6216, %v6800
    %v6802 = vpop.f32.mrf.mxu0
    %v6803 = vadd.f32 %v6216, %v6802
    %6804 = vmatmul.bf16.gmra.mxu0 %v1294
    %v6805 = vpop.f32.mrf.mxu0
    %v6806 = vadd.f32 %v6216, %v6805
    %v6807 = vpop.f32.mrf.mxu0
    %v6808 = vadd.f32 %v6216, %v6807
    %6809 = vmatmul.bf16.gmra.mxu0 %v1297
    %v6810 = vpop.f32.mrf.mxu0
    %v6811 = vadd.f32 %v6216, %v6810
    %v6812 = vpop.f32.mrf.mxu0
    %v6813 = vadd.f32 %v6216, %v6812
    %6814 = vmatmul.bf16.gmra.mxu0 %v1300
    %v6815 = vpop.f32.mrf.mxu0
    %v6816 = vadd.f32 %v6216, %v6815
    %v6817 = vpop.f32.mrf.mxu0
    %v6818 = vadd.f32 %v6216, %v6817
    %6819 = vmatmul.bf16.gmra.mxu0 %v1303
    %v6820 = vpop.f32.mrf.mxu0
    %v6821 = vadd.f32 %v6216, %v6820
    %v6822 = vpop.f32.mrf.mxu0
    %v6823 = vadd.f32 %v6216, %v6822
    %6824 = vmatmul.bf16.gmra.mxu0 %v1306
    %v6825 = vpop.f32.mrf.mxu0
    %v6826 = vadd.f32 %v6216, %v6825
    %v6827 = vpop.f32.mrf.mxu0
    %v6828 = vadd.f32 %v6216, %v6827
    %6829 = vmatmul.bf16.gmra.mxu0 %v1309
    %v6830 = vpop.f32.mrf.mxu0
    %v6831 = vadd.f32 %v6216, %v6830
    %v6832 = vpop.f32.mrf.mxu0
    %v6833 = vadd.f32 %v6216, %v6832
    %6834 = vmatmul.bf16.gmra.mxu0 %v1312
    %v6835 = vpop.f32.mrf.mxu0
    %v6836 = vadd.f32 %v6216, %v6835
    %v6837 = vpop.f32.mrf.mxu0
    %v6838 = vadd.f32 %v6216, %v6837
    %6839 = vmatmul.bf16.gmra.mxu0 %v1315
    %v6840 = vpop.f32.mrf.mxu0
    %v6841 = vadd.f32 %v6216, %v6840
    %v6842 = vpop.f32.mrf.mxu0
    %v6843 = vadd.f32 %v6216, %v6842
    %6844 = vmatmul.bf16.gmra.mxu0 %v1318
    %v6845 = vpop.f32.mrf.mxu0
    %v6846 = vadd.f32 %v6216, %v6845
    %v6847 = vpop.f32.mrf.mxu0
    %v6848 = vadd.f32 %v6216, %v6847
    %6849 = vmatmul.bf16.gmra.mxu0 %v1321
    %v6850 = vpop.f32.mrf.mxu0
    %v6851 = vadd.f32 %v6216, %v6850
    %v6852 = vpop.f32.mrf.mxu0
    %v6853 = vadd.f32 %v6216, %v6852
    %6854 = vmatmul.bf16.gmra.mxu0 %v1324
    %v6855 = vpop.f32.mrf.mxu0
    %v6856 = vadd.f32 %v6216, %v6855
    %v6857 = vpop.f32.mrf.mxu0
    %v6858 = vadd.f32 %v6216, %v6857
    %6859 = vmatmul.bf16.gmra.mxu0 %v1327
    %v6860 = vpop.f32.mrf.mxu0
    %v6861 = vadd.f32 %v6216, %v6860
    %v6862 = vpop.f32.mrf.mxu0
    %v6863 = vadd.f32 %v6216, %v6862
    %6864 = vmatmul.bf16.gmra.mxu0 %v1330
    %v6865 = vpop.f32.mrf.mxu0
    %v6866 = vadd.f32 %v6216, %v6865
    %v6867 = vpop.f32.mrf.mxu0
    %v6868 = vadd.f32 %v6216, %v6867
    %6869 = vdwg.mxu0
    %v6870 = vmax.f32 %v6231, 0.0
    %v6871 = vmax.f32 %v6233, 0.0
    %v6872 = vmax.f32 %v6236, 0.0
    %v6873 = vmax.f32 %v6238, 0.0
    %v6874 = vmax.f32 %v6241, 0.0
    %v6875 = vmax.f32 %v6243, 0.0
    %v6876 = vmax.f32 %v6246, 0.0
    %v6877 = vmax.f32 %v6248, 0.0
    %v6878 = vmax.f32 %v6251, 0.0
    %v6879 = vmax.f32 %v6253, 0.0
    %v6880 = vmax.f32 %v6256, 0.0
    %v6881 = vmax.f32 %v6258, 0.0
    %v6882 = vmax.f32 %v6261, 0.0
    %v6883 = vmax.f32 %v6263, 0.0
    %v6884 = vmax.f32 %v6266, 0.0
    %v6885 = vmax.f32 %v6268, 0.0
    %v6886 = vmax.f32 %v6271, 0.0
    %v6887 = vmax.f32 %v6273, 0.0
    %v6888 = vmax.f32 %v6276, 0.0
    %v6889 = vmax.f32 %v6278, 0.0
    %v6890 = vmax.f32 %v6281, 0.0
    %v6891 = vmax.f32 %v6283, 0.0
    %v6892 = vmax.f32 %v6286, 0.0
    %v6893 = vmax.f32 %v6288, 0.0
    %v6894 = vmax.f32 %v6291, 0.0
    %v6895 = vmax.f32 %v6293, 0.0
    %v6896 = vmax.f32 %v6296, 0.0
    %v6897 = vmax.f32 %v6298, 0.0
    %v6898 = vmax.f32 %v6301, 0.0
    %v6899 = vmax.f32 %v6303, 0.0
    %v6900 = vmax.f32 %v6306, 0.0
    %v6901 = vmax.f32 %v6308, 0.0
    %v6902 = vmax.f32 %v6311, 0.0
    %v6903 = vmax.f32 %v6313, 0.0
    %v6904 = vmax.f32 %v6316, 0.0
    %v6905 = vmax.f32 %v6318, 0.0
    %v6906 = vmax.f32 %v6321, 0.0
    %v6907 = vmax.f32 %v6323, 0.0
    %v6908 = vmax.f32 %v6326, 0.0
    %v6909 = vmax.f32 %v6328, 0.0
    %v6910 = vmax.f32 %v6331, 0.0
    %v6911 = vmax.f32 %v6333, 0.0
    %v6912 = vmax.f32 %v6336, 0.0
    %v6913 = vmax.f32 %v6338, 0.0
    %v6914 = vmax.f32 %v6341, 0.0
    %v6915 = vmax.f32 %v6343, 0.0
    %v6916 = vmax.f32 %v6346, 0.0
    %v6917 = vmax.f32 %v6348, 0.0
    %v6918 = vmax.f32 %v6351, 0.0
    %v6919 = vmax.f32 %v6353, 0.0
    %v6920 = vmax.f32 %v6356, 0.0
    %v6921 = vmax.f32 %v6358, 0.0
    %v6922 = vmax.f32 %v6361, 0.0
    %v6923 = vmax.f32 %v6363, 0.0
    %v6924 = vmax.f32 %v6366, 0.0
    %v6925 = vmax.f32 %v6368, 0.0
    %v6926 = vmax.f32 %v6371, 0.0
    %v6927 = vmax.f32 %v6373, 0.0
    %v6928 = vmax.f32 %v6376, 0.0
    %v6929 = vmax.f32 %v6378, 0.0
    %v6930 = vmax.f32 %v6381, 0.0
    %v6931 = vmax.f32 %v6383, 0.0
    %v6932 = vmax.f32 %v6386, 0.0
    %v6933 = vmax.f32 %v6388, 0.0
    %v6934 = vmax.f32 %v6391, 0.0
    %v6935 = vmax.f32 %v6393, 0.0
    %v6936 = vmax.f32 %v6396, 0.0
    %v6937 = vmax.f32 %v6398, 0.0
    %v6938 = vmax.f32 %v6401, 0.0
    %v6939 = vmax.f32 %v6403, 0.0
    %v6940 = vmax.f32 %v6406, 0.0
    %v6941 = vmax.f32 %v6408, 0.0
    %v6942 = vmax.f32 %v6411, 0.0
    %v6943 = vmax.f32 %v6413, 0.0
    %v6944 = vmax.f32 %v6416, 0.0
    %v6945 = vmax.f32 %v6418, 0.0
    %v6946 = vmax.f32 %v6421, 0.0
    %v6947 = vmax.f32 %v6423, 0.0
    %v6948 = vmax.f32 %v6426, 0.0
    %v6949 = vmax.f32 %v6428, 0.0
    %v6950 = vmax.f32 %v6431, 0.0
    %v6951 = vmax.f32 %v6433, 0.0
    %v6952 = vmax.f32 %v6436, 0.0
    %v6953 = vmax.f32 %v6438, 0.0
    %v6954 = vmax.f32 %v6441, 0.0
    %v6955 = vmax.f32 %v6443, 0.0
    %v6956 = vmax.f32 %v6446, 0.0
    %v6957 = vmax.f32 %v6448, 0.0
    %v6958 = vmax.f32 %v6451, 0.0
    %v6959 = vmax.f32 %v6453, 0.0
    %v6960 = vmax.f32 %v6456, 0.0
    %v6961 = vmax.f32 %v6458, 0.0
    %v6962 = vmax.f32 %v6461, 0.0
    %v6963 = vmax.f32 %v6463, 0.0
    %v6964 = vmax.f32 %v6466, 0.0
    %v6965 = vmax.f32 %v6468, 0.0
    %v6966 = vmax.f32 %v6471, 0.0
    %v6967 = vmax.f32 %v6473, 0.0
    %v6968 = vmax.f32 %v6476, 0.0
    %v6969 = vmax.f32 %v6478, 0.0
    %v6970 = vmax.f32 %v6481, 0.0
    %v6971 = vmax.f32 %v6483, 0.0
    %v6972 = vmax.f32 %v6486, 0.0
    %v6973 = vmax.f32 %v6488, 0.0
    %v6974 = vmax.f32 %v6491, 0.0
    %v6975 = vmax.f32 %v6493, 0.0
    %v6976 = vmax.f32 %v6496, 0.0
    %v6977 = vmax.f32 %v6498, 0.0
    %v6978 = vmax.f32 %v6501, 0.0
    %v6979 = vmax.f32 %v6503, 0.0
    %v6980 = vmax.f32 %v6506, 0.0
    %v6981 = vmax.f32 %v6508, 0.0
    %v6982 = vmax.f32 %v6511, 0.0
    %v6983 = vmax.f32 %v6513, 0.0
    %v6984 = vmax.f32 %v6516, 0.0
    %v6985 = vmax.f32 %v6518, 0.0
    %v6986 = vmax.f32 %v6521, 0.0
    %v6987 = vmax.f32 %v6523, 0.0
    %v6988 = vmax.f32 %v6526, 0.0
    %v6989 = vmax.f32 %v6528, 0.0
    %v6990 = vmax.f32 %v6531, 0.0
    %v6991 = vmax.f32 %v6533, 0.0
    %v6992 = vmax.f32 %v6536, 0.0
    %v6993 = vmax.f32 %v6538, 0.0
    %v6994 = vmax.f32 %v6541, 0.0
    %v6995 = vmax.f32 %v6543, 0.0
    %v6996 = vmax.f32 %v6546, 0.0
    %v6997 = vmax.f32 %v6548, 0.0
    %v6998 = vmax.f32 %v6551, 0.0
    %v6999 = vmax.f32 %v6553, 0.0
    %v7000 = vmax.f32 %v6556, 0.0
    %v7001 = vmax.f32 %v6558, 0.0
    %v7002 = vmax.f32 %v6561, 0.0
    %v7003 = vmax.f32 %v6563, 0.0
    %v7004 = vmax.f32 %v6566, 0.0
    %v7005 = vmax.f32 %v6568, 0.0
    %v7006 = vmax.f32 %v6571, 0.0
    %v7007 = vmax.f32 %v6573, 0.0
    %v7008 = vmax.f32 %v6576, 0.0
    %v7009 = vmax.f32 %v6578, 0.0
    %v7010 = vmax.f32 %v6581, 0.0
    %v7011 = vmax.f32 %v6583, 0.0
    %v7012 = vmax.f32 %v6586, 0.0
    %v7013 = vmax.f32 %v6588, 0.0
    %v7014 = vmax.f32 %v6591, 0.0
    %v7015 = vmax.f32 %v6593, 0.0
    %v7016 = vmax.f32 %v6596, 0.0
    %v7017 = vmax.f32 %v6598, 0.0
    %v7018 = vmax.f32 %v6601, 0.0
    %v7019 = vmax.f32 %v6603, 0.0
    %v7020 = vmax.f32 %v6606, 0.0
    %v7021 = vmax.f32 %v6608, 0.0
    %v7022 = vmax.f32 %v6611, 0.0
    %v7023 = vmax.f32 %v6613, 0.0
    %v7024 = vmax.f32 %v6616, 0.0
    %v7025 = vmax.f32 %v6618, 0.0
    %v7026 = vmax.f32 %v6621, 0.0
    %v7027 = vmax.f32 %v6623, 0.0
    %v7028 = vmax.f32 %v6626, 0.0
    %v7029 = vmax.f32 %v6628, 0.0
    %v7030 = vmax.f32 %v6631, 0.0
    %v7031 = vmax.f32 %v6633, 0.0
    %v7032 = vmax.f32 %v6636, 0.0
    %v7033 = vmax.f32 %v6638, 0.0
    %v7034 = vmax.f32 %v6641, 0.0
    %v7035 = vmax.f32 %v6643, 0.0
    %v7036 = vmax.f32 %v6646, 0.0
    %v7037 = vmax.f32 %v6648, 0.0
    %v7038 = vmax.f32 %v6651, 0.0
    %v7039 = vmax.f32 %v6653, 0.0
    %v7040 = vmax.f32 %v6656, 0.0
    %v7041 = vmax.f32 %v6658, 0.0
    %v7042 = vmax.f32 %v6661, 0.0
    %v7043 = vmax.f32 %v6663, 0.0
    %v7044 = vmax.f32 %v6666, 0.0
    %v7045 = vmax.f32 %v6668, 0.0
    %v7046 = vmax.f32 %v6671, 0.0
    %v7047 = vmax.f32 %v6673, 0.0
    %v7048 = vmax.f32 %v6676, 0.0
    %v7049 = vmax.f32 %v6678, 0.0
    %v7050 = vmax.f32 %v6681, 0.0
    %v7051 = vmax.f32 %v6683, 0.0
    %v7052 = vmax.f32 %v6686, 0.0
    %v7053 = vmax.f32 %v6688, 0.0
    %v7054 = vmax.f32 %v6691, 0.0
    %v7055 = vmax.f32 %v6693, 0.0
    %v7056 = vmax.f32 %v6696, 0.0
    %v7057 = vmax.f32 %v6698, 0.0
    %v7058 = vmax.f32 %v6701, 0.0
    %v7059 = vmax.f32 %v6703, 0.0
    %v7060 = vmax.f32 %v6706, 0.0
    %v7061 = vmax.f32 %v6708, 0.0
    %v7062 = vmax.f32 %v6711, 0.0
    %v7063 = vmax.f32 %v6713, 0.0
    %v7064 = vmax.f32 %v6716, 0.0
    %v7065 = vmax.f32 %v6718, 0.0
    %v7066 = vmax.f32 %v6721, 0.0
    %v7067 = vmax.f32 %v6723, 0.0
    %v7068 = vmax.f32 %v6726, 0.0
    %v7069 = vmax.f32 %v6728, 0.0
    %v7070 = vmax.f32 %v6731, 0.0
    %v7071 = vmax.f32 %v6733, 0.0
    %v7072 = vmax.f32 %v6736, 0.0
    %v7073 = vmax.f32 %v6738, 0.0
    %v7074 = vmax.f32 %v6741, 0.0
    %v7075 = vmax.f32 %v6743, 0.0
    %v7076 = vmax.f32 %v6746, 0.0
    %v7077 = vmax.f32 %v6748, 0.0
    %v7078 = vmax.f32 %v6751, 0.0
    %v7079 = vmax.f32 %v6753, 0.0
    %v7080 = vmax.f32 %v6756, 0.0
    %v7081 = vmax.f32 %v6758, 0.0
    %v7082 = vmax.f32 %v6761, 0.0
    %v7083 = vmax.f32 %v6763, 0.0
    %v7084 = vmax.f32 %v6766, 0.0
    %v7085 = vmax.f32 %v6768, 0.0
    %v7086 = vmax.f32 %v6771, 0.0
    %v7087 = vmax.f32 %v6773, 0.0
    %v7088 = vmax.f32 %v6776, 0.0
    %v7089 = vmax.f32 %v6778, 0.0
    %v7090 = vmax.f32 %v6781, 0.0
    %v7091 = vmax.f32 %v6783, 0.0
    %v7092 = vmax.f32 %v6786, 0.0
    %v7093 = vmax.f32 %v6788, 0.0
    %v7094 = vmax.f32 %v6791, 0.0
    %v7095 = vmax.f32 %v6793, 0.0
    %v7096 = vmax.f32 %v6796, 0.0
    %v7097 = vmax.f32 %v6798, 0.0
    %v7098 = vmax.f32 %v6801, 0.0
    %v7099 = vmax.f32 %v6803, 0.0
    %v7100 = vmax.f32 %v6806, 0.0
    %v7101 = vmax.f32 %v6808, 0.0
    %v7102 = vmax.f32 %v6811, 0.0
    %v7103 = vmax.f32 %v6813, 0.0
    %v7104 = vmax.f32 %v6816, 0.0
    %v7105 = vmax.f32 %v6818, 0.0
    %v7106 = vmax.f32 %v6821, 0.0
    %v7107 = vmax.f32 %v6823, 0.0
    %v7108 = vmax.f32 %v6826, 0.0
    %v7109 = vmax.f32 %v6828, 0.0
    %v7110 = vmax.f32 %v6831, 0.0
    %v7111 = vmax.f32 %v6833, 0.0
    %v7112 = vmax.f32 %v6836, 0.0
    %v7113 = vmax.f32 %v6838, 0.0
    %v7114 = vmax.f32 %v6841, 0.0
    %v7115 = vmax.f32 %v6843, 0.0
    %v7116 = vmax.f32 %v6846, 0.0
    %v7117 = vmax.f32 %v6848, 0.0
    %v7118 = vmax.f32 %v6851, 0.0
    %v7119 = vmax.f32 %v6853, 0.0
    %v7120 = vmax.f32 %v6856, 0.0
    %v7121 = vmax.f32 %v6858, 0.0
    %v7122 = vmax.f32 %v6861, 0.0
    %v7123 = vmax.f32 %v6863, 0.0
    %v7124 = vmax.f32 %v6866, 0.0
    %v7125 = vmax.f32 %v6868, 0.0
    %v7126 = vpack.c.bf16 %v6871, %v6870
    %v7127 = vpack.c.bf16 %v6873, %v6872
    %v7128 = vpack.c.bf16 %v6875, %v6874
    %v7129 = vpack.c.bf16 %v6877, %v6876
    %v7130 = vpack.c.bf16 %v6879, %v6878
    %v7131 = vpack.c.bf16 %v6881, %v6880
    %v7132 = vpack.c.bf16 %v6883, %v6882
    %v7133 = vpack.c.bf16 %v6885, %v6884
    %v7134 = vpack.c.bf16 %v6887, %v6886
    %v7135 = vpack.c.bf16 %v6889, %v6888
    %v7136 = vpack.c.bf16 %v6891, %v6890
    %v7137 = vpack.c.bf16 %v6893, %v6892
    %v7138 = vpack.c.bf16 %v6895, %v6894
    %v7139 = vpack.c.bf16 %v6897, %v6896
    %v7140 = vpack.c.bf16 %v6899, %v6898
    %v7141 = vpack.c.bf16 %v6901, %v6900
    %v7142 = vpack.c.bf16 %v6903, %v6902
    %v7143 = vpack.c.bf16 %v6905, %v6904
    %v7144 = vpack.c.bf16 %v6907, %v6906
    %v7145 = vpack.c.bf16 %v6909, %v6908
    %v7146 = vpack.c.bf16 %v6911, %v6910
    %v7147 = vpack.c.bf16 %v6913, %v6912
    %v7148 = vpack.c.bf16 %v6915, %v6914
    %v7149 = vpack.c.bf16 %v6917, %v6916
    %v7150 = vpack.c.bf16 %v6919, %v6918
    %v7151 = vpack.c.bf16 %v6921, %v6920
    %v7152 = vpack.c.bf16 %v6923, %v6922
    %v7153 = vpack.c.bf16 %v6925, %v6924
    %v7154 = vpack.c.bf16 %v6927, %v6926
    %v7155 = vpack.c.bf16 %v6929, %v6928
    %v7156 = vpack.c.bf16 %v6931, %v6930
    %v7157 = vpack.c.bf16 %v6933, %v6932
    %v7158 = vpack.c.bf16 %v6935, %v6934
    %v7159 = vpack.c.bf16 %v6937, %v6936
    %v7160 = vpack.c.bf16 %v6939, %v6938
    %v7161 = vpack.c.bf16 %v6941, %v6940
    %v7162 = vpack.c.bf16 %v6943, %v6942
    %v7163 = vpack.c.bf16 %v6945, %v6944
    %v7164 = vpack.c.bf16 %v6947, %v6946
    %v7165 = vpack.c.bf16 %v6949, %v6948
    %v7166 = vpack.c.bf16 %v6951, %v6950
    %v7167 = vpack.c.bf16 %v6953, %v6952
    %v7168 = vpack.c.bf16 %v6955, %v6954
    %v7169 = vpack.c.bf16 %v6957, %v6956
    %v7170 = vpack.c.bf16 %v6959, %v6958
    %v7171 = vpack.c.bf16 %v6961, %v6960
    %v7172 = vpack.c.bf16 %v6963, %v6962
    %v7173 = vpack.c.bf16 %v6965, %v6964
    %v7174 = vpack.c.bf16 %v6967, %v6966
    %v7175 = vpack.c.bf16 %v6969, %v6968
    %v7176 = vpack.c.bf16 %v6971, %v6970
    %v7177 = vpack.c.bf16 %v6973, %v6972
    %v7178 = vpack.c.bf16 %v6975, %v6974
    %v7179 = vpack.c.bf16 %v6977, %v6976
    %v7180 = vpack.c.bf16 %v6979, %v6978
    %v7181 = vpack.c.bf16 %v6981, %v6980
    %v7182 = vpack.c.bf16 %v6983, %v6982
    %v7183 = vpack.c.bf16 %v6985, %v6984
    %v7184 = vpack.c.bf16 %v6987, %v6986
    %v7185 = vpack.c.bf16 %v6989, %v6988
    %v7186 = vpack.c.bf16 %v6991, %v6990
    %v7187 = vpack.c.bf16 %v6993, %v6992
    %v7188 = vpack.c.bf16 %v6995, %v6994
    %v7189 = vpack.c.bf16 %v6997, %v6996
    %v7190 = vpack.c.bf16 %v6999, %v6998
    %v7191 = vpack.c.bf16 %v7001, %v7000
    %v7192 = vpack.c.bf16 %v7003, %v7002
    %v7193 = vpack.c.bf16 %v7005, %v7004
    %v7194 = vpack.c.bf16 %v7007, %v7006
    %v7195 = vpack.c.bf16 %v7009, %v7008
    %v7196 = vpack.c.bf16 %v7011, %v7010
    %v7197 = vpack.c.bf16 %v7013, %v7012
    %v7198 = vpack.c.bf16 %v7015, %v7014
    %v7199 = vpack.c.bf16 %v7017, %v7016
    %v7200 = vpack.c.bf16 %v7019, %v7018
    %v7201 = vpack.c.bf16 %v7021, %v7020
    %v7202 = vpack.c.bf16 %v7023, %v7022
    %v7203 = vpack.c.bf16 %v7025, %v7024
    %v7204 = vpack.c.bf16 %v7027, %v7026
    %v7205 = vpack.c.bf16 %v7029, %v7028
    %v7206 = vpack.c.bf16 %v7031, %v7030
    %v7207 = vpack.c.bf16 %v7033, %v7032
    %v7208 = vpack.c.bf16 %v7035, %v7034
    %v7209 = vpack.c.bf16 %v7037, %v7036
    %v7210 = vpack.c.bf16 %v7039, %v7038
    %v7211 = vpack.c.bf16 %v7041, %v7040
    %v7212 = vpack.c.bf16 %v7043, %v7042
    %v7213 = vpack.c.bf16 %v7045, %v7044
    %v7214 = vpack.c.bf16 %v7047, %v7046
    %v7215 = vpack.c.bf16 %v7049, %v7048
    %v7216 = vpack.c.bf16 %v7051, %v7050
    %v7217 = vpack.c.bf16 %v7053, %v7052
    %v7218 = vpack.c.bf16 %v7055, %v7054
    %v7219 = vpack.c.bf16 %v7057, %v7056
    %v7220 = vpack.c.bf16 %v7059, %v7058
    %v7221 = vpack.c.bf16 %v7061, %v7060
    %v7222 = vpack.c.bf16 %v7063, %v7062
    %v7223 = vpack.c.bf16 %v7065, %v7064
    %v7224 = vpack.c.bf16 %v7067, %v7066
    %v7225 = vpack.c.bf16 %v7069, %v7068
    %v7226 = vpack.c.bf16 %v7071, %v7070
    %v7227 = vpack.c.bf16 %v7073, %v7072
    %v7228 = vpack.c.bf16 %v7075, %v7074
    %v7229 = vpack.c.bf16 %v7077, %v7076
    %v7230 = vpack.c.bf16 %v7079, %v7078
    %v7231 = vpack.c.bf16 %v7081, %v7080
    %v7232 = vpack.c.bf16 %v7083, %v7082
    %v7233 = vpack.c.bf16 %v7085, %v7084
    %v7234 = vpack.c.bf16 %v7087, %v7086
    %v7235 = vpack.c.bf16 %v7089, %v7088
    %v7236 = vpack.c.bf16 %v7091, %v7090
    %v7237 = vpack.c.bf16 %v7093, %v7092
    %v7238 = vpack.c.bf16 %v7095, %v7094
    %v7239 = vpack.c.bf16 %v7097, %v7096
    %v7240 = vpack.c.bf16 %v7099, %v7098
    %v7241 = vpack.c.bf16 %v7101, %v7100
    %v7242 = vpack.c.bf16 %v7103, %v7102
    %v7243 = vpack.c.bf16 %v7105, %v7104
    %v7244 = vpack.c.bf16 %v7107, %v7106
    %v7245 = vpack.c.bf16 %v7109, %v7108
    %v7246 = vpack.c.bf16 %v7111, %v7110
    %v7247 = vpack.c.bf16 %v7113, %v7112
    %v7248 = vpack.c.bf16 %v7115, %v7114
    %v7249 = vpack.c.bf16 %v7117, %v7116
    %v7250 = vpack.c.bf16 %v7119, %v7118
    %v7251 = vpack.c.bf16 %v7121, %v7120
    %v7252 = vpack.c.bf16 %v7123, %v7122
    %v7253 = vpack.c.bf16 %v7125, %v7124
    %v7254 = vld [vmem:[%s9] sm:$0xf]
    %v7255 = vld [vmem:[%s9 + $0x4] sm:$0xf]
    %v7256 = vld [vmem:[%s9 + $0x8] sm:$0xf]
    %v7257 = vld [vmem:[%s9 + $0xc] sm:$0xf]
    %v7258 = vld [vmem:[%s10] sm:$0x1]
    %v7260 = vperm.slane %v7258, 0
    %v7266 = vunpack.c.l.b16 %v7254
    %v7267 = vunpack.c.l.b16 %v7255
    %v7268 = vunpack.c.l.b16 %v7256
    %v7269 = vunpack.c.l.b16 %v7257
    %v7270 = vpack.c.b16 %v7267, %v7266
    %v7271 = vpack.c.b16 %v7269, %v7268
    %v7275 = vsel %vm5100, %v7126, 0
    %v7278 = vsel %vm5100, %v7127, 0
    %v7281 = vsel %vm5100, %v7128, 0
    %v7284 = vsel %vm5100, %v7129, 0
    %v7287 = vsel %vm5100, %v7130, 0
    %v7290 = vsel %vm5100, %v7131, 0
    %v7293 = vsel %vm5100, %v7132, 0
    %v7296 = vsel %vm5100, %v7133, 0
    %v7299 = vsel %vm5100, %v7134, 0
    %v7302 = vsel %vm5100, %v7135, 0
    %v7305 = vsel %vm5100, %v7136, 0
    %v7308 = vsel %vm5100, %v7137, 0
    %v7311 = vsel %vm5100, %v7138, 0
    %v7314 = vsel %vm5100, %v7139, 0
    %v7317 = vsel %vm5100, %v7140, 0
    %v7320 = vsel %vm5100, %v7141, 0
    %v7323 = vsel %vm5100, %v7142, 0
    %v7326 = vsel %vm5100, %v7143, 0
    %v7329 = vsel %vm5100, %v7144, 0
    %v7332 = vsel %vm5100, %v7145, 0
    %v7335 = vsel %vm5100, %v7146, 0
    %v7338 = vsel %vm5100, %v7147, 0
    %v7341 = vsel %vm5100, %v7148, 0
    %v7344 = vsel %vm5100, %v7149, 0
    %v7347 = vsel %vm5100, %v7150, 0
    %v7350 = vsel %vm5100, %v7151, 0
    %v7353 = vsel %vm5100, %v7152, 0
    %v7356 = vsel %vm5100, %v7153, 0
    %v7359 = vsel %vm5100, %v7154, 0
    %v7362 = vsel %vm5100, %v7155, 0
    %v7365 = vsel %vm5100, %v7156, 0
    %v7368 = vsel %vm5100, %v7157, 0
    %v7371 = vsel %vm5100, %v7158, 0
    %v7374 = vsel %vm5100, %v7159, 0
    %v7377 = vsel %vm5100, %v7160, 0
    %v7380 = vsel %vm5100, %v7161, 0
    %v7383 = vsel %vm5100, %v7162, 0
    %v7386 = vsel %vm5100, %v7163, 0
    %v7389 = vsel %vm5100, %v7164, 0
    %v7392 = vsel %vm5100, %v7165, 0
    %v7395 = vsel %vm5100, %v7166, 0
    %v7398 = vsel %vm5100, %v7167, 0
    %v7401 = vsel %vm5100, %v7168, 0
    %v7404 = vsel %vm5100, %v7169, 0
    %v7407 = vsel %vm5100, %v7170, 0
    %v7410 = vsel %vm5100, %v7171, 0
    %v7413 = vsel %vm5100, %v7172, 0
    %v7416 = vsel %vm5100, %v7173, 0
    %v7419 = vsel %vm5100, %v7174, 0
    %v7422 = vsel %vm5100, %v7175, 0
    %v7425 = vsel %vm5100, %v7176, 0
    %v7428 = vsel %vm5100, %v7177, 0
    %v7431 = vsel %vm5100, %v7178, 0
    %v7434 = vsel %vm5100, %v7179, 0
    %v7437 = vsel %vm5100, %v7180, 0
    %v7440 = vsel %vm5100, %v7181, 0
    %v7443 = vsel %vm5100, %v7182, 0
    %v7446 = vsel %vm5100, %v7183, 0
    %v7449 = vsel %vm5100, %v7184, 0
    %v7452 = vsel %vm5100, %v7185, 0
    %v7455 = vsel %vm5100, %v7186, 0
    %v7458 = vsel %vm5100, %v7187, 0
    %v7461 = vsel %vm5100, %v7188, 0
    %v7464 = vsel %vm5100, %v7189, 0
    %v7467 = vsel %vm5100, %v7190, 0
    %v7470 = vsel %vm5100, %v7191, 0
    %v7473 = vsel %vm5100, %v7192, 0
    %v7476 = vsel %vm5100, %v7193, 0
    %v7479 = vsel %vm5100, %v7194, 0
    %v7482 = vsel %vm5100, %v7195, 0
    %v7485 = vsel %vm5100, %v7196, 0
    %v7488 = vsel %vm5100, %v7197, 0
    %v7491 = vsel %vm5100, %v7198, 0
    %v7494 = vsel %vm5100, %v7199, 0
    %v7497 = vsel %vm5100, %v7200, 0
    %v7500 = vsel %vm5100, %v7201, 0
    %v7503 = vsel %vm5100, %v7202, 0
    %v7506 = vsel %vm5100, %v7203, 0
    %v7509 = vsel %vm5100, %v7204, 0
    %v7512 = vsel %vm5100, %v7205, 0
    %v7515 = vsel %vm5100, %v7206, 0
    %v7518 = vsel %vm5100, %v7207, 0
    %v7521 = vsel %vm5100, %v7208, 0
    %v7524 = vsel %vm5100, %v7209, 0
    %v7527 = vsel %vm5100, %v7210, 0
    %v7530 = vsel %vm5100, %v7211, 0
    %v7533 = vsel %vm5100, %v7212, 0
    %v7536 = vsel %vm5100, %v7213, 0
    %v7539 = vsel %vm5100, %v7214, 0
    %v7542 = vsel %vm5100, %v7215, 0
    %v7545 = vsel %vm5100, %v7216, 0
    %v7548 = vsel %vm5100, %v7217, 0
    %v7551 = vsel %vm5100, %v7218, 0
    %v7554 = vsel %vm5100, %v7219, 0
    %v7557 = vsel %vm5100, %v7220, 0
    %v7560 = vsel %vm5100, %v7221, 0
    %v7563 = vsel %vm5100, %v7222, 0
    %v7566 = vsel %vm5100, %v7223, 0
    %v7569 = vsel %vm5100, %v7224, 0
    %v7572 = vsel %vm5100, %v7225, 0
    %v7575 = vsel %vm5100, %v7226, 0
    %v7578 = vsel %vm5100, %v7227, 0
    %v7581 = vsel %vm5100, %v7228, 0
    %v7584 = vsel %vm5100, %v7229, 0
    %v7587 = vsel %vm5100, %v7230, 0
    %v7590 = vsel %vm5100, %v7231, 0
    %v7593 = vsel %vm5100, %v7232, 0
    %v7596 = vsel %vm5100, %v7233, 0
    %v7599 = vsel %vm5100, %v7234, 0
    %v7602 = vsel %vm5100, %v7235, 0
    %v7605 = vsel %vm5100, %v7236, 0
    %v7608 = vsel %vm5100, %v7237, 0
    %v7611 = vsel %vm5100, %v7238, 0
    %v7614 = vsel %vm5100, %v7239, 0
    %v7617 = vsel %vm5100, %v7240, 0
    %v7620 = vsel %vm5100, %v7241, 0
    %v7623 = vsel %vm5100, %v7242, 0
    %v7626 = vsel %vm5100, %v7243, 0
    %v7629 = vsel %vm5100, %v7244, 0
    %v7632 = vsel %vm5100, %v7245, 0
    %v7635 = vsel %vm5100, %v7246, 0
    %v7638 = vsel %vm5100, %v7247, 0
    %v7641 = vsel %vm5100, %v7248, 0
    %v7644 = vsel %vm5100, %v7249, 0
    %v7647 = vsel %vm5100, %v7250, 0
    %v7650 = vsel %vm5100, %v7251, 0
    %v7653 = vsel %vm5100, %v7252, 0
    %v7656 = vsel %vm5100, %v7253, 0
    %7658 = vmatpush.bf16.msra.mxu0 0
    %7659 = vmatpush.bf16.msra.mxu0 0
    %7660 = vmatpush.bf16.msra.mxu0 0
    %7661 = vmatpush.bf16.msra.mxu0 0
    %7662 = vmatpush.bf16.msra.mxu0 0
    %7663 = vmatpush.bf16.msra.mxu0 0
    %7664 = vmatpush.bf16.msra.mxu0 %v7271
    %7665 = vmatpush.bf16.msra.mxu0 %v7270
    %7666 = vmatmul.bf16.gmra.mxu0 %v7275
    %v7667 = vpop.f32.mrf.mxu0
    %v7668 = vadd.f32 %v7260, %v7667
    %v7669 = vpop.f32.mrf.mxu0
    %v7670 = vadd.f32 %v7260, %v7669
    %7671 = vmatmul.bf16.gmra.mxu0 %v7278
    %v7672 = vpop.f32.mrf.mxu0
    %v7673 = vadd.f32 %v7260, %v7672
    %v7674 = vpop.f32.mrf.mxu0
    %v7675 = vadd.f32 %v7260, %v7674
    %7676 = vmatmul.bf16.gmra.mxu0 %v7281
    %v7677 = vpop.f32.mrf.mxu0
    %v7678 = vadd.f32 %v7260, %v7677
    %v7679 = vpop.f32.mrf.mxu0
    %v7680 = vadd.f32 %v7260, %v7679
    %7681 = vmatmul.bf16.gmra.mxu0 %v7284
    %v7682 = vpop.f32.mrf.mxu0
    %v7683 = vadd.f32 %v7260, %v7682
    %v7684 = vpop.f32.mrf.mxu0
    %v7685 = vadd.f32 %v7260, %v7684
    %7686 = vmatmul.bf16.gmra.mxu0 %v7287
    %v7687 = vpop.f32.mrf.mxu0
    %v7688 = vadd.f32 %v7260, %v7687
    %v7689 = vpop.f32.mrf.mxu0
    %v7690 = vadd.f32 %v7260, %v7689
    %7691 = vmatmul.bf16.gmra.mxu0 %v7290
    %v7692 = vpop.f32.mrf.mxu0
    %v7693 = vadd.f32 %v7260, %v7692
    %v7694 = vpop.f32.mrf.mxu0
    %v7695 = vadd.f32 %v7260, %v7694
    %7696 = vmatmul.bf16.gmra.mxu0 %v7293
    %v7697 = vpop.f32.mrf.mxu0
    %v7698 = vadd.f32 %v7260, %v7697
    %v7699 = vpop.f32.mrf.mxu0
    %v7700 = vadd.f32 %v7260, %v7699
    %7701 = vmatmul.bf16.gmra.mxu0 %v7296
    %v7702 = vpop.f32.mrf.mxu0
    %v7703 = vadd.f32 %v7260, %v7702
    %v7704 = vpop.f32.mrf.mxu0
    %v7705 = vadd.f32 %v7260, %v7704
    %7706 = vmatmul.bf16.gmra.mxu0 %v7299
    %v7707 = vpop.f32.mrf.mxu0
    %v7708 = vadd.f32 %v7260, %v7707
    %v7709 = vpop.f32.mrf.mxu0
    %v7710 = vadd.f32 %v7260, %v7709
    %7711 = vmatmul.bf16.gmra.mxu0 %v7302
    %v7712 = vpop.f32.mrf.mxu0
    %v7713 = vadd.f32 %v7260, %v7712
    %v7714 = vpop.f32.mrf.mxu0
    %v7715 = vadd.f32 %v7260, %v7714
    %7716 = vmatmul.bf16.gmra.mxu0 %v7305
    %v7717 = vpop.f32.mrf.mxu0
    %v7718 = vadd.f32 %v7260, %v7717
    %v7719 = vpop.f32.mrf.mxu0
    %v7720 = vadd.f32 %v7260, %v7719
    %7721 = vmatmul.bf16.gmra.mxu0 %v7308
    %v7722 = vpop.f32.mrf.mxu0
    %v7723 = vadd.f32 %v7260, %v7722
    %v7724 = vpop.f32.mrf.mxu0
    %v7725 = vadd.f32 %v7260, %v7724
    %7726 = vmatmul.bf16.gmra.mxu0 %v7311
    %v7727 = vpop.f32.mrf.mxu0
    %v7728 = vadd.f32 %v7260, %v7727
    %v7729 = vpop.f32.mrf.mxu0
    %v7730 = vadd.f32 %v7260, %v7729
    %7731 = vmatmul.bf16.gmra.mxu0 %v7314
    %v7732 = vpop.f32.mrf.mxu0
    %v7733 = vadd.f32 %v7260, %v7732
    %v7734 = vpop.f32.mrf.mxu0
    %v7735 = vadd.f32 %v7260, %v7734
    %7736 = vmatmul.bf16.gmra.mxu0 %v7317
    %v7737 = vpop.f32.mrf.mxu0
    %v7738 = vadd.f32 %v7260, %v7737
    %v7739 = vpop.f32.mrf.mxu0
    %v7740 = vadd.f32 %v7260, %v7739
    %7741 = vmatmul.bf16.gmra.mxu0 %v7320
    %v7742 = vpop.f32.mrf.mxu0
    %v7743 = vadd.f32 %v7260, %v7742
    %v7744 = vpop.f32.mrf.mxu0
    %v7745 = vadd.f32 %v7260, %v7744
    %7746 = vmatmul.bf16.gmra.mxu0 %v7323
    %v7747 = vpop.f32.mrf.mxu0
    %v7748 = vadd.f32 %v7260, %v7747
    %v7749 = vpop.f32.mrf.mxu0
    %v7750 = vadd.f32 %v7260, %v7749
    %7751 = vmatmul.bf16.gmra.mxu0 %v7326
    %v7752 = vpop.f32.mrf.mxu0
    %v7753 = vadd.f32 %v7260, %v7752
    %v7754 = vpop.f32.mrf.mxu0
    %v7755 = vadd.f32 %v7260, %v7754
    %7756 = vmatmul.bf16.gmra.mxu0 %v7329
    %v7757 = vpop.f32.mrf.mxu0
    %v7758 = vadd.f32 %v7260, %v7757
    %v7759 = vpop.f32.mrf.mxu0
    %v7760 = vadd.f32 %v7260, %v7759
    %7761 = vmatmul.bf16.gmra.mxu0 %v7332
    %v7762 = vpop.f32.mrf.mxu0
    %v7763 = vadd.f32 %v7260, %v7762
    %v7764 = vpop.f32.mrf.mxu0
    %v7765 = vadd.f32 %v7260, %v7764
    %7766 = vmatmul.bf16.gmra.mxu0 %v7335
    %v7767 = vpop.f32.mrf.mxu0
    %v7768 = vadd.f32 %v7260, %v7767
    %v7769 = vpop.f32.mrf.mxu0
    %v7770 = vadd.f32 %v7260, %v7769
    %7771 = vmatmul.bf16.gmra.mxu0 %v7338
    %v7772 = vpop.f32.mrf.mxu0
    %v7773 = vadd.f32 %v7260, %v7772
    %v7774 = vpop.f32.mrf.mxu0
    %v7775 = vadd.f32 %v7260, %v7774
    %7776 = vmatmul.bf16.gmra.mxu0 %v7341
    %v7777 = vpop.f32.mrf.mxu0
    %v7778 = vadd.f32 %v7260, %v7777
    %v7779 = vpop.f32.mrf.mxu0
    %v7780 = vadd.f32 %v7260, %v7779
    %7781 = vmatmul.bf16.gmra.mxu0 %v7344
    %v7782 = vpop.f32.mrf.mxu0
    %v7783 = vadd.f32 %v7260, %v7782
    %v7784 = vpop.f32.mrf.mxu0
    %v7785 = vadd.f32 %v7260, %v7784
    %7786 = vmatmul.bf16.gmra.mxu0 %v7347
    %v7787 = vpop.f32.mrf.mxu0
    %v7788 = vadd.f32 %v7260, %v7787
    %v7789 = vpop.f32.mrf.mxu0
    %v7790 = vadd.f32 %v7260, %v7789
    %7791 = vmatmul.bf16.gmra.mxu0 %v7350
    %v7792 = vpop.f32.mrf.mxu0
    %v7793 = vadd.f32 %v7260, %v7792
    %v7794 = vpop.f32.mrf.mxu0
    %v7795 = vadd.f32 %v7260, %v7794
    %7796 = vmatmul.bf16.gmra.mxu0 %v7353
    %v7797 = vpop.f32.mrf.mxu0
    %v7798 = vadd.f32 %v7260, %v7797
    %v7799 = vpop.f32.mrf.mxu0
    %v7800 = vadd.f32 %v7260, %v7799
    %7801 = vmatmul.bf16.gmra.mxu0 %v7356
    %v7802 = vpop.f32.mrf.mxu0
    %v7803 = vadd.f32 %v7260, %v7802
    %v7804 = vpop.f32.mrf.mxu0
    %v7805 = vadd.f32 %v7260, %v7804
    %7806 = vmatmul.bf16.gmra.mxu0 %v7359
    %v7807 = vpop.f32.mrf.mxu0
    %v7808 = vadd.f32 %v7260, %v7807
    %v7809 = vpop.f32.mrf.mxu0
    %v7810 = vadd.f32 %v7260, %v7809
    %7811 = vmatmul.bf16.gmra.mxu0 %v7362
    %v7812 = vpop.f32.mrf.mxu0
    %v7813 = vadd.f32 %v7260, %v7812
    %v7814 = vpop.f32.mrf.mxu0
    %v7815 = vadd.f32 %v7260, %v7814
    %7816 = vmatmul.bf16.gmra.mxu0 %v7365
    %v7817 = vpop.f32.mrf.mxu0
    %v7818 = vadd.f32 %v7260, %v7817
    %v7819 = vpop.f32.mrf.mxu0
    %v7820 = vadd.f32 %v7260, %v7819
    %7821 = vmatmul.bf16.gmra.mxu0 %v7368
    %v7822 = vpop.f32.mrf.mxu0
    %v7823 = vadd.f32 %v7260, %v7822
    %v7824 = vpop.f32.mrf.mxu0
    %v7825 = vadd.f32 %v7260, %v7824
    %7826 = vmatmul.bf16.gmra.mxu0 %v7371
    %v7827 = vpop.f32.mrf.mxu0
    %v7828 = vadd.f32 %v7260, %v7827
    %v7829 = vpop.f32.mrf.mxu0
    %v7830 = vadd.f32 %v7260, %v7829
    %7831 = vmatmul.bf16.gmra.mxu0 %v7374
    %v7832 = vpop.f32.mrf.mxu0
    %v7833 = vadd.f32 %v7260, %v7832
    %v7834 = vpop.f32.mrf.mxu0
    %v7835 = vadd.f32 %v7260, %v7834
    %7836 = vmatmul.bf16.gmra.mxu0 %v7377
    %v7837 = vpop.f32.mrf.mxu0
    %v7838 = vadd.f32 %v7260, %v7837
    %v7839 = vpop.f32.mrf.mxu0
    %v7840 = vadd.f32 %v7260, %v7839
    %7841 = vmatmul.bf16.gmra.mxu0 %v7380
    %v7842 = vpop.f32.mrf.mxu0
    %v7843 = vadd.f32 %v7260, %v7842
    %v7844 = vpop.f32.mrf.mxu0
    %v7845 = vadd.f32 %v7260, %v7844
    %7846 = vmatmul.bf16.gmra.mxu0 %v7383
    %v7847 = vpop.f32.mrf.mxu0
    %v7848 = vadd.f32 %v7260, %v7847
    %v7849 = vpop.f32.mrf.mxu0
    %v7850 = vadd.f32 %v7260, %v7849
    %7851 = vmatmul.bf16.gmra.mxu0 %v7386
    %v7852 = vpop.f32.mrf.mxu0
    %v7853 = vadd.f32 %v7260, %v7852
    %v7854 = vpop.f32.mrf.mxu0
    %v7855 = vadd.f32 %v7260, %v7854
    %7856 = vmatmul.bf16.gmra.mxu0 %v7389
    %v7857 = vpop.f32.mrf.mxu0
    %v7858 = vadd.f32 %v7260, %v7857
    %v7859 = vpop.f32.mrf.mxu0
    %v7860 = vadd.f32 %v7260, %v7859
    %7861 = vmatmul.bf16.gmra.mxu0 %v7392
    %v7862 = vpop.f32.mrf.mxu0
    %v7863 = vadd.f32 %v7260, %v7862
    %v7864 = vpop.f32.mrf.mxu0
    %v7865 = vadd.f32 %v7260, %v7864
    %7866 = vmatmul.bf16.gmra.mxu0 %v7395
    %v7867 = vpop.f32.mrf.mxu0
    %v7868 = vadd.f32 %v7260, %v7867
    %v7869 = vpop.f32.mrf.mxu0
    %v7870 = vadd.f32 %v7260, %v7869
    %7871 = vmatmul.bf16.gmra.mxu0 %v7398
    %v7872 = vpop.f32.mrf.mxu0
    %v7873 = vadd.f32 %v7260, %v7872
    %v7874 = vpop.f32.mrf.mxu0
    %v7875 = vadd.f32 %v7260, %v7874
    %7876 = vmatmul.bf16.gmra.mxu0 %v7401
    %v7877 = vpop.f32.mrf.mxu0
    %v7878 = vadd.f32 %v7260, %v7877
    %v7879 = vpop.f32.mrf.mxu0
    %v7880 = vadd.f32 %v7260, %v7879
    %7881 = vmatmul.bf16.gmra.mxu0 %v7404
    %v7882 = vpop.f32.mrf.mxu0
    %v7883 = vadd.f32 %v7260, %v7882
    %v7884 = vpop.f32.mrf.mxu0
    %v7885 = vadd.f32 %v7260, %v7884
    %7886 = vmatmul.bf16.gmra.mxu0 %v7407
    %v7887 = vpop.f32.mrf.mxu0
    %v7888 = vadd.f32 %v7260, %v7887
    %v7889 = vpop.f32.mrf.mxu0
    %v7890 = vadd.f32 %v7260, %v7889
    %7891 = vmatmul.bf16.gmra.mxu0 %v7410
    %v7892 = vpop.f32.mrf.mxu0
    %v7893 = vadd.f32 %v7260, %v7892
    %v7894 = vpop.f32.mrf.mxu0
    %v7895 = vadd.f32 %v7260, %v7894
    %7896 = vmatmul.bf16.gmra.mxu0 %v7413
    %v7897 = vpop.f32.mrf.mxu0
    %v7898 = vadd.f32 %v7260, %v7897
    %v7899 = vpop.f32.mrf.mxu0
    %v7900 = vadd.f32 %v7260, %v7899
    %7901 = vmatmul.bf16.gmra.mxu0 %v7416
    %v7902 = vpop.f32.mrf.mxu0
    %v7903 = vadd.f32 %v7260, %v7902
    %v7904 = vpop.f32.mrf.mxu0
    %v7905 = vadd.f32 %v7260, %v7904
    %7906 = vmatmul.bf16.gmra.mxu0 %v7419
    %v7907 = vpop.f32.mrf.mxu0
    %v7908 = vadd.f32 %v7260, %v7907
    %v7909 = vpop.f32.mrf.mxu0
    %v7910 = vadd.f32 %v7260, %v7909
    %7911 = vmatmul.bf16.gmra.mxu0 %v7422
    %v7912 = vpop.f32.mrf.mxu0
    %v7913 = vadd.f32 %v7260, %v7912
    %v7914 = vpop.f32.mrf.mxu0
    %v7915 = vadd.f32 %v7260, %v7914
    %7916 = vmatmul.bf16.gmra.mxu0 %v7425
    %v7917 = vpop.f32.mrf.mxu0
    %v7918 = vadd.f32 %v7260, %v7917
    %v7919 = vpop.f32.mrf.mxu0
    %v7920 = vadd.f32 %v7260, %v7919
    %7921 = vmatmul.bf16.gmra.mxu0 %v7428
    %v7922 = vpop.f32.mrf.mxu0
    %v7923 = vadd.f32 %v7260, %v7922
    %v7924 = vpop.f32.mrf.mxu0
    %v7925 = vadd.f32 %v7260, %v7924
    %7926 = vmatmul.bf16.gmra.mxu0 %v7431
    %v7927 = vpop.f32.mrf.mxu0
    %v7928 = vadd.f32 %v7260, %v7927
    %v7929 = vpop.f32.mrf.mxu0
    %v7930 = vadd.f32 %v7260, %v7929
    %7931 = vmatmul.bf16.gmra.mxu0 %v7434
    %v7932 = vpop.f32.mrf.mxu0
    %v7933 = vadd.f32 %v7260, %v7932
    %v7934 = vpop.f32.mrf.mxu0
    %v7935 = vadd.f32 %v7260, %v7934
    %7936 = vmatmul.bf16.gmra.mxu0 %v7437
    %v7937 = vpop.f32.mrf.mxu0
    %v7938 = vadd.f32 %v7260, %v7937
    %v7939 = vpop.f32.mrf.mxu0
    %v7940 = vadd.f32 %v7260, %v7939
    %7941 = vmatmul.bf16.gmra.mxu0 %v7440
    %v7942 = vpop.f32.mrf.mxu0
    %v7943 = vadd.f32 %v7260, %v7942
    %v7944 = vpop.f32.mrf.mxu0
    %v7945 = vadd.f32 %v7260, %v7944
    %7946 = vmatmul.bf16.gmra.mxu0 %v7443
    %v7947 = vpop.f32.mrf.mxu0
    %v7948 = vadd.f32 %v7260, %v7947
    %v7949 = vpop.f32.mrf.mxu0
    %v7950 = vadd.f32 %v7260, %v7949
    %7951 = vmatmul.bf16.gmra.mxu0 %v7446
    %v7952 = vpop.f32.mrf.mxu0
    %v7953 = vadd.f32 %v7260, %v7952
    %v7954 = vpop.f32.mrf.mxu0
    %v7955 = vadd.f32 %v7260, %v7954
    %7956 = vmatmul.bf16.gmra.mxu0 %v7449
    %v7957 = vpop.f32.mrf.mxu0
    %v7958 = vadd.f32 %v7260, %v7957
    %v7959 = vpop.f32.mrf.mxu0
    %v7960 = vadd.f32 %v7260, %v7959
    %7961 = vmatmul.bf16.gmra.mxu0 %v7452
    %v7962 = vpop.f32.mrf.mxu0
    %v7963 = vadd.f32 %v7260, %v7962
    %v7964 = vpop.f32.mrf.mxu0
    %v7965 = vadd.f32 %v7260, %v7964
    %7966 = vmatmul.bf16.gmra.mxu0 %v7455
    %v7967 = vpop.f32.mrf.mxu0
    %v7968 = vadd.f32 %v7260, %v7967
    %v7969 = vpop.f32.mrf.mxu0
    %v7970 = vadd.f32 %v7260, %v7969
    %7971 = vmatmul.bf16.gmra.mxu0 %v7458
    %v7972 = vpop.f32.mrf.mxu0
    %v7973 = vadd.f32 %v7260, %v7972
    %v7974 = vpop.f32.mrf.mxu0
    %v7975 = vadd.f32 %v7260, %v7974
    %7976 = vmatmul.bf16.gmra.mxu0 %v7461
    %v7977 = vpop.f32.mrf.mxu0
    %v7978 = vadd.f32 %v7260, %v7977
    %v7979 = vpop.f32.mrf.mxu0
    %v7980 = vadd.f32 %v7260, %v7979
    %7981 = vmatmul.bf16.gmra.mxu0 %v7464
    %v7982 = vpop.f32.mrf.mxu0
    %v7983 = vadd.f32 %v7260, %v7982
    %v7984 = vpop.f32.mrf.mxu0
    %v7985 = vadd.f32 %v7260, %v7984
    %7986 = vmatmul.bf16.gmra.mxu0 %v7467
    %v7987 = vpop.f32.mrf.mxu0
    %v7988 = vadd.f32 %v7260, %v7987
    %v7989 = vpop.f32.mrf.mxu0
    %v7990 = vadd.f32 %v7260, %v7989
    %7991 = vmatmul.bf16.gmra.mxu0 %v7470
    %v7992 = vpop.f32.mrf.mxu0
    %v7993 = vadd.f32 %v7260, %v7992
    %v7994 = vpop.f32.mrf.mxu0
    %v7995 = vadd.f32 %v7260, %v7994
    %7996 = vmatmul.bf16.gmra.mxu0 %v7473
    %v7997 = vpop.f32.mrf.mxu0
    %v7998 = vadd.f32 %v7260, %v7997
    %v7999 = vpop.f32.mrf.mxu0
    %v8000 = vadd.f32 %v7260, %v7999
    %8001 = vmatmul.bf16.gmra.mxu0 %v7476
    %v8002 = vpop.f32.mrf.mxu0
    %v8003 = vadd.f32 %v7260, %v8002
    %v8004 = vpop.f32.mrf.mxu0
    %v8005 = vadd.f32 %v7260, %v8004
    %8006 = vmatmul.bf16.gmra.mxu0 %v7479
    %v8007 = vpop.f32.mrf.mxu0
    %v8008 = vadd.f32 %v7260, %v8007
    %v8009 = vpop.f32.mrf.mxu0
    %v8010 = vadd.f32 %v7260, %v8009
    %8011 = vmatmul.bf16.gmra.mxu0 %v7482
    %v8012 = vpop.f32.mrf.mxu0
    %v8013 = vadd.f32 %v7260, %v8012
    %v8014 = vpop.f32.mrf.mxu0
    %v8015 = vadd.f32 %v7260, %v8014
    %8016 = vmatmul.bf16.gmra.mxu0 %v7485
    %v8017 = vpop.f32.mrf.mxu0
    %v8018 = vadd.f32 %v7260, %v8017
    %v8019 = vpop.f32.mrf.mxu0
    %v8020 = vadd.f32 %v7260, %v8019
    %8021 = vmatmul.bf16.gmra.mxu0 %v7488
    %v8022 = vpop.f32.mrf.mxu0
    %v8023 = vadd.f32 %v7260, %v8022
    %v8024 = vpop.f32.mrf.mxu0
    %v8025 = vadd.f32 %v7260, %v8024
    %8026 = vmatmul.bf16.gmra.mxu0 %v7491
    %v8027 = vpop.f32.mrf.mxu0
    %v8028 = vadd.f32 %v7260, %v8027
    %v8029 = vpop.f32.mrf.mxu0
    %v8030 = vadd.f32 %v7260, %v8029
    %8031 = vmatmul.bf16.gmra.mxu0 %v7494
    %v8032 = vpop.f32.mrf.mxu0
    %v8033 = vadd.f32 %v7260, %v8032
    %v8034 = vpop.f32.mrf.mxu0
    %v8035 = vadd.f32 %v7260, %v8034
    %8036 = vmatmul.bf16.gmra.mxu0 %v7497
    %v8037 = vpop.f32.mrf.mxu0
    %v8038 = vadd.f32 %v7260, %v8037
    %v8039 = vpop.f32.mrf.mxu0
    %v8040 = vadd.f32 %v7260, %v8039
    %8041 = vmatmul.bf16.gmra.mxu0 %v7500
    %v8042 = vpop.f32.mrf.mxu0
    %v8043 = vadd.f32 %v7260, %v8042
    %v8044 = vpop.f32.mrf.mxu0
    %v8045 = vadd.f32 %v7260, %v8044
    %8046 = vmatmul.bf16.gmra.mxu0 %v7503
    %v8047 = vpop.f32.mrf.mxu0
    %v8048 = vadd.f32 %v7260, %v8047
    %v8049 = vpop.f32.mrf.mxu0
    %v8050 = vadd.f32 %v7260, %v8049
    %8051 = vmatmul.bf16.gmra.mxu0 %v7506
    %v8052 = vpop.f32.mrf.mxu0
    %v8053 = vadd.f32 %v7260, %v8052
    %v8054 = vpop.f32.mrf.mxu0
    %v8055 = vadd.f32 %v7260, %v8054
    %8056 = vmatmul.bf16.gmra.mxu0 %v7509
    %v8057 = vpop.f32.mrf.mxu0
    %v8058 = vadd.f32 %v7260, %v8057
    %v8059 = vpop.f32.mrf.mxu0
    %v8060 = vadd.f32 %v7260, %v8059
    %8061 = vmatmul.bf16.gmra.mxu0 %v7512
    %v8062 = vpop.f32.mrf.mxu0
    %v8063 = vadd.f32 %v7260, %v8062
    %v8064 = vpop.f32.mrf.mxu0
    %v8065 = vadd.f32 %v7260, %v8064
    %8066 = vmatmul.bf16.gmra.mxu0 %v7515
    %v8067 = vpop.f32.mrf.mxu0
    %v8068 = vadd.f32 %v7260, %v8067
    %v8069 = vpop.f32.mrf.mxu0
    %v8070 = vadd.f32 %v7260, %v8069
    %8071 = vmatmul.bf16.gmra.mxu0 %v7518
    %v8072 = vpop.f32.mrf.mxu0
    %v8073 = vadd.f32 %v7260, %v8072
    %v8074 = vpop.f32.mrf.mxu0
    %v8075 = vadd.f32 %v7260, %v8074
    %8076 = vmatmul.bf16.gmra.mxu0 %v7521
    %v8077 = vpop.f32.mrf.mxu0
    %v8078 = vadd.f32 %v7260, %v8077
    %v8079 = vpop.f32.mrf.mxu0
    %v8080 = vadd.f32 %v7260, %v8079
    %8081 = vmatmul.bf16.gmra.mxu0 %v7524
    %v8082 = vpop.f32.mrf.mxu0
    %v8083 = vadd.f32 %v7260, %v8082
    %v8084 = vpop.f32.mrf.mxu0
    %v8085 = vadd.f32 %v7260, %v8084
    %8086 = vmatmul.bf16.gmra.mxu0 %v7527
    %v8087 = vpop.f32.mrf.mxu0
    %v8088 = vadd.f32 %v7260, %v8087
    %v8089 = vpop.f32.mrf.mxu0
    %v8090 = vadd.f32 %v7260, %v8089
    %8091 = vmatmul.bf16.gmra.mxu0 %v7530
    %v8092 = vpop.f32.mrf.mxu0
    %v8093 = vadd.f32 %v7260, %v8092
    %v8094 = vpop.f32.mrf.mxu0
    %v8095 = vadd.f32 %v7260, %v8094
    %8096 = vmatmul.bf16.gmra.mxu0 %v7533
    %v8097 = vpop.f32.mrf.mxu0
    %v8098 = vadd.f32 %v7260, %v8097
    %v8099 = vpop.f32.mrf.mxu0
    %v8100 = vadd.f32 %v7260, %v8099
    %8101 = vmatmul.bf16.gmra.mxu0 %v7536
    %v8102 = vpop.f32.mrf.mxu0
    %v8103 = vadd.f32 %v7260, %v8102
    %v8104 = vpop.f32.mrf.mxu0
    %v8105 = vadd.f32 %v7260, %v8104
    %8106 = vmatmul.bf16.gmra.mxu0 %v7539
    %v8107 = vpop.f32.mrf.mxu0
    %v8108 = vadd.f32 %v7260, %v8107
    %v8109 = vpop.f32.mrf.mxu0
    %v8110 = vadd.f32 %v7260, %v8109
    %8111 = vmatmul.bf16.gmra.mxu0 %v7542
    %v8112 = vpop.f32.mrf.mxu0
    %v8113 = vadd.f32 %v7260, %v8112
    %v8114 = vpop.f32.mrf.mxu0
    %v8115 = vadd.f32 %v7260, %v8114
    %8116 = vmatmul.bf16.gmra.mxu0 %v7545
    %v8117 = vpop.f32.mrf.mxu0
    %v8118 = vadd.f32 %v7260, %v8117
    %v8119 = vpop.f32.mrf.mxu0
    %v8120 = vadd.f32 %v7260, %v8119
    %8121 = vmatmul.bf16.gmra.mxu0 %v7548
    %v8122 = vpop.f32.mrf.mxu0
    %v8123 = vadd.f32 %v7260, %v8122
    %v8124 = vpop.f32.mrf.mxu0
    %v8125 = vadd.f32 %v7260, %v8124
    %8126 = vmatmul.bf16.gmra.mxu0 %v7551
    %v8127 = vpop.f32.mrf.mxu0
    %v8128 = vadd.f32 %v7260, %v8127
    %v8129 = vpop.f32.mrf.mxu0
    %v8130 = vadd.f32 %v7260, %v8129
    %8131 = vmatmul.bf16.gmra.mxu0 %v7554
    %v8132 = vpop.f32.mrf.mxu0
    %v8133 = vadd.f32 %v7260, %v8132
    %v8134 = vpop.f32.mrf.mxu0
    %v8135 = vadd.f32 %v7260, %v8134
    %8136 = vmatmul.bf16.gmra.mxu0 %v7557
    %v8137 = vpop.f32.mrf.mxu0
    %v8138 = vadd.f32 %v7260, %v8137
    %v8139 = vpop.f32.mrf.mxu0
    %v8140 = vadd.f32 %v7260, %v8139
    %8141 = vmatmul.bf16.gmra.mxu0 %v7560
    %v8142 = vpop.f32.mrf.mxu0
    %v8143 = vadd.f32 %v7260, %v8142
    %v8144 = vpop.f32.mrf.mxu0
    %v8145 = vadd.f32 %v7260, %v8144
    %8146 = vmatmul.bf16.gmra.mxu0 %v7563
    %v8147 = vpop.f32.mrf.mxu0
    %v8148 = vadd.f32 %v7260, %v8147
    %v8149 = vpop.f32.mrf.mxu0
    %v8150 = vadd.f32 %v7260, %v8149
    %8151 = vmatmul.bf16.gmra.mxu0 %v7566
    %v8152 = vpop.f32.mrf.mxu0
    %v8153 = vadd.f32 %v7260, %v8152
    %v8154 = vpop.f32.mrf.mxu0
    %v8155 = vadd.f32 %v7260, %v8154
    %8156 = vmatmul.bf16.gmra.mxu0 %v7569
    %v8157 = vpop.f32.mrf.mxu0
    %v8158 = vadd.f32 %v7260, %v8157
    %v8159 = vpop.f32.mrf.mxu0
    %v8160 = vadd.f32 %v7260, %v8159
    %8161 = vmatmul.bf16.gmra.mxu0 %v7572
    %v8162 = vpop.f32.mrf.mxu0
    %v8163 = vadd.f32 %v7260, %v8162
    %v8164 = vpop.f32.mrf.mxu0
    %v8165 = vadd.f32 %v7260, %v8164
    %8166 = vmatmul.bf16.gmra.mxu0 %v7575
    %v8167 = vpop.f32.mrf.mxu0
    %v8168 = vadd.f32 %v7260, %v8167
    %v8169 = vpop.f32.mrf.mxu0
    %v8170 = vadd.f32 %v7260, %v8169
    %8171 = vmatmul.bf16.gmra.mxu0 %v7578
    %v8172 = vpop.f32.mrf.mxu0
    %v8173 = vadd.f32 %v7260, %v8172
    %v8174 = vpop.f32.mrf.mxu0
    %v8175 = vadd.f32 %v7260, %v8174
    %8176 = vmatmul.bf16.gmra.mxu0 %v7581
    %v8177 = vpop.f32.mrf.mxu0
    %v8178 = vadd.f32 %v7260, %v8177
    %v8179 = vpop.f32.mrf.mxu0
    %v8180 = vadd.f32 %v7260, %v8179
    %8181 = vmatmul.bf16.gmra.mxu0 %v7584
    %v8182 = vpop.f32.mrf.mxu0
    %v8183 = vadd.f32 %v7260, %v8182
    %v8184 = vpop.f32.mrf.mxu0
    %v8185 = vadd.f32 %v7260, %v8184
    %8186 = vmatmul.bf16.gmra.mxu0 %v7587
    %v8187 = vpop.f32.mrf.mxu0
    %v8188 = vadd.f32 %v7260, %v8187
    %v8189 = vpop.f32.mrf.mxu0
    %v8190 = vadd.f32 %v7260, %v8189
    %8191 = vmatmul.bf16.gmra.mxu0 %v7590
    %v8192 = vpop.f32.mrf.mxu0
    %v8193 = vadd.f32 %v7260, %v8192
    %v8194 = vpop.f32.mrf.mxu0
    %v8195 = vadd.f32 %v7260, %v8194
    %8196 = vmatmul.bf16.gmra.mxu0 %v7593
    %v8197 = vpop.f32.mrf.mxu0
    %v8198 = vadd.f32 %v7260, %v8197
    %v8199 = vpop.f32.mrf.mxu0
    %v8200 = vadd.f32 %v7260, %v8199
    %8201 = vmatmul.bf16.gmra.mxu0 %v7596
    %v8202 = vpop.f32.mrf.mxu0
    %v8203 = vadd.f32 %v7260, %v8202
    %v8204 = vpop.f32.mrf.mxu0
    %v8205 = vadd.f32 %v7260, %v8204
    %8206 = vmatmul.bf16.gmra.mxu0 %v7599
    %v8207 = vpop.f32.mrf.mxu0
    %v8208 = vadd.f32 %v7260, %v8207
    %v8209 = vpop.f32.mrf.mxu0
    %v8210 = vadd.f32 %v7260, %v8209
    %8211 = vmatmul.bf16.gmra.mxu0 %v7602
    %v8212 = vpop.f32.mrf.mxu0
    %v8213 = vadd.f32 %v7260, %v8212
    %v8214 = vpop.f32.mrf.mxu0
    %v8215 = vadd.f32 %v7260, %v8214
    %8216 = vmatmul.bf16.gmra.mxu0 %v7605
    %v8217 = vpop.f32.mrf.mxu0
    %v8218 = vadd.f32 %v7260, %v8217
    %v8219 = vpop.f32.mrf.mxu0
    %v8220 = vadd.f32 %v7260, %v8219
    %8221 = vmatmul.bf16.gmra.mxu0 %v7608
    %v8222 = vpop.f32.mrf.mxu0
    %v8223 = vadd.f32 %v7260, %v8222
    %v8224 = vpop.f32.mrf.mxu0
    %v8225 = vadd.f32 %v7260, %v8224
    %8226 = vmatmul.bf16.gmra.mxu0 %v7611
    %v8227 = vpop.f32.mrf.mxu0
    %v8228 = vadd.f32 %v7260, %v8227
    %v8229 = vpop.f32.mrf.mxu0
    %v8230 = vadd.f32 %v7260, %v8229
    %8231 = vmatmul.bf16.gmra.mxu0 %v7614
    %v8232 = vpop.f32.mrf.mxu0
    %v8233 = vadd.f32 %v7260, %v8232
    %v8234 = vpop.f32.mrf.mxu0
    %v8235 = vadd.f32 %v7260, %v8234
    %8236 = vmatmul.bf16.gmra.mxu0 %v7617
    %v8237 = vpop.f32.mrf.mxu0
    %v8238 = vadd.f32 %v7260, %v8237
    %v8239 = vpop.f32.mrf.mxu0
    %v8240 = vadd.f32 %v7260, %v8239
    %8241 = vmatmul.bf16.gmra.mxu0 %v7620
    %v8242 = vpop.f32.mrf.mxu0
    %v8243 = vadd.f32 %v7260, %v8242
    %v8244 = vpop.f32.mrf.mxu0
    %v8245 = vadd.f32 %v7260, %v8244
    %8246 = vmatmul.bf16.gmra.mxu0 %v7623
    %v8247 = vpop.f32.mrf.mxu0
    %v8248 = vadd.f32 %v7260, %v8247
    %v8249 = vpop.f32.mrf.mxu0
    %v8250 = vadd.f32 %v7260, %v8249
    %8251 = vmatmul.bf16.gmra.mxu0 %v7626
    %v8252 = vpop.f32.mrf.mxu0
    %v8253 = vadd.f32 %v7260, %v8252
    %v8254 = vpop.f32.mrf.mxu0
    %v8255 = vadd.f32 %v7260, %v8254
    %8256 = vmatmul.bf16.gmra.mxu0 %v7629
    %v8257 = vpop.f32.mrf.mxu0
    %v8258 = vadd.f32 %v7260, %v8257
    %v8259 = vpop.f32.mrf.mxu0
    %v8260 = vadd.f32 %v7260, %v8259
    %8261 = vmatmul.bf16.gmra.mxu0 %v7632
    %v8262 = vpop.f32.mrf.mxu0
    %v8263 = vadd.f32 %v7260, %v8262
    %v8264 = vpop.f32.mrf.mxu0
    %v8265 = vadd.f32 %v7260, %v8264
    %8266 = vmatmul.bf16.gmra.mxu0 %v7635
    %v8267 = vpop.f32.mrf.mxu0
    %v8268 = vadd.f32 %v7260, %v8267
    %v8269 = vpop.f32.mrf.mxu0
    %v8270 = vadd.f32 %v7260, %v8269
    %8271 = vmatmul.bf16.gmra.mxu0 %v7638
    %v8272 = vpop.f32.mrf.mxu0
    %v8273 = vadd.f32 %v7260, %v8272
    %v8274 = vpop.f32.mrf.mxu0
    %v8275 = vadd.f32 %v7260, %v8274
    %8276 = vmatmul.bf16.gmra.mxu0 %v7641
    %v8277 = vpop.f32.mrf.mxu0
    %v8278 = vadd.f32 %v7260, %v8277
    %v8279 = vpop.f32.mrf.mxu0
    %v8280 = vadd.f32 %v7260, %v8279
    %8281 = vmatmul.bf16.gmra.mxu0 %v7644
    %v8282 = vpop.f32.mrf.mxu0
    %v8283 = vadd.f32 %v7260, %v8282
    %v8284 = vpop.f32.mrf.mxu0
    %v8285 = vadd.f32 %v7260, %v8284
    %8286 = vmatmul.bf16.gmra.mxu0 %v7647
    %v8287 = vpop.f32.mrf.mxu0
    %v8288 = vadd.f32 %v7260, %v8287
    %v8289 = vpop.f32.mrf.mxu0
    %v8290 = vadd.f32 %v7260, %v8289
    %8291 = vmatmul.bf16.gmra.mxu0 %v7650
    %v8292 = vpop.f32.mrf.mxu0
    %v8293 = vadd.f32 %v7260, %v8292
    %v8294 = vpop.f32.mrf.mxu0
    %v8295 = vadd.f32 %v7260, %v8294
    %8296 = vmatmul.bf16.gmra.mxu0 %v7653
    %v8297 = vpop.f32.mrf.mxu0
    %v8298 = vadd.f32 %v7260, %v8297
    %v8299 = vpop.f32.mrf.mxu0
    %v8300 = vadd.f32 %v7260, %v8299
    %8301 = vmatmul.bf16.gmra.mxu0 %v7656
    %v8302 = vpop.f32.mrf.mxu0
    %v8303 = vadd.f32 %v7260, %v8302
    %v8304 = vpop.f32.mrf.mxu0
    %v8305 = vadd.f32 %v7260, %v8304
    %8306 = vdwg.mxu0
    %v8307 = vmax.f32 %v7668, 0.0
    %v8308 = vmax.f32 %v7670, 0.0
    %v8309 = vmax.f32 %v7673, 0.0
    %v8310 = vmax.f32 %v7675, 0.0
    %v8311 = vmax.f32 %v7678, 0.0
    %v8312 = vmax.f32 %v7680, 0.0
    %v8313 = vmax.f32 %v7683, 0.0
    %v8314 = vmax.f32 %v7685, 0.0
    %v8315 = vmax.f32 %v7688, 0.0
    %v8316 = vmax.f32 %v7690, 0.0
    %v8317 = vmax.f32 %v7693, 0.0
    %v8318 = vmax.f32 %v7695, 0.0
    %v8319 = vmax.f32 %v7698, 0.0
    %v8320 = vmax.f32 %v7700, 0.0
    %v8321 = vmax.f32 %v7703, 0.0
    %v8322 = vmax.f32 %v7705, 0.0
    %v8323 = vmax.f32 %v7708, 0.0
    %v8324 = vmax.f32 %v7710, 0.0
    %v8325 = vmax.f32 %v7713, 0.0
    %v8326 = vmax.f32 %v7715, 0.0
    %v8327 = vmax.f32 %v7718, 0.0
    %v8328 = vmax.f32 %v7720, 0.0
    %v8329 = vmax.f32 %v7723, 0.0
    %v8330 = vmax.f32 %v7725, 0.0
    %v8331 = vmax.f32 %v7728, 0.0
    %v8332 = vmax.f32 %v7730, 0.0
    %v8333 = vmax.f32 %v7733, 0.0
    %v8334 = vmax.f32 %v7735, 0.0
    %v8335 = vmax.f32 %v7738, 0.0
    %v8336 = vmax.f32 %v7740, 0.0
    %v8337 = vmax.f32 %v7743, 0.0
    %v8338 = vmax.f32 %v7745, 0.0
    %v8339 = vmax.f32 %v7748, 0.0
    %v8340 = vmax.f32 %v7750, 0.0
    %v8341 = vmax.f32 %v7753, 0.0
    %v8342 = vmax.f32 %v7755, 0.0
    %v8343 = vmax.f32 %v7758, 0.0
    %v8344 = vmax.f32 %v7760, 0.0
    %v8345 = vmax.f32 %v7763, 0.0
    %v8346 = vmax.f32 %v7765, 0.0
    %v8347 = vmax.f32 %v7768, 0.0
    %v8348 = vmax.f32 %v7770, 0.0
    %v8349 = vmax.f32 %v7773, 0.0
    %v8350 = vmax.f32 %v7775, 0.0
    %v8351 = vmax.f32 %v7778, 0.0
    %v8352 = vmax.f32 %v7780, 0.0
    %v8353 = vmax.f32 %v7783, 0.0
    %v8354 = vmax.f32 %v7785, 0.0
    %v8355 = vmax.f32 %v7788, 0.0
    %v8356 = vmax.f32 %v7790, 0.0
    %v8357 = vmax.f32 %v7793, 0.0
    %v8358 = vmax.f32 %v7795, 0.0
    %v8359 = vmax.f32 %v7798, 0.0
    %v8360 = vmax.f32 %v7800, 0.0
    %v8361 = vmax.f32 %v7803, 0.0
    %v8362 = vmax.f32 %v7805, 0.0
    %v8363 = vmax.f32 %v7808, 0.0
    %v8364 = vmax.f32 %v7810, 0.0
    %v8365 = vmax.f32 %v7813, 0.0
    %v8366 = vmax.f32 %v7815, 0.0
    %v8367 = vmax.f32 %v7818, 0.0
    %v8368 = vmax.f32 %v7820, 0.0
    %v8369 = vmax.f32 %v7823, 0.0
    %v8370 = vmax.f32 %v7825, 0.0
    %v8371 = vmax.f32 %v7828, 0.0
    %v8372 = vmax.f32 %v7830, 0.0
    %v8373 = vmax.f32 %v7833, 0.0
    %v8374 = vmax.f32 %v7835, 0.0
    %v8375 = vmax.f32 %v7838, 0.0
    %v8376 = vmax.f32 %v7840, 0.0
    %v8377 = vmax.f32 %v7843, 0.0
    %v8378 = vmax.f32 %v7845, 0.0
    %v8379 = vmax.f32 %v7848, 0.0
    %v8380 = vmax.f32 %v7850, 0.0
    %v8381 = vmax.f32 %v7853, 0.0
    %v8382 = vmax.f32 %v7855, 0.0
    %v8383 = vmax.f32 %v7858, 0.0
    %v8384 = vmax.f32 %v7860, 0.0
    %v8385 = vmax.f32 %v7863, 0.0
    %v8386 = vmax.f32 %v7865, 0.0
    %v8387 = vmax.f32 %v7868, 0.0
    %v8388 = vmax.f32 %v7870, 0.0
    %v8389 = vmax.f32 %v7873, 0.0
    %v8390 = vmax.f32 %v7875, 0.0
    %v8391 = vmax.f32 %v7878, 0.0
    %v8392 = vmax.f32 %v7880, 0.0
    %v8393 = vmax.f32 %v7883, 0.0
    %v8394 = vmax.f32 %v7885, 0.0
    %v8395 = vmax.f32 %v7888, 0.0
    %v8396 = vmax.f32 %v7890, 0.0
    %v8397 = vmax.f32 %v7893, 0.0
    %v8398 = vmax.f32 %v7895, 0.0
    %v8399 = vmax.f32 %v7898, 0.0
    %v8400 = vmax.f32 %v7900, 0.0
    %v8401 = vmax.f32 %v7903, 0.0
    %v8402 = vmax.f32 %v7905, 0.0
    %v8403 = vmax.f32 %v7908, 0.0
    %v8404 = vmax.f32 %v7910, 0.0
    %v8405 = vmax.f32 %v7913, 0.0
    %v8406 = vmax.f32 %v7915, 0.0
    %v8407 = vmax.f32 %v7918, 0.0
    %v8408 = vmax.f32 %v7920, 0.0
    %v8409 = vmax.f32 %v7923, 0.0
    %v8410 = vmax.f32 %v7925, 0.0
    %v8411 = vmax.f32 %v7928, 0.0
    %v8412 = vmax.f32 %v7930, 0.0
    %v8413 = vmax.f32 %v7933, 0.0
    %v8414 = vmax.f32 %v7935, 0.0
    %v8415 = vmax.f32 %v7938, 0.0
    %v8416 = vmax.f32 %v7940, 0.0
    %v8417 = vmax.f32 %v7943, 0.0
    %v8418 = vmax.f32 %v7945, 0.0
    %v8419 = vmax.f32 %v7948, 0.0
    %v8420 = vmax.f32 %v7950, 0.0
    %v8421 = vmax.f32 %v7953, 0.0
    %v8422 = vmax.f32 %v7955, 0.0
    %v8423 = vmax.f32 %v7958, 0.0
    %v8424 = vmax.f32 %v7960, 0.0
    %v8425 = vmax.f32 %v7963, 0.0
    %v8426 = vmax.f32 %v7965, 0.0
    %v8427 = vmax.f32 %v7968, 0.0
    %v8428 = vmax.f32 %v7970, 0.0
    %v8429 = vmax.f32 %v7973, 0.0
    %v8430 = vmax.f32 %v7975, 0.0
    %v8431 = vmax.f32 %v7978, 0.0
    %v8432 = vmax.f32 %v7980, 0.0
    %v8433 = vmax.f32 %v7983, 0.0
    %v8434 = vmax.f32 %v7985, 0.0
    %v8435 = vmax.f32 %v7988, 0.0
    %v8436 = vmax.f32 %v7990, 0.0
    %v8437 = vmax.f32 %v7993, 0.0
    %v8438 = vmax.f32 %v7995, 0.0
    %v8439 = vmax.f32 %v7998, 0.0
    %v8440 = vmax.f32 %v8000, 0.0
    %v8441 = vmax.f32 %v8003, 0.0
    %v8442 = vmax.f32 %v8005, 0.0
    %v8443 = vmax.f32 %v8008, 0.0
    %v8444 = vmax.f32 %v8010, 0.0
    %v8445 = vmax.f32 %v8013, 0.0
    %v8446 = vmax.f32 %v8015, 0.0
    %v8447 = vmax.f32 %v8018, 0.0
    %v8448 = vmax.f32 %v8020, 0.0
    %v8449 = vmax.f32 %v8023, 0.0
    %v8450 = vmax.f32 %v8025, 0.0
    %v8451 = vmax.f32 %v8028, 0.0
    %v8452 = vmax.f32 %v8030, 0.0
    %v8453 = vmax.f32 %v8033, 0.0
    %v8454 = vmax.f32 %v8035, 0.0
    %v8455 = vmax.f32 %v8038, 0.0
    %v8456 = vmax.f32 %v8040, 0.0
    %v8457 = vmax.f32 %v8043, 0.0
    %v8458 = vmax.f32 %v8045, 0.0
    %v8459 = vmax.f32 %v8048, 0.0
    %v8460 = vmax.f32 %v8050, 0.0
    %v8461 = vmax.f32 %v8053, 0.0
    %v8462 = vmax.f32 %v8055, 0.0
    %v8463 = vmax.f32 %v8058, 0.0
    %v8464 = vmax.f32 %v8060, 0.0
    %v8465 = vmax.f32 %v8063, 0.0
    %v8466 = vmax.f32 %v8065, 0.0
    %v8467 = vmax.f32 %v8068, 0.0
    %v8468 = vmax.f32 %v8070, 0.0
    %v8469 = vmax.f32 %v8073, 0.0
    %v8470 = vmax.f32 %v8075, 0.0
    %v8471 = vmax.f32 %v8078, 0.0
    %v8472 = vmax.f32 %v8080, 0.0
    %v8473 = vmax.f32 %v8083, 0.0
    %v8474 = vmax.f32 %v8085, 0.0
    %v8475 = vmax.f32 %v8088, 0.0
    %v8476 = vmax.f32 %v8090, 0.0
    %v8477 = vmax.f32 %v8093, 0.0
    %v8478 = vmax.f32 %v8095, 0.0
    %v8479 = vmax.f32 %v8098, 0.0
    %v8480 = vmax.f32 %v8100, 0.0
    %v8481 = vmax.f32 %v8103, 0.0
    %v8482 = vmax.f32 %v8105, 0.0
    %v8483 = vmax.f32 %v8108, 0.0
    %v8484 = vmax.f32 %v8110, 0.0
    %v8485 = vmax.f32 %v8113, 0.0
    %v8486 = vmax.f32 %v8115, 0.0
    %v8487 = vmax.f32 %v8118, 0.0
    %v8488 = vmax.f32 %v8120, 0.0
    %v8489 = vmax.f32 %v8123, 0.0
    %v8490 = vmax.f32 %v8125, 0.0
    %v8491 = vmax.f32 %v8128, 0.0
    %v8492 = vmax.f32 %v8130, 0.0
    %v8493 = vmax.f32 %v8133, 0.0
    %v8494 = vmax.f32 %v8135, 0.0
    %v8495 = vmax.f32 %v8138, 0.0
    %v8496 = vmax.f32 %v8140, 0.0
    %v8497 = vmax.f32 %v8143, 0.0
    %v8498 = vmax.f32 %v8145, 0.0
    %v8499 = vmax.f32 %v8148, 0.0
    %v8500 = vmax.f32 %v8150, 0.0
    %v8501 = vmax.f32 %v8153, 0.0
    %v8502 = vmax.f32 %v8155, 0.0
    %v8503 = vmax.f32 %v8158, 0.0
    %v8504 = vmax.f32 %v8160, 0.0
    %v8505 = vmax.f32 %v8163, 0.0
    %v8506 = vmax.f32 %v8165, 0.0
    %v8507 = vmax.f32 %v8168, 0.0
    %v8508 = vmax.f32 %v8170, 0.0
    %v8509 = vmax.f32 %v8173, 0.0
    %v8510 = vmax.f32 %v8175, 0.0
    %v8511 = vmax.f32 %v8178, 0.0
    %v8512 = vmax.f32 %v8180, 0.0
    %v8513 = vmax.f32 %v8183, 0.0
    %v8514 = vmax.f32 %v8185, 0.0
    %v8515 = vmax.f32 %v8188, 0.0
    %v8516 = vmax.f32 %v8190, 0.0
    %v8517 = vmax.f32 %v8193, 0.0
    %v8518 = vmax.f32 %v8195, 0.0
    %v8519 = vmax.f32 %v8198, 0.0
    %v8520 = vmax.f32 %v8200, 0.0
    %v8521 = vmax.f32 %v8203, 0.0
    %v8522 = vmax.f32 %v8205, 0.0
    %v8523 = vmax.f32 %v8208, 0.0
    %v8524 = vmax.f32 %v8210, 0.0
    %v8525 = vmax.f32 %v8213, 0.0
    %v8526 = vmax.f32 %v8215, 0.0
    %v8527 = vmax.f32 %v8218, 0.0
    %v8528 = vmax.f32 %v8220, 0.0
    %v8529 = vmax.f32 %v8223, 0.0
    %v8530 = vmax.f32 %v8225, 0.0
    %v8531 = vmax.f32 %v8228, 0.0
    %v8532 = vmax.f32 %v8230, 0.0
    %v8533 = vmax.f32 %v8233, 0.0
    %v8534 = vmax.f32 %v8235, 0.0
    %v8535 = vmax.f32 %v8238, 0.0
    %v8536 = vmax.f32 %v8240, 0.0
    %v8537 = vmax.f32 %v8243, 0.0
    %v8538 = vmax.f32 %v8245, 0.0
    %v8539 = vmax.f32 %v8248, 0.0
    %v8540 = vmax.f32 %v8250, 0.0
    %v8541 = vmax.f32 %v8253, 0.0
    %v8542 = vmax.f32 %v8255, 0.0
    %v8543 = vmax.f32 %v8258, 0.0
    %v8544 = vmax.f32 %v8260, 0.0
    %v8545 = vmax.f32 %v8263, 0.0
    %v8546 = vmax.f32 %v8265, 0.0
    %v8547 = vmax.f32 %v8268, 0.0
    %v8548 = vmax.f32 %v8270, 0.0
    %v8549 = vmax.f32 %v8273, 0.0
    %v8550 = vmax.f32 %v8275, 0.0
    %v8551 = vmax.f32 %v8278, 0.0
    %v8552 = vmax.f32 %v8280, 0.0
    %v8553 = vmax.f32 %v8283, 0.0
    %v8554 = vmax.f32 %v8285, 0.0
    %v8555 = vmax.f32 %v8288, 0.0
    %v8556 = vmax.f32 %v8290, 0.0
    %v8557 = vmax.f32 %v8293, 0.0
    %v8558 = vmax.f32 %v8295, 0.0
    %v8559 = vmax.f32 %v8298, 0.0
    %v8560 = vmax.f32 %v8300, 0.0
    %v8561 = vmax.f32 %v8303, 0.0
    %v8562 = vmax.f32 %v8305, 0.0
    %v8563 = vpack.c.bf16 %v8308, %v8307
    %v8564 = vpack.c.bf16 %v8310, %v8309
    %v8565 = vpack.c.bf16 %v8312, %v8311
    %v8566 = vpack.c.bf16 %v8314, %v8313
    %v8567 = vpack.c.bf16 %v8316, %v8315
    %v8568 = vpack.c.bf16 %v8318, %v8317
    %v8569 = vpack.c.bf16 %v8320, %v8319
    %v8570 = vpack.c.bf16 %v8322, %v8321
    %v8571 = vpack.c.bf16 %v8324, %v8323
    %v8572 = vpack.c.bf16 %v8326, %v8325
    %v8573 = vpack.c.bf16 %v8328, %v8327
    %v8574 = vpack.c.bf16 %v8330, %v8329
    %v8575 = vpack.c.bf16 %v8332, %v8331
    %v8576 = vpack.c.bf16 %v8334, %v8333
    %v8577 = vpack.c.bf16 %v8336, %v8335
    %v8578 = vpack.c.bf16 %v8338, %v8337
    %v8579 = vpack.c.bf16 %v8340, %v8339
    %v8580 = vpack.c.bf16 %v8342, %v8341
    %v8581 = vpack.c.bf16 %v8344, %v8343
    %v8582 = vpack.c.bf16 %v8346, %v8345
    %v8583 = vpack.c.bf16 %v8348, %v8347
    %v8584 = vpack.c.bf16 %v8350, %v8349
    %v8585 = vpack.c.bf16 %v8352, %v8351
    %v8586 = vpack.c.bf16 %v8354, %v8353
    %v8587 = vpack.c.bf16 %v8356, %v8355
    %v8588 = vpack.c.bf16 %v8358, %v8357
    %v8589 = vpack.c.bf16 %v8360, %v8359
    %v8590 = vpack.c.bf16 %v8362, %v8361
    %v8591 = vpack.c.bf16 %v8364, %v8363
    %v8592 = vpack.c.bf16 %v8366, %v8365
    %v8593 = vpack.c.bf16 %v8368, %v8367
    %v8594 = vpack.c.bf16 %v8370, %v8369
    %v8595 = vpack.c.bf16 %v8372, %v8371
    %v8596 = vpack.c.bf16 %v8374, %v8373
    %v8597 = vpack.c.bf16 %v8376, %v8375
    %v8598 = vpack.c.bf16 %v8378, %v8377
    %v8599 = vpack.c.bf16 %v8380, %v8379
    %v8600 = vpack.c.bf16 %v8382, %v8381
    %v8601 = vpack.c.bf16 %v8384, %v8383
    %v8602 = vpack.c.bf16 %v8386, %v8385
    %v8603 = vpack.c.bf16 %v8388, %v8387
    %v8604 = vpack.c.bf16 %v8390, %v8389
    %v8605 = vpack.c.bf16 %v8392, %v8391
    %v8606 = vpack.c.bf16 %v8394, %v8393
    %v8607 = vpack.c.bf16 %v8396, %v8395
    %v8608 = vpack.c.bf16 %v8398, %v8397
    %v8609 = vpack.c.bf16 %v8400, %v8399
    %v8610 = vpack.c.bf16 %v8402, %v8401
    %v8611 = vpack.c.bf16 %v8404, %v8403
    %v8612 = vpack.c.bf16 %v8406, %v8405
    %v8613 = vpack.c.bf16 %v8408, %v8407
    %v8614 = vpack.c.bf16 %v8410, %v8409
    %v8615 = vpack.c.bf16 %v8412, %v8411
    %v8616 = vpack.c.bf16 %v8414, %v8413
    %v8617 = vpack.c.bf16 %v8416, %v8415
    %v8618 = vpack.c.bf16 %v8418, %v8417
    %v8619 = vpack.c.bf16 %v8420, %v8419
    %v8620 = vpack.c.bf16 %v8422, %v8421
    %v8621 = vpack.c.bf16 %v8424, %v8423
    %v8622 = vpack.c.bf16 %v8426, %v8425
    %v8623 = vpack.c.bf16 %v8428, %v8427
    %v8624 = vpack.c.bf16 %v8430, %v8429
    %v8625 = vpack.c.bf16 %v8432, %v8431
    %v8626 = vpack.c.bf16 %v8434, %v8433
    %v8627 = vpack.c.bf16 %v8436, %v8435
    %v8628 = vpack.c.bf16 %v8438, %v8437
    %v8629 = vpack.c.bf16 %v8440, %v8439
    %v8630 = vpack.c.bf16 %v8442, %v8441
    %v8631 = vpack.c.bf16 %v8444, %v8443
    %v8632 = vpack.c.bf16 %v8446, %v8445
    %v8633 = vpack.c.bf16 %v8448, %v8447
    %v8634 = vpack.c.bf16 %v8450, %v8449
    %v8635 = vpack.c.bf16 %v8452, %v8451
    %v8636 = vpack.c.bf16 %v8454, %v8453
    %v8637 = vpack.c.bf16 %v8456, %v8455
    %v8638 = vpack.c.bf16 %v8458, %v8457
    %v8639 = vpack.c.bf16 %v8460, %v8459
    %v8640 = vpack.c.bf16 %v8462, %v8461
    %v8641 = vpack.c.bf16 %v8464, %v8463
    %v8642 = vpack.c.bf16 %v8466, %v8465
    %v8643 = vpack.c.bf16 %v8468, %v8467
    %v8644 = vpack.c.bf16 %v8470, %v8469
    %v8645 = vpack.c.bf16 %v8472, %v8471
    %v8646 = vpack.c.bf16 %v8474, %v8473
    %v8647 = vpack.c.bf16 %v8476, %v8475
    %v8648 = vpack.c.bf16 %v8478, %v8477
    %v8649 = vpack.c.bf16 %v8480, %v8479
    %v8650 = vpack.c.bf16 %v8482, %v8481
    %v8651 = vpack.c.bf16 %v8484, %v8483
    %v8652 = vpack.c.bf16 %v8486, %v8485
    %v8653 = vpack.c.bf16 %v8488, %v8487
    %v8654 = vpack.c.bf16 %v8490, %v8489
    %v8655 = vpack.c.bf16 %v8492, %v8491
    %v8656 = vpack.c.bf16 %v8494, %v8493
    %v8657 = vpack.c.bf16 %v8496, %v8495
    %v8658 = vpack.c.bf16 %v8498, %v8497
    %v8659 = vpack.c.bf16 %v8500, %v8499
    %v8660 = vpack.c.bf16 %v8502, %v8501
    %v8661 = vpack.c.bf16 %v8504, %v8503
    %v8662 = vpack.c.bf16 %v8506, %v8505
    %v8663 = vpack.c.bf16 %v8508, %v8507
    %v8664 = vpack.c.bf16 %v8510, %v8509
    %v8665 = vpack.c.bf16 %v8512, %v8511
    %v8666 = vpack.c.bf16 %v8514, %v8513
    %v8667 = vpack.c.bf16 %v8516, %v8515
    %v8668 = vpack.c.bf16 %v8518, %v8517
    %v8669 = vpack.c.bf16 %v8520, %v8519
    %v8670 = vpack.c.bf16 %v8522, %v8521
    %v8671 = vpack.c.bf16 %v8524, %v8523
    %v8672 = vpack.c.bf16 %v8526, %v8525
    %v8673 = vpack.c.bf16 %v8528, %v8527
    %v8674 = vpack.c.bf16 %v8530, %v8529
    %v8675 = vpack.c.bf16 %v8532, %v8531
    %v8676 = vpack.c.bf16 %v8534, %v8533
    %v8677 = vpack.c.bf16 %v8536, %v8535
    %v8678 = vpack.c.bf16 %v8538, %v8537
    %v8679 = vpack.c.bf16 %v8540, %v8539
    %v8680 = vpack.c.bf16 %v8542, %v8541
    %v8681 = vpack.c.bf16 %v8544, %v8543
    %v8682 = vpack.c.bf16 %v8546, %v8545
    %v8683 = vpack.c.bf16 %v8548, %v8547
    %v8684 = vpack.c.bf16 %v8550, %v8549
    %v8685 = vpack.c.bf16 %v8552, %v8551
    %v8686 = vpack.c.bf16 %v8554, %v8553
    %v8687 = vpack.c.bf16 %v8556, %v8555
    %v8688 = vpack.c.bf16 %v8558, %v8557
    %v8689 = vpack.c.bf16 %v8560, %v8559
    %v8690 = vpack.c.bf16 %v8562, %v8561
    %v8691 = vld [vmem:[%s11] sm:$0xf]
    %v8692 = vld [vmem:[%s11 + $0x4] sm:$0xf]
    %v8693 = vld [vmem:[%s11 + $0x8] sm:$0xf]
    %v8694 = vld [vmem:[%s11 + $0xc] sm:$0xf]
    %v8695 = vld [vmem:[%s12] sm:$0x1]
    %v8697 = vperm.slane %v8695, 0
    %v8703 = vunpack.c.l.b16 %v8691
    %v8704 = vunpack.c.l.b16 %v8692
    %v8705 = vunpack.c.l.b16 %v8693
    %v8706 = vunpack.c.l.b16 %v8694
    %v8707 = vpack.c.b16 %v8704, %v8703
    %v8708 = vpack.c.b16 %v8706, %v8705
    %v8712 = vsel %vm5100, %v8563, 0
    %v8715 = vsel %vm5100, %v8564, 0
    %v8718 = vsel %vm5100, %v8565, 0
    %v8721 = vsel %vm5100, %v8566, 0
    %v8724 = vsel %vm5100, %v8567, 0
    %v8727 = vsel %vm5100, %v8568, 0
    %v8730 = vsel %vm5100, %v8569, 0
    %v8733 = vsel %vm5100, %v8570, 0
    %v8736 = vsel %vm5100, %v8571, 0
    %v8739 = vsel %vm5100, %v8572, 0
    %v8742 = vsel %vm5100, %v8573, 0
    %v8745 = vsel %vm5100, %v8574, 0
    %v8748 = vsel %vm5100, %v8575, 0
    %v8751 = vsel %vm5100, %v8576, 0
    %v8754 = vsel %vm5100, %v8577, 0
    %v8757 = vsel %vm5100, %v8578, 0
    %v8760 = vsel %vm5100, %v8579, 0
    %v8763 = vsel %vm5100, %v8580, 0
    %v8766 = vsel %vm5100, %v8581, 0
    %v8769 = vsel %vm5100, %v8582, 0
    %v8772 = vsel %vm5100, %v8583, 0
    %v8775 = vsel %vm5100, %v8584, 0
    %v8778 = vsel %vm5100, %v8585, 0
    %v8781 = vsel %vm5100, %v8586, 0
    %v8784 = vsel %vm5100, %v8587, 0
    %v8787 = vsel %vm5100, %v8588, 0
    %v8790 = vsel %vm5100, %v8589, 0
    %v8793 = vsel %vm5100, %v8590, 0
    %v8796 = vsel %vm5100, %v8591, 0
    %v8799 = vsel %vm5100, %v8592, 0
    %v8802 = vsel %vm5100, %v8593, 0
    %v8805 = vsel %vm5100, %v8594, 0
    %v8808 = vsel %vm5100, %v8595, 0
    %v8811 = vsel %vm5100, %v8596, 0
    %v8814 = vsel %vm5100, %v8597, 0
    %v8817 = vsel %vm5100, %v8598, 0
    %v8820 = vsel %vm5100, %v8599, 0
    %v8823 = vsel %vm5100, %v8600, 0
    %v8826 = vsel %vm5100, %v8601, 0
    %v8829 = vsel %vm5100, %v8602, 0
    %v8832 = vsel %vm5100, %v8603, 0
    %v8835 = vsel %vm5100, %v8604, 0
    %v8838 = vsel %vm5100, %v8605, 0
    %v8841 = vsel %vm5100, %v8606, 0
    %v8844 = vsel %vm5100, %v8607, 0
    %v8847 = vsel %vm5100, %v8608, 0
    %v8850 = vsel %vm5100, %v8609, 0
    %v8853 = vsel %vm5100, %v8610, 0
    %v8856 = vsel %vm5100, %v8611, 0
    %v8859 = vsel %vm5100, %v8612, 0
    %v8862 = vsel %vm5100, %v8613, 0
    %v8865 = vsel %vm5100, %v8614, 0
    %v8868 = vsel %vm5100, %v8615, 0
    %v8871 = vsel %vm5100, %v8616, 0
    %v8874 = vsel %vm5100, %v8617, 0
    %v8877 = vsel %vm5100, %v8618, 0
    %v8880 = vsel %vm5100, %v8619, 0
    %v8883 = vsel %vm5100, %v8620, 0
    %v8886 = vsel %vm5100, %v8621, 0
    %v8889 = vsel %vm5100, %v8622, 0
    %v8892 = vsel %vm5100, %v8623, 0
    %v8895 = vsel %vm5100, %v8624, 0
    %v8898 = vsel %vm5100, %v8625, 0
    %v8901 = vsel %vm5100, %v8626, 0
    %v8904 = vsel %vm5100, %v8627, 0
    %v8907 = vsel %vm5100, %v8628, 0
    %v8910 = vsel %vm5100, %v8629, 0
    %v8913 = vsel %vm5100, %v8630, 0
    %v8916 = vsel %vm5100, %v8631, 0
    %v8919 = vsel %vm5100, %v8632, 0
    %v8922 = vsel %vm5100, %v8633, 0
    %v8925 = vsel %vm5100, %v8634, 0
    %v8928 = vsel %vm5100, %v8635, 0
    %v8931 = vsel %vm5100, %v8636, 0
    %v8934 = vsel %vm5100, %v8637, 0
    %v8937 = vsel %vm5100, %v8638, 0
    %v8940 = vsel %vm5100, %v8639, 0
    %v8943 = vsel %vm5100, %v8640, 0
    %v8946 = vsel %vm5100, %v8641, 0
    %v8949 = vsel %vm5100, %v8642, 0
    %v8952 = vsel %vm5100, %v8643, 0
    %v8955 = vsel %vm5100, %v8644, 0
    %v8958 = vsel %vm5100, %v8645, 0
    %v8961 = vsel %vm5100, %v8646, 0
    %v8964 = vsel %vm5100, %v8647, 0
    %v8967 = vsel %vm5100, %v8648, 0
    %v8970 = vsel %vm5100, %v8649, 0
    %v8973 = vsel %vm5100, %v8650, 0
    %v8976 = vsel %vm5100, %v8651, 0
    %v8979 = vsel %vm5100, %v8652, 0
    %v8982 = vsel %vm5100, %v8653, 0
    %v8985 = vsel %vm5100, %v8654, 0
    %v8988 = vsel %vm5100, %v8655, 0
    %v8991 = vsel %vm5100, %v8656, 0
    %v8994 = vsel %vm5100, %v8657, 0
    %v8997 = vsel %vm5100, %v8658, 0
    %v9000 = vsel %vm5100, %v8659, 0
    %v9003 = vsel %vm5100, %v8660, 0
    %v9006 = vsel %vm5100, %v8661, 0
    %v9009 = vsel %vm5100, %v8662, 0
    %v9012 = vsel %vm5100, %v8663, 0
    %v9015 = vsel %vm5100, %v8664, 0
    %v9018 = vsel %vm5100, %v8665, 0
    %v9021 = vsel %vm5100, %v8666, 0
    %v9024 = vsel %vm5100, %v8667, 0
    %v9027 = vsel %vm5100, %v8668, 0
    %v9030 = vsel %vm5100, %v8669, 0
    %v9033 = vsel %vm5100, %v8670, 0
    %v9036 = vsel %vm5100, %v8671, 0
    %v9039 = vsel %vm5100, %v8672, 0
    %v9042 = vsel %vm5100, %v8673, 0
    %v9045 = vsel %vm5100, %v8674, 0
    %v9048 = vsel %vm5100, %v8675, 0
    %v9051 = vsel %vm5100, %v8676, 0
    %v9054 = vsel %vm5100, %v8677, 0
    %v9057 = vsel %vm5100, %v8678, 0
    %v9060 = vsel %vm5100, %v8679, 0
    %v9063 = vsel %vm5100, %v8680, 0
    %v9066 = vsel %vm5100, %v8681, 0
    %v9069 = vsel %vm5100, %v8682, 0
    %v9072 = vsel %vm5100, %v8683, 0
    %v9075 = vsel %vm5100, %v8684, 0
    %v9078 = vsel %vm5100, %v8685, 0
    %v9081 = vsel %vm5100, %v8686, 0
    %v9084 = vsel %vm5100, %v8687, 0
    %v9087 = vsel %vm5100, %v8688, 0
    %v9090 = vsel %vm5100, %v8689, 0
    %v9093 = vsel %vm5100, %v8690, 0
    %9095 = vmatpush.bf16.msra.mxu0 0
    %9096 = vmatpush.bf16.msra.mxu0 0
    %9097 = vmatpush.bf16.msra.mxu0 0
    %9098 = vmatpush.bf16.msra.mxu0 0
    %9099 = vmatpush.bf16.msra.mxu0 0
    %9100 = vmatpush.bf16.msra.mxu0 0
    %9101 = vmatpush.bf16.msra.mxu0 %v8708
    %9102 = vmatpush.bf16.msra.mxu0 %v8707
    %9103 = vmatmul.bf16.gmra.mxu0 %v8712
    %v9104 = vpop.f32.mrf.mxu0
    %v9105 = vadd.f32 %v8697, %v9104
    %v9106 = vpop.f32.mrf.mxu0
    %v9107 = vadd.f32 %v8697, %v9106
    %9108 = vmatmul.bf16.gmra.mxu0 %v8715
    %v9109 = vpop.f32.mrf.mxu0
    %v9110 = vadd.f32 %v8697, %v9109
    %v9111 = vpop.f32.mrf.mxu0
    %v9112 = vadd.f32 %v8697, %v9111
    %9113 = vmatmul.bf16.gmra.mxu0 %v8718
    %v9114 = vpop.f32.mrf.mxu0
    %v9115 = vadd.f32 %v8697, %v9114
    %v9116 = vpop.f32.mrf.mxu0
    %v9117 = vadd.f32 %v8697, %v9116
    %9118 = vmatmul.bf16.gmra.mxu0 %v8721
    %v9119 = vpop.f32.mrf.mxu0
    %v9120 = vadd.f32 %v8697, %v9119
    %v9121 = vpop.f32.mrf.mxu0
    %v9122 = vadd.f32 %v8697, %v9121
    %9123 = vmatmul.bf16.gmra.mxu0 %v8724
    %v9124 = vpop.f32.mrf.mxu0
    %v9125 = vadd.f32 %v8697, %v9124
    %v9126 = vpop.f32.mrf.mxu0
    %v9127 = vadd.f32 %v8697, %v9126
    %9128 = vmatmul.bf16.gmra.mxu0 %v8727
    %v9129 = vpop.f32.mrf.mxu0
    %v9130 = vadd.f32 %v8697, %v9129
    %v9131 = vpop.f32.mrf.mxu0
    %v9132 = vadd.f32 %v8697, %v9131
    %9133 = vmatmul.bf16.gmra.mxu0 %v8730
    %v9134 = vpop.f32.mrf.mxu0
    %v9135 = vadd.f32 %v8697, %v9134
    %v9136 = vpop.f32.mrf.mxu0
    %v9137 = vadd.f32 %v8697, %v9136
    %9138 = vmatmul.bf16.gmra.mxu0 %v8733
    %v9139 = vpop.f32.mrf.mxu0
    %v9140 = vadd.f32 %v8697, %v9139
    %v9141 = vpop.f32.mrf.mxu0
    %v9142 = vadd.f32 %v8697, %v9141
    %9143 = vmatmul.bf16.gmra.mxu0 %v8736
    %v9144 = vpop.f32.mrf.mxu0
    %v9145 = vadd.f32 %v8697, %v9144
    %v9146 = vpop.f32.mrf.mxu0
    %v9147 = vadd.f32 %v8697, %v9146
    %9148 = vmatmul.bf16.gmra.mxu0 %v8739
    %v9149 = vpop.f32.mrf.mxu0
    %v9150 = vadd.f32 %v8697, %v9149
    %v9151 = vpop.f32.mrf.mxu0
    %v9152 = vadd.f32 %v8697, %v9151
    %9153 = vmatmul.bf16.gmra.mxu0 %v8742
    %v9154 = vpop.f32.mrf.mxu0
    %v9155 = vadd.f32 %v8697, %v9154
    %v9156 = vpop.f32.mrf.mxu0
    %v9157 = vadd.f32 %v8697, %v9156
    %9158 = vmatmul.bf16.gmra.mxu0 %v8745
    %v9159 = vpop.f32.mrf.mxu0
    %v9160 = vadd.f32 %v8697, %v9159
    %v9161 = vpop.f32.mrf.mxu0
    %v9162 = vadd.f32 %v8697, %v9161
    %9163 = vmatmul.bf16.gmra.mxu0 %v8748
    %v9164 = vpop.f32.mrf.mxu0
    %v9165 = vadd.f32 %v8697, %v9164
    %v9166 = vpop.f32.mrf.mxu0
    %v9167 = vadd.f32 %v8697, %v9166
    %9168 = vmatmul.bf16.gmra.mxu0 %v8751
    %v9169 = vpop.f32.mrf.mxu0
    %v9170 = vadd.f32 %v8697, %v9169
    %v9171 = vpop.f32.mrf.mxu0
    %v9172 = vadd.f32 %v8697, %v9171
    %9173 = vmatmul.bf16.gmra.mxu0 %v8754
    %v9174 = vpop.f32.mrf.mxu0
    %v9175 = vadd.f32 %v8697, %v9174
    %v9176 = vpop.f32.mrf.mxu0
    %v9177 = vadd.f32 %v8697, %v9176
    %9178 = vmatmul.bf16.gmra.mxu0 %v8757
    %v9179 = vpop.f32.mrf.mxu0
    %v9180 = vadd.f32 %v8697, %v9179
    %v9181 = vpop.f32.mrf.mxu0
    %v9182 = vadd.f32 %v8697, %v9181
    %9183 = vmatmul.bf16.gmra.mxu0 %v8760
    %v9184 = vpop.f32.mrf.mxu0
    %v9185 = vadd.f32 %v8697, %v9184
    %v9186 = vpop.f32.mrf.mxu0
    %v9187 = vadd.f32 %v8697, %v9186
    %9188 = vmatmul.bf16.gmra.mxu0 %v8763
    %v9189 = vpop.f32.mrf.mxu0
    %v9190 = vadd.f32 %v8697, %v9189
    %v9191 = vpop.f32.mrf.mxu0
    %v9192 = vadd.f32 %v8697, %v9191
    %9193 = vmatmul.bf16.gmra.mxu0 %v8766
    %v9194 = vpop.f32.mrf.mxu0
    %v9195 = vadd.f32 %v8697, %v9194
    %v9196 = vpop.f32.mrf.mxu0
    %v9197 = vadd.f32 %v8697, %v9196
    %9198 = vmatmul.bf16.gmra.mxu0 %v8769
    %v9199 = vpop.f32.mrf.mxu0
    %v9200 = vadd.f32 %v8697, %v9199
    %v9201 = vpop.f32.mrf.mxu0
    %v9202 = vadd.f32 %v8697, %v9201
    %9203 = vmatmul.bf16.gmra.mxu0 %v8772
    %v9204 = vpop.f32.mrf.mxu0
    %v9205 = vadd.f32 %v8697, %v9204
    %v9206 = vpop.f32.mrf.mxu0
    %v9207 = vadd.f32 %v8697, %v9206
    %9208 = vmatmul.bf16.gmra.mxu0 %v8775
    %v9209 = vpop.f32.mrf.mxu0
    %v9210 = vadd.f32 %v8697, %v9209
    %v9211 = vpop.f32.mrf.mxu0
    %v9212 = vadd.f32 %v8697, %v9211
    %9213 = vmatmul.bf16.gmra.mxu0 %v8778
    %v9214 = vpop.f32.mrf.mxu0
    %v9215 = vadd.f32 %v8697, %v9214
    %v9216 = vpop.f32.mrf.mxu0
    %v9217 = vadd.f32 %v8697, %v9216
    %9218 = vmatmul.bf16.gmra.mxu0 %v8781
    %v9219 = vpop.f32.mrf.mxu0
    %v9220 = vadd.f32 %v8697, %v9219
    %v9221 = vpop.f32.mrf.mxu0
    %v9222 = vadd.f32 %v8697, %v9221
    %9223 = vmatmul.bf16.gmra.mxu0 %v8784
    %v9224 = vpop.f32.mrf.mxu0
    %v9225 = vadd.f32 %v8697, %v9224
    %v9226 = vpop.f32.mrf.mxu0
    %v9227 = vadd.f32 %v8697, %v9226
    %9228 = vmatmul.bf16.gmra.mxu0 %v8787
    %v9229 = vpop.f32.mrf.mxu0
    %v9230 = vadd.f32 %v8697, %v9229
    %v9231 = vpop.f32.mrf.mxu0
    %v9232 = vadd.f32 %v8697, %v9231
    %9233 = vmatmul.bf16.gmra.mxu0 %v8790
    %v9234 = vpop.f32.mrf.mxu0
    %v9235 = vadd.f32 %v8697, %v9234
    %v9236 = vpop.f32.mrf.mxu0
    %v9237 = vadd.f32 %v8697, %v9236
    %9238 = vmatmul.bf16.gmra.mxu0 %v8793
    %v9239 = vpop.f32.mrf.mxu0
    %v9240 = vadd.f32 %v8697, %v9239
    %v9241 = vpop.f32.mrf.mxu0
    %v9242 = vadd.f32 %v8697, %v9241
    %9243 = vmatmul.bf16.gmra.mxu0 %v8796
    %v9244 = vpop.f32.mrf.mxu0
    %v9245 = vadd.f32 %v8697, %v9244
    %v9246 = vpop.f32.mrf.mxu0
    %v9247 = vadd.f32 %v8697, %v9246
    %9248 = vmatmul.bf16.gmra.mxu0 %v8799
    %v9249 = vpop.f32.mrf.mxu0
    %v9250 = vadd.f32 %v8697, %v9249
    %v9251 = vpop.f32.mrf.mxu0
    %v9252 = vadd.f32 %v8697, %v9251
    %9253 = vmatmul.bf16.gmra.mxu0 %v8802
    %v9254 = vpop.f32.mrf.mxu0
    %v9255 = vadd.f32 %v8697, %v9254
    %v9256 = vpop.f32.mrf.mxu0
    %v9257 = vadd.f32 %v8697, %v9256
    %9258 = vmatmul.bf16.gmra.mxu0 %v8805
    %v9259 = vpop.f32.mrf.mxu0
    %v9260 = vadd.f32 %v8697, %v9259
    %v9261 = vpop.f32.mrf.mxu0
    %v9262 = vadd.f32 %v8697, %v9261
    %9263 = vmatmul.bf16.gmra.mxu0 %v8808
    %v9264 = vpop.f32.mrf.mxu0
    %v9265 = vadd.f32 %v8697, %v9264
    %v9266 = vpop.f32.mrf.mxu0
    %v9267 = vadd.f32 %v8697, %v9266
    %9268 = vmatmul.bf16.gmra.mxu0 %v8811
    %v9269 = vpop.f32.mrf.mxu0
    %v9270 = vadd.f32 %v8697, %v9269
    %v9271 = vpop.f32.mrf.mxu0
    %v9272 = vadd.f32 %v8697, %v9271
    %9273 = vmatmul.bf16.gmra.mxu0 %v8814
    %v9274 = vpop.f32.mrf.mxu0
    %v9275 = vadd.f32 %v8697, %v9274
    %v9276 = vpop.f32.mrf.mxu0
    %v9277 = vadd.f32 %v8697, %v9276
    %9278 = vmatmul.bf16.gmra.mxu0 %v8817
    %v9279 = vpop.f32.mrf.mxu0
    %v9280 = vadd.f32 %v8697, %v9279
    %v9281 = vpop.f32.mrf.mxu0
    %v9282 = vadd.f32 %v8697, %v9281
    %9283 = vmatmul.bf16.gmra.mxu0 %v8820
    %v9284 = vpop.f32.mrf.mxu0
    %v9285 = vadd.f32 %v8697, %v9284
    %v9286 = vpop.f32.mrf.mxu0
    %v9287 = vadd.f32 %v8697, %v9286
    %9288 = vmatmul.bf16.gmra.mxu0 %v8823
    %v9289 = vpop.f32.mrf.mxu0
    %v9290 = vadd.f32 %v8697, %v9289
    %v9291 = vpop.f32.mrf.mxu0
    %v9292 = vadd.f32 %v8697, %v9291
    %9293 = vmatmul.bf16.gmra.mxu0 %v8826
    %v9294 = vpop.f32.mrf.mxu0
    %v9295 = vadd.f32 %v8697, %v9294
    %v9296 = vpop.f32.mrf.mxu0
    %v9297 = vadd.f32 %v8697, %v9296
    %9298 = vmatmul.bf16.gmra.mxu0 %v8829
    %v9299 = vpop.f32.mrf.mxu0
    %v9300 = vadd.f32 %v8697, %v9299
    %v9301 = vpop.f32.mrf.mxu0
    %v9302 = vadd.f32 %v8697, %v9301
    %9303 = vmatmul.bf16.gmra.mxu0 %v8832
    %v9304 = vpop.f32.mrf.mxu0
    %v9305 = vadd.f32 %v8697, %v9304
    %v9306 = vpop.f32.mrf.mxu0
    %v9307 = vadd.f32 %v8697, %v9306
    %9308 = vmatmul.bf16.gmra.mxu0 %v8835
    %v9309 = vpop.f32.mrf.mxu0
    %v9310 = vadd.f32 %v8697, %v9309
    %v9311 = vpop.f32.mrf.mxu0
    %v9312 = vadd.f32 %v8697, %v9311
    %9313 = vmatmul.bf16.gmra.mxu0 %v8838
    %v9314 = vpop.f32.mrf.mxu0
    %v9315 = vadd.f32 %v8697, %v9314
    %v9316 = vpop.f32.mrf.mxu0
    %v9317 = vadd.f32 %v8697, %v9316
    %9318 = vmatmul.bf16.gmra.mxu0 %v8841
    %v9319 = vpop.f32.mrf.mxu0
    %v9320 = vadd.f32 %v8697, %v9319
    %v9321 = vpop.f32.mrf.mxu0
    %v9322 = vadd.f32 %v8697, %v9321
    %9323 = vmatmul.bf16.gmra.mxu0 %v8844
    %v9324 = vpop.f32.mrf.mxu0
    %v9325 = vadd.f32 %v8697, %v9324
    %v9326 = vpop.f32.mrf.mxu0
    %v9327 = vadd.f32 %v8697, %v9326
    %9328 = vmatmul.bf16.gmra.mxu0 %v8847
    %v9329 = vpop.f32.mrf.mxu0
    %v9330 = vadd.f32 %v8697, %v9329
    %v9331 = vpop.f32.mrf.mxu0
    %v9332 = vadd.f32 %v8697, %v9331
    %9333 = vmatmul.bf16.gmra.mxu0 %v8850
    %v9334 = vpop.f32.mrf.mxu0
    %v9335 = vadd.f32 %v8697, %v9334
    %v9336 = vpop.f32.mrf.mxu0
    %v9337 = vadd.f32 %v8697, %v9336
    %9338 = vmatmul.bf16.gmra.mxu0 %v8853
    %v9339 = vpop.f32.mrf.mxu0
    %v9340 = vadd.f32 %v8697, %v9339
    %v9341 = vpop.f32.mrf.mxu0
    %v9342 = vadd.f32 %v8697, %v9341
    %9343 = vmatmul.bf16.gmra.mxu0 %v8856
    %v9344 = vpop.f32.mrf.mxu0
    %v9345 = vadd.f32 %v8697, %v9344
    %v9346 = vpop.f32.mrf.mxu0
    %v9347 = vadd.f32 %v8697, %v9346
    %9348 = vmatmul.bf16.gmra.mxu0 %v8859
    %v9349 = vpop.f32.mrf.mxu0
    %v9350 = vadd.f32 %v8697, %v9349
    %v9351 = vpop.f32.mrf.mxu0
    %v9352 = vadd.f32 %v8697, %v9351
    %9353 = vmatmul.bf16.gmra.mxu0 %v8862
    %v9354 = vpop.f32.mrf.mxu0
    %v9355 = vadd.f32 %v8697, %v9354
    %v9356 = vpop.f32.mrf.mxu0
    %v9357 = vadd.f32 %v8697, %v9356
    %9358 = vmatmul.bf16.gmra.mxu0 %v8865
    %v9359 = vpop.f32.mrf.mxu0
    %v9360 = vadd.f32 %v8697, %v9359
    %v9361 = vpop.f32.mrf.mxu0
    %v9362 = vadd.f32 %v8697, %v9361
    %9363 = vmatmul.bf16.gmra.mxu0 %v8868
    %v9364 = vpop.f32.mrf.mxu0
    %v9365 = vadd.f32 %v8697, %v9364
    %v9366 = vpop.f32.mrf.mxu0
    %v9367 = vadd.f32 %v8697, %v9366
    %9368 = vmatmul.bf16.gmra.mxu0 %v8871
    %v9369 = vpop.f32.mrf.mxu0
    %v9370 = vadd.f32 %v8697, %v9369
    %v9371 = vpop.f32.mrf.mxu0
    %v9372 = vadd.f32 %v8697, %v9371
    %9373 = vmatmul.bf16.gmra.mxu0 %v8874
    %v9374 = vpop.f32.mrf.mxu0
    %v9375 = vadd.f32 %v8697, %v9374
    %v9376 = vpop.f32.mrf.mxu0
    %v9377 = vadd.f32 %v8697, %v9376
    %9378 = vmatmul.bf16.gmra.mxu0 %v8877
    %v9379 = vpop.f32.mrf.mxu0
    %v9380 = vadd.f32 %v8697, %v9379
    %v9381 = vpop.f32.mrf.mxu0
    %v9382 = vadd.f32 %v8697, %v9381
    %9383 = vmatmul.bf16.gmra.mxu0 %v8880
    %v9384 = vpop.f32.mrf.mxu0
    %v9385 = vadd.f32 %v8697, %v9384
    %v9386 = vpop.f32.mrf.mxu0
    %v9387 = vadd.f32 %v8697, %v9386
    %9388 = vmatmul.bf16.gmra.mxu0 %v8883
    %v9389 = vpop.f32.mrf.mxu0
    %v9390 = vadd.f32 %v8697, %v9389
    %v9391 = vpop.f32.mrf.mxu0
    %v9392 = vadd.f32 %v8697, %v9391
    %9393 = vmatmul.bf16.gmra.mxu0 %v8886
    %v9394 = vpop.f32.mrf.mxu0
    %v9395 = vadd.f32 %v8697, %v9394
    %v9396 = vpop.f32.mrf.mxu0
    %v9397 = vadd.f32 %v8697, %v9396
    %9398 = vmatmul.bf16.gmra.mxu0 %v8889
    %v9399 = vpop.f32.mrf.mxu0
    %v9400 = vadd.f32 %v8697, %v9399
    %v9401 = vpop.f32.mrf.mxu0
    %v9402 = vadd.f32 %v8697, %v9401
    %9403 = vmatmul.bf16.gmra.mxu0 %v8892
    %v9404 = vpop.f32.mrf.mxu0
    %v9405 = vadd.f32 %v8697, %v9404
    %v9406 = vpop.f32.mrf.mxu0
    %v9407 = vadd.f32 %v8697, %v9406
    %9408 = vmatmul.bf16.gmra.mxu0 %v8895
    %v9409 = vpop.f32.mrf.mxu0
    %v9410 = vadd.f32 %v8697, %v9409
    %v9411 = vpop.f32.mrf.mxu0
    %v9412 = vadd.f32 %v8697, %v9411
    %9413 = vmatmul.bf16.gmra.mxu0 %v8898
    %v9414 = vpop.f32.mrf.mxu0
    %v9415 = vadd.f32 %v8697, %v9414
    %v9416 = vpop.f32.mrf.mxu0
    %v9417 = vadd.f32 %v8697, %v9416
    %9418 = vmatmul.bf16.gmra.mxu0 %v8901
    %v9419 = vpop.f32.mrf.mxu0
    %v9420 = vadd.f32 %v8697, %v9419
    %v9421 = vpop.f32.mrf.mxu0
    %v9422 = vadd.f32 %v8697, %v9421
    %9423 = vmatmul.bf16.gmra.mxu0 %v8904
    %v9424 = vpop.f32.mrf.mxu0
    %v9425 = vadd.f32 %v8697, %v9424
    %v9426 = vpop.f32.mrf.mxu0
    %v9427 = vadd.f32 %v8697, %v9426
    %9428 = vmatmul.bf16.gmra.mxu0 %v8907
    %v9429 = vpop.f32.mrf.mxu0
    %v9430 = vadd.f32 %v8697, %v9429
    %v9431 = vpop.f32.mrf.mxu0
    %v9432 = vadd.f32 %v8697, %v9431
    %9433 = vmatmul.bf16.gmra.mxu0 %v8910
    %v9434 = vpop.f32.mrf.mxu0
    %v9435 = vadd.f32 %v8697, %v9434
    %v9436 = vpop.f32.mrf.mxu0
    %v9437 = vadd.f32 %v8697, %v9436
    %9438 = vmatmul.bf16.gmra.mxu0 %v8913
    %v9439 = vpop.f32.mrf.mxu0
    %v9440 = vadd.f32 %v8697, %v9439
    %v9441 = vpop.f32.mrf.mxu0
    %v9442 = vadd.f32 %v8697, %v9441
    %9443 = vmatmul.bf16.gmra.mxu0 %v8916
    %v9444 = vpop.f32.mrf.mxu0
    %v9445 = vadd.f32 %v8697, %v9444
    %v9446 = vpop.f32.mrf.mxu0
    %v9447 = vadd.f32 %v8697, %v9446
    %9448 = vmatmul.bf16.gmra.mxu0 %v8919
    %v9449 = vpop.f32.mrf.mxu0
    %v9450 = vadd.f32 %v8697, %v9449
    %v9451 = vpop.f32.mrf.mxu0
    %v9452 = vadd.f32 %v8697, %v9451
    %9453 = vmatmul.bf16.gmra.mxu0 %v8922
    %v9454 = vpop.f32.mrf.mxu0
    %v9455 = vadd.f32 %v8697, %v9454
    %v9456 = vpop.f32.mrf.mxu0
    %v9457 = vadd.f32 %v8697, %v9456
    %9458 = vmatmul.bf16.gmra.mxu0 %v8925
    %v9459 = vpop.f32.mrf.mxu0
    %v9460 = vadd.f32 %v8697, %v9459
    %v9461 = vpop.f32.mrf.mxu0
    %v9462 = vadd.f32 %v8697, %v9461
    %9463 = vmatmul.bf16.gmra.mxu0 %v8928
    %v9464 = vpop.f32.mrf.mxu0
    %v9465 = vadd.f32 %v8697, %v9464
    %v9466 = vpop.f32.mrf.mxu0
    %v9467 = vadd.f32 %v8697, %v9466
    %9468 = vmatmul.bf16.gmra.mxu0 %v8931
    %v9469 = vpop.f32.mrf.mxu0
    %v9470 = vadd.f32 %v8697, %v9469
    %v9471 = vpop.f32.mrf.mxu0
    %v9472 = vadd.f32 %v8697, %v9471
    %9473 = vmatmul.bf16.gmra.mxu0 %v8934
    %v9474 = vpop.f32.mrf.mxu0
    %v9475 = vadd.f32 %v8697, %v9474
    %v9476 = vpop.f32.mrf.mxu0
    %v9477 = vadd.f32 %v8697, %v9476
    %9478 = vmatmul.bf16.gmra.mxu0 %v8937
    %v9479 = vpop.f32.mrf.mxu0
    %v9480 = vadd.f32 %v8697, %v9479
    %v9481 = vpop.f32.mrf.mxu0
    %v9482 = vadd.f32 %v8697, %v9481
    %9483 = vmatmul.bf16.gmra.mxu0 %v8940
    %v9484 = vpop.f32.mrf.mxu0
    %v9485 = vadd.f32 %v8697, %v9484
    %v9486 = vpop.f32.mrf.mxu0
    %v9487 = vadd.f32 %v8697, %v9486
    %9488 = vmatmul.bf16.gmra.mxu0 %v8943
    %v9489 = vpop.f32.mrf.mxu0
    %v9490 = vadd.f32 %v8697, %v9489
    %v9491 = vpop.f32.mrf.mxu0
    %v9492 = vadd.f32 %v8697, %v9491
    %9493 = vmatmul.bf16.gmra.mxu0 %v8946
    %v9494 = vpop.f32.mrf.mxu0
    %v9495 = vadd.f32 %v8697, %v9494
    %v9496 = vpop.f32.mrf.mxu0
    %v9497 = vadd.f32 %v8697, %v9496
    %9498 = vmatmul.bf16.gmra.mxu0 %v8949
    %v9499 = vpop.f32.mrf.mxu0
    %v9500 = vadd.f32 %v8697, %v9499
    %v9501 = vpop.f32.mrf.mxu0
    %v9502 = vadd.f32 %v8697, %v9501
    %9503 = vmatmul.bf16.gmra.mxu0 %v8952
    %v9504 = vpop.f32.mrf.mxu0
    %v9505 = vadd.f32 %v8697, %v9504
    %v9506 = vpop.f32.mrf.mxu0
    %v9507 = vadd.f32 %v8697, %v9506
    %9508 = vmatmul.bf16.gmra.mxu0 %v8955
    %v9509 = vpop.f32.mrf.mxu0
    %v9510 = vadd.f32 %v8697, %v9509
    %v9511 = vpop.f32.mrf.mxu0
    %v9512 = vadd.f32 %v8697, %v9511
    %9513 = vmatmul.bf16.gmra.mxu0 %v8958
    %v9514 = vpop.f32.mrf.mxu0
    %v9515 = vadd.f32 %v8697, %v9514
    %v9516 = vpop.f32.mrf.mxu0
    %v9517 = vadd.f32 %v8697, %v9516
    %9518 = vmatmul.bf16.gmra.mxu0 %v8961
    %v9519 = vpop.f32.mrf.mxu0
    %v9520 = vadd.f32 %v8697, %v9519
    %v9521 = vpop.f32.mrf.mxu0
    %v9522 = vadd.f32 %v8697, %v9521
    %9523 = vmatmul.bf16.gmra.mxu0 %v8964
    %v9524 = vpop.f32.mrf.mxu0
    %v9525 = vadd.f32 %v8697, %v9524
    %v9526 = vpop.f32.mrf.mxu0
    %v9527 = vadd.f32 %v8697, %v9526
    %9528 = vmatmul.bf16.gmra.mxu0 %v8967
    %v9529 = vpop.f32.mrf.mxu0
    %v9530 = vadd.f32 %v8697, %v9529
    %v9531 = vpop.f32.mrf.mxu0
    %v9532 = vadd.f32 %v8697, %v9531
    %9533 = vmatmul.bf16.gmra.mxu0 %v8970
    %v9534 = vpop.f32.mrf.mxu0
    %v9535 = vadd.f32 %v8697, %v9534
    %v9536 = vpop.f32.mrf.mxu0
    %v9537 = vadd.f32 %v8697, %v9536
    %9538 = vmatmul.bf16.gmra.mxu0 %v8973
    %v9539 = vpop.f32.mrf.mxu0
    %v9540 = vadd.f32 %v8697, %v9539
    %v9541 = vpop.f32.mrf.mxu0
    %v9542 = vadd.f32 %v8697, %v9541
    %9543 = vmatmul.bf16.gmra.mxu0 %v8976
    %v9544 = vpop.f32.mrf.mxu0
    %v9545 = vadd.f32 %v8697, %v9544
    %v9546 = vpop.f32.mrf.mxu0
    %v9547 = vadd.f32 %v8697, %v9546
    %9548 = vmatmul.bf16.gmra.mxu0 %v8979
    %v9549 = vpop.f32.mrf.mxu0
    %v9550 = vadd.f32 %v8697, %v9549
    %v9551 = vpop.f32.mrf.mxu0
    %v9552 = vadd.f32 %v8697, %v9551
    %9553 = vmatmul.bf16.gmra.mxu0 %v8982
    %v9554 = vpop.f32.mrf.mxu0
    %v9555 = vadd.f32 %v8697, %v9554
    %v9556 = vpop.f32.mrf.mxu0
    %v9557 = vadd.f32 %v8697, %v9556
    %9558 = vmatmul.bf16.gmra.mxu0 %v8985
    %v9559 = vpop.f32.mrf.mxu0
    %v9560 = vadd.f32 %v8697, %v9559
    %v9561 = vpop.f32.mrf.mxu0
    %v9562 = vadd.f32 %v8697, %v9561
    %9563 = vmatmul.bf16.gmra.mxu0 %v8988
    %v9564 = vpop.f32.mrf.mxu0
    %v9565 = vadd.f32 %v8697, %v9564
    %v9566 = vpop.f32.mrf.mxu0
    %v9567 = vadd.f32 %v8697, %v9566
    %9568 = vmatmul.bf16.gmra.mxu0 %v8991
    %v9569 = vpop.f32.mrf.mxu0
    %v9570 = vadd.f32 %v8697, %v9569
    %v9571 = vpop.f32.mrf.mxu0
    %v9572 = vadd.f32 %v8697, %v9571
    %9573 = vmatmul.bf16.gmra.mxu0 %v8994
    %v9574 = vpop.f32.mrf.mxu0
    %v9575 = vadd.f32 %v8697, %v9574
    %v9576 = vpop.f32.mrf.mxu0
    %v9577 = vadd.f32 %v8697, %v9576
    %9578 = vmatmul.bf16.gmra.mxu0 %v8997
    %v9579 = vpop.f32.mrf.mxu0
    %v9580 = vadd.f32 %v8697, %v9579
    %v9581 = vpop.f32.mrf.mxu0
    %v9582 = vadd.f32 %v8697, %v9581
    %9583 = vmatmul.bf16.gmra.mxu0 %v9000
    %v9584 = vpop.f32.mrf.mxu0
    %v9585 = vadd.f32 %v8697, %v9584
    %v9586 = vpop.f32.mrf.mxu0
    %v9587 = vadd.f32 %v8697, %v9586
    %9588 = vmatmul.bf16.gmra.mxu0 %v9003
    %v9589 = vpop.f32.mrf.mxu0
    %v9590 = vadd.f32 %v8697, %v9589
    %v9591 = vpop.f32.mrf.mxu0
    %v9592 = vadd.f32 %v8697, %v9591
    %9593 = vmatmul.bf16.gmra.mxu0 %v9006
    %v9594 = vpop.f32.mrf.mxu0
    %v9595 = vadd.f32 %v8697, %v9594
    %v9596 = vpop.f32.mrf.mxu0
    %v9597 = vadd.f32 %v8697, %v9596
    %9598 = vmatmul.bf16.gmra.mxu0 %v9009
    %v9599 = vpop.f32.mrf.mxu0
    %v9600 = vadd.f32 %v8697, %v9599
    %v9601 = vpop.f32.mrf.mxu0
    %v9602 = vadd.f32 %v8697, %v9601
    %9603 = vmatmul.bf16.gmra.mxu0 %v9012
    %v9604 = vpop.f32.mrf.mxu0
    %v9605 = vadd.f32 %v8697, %v9604
    %v9606 = vpop.f32.mrf.mxu0
    %v9607 = vadd.f32 %v8697, %v9606
    %9608 = vmatmul.bf16.gmra.mxu0 %v9015
    %v9609 = vpop.f32.mrf.mxu0
    %v9610 = vadd.f32 %v8697, %v9609
    %v9611 = vpop.f32.mrf.mxu0
    %v9612 = vadd.f32 %v8697, %v9611
    %9613 = vmatmul.bf16.gmra.mxu0 %v9018
    %v9614 = vpop.f32.mrf.mxu0
    %v9615 = vadd.f32 %v8697, %v9614
    %v9616 = vpop.f32.mrf.mxu0
    %v9617 = vadd.f32 %v8697, %v9616
    %9618 = vmatmul.bf16.gmra.mxu0 %v9021
    %v9619 = vpop.f32.mrf.mxu0
    %v9620 = vadd.f32 %v8697, %v9619
    %v9621 = vpop.f32.mrf.mxu0
    %v9622 = vadd.f32 %v8697, %v9621
    %9623 = vmatmul.bf16.gmra.mxu0 %v9024
    %v9624 = vpop.f32.mrf.mxu0
    %v9625 = vadd.f32 %v8697, %v9624
    %v9626 = vpop.f32.mrf.mxu0
    %v9627 = vadd.f32 %v8697, %v9626
    %9628 = vmatmul.bf16.gmra.mxu0 %v9027
    %v9629 = vpop.f32.mrf.mxu0
    %v9630 = vadd.f32 %v8697, %v9629
    %v9631 = vpop.f32.mrf.mxu0
    %v9632 = vadd.f32 %v8697, %v9631
    %9633 = vmatmul.bf16.gmra.mxu0 %v9030
    %v9634 = vpop.f32.mrf.mxu0
    %v9635 = vadd.f32 %v8697, %v9634
    %v9636 = vpop.f32.mrf.mxu0
    %v9637 = vadd.f32 %v8697, %v9636
    %9638 = vmatmul.bf16.gmra.mxu0 %v9033
    %v9639 = vpop.f32.mrf.mxu0
    %v9640 = vadd.f32 %v8697, %v9639
    %v9641 = vpop.f32.mrf.mxu0
    %v9642 = vadd.f32 %v8697, %v9641
    %9643 = vmatmul.bf16.gmra.mxu0 %v9036
    %v9644 = vpop.f32.mrf.mxu0
    %v9645 = vadd.f32 %v8697, %v9644
    %v9646 = vpop.f32.mrf.mxu0
    %v9647 = vadd.f32 %v8697, %v9646
    %9648 = vmatmul.bf16.gmra.mxu0 %v9039
    %v9649 = vpop.f32.mrf.mxu0
    %v9650 = vadd.f32 %v8697, %v9649
    %v9651 = vpop.f32.mrf.mxu0
    %v9652 = vadd.f32 %v8697, %v9651
    %9653 = vmatmul.bf16.gmra.mxu0 %v9042
    %v9654 = vpop.f32.mrf.mxu0
    %v9655 = vadd.f32 %v8697, %v9654
    %v9656 = vpop.f32.mrf.mxu0
    %v9657 = vadd.f32 %v8697, %v9656
    %9658 = vmatmul.bf16.gmra.mxu0 %v9045
    %v9659 = vpop.f32.mrf.mxu0
    %v9660 = vadd.f32 %v8697, %v9659
    %v9661 = vpop.f32.mrf.mxu0
    %v9662 = vadd.f32 %v8697, %v9661
    %9663 = vmatmul.bf16.gmra.mxu0 %v9048
    %v9664 = vpop.f32.mrf.mxu0
    %v9665 = vadd.f32 %v8697, %v9664
    %v9666 = vpop.f32.mrf.mxu0
    %v9667 = vadd.f32 %v8697, %v9666
    %9668 = vmatmul.bf16.gmra.mxu0 %v9051
    %v9669 = vpop.f32.mrf.mxu0
    %v9670 = vadd.f32 %v8697, %v9669
    %v9671 = vpop.f32.mrf.mxu0
    %v9672 = vadd.f32 %v8697, %v9671
    %9673 = vmatmul.bf16.gmra.mxu0 %v9054
    %v9674 = vpop.f32.mrf.mxu0
    %v9675 = vadd.f32 %v8697, %v9674
    %v9676 = vpop.f32.mrf.mxu0
    %v9677 = vadd.f32 %v8697, %v9676
    %9678 = vmatmul.bf16.gmra.mxu0 %v9057
    %v9679 = vpop.f32.mrf.mxu0
    %v9680 = vadd.f32 %v8697, %v9679
    %v9681 = vpop.f32.mrf.mxu0
    %v9682 = vadd.f32 %v8697, %v9681
    %9683 = vmatmul.bf16.gmra.mxu0 %v9060
    %v9684 = vpop.f32.mrf.mxu0
    %v9685 = vadd.f32 %v8697, %v9684
    %v9686 = vpop.f32.mrf.mxu0
    %v9687 = vadd.f32 %v8697, %v9686
    %9688 = vmatmul.bf16.gmra.mxu0 %v9063
    %v9689 = vpop.f32.mrf.mxu0
    %v9690 = vadd.f32 %v8697, %v9689
    %v9691 = vpop.f32.mrf.mxu0
    %v9692 = vadd.f32 %v8697, %v9691
    %9693 = vmatmul.bf16.gmra.mxu0 %v9066
    %v9694 = vpop.f32.mrf.mxu0
    %v9695 = vadd.f32 %v8697, %v9694
    %v9696 = vpop.f32.mrf.mxu0
    %v9697 = vadd.f32 %v8697, %v9696
    %9698 = vmatmul.bf16.gmra.mxu0 %v9069
    %v9699 = vpop.f32.mrf.mxu0
    %v9700 = vadd.f32 %v8697, %v9699
    %v9701 = vpop.f32.mrf.mxu0
    %v9702 = vadd.f32 %v8697, %v9701
    %9703 = vmatmul.bf16.gmra.mxu0 %v9072
    %v9704 = vpop.f32.mrf.mxu0
    %v9705 = vadd.f32 %v8697, %v9704
    %v9706 = vpop.f32.mrf.mxu0
    %v9707 = vadd.f32 %v8697, %v9706
    %9708 = vmatmul.bf16.gmra.mxu0 %v9075
    %v9709 = vpop.f32.mrf.mxu0
    %v9710 = vadd.f32 %v8697, %v9709
    %v9711 = vpop.f32.mrf.mxu0
    %v9712 = vadd.f32 %v8697, %v9711
    %9713 = vmatmul.bf16.gmra.mxu0 %v9078
    %v9714 = vpop.f32.mrf.mxu0
    %v9715 = vadd.f32 %v8697, %v9714
    %v9716 = vpop.f32.mrf.mxu0
    %v9717 = vadd.f32 %v8697, %v9716
    %9718 = vmatmul.bf16.gmra.mxu0 %v9081
    %v9719 = vpop.f32.mrf.mxu0
    %v9720 = vadd.f32 %v8697, %v9719
    %v9721 = vpop.f32.mrf.mxu0
    %v9722 = vadd.f32 %v8697, %v9721
    %9723 = vmatmul.bf16.gmra.mxu0 %v9084
    %v9724 = vpop.f32.mrf.mxu0
    %v9725 = vadd.f32 %v8697, %v9724
    %v9726 = vpop.f32.mrf.mxu0
    %v9727 = vadd.f32 %v8697, %v9726
    %9728 = vmatmul.bf16.gmra.mxu0 %v9087
    %v9729 = vpop.f32.mrf.mxu0
    %v9730 = vadd.f32 %v8697, %v9729
    %v9731 = vpop.f32.mrf.mxu0
    %v9732 = vadd.f32 %v8697, %v9731
    %9733 = vmatmul.bf16.gmra.mxu0 %v9090
    %v9734 = vpop.f32.mrf.mxu0
    %v9735 = vadd.f32 %v8697, %v9734
    %v9736 = vpop.f32.mrf.mxu0
    %v9737 = vadd.f32 %v8697, %v9736
    %9738 = vmatmul.bf16.gmra.mxu0 %v9093
    %v9739 = vpop.f32.mrf.mxu0
    %v9740 = vadd.f32 %v8697, %v9739
    %v9741 = vpop.f32.mrf.mxu0
    %v9742 = vadd.f32 %v8697, %v9741
    %9743 = vdwg.mxu0
    %v9744 = vmax.f32 %v9105, 0.0
    %v9745 = vmax.f32 %v9107, 0.0
    %v9746 = vmax.f32 %v9110, 0.0
    %v9747 = vmax.f32 %v9112, 0.0
    %v9748 = vmax.f32 %v9115, 0.0
    %v9749 = vmax.f32 %v9117, 0.0
    %v9750 = vmax.f32 %v9120, 0.0
    %v9751 = vmax.f32 %v9122, 0.0
    %v9752 = vmax.f32 %v9125, 0.0
    %v9753 = vmax.f32 %v9127, 0.0
    %v9754 = vmax.f32 %v9130, 0.0
    %v9755 = vmax.f32 %v9132, 0.0
    %v9756 = vmax.f32 %v9135, 0.0
    %v9757 = vmax.f32 %v9137, 0.0
    %v9758 = vmax.f32 %v9140, 0.0
    %v9759 = vmax.f32 %v9142, 0.0
    %v9760 = vmax.f32 %v9145, 0.0
    %v9761 = vmax.f32 %v9147, 0.0
    %v9762 = vmax.f32 %v9150, 0.0
    %v9763 = vmax.f32 %v9152, 0.0
    %v9764 = vmax.f32 %v9155, 0.0
    %v9765 = vmax.f32 %v9157, 0.0
    %v9766 = vmax.f32 %v9160, 0.0
    %v9767 = vmax.f32 %v9162, 0.0
    %v9768 = vmax.f32 %v9165, 0.0
    %v9769 = vmax.f32 %v9167, 0.0
    %v9770 = vmax.f32 %v9170, 0.0
    %v9771 = vmax.f32 %v9172, 0.0
    %v9772 = vmax.f32 %v9175, 0.0
    %v9773 = vmax.f32 %v9177, 0.0
    %v9774 = vmax.f32 %v9180, 0.0
    %v9775 = vmax.f32 %v9182, 0.0
    %v9776 = vmax.f32 %v9185, 0.0
    %v9777 = vmax.f32 %v9187, 0.0
    %v9778 = vmax.f32 %v9190, 0.0
    %v9779 = vmax.f32 %v9192, 0.0
    %v9780 = vmax.f32 %v9195, 0.0
    %v9781 = vmax.f32 %v9197, 0.0
    %v9782 = vmax.f32 %v9200, 0.0
    %v9783 = vmax.f32 %v9202, 0.0
    %v9784 = vmax.f32 %v9205, 0.0
    %v9785 = vmax.f32 %v9207, 0.0
    %v9786 = vmax.f32 %v9210, 0.0
    %v9787 = vmax.f32 %v9212, 0.0
    %v9788 = vmax.f32 %v9215, 0.0
    %v9789 = vmax.f32 %v9217, 0.0
    %v9790 = vmax.f32 %v9220, 0.0
    %v9791 = vmax.f32 %v9222, 0.0
    %v9792 = vmax.f32 %v9225, 0.0
    %v9793 = vmax.f32 %v9227, 0.0
    %v9794 = vmax.f32 %v9230, 0.0
    %v9795 = vmax.f32 %v9232, 0.0
    %v9796 = vmax.f32 %v9235, 0.0
    %v9797 = vmax.f32 %v9237, 0.0
    %v9798 = vmax.f32 %v9240, 0.0
    %v9799 = vmax.f32 %v9242, 0.0
    %v9800 = vmax.f32 %v9245, 0.0
    %v9801 = vmax.f32 %v9247, 0.0
    %v9802 = vmax.f32 %v9250, 0.0
    %v9803 = vmax.f32 %v9252, 0.0
    %v9804 = vmax.f32 %v9255, 0.0
    %v9805 = vmax.f32 %v9257, 0.0
    %v9806 = vmax.f32 %v9260, 0.0
    %v9807 = vmax.f32 %v9262, 0.0
    %v9808 = vmax.f32 %v9265, 0.0
    %v9809 = vmax.f32 %v9267, 0.0
    %v9810 = vmax.f32 %v9270, 0.0
    %v9811 = vmax.f32 %v9272, 0.0
    %v9812 = vmax.f32 %v9275, 0.0
    %v9813 = vmax.f32 %v9277, 0.0
    %v9814 = vmax.f32 %v9280, 0.0
    %v9815 = vmax.f32 %v9282, 0.0
    %v9816 = vmax.f32 %v9285, 0.0
    %v9817 = vmax.f32 %v9287, 0.0
    %v9818 = vmax.f32 %v9290, 0.0
    %v9819 = vmax.f32 %v9292, 0.0
    %v9820 = vmax.f32 %v9295, 0.0
    %v9821 = vmax.f32 %v9297, 0.0
    %v9822 = vmax.f32 %v9300, 0.0
    %v9823 = vmax.f32 %v9302, 0.0
    %v9824 = vmax.f32 %v9305, 0.0
    %v9825 = vmax.f32 %v9307, 0.0
    %v9826 = vmax.f32 %v9310, 0.0
    %v9827 = vmax.f32 %v9312, 0.0
    %v9828 = vmax.f32 %v9315, 0.0
    %v9829 = vmax.f32 %v9317, 0.0
    %v9830 = vmax.f32 %v9320, 0.0
    %v9831 = vmax.f32 %v9322, 0.0
    %v9832 = vmax.f32 %v9325, 0.0
    %v9833 = vmax.f32 %v9327, 0.0
    %v9834 = vmax.f32 %v9330, 0.0
    %v9835 = vmax.f32 %v9332, 0.0
    %v9836 = vmax.f32 %v9335, 0.0
    %v9837 = vmax.f32 %v9337, 0.0
    %v9838 = vmax.f32 %v9340, 0.0
    %v9839 = vmax.f32 %v9342, 0.0
    %v9840 = vmax.f32 %v9345, 0.0
    %v9841 = vmax.f32 %v9347, 0.0
    %v9842 = vmax.f32 %v9350, 0.0
    %v9843 = vmax.f32 %v9352, 0.0
    %v9844 = vmax.f32 %v9355, 0.0
    %v9845 = vmax.f32 %v9357, 0.0
    %v9846 = vmax.f32 %v9360, 0.0
    %v9847 = vmax.f32 %v9362, 0.0
    %v9848 = vmax.f32 %v9365, 0.0
    %v9849 = vmax.f32 %v9367, 0.0
    %v9850 = vmax.f32 %v9370, 0.0
    %v9851 = vmax.f32 %v9372, 0.0
    %v9852 = vmax.f32 %v9375, 0.0
    %v9853 = vmax.f32 %v9377, 0.0
    %v9854 = vmax.f32 %v9380, 0.0
    %v9855 = vmax.f32 %v9382, 0.0
    %v9856 = vmax.f32 %v9385, 0.0
    %v9857 = vmax.f32 %v9387, 0.0
    %v9858 = vmax.f32 %v9390, 0.0
    %v9859 = vmax.f32 %v9392, 0.0
    %v9860 = vmax.f32 %v9395, 0.0
    %v9861 = vmax.f32 %v9397, 0.0
    %v9862 = vmax.f32 %v9400, 0.0
    %v9863 = vmax.f32 %v9402, 0.0
    %v9864 = vmax.f32 %v9405, 0.0
    %v9865 = vmax.f32 %v9407, 0.0
    %v9866 = vmax.f32 %v9410, 0.0
    %v9867 = vmax.f32 %v9412, 0.0
    %v9868 = vmax.f32 %v9415, 0.0
    %v9869 = vmax.f32 %v9417, 0.0
    %v9870 = vmax.f32 %v9420, 0.0
    %v9871 = vmax.f32 %v9422, 0.0
    %v9872 = vmax.f32 %v9425, 0.0
    %v9873 = vmax.f32 %v9427, 0.0
    %v9874 = vmax.f32 %v9430, 0.0
    %v9875 = vmax.f32 %v9432, 0.0
    %v9876 = vmax.f32 %v9435, 0.0
    %v9877 = vmax.f32 %v9437, 0.0
    %v9878 = vmax.f32 %v9440, 0.0
    %v9879 = vmax.f32 %v9442, 0.0
    %v9880 = vmax.f32 %v9445, 0.0
    %v9881 = vmax.f32 %v9447, 0.0
    %v9882 = vmax.f32 %v9450, 0.0
    %v9883 = vmax.f32 %v9452, 0.0
    %v9884 = vmax.f32 %v9455, 0.0
    %v9885 = vmax.f32 %v9457, 0.0
    %v9886 = vmax.f32 %v9460, 0.0
    %v9887 = vmax.f32 %v9462, 0.0
    %v9888 = vmax.f32 %v9465, 0.0
    %v9889 = vmax.f32 %v9467, 0.0
    %v9890 = vmax.f32 %v9470, 0.0
    %v9891 = vmax.f32 %v9472, 0.0
    %v9892 = vmax.f32 %v9475, 0.0
    %v9893 = vmax.f32 %v9477, 0.0
    %v9894 = vmax.f32 %v9480, 0.0
    %v9895 = vmax.f32 %v9482, 0.0
    %v9896 = vmax.f32 %v9485, 0.0
    %v9897 = vmax.f32 %v9487, 0.0
    %v9898 = vmax.f32 %v9490, 0.0
    %v9899 = vmax.f32 %v9492, 0.0
    %v9900 = vmax.f32 %v9495, 0.0
    %v9901 = vmax.f32 %v9497, 0.0
    %v9902 = vmax.f32 %v9500, 0.0
    %v9903 = vmax.f32 %v9502, 0.0
    %v9904 = vmax.f32 %v9505, 0.0
    %v9905 = vmax.f32 %v9507, 0.0
    %v9906 = vmax.f32 %v9510, 0.0
    %v9907 = vmax.f32 %v9512, 0.0
    %v9908 = vmax.f32 %v9515, 0.0
    %v9909 = vmax.f32 %v9517, 0.0
    %v9910 = vmax.f32 %v9520, 0.0
    %v9911 = vmax.f32 %v9522, 0.0
    %v9912 = vmax.f32 %v9525, 0.0
    %v9913 = vmax.f32 %v9527, 0.0
    %v9914 = vmax.f32 %v9530, 0.0
    %v9915 = vmax.f32 %v9532, 0.0
    %v9916 = vmax.f32 %v9535, 0.0
    %v9917 = vmax.f32 %v9537, 0.0
    %v9918 = vmax.f32 %v9540, 0.0
    %v9919 = vmax.f32 %v9542, 0.0
    %v9920 = vmax.f32 %v9545, 0.0
    %v9921 = vmax.f32 %v9547, 0.0
    %v9922 = vmax.f32 %v9550, 0.0
    %v9923 = vmax.f32 %v9552, 0.0
    %v9924 = vmax.f32 %v9555, 0.0
    %v9925 = vmax.f32 %v9557, 0.0
    %v9926 = vmax.f32 %v9560, 0.0
    %v9927 = vmax.f32 %v9562, 0.0
    %v9928 = vmax.f32 %v9565, 0.0
    %v9929 = vmax.f32 %v9567, 0.0
    %v9930 = vmax.f32 %v9570, 0.0
    %v9931 = vmax.f32 %v9572, 0.0
    %v9932 = vmax.f32 %v9575, 0.0
    %v9933 = vmax.f32 %v9577, 0.0
    %v9934 = vmax.f32 %v9580, 0.0
    %v9935 = vmax.f32 %v9582, 0.0
    %v9936 = vmax.f32 %v9585, 0.0
    %v9937 = vmax.f32 %v9587, 0.0
    %v9938 = vmax.f32 %v9590, 0.0
    %v9939 = vmax.f32 %v9592, 0.0
    %v9940 = vmax.f32 %v9595, 0.0
    %v9941 = vmax.f32 %v9597, 0.0
    %v9942 = vmax.f32 %v9600, 0.0
    %v9943 = vmax.f32 %v9602, 0.0
    %v9944 = vmax.f32 %v9605, 0.0
    %v9945 = vmax.f32 %v9607, 0.0
    %v9946 = vmax.f32 %v9610, 0.0
    %v9947 = vmax.f32 %v9612, 0.0
    %v9948 = vmax.f32 %v9615, 0.0
    %v9949 = vmax.f32 %v9617, 0.0
    %v9950 = vmax.f32 %v9620, 0.0
    %v9951 = vmax.f32 %v9622, 0.0
    %v9952 = vmax.f32 %v9625, 0.0
    %v9953 = vmax.f32 %v9627, 0.0
    %v9954 = vmax.f32 %v9630, 0.0
    %v9955 = vmax.f32 %v9632, 0.0
    %v9956 = vmax.f32 %v9635, 0.0
    %v9957 = vmax.f32 %v9637, 0.0
    %v9958 = vmax.f32 %v9640, 0.0
    %v9959 = vmax.f32 %v9642, 0.0
    %v9960 = vmax.f32 %v9645, 0.0
    %v9961 = vmax.f32 %v9647, 0.0
    %v9962 = vmax.f32 %v9650, 0.0
    %v9963 = vmax.f32 %v9652, 0.0
    %v9964 = vmax.f32 %v9655, 0.0
    %v9965 = vmax.f32 %v9657, 0.0
    %v9966 = vmax.f32 %v9660, 0.0
    %v9967 = vmax.f32 %v9662, 0.0
    %v9968 = vmax.f32 %v9665, 0.0
    %v9969 = vmax.f32 %v9667, 0.0
    %v9970 = vmax.f32 %v9670, 0.0
    %v9971 = vmax.f32 %v9672, 0.0
    %v9972 = vmax.f32 %v9675, 0.0
    %v9973 = vmax.f32 %v9677, 0.0
    %v9974 = vmax.f32 %v9680, 0.0
    %v9975 = vmax.f32 %v9682, 0.0
    %v9976 = vmax.f32 %v9685, 0.0
    %v9977 = vmax.f32 %v9687, 0.0
    %v9978 = vmax.f32 %v9690, 0.0
    %v9979 = vmax.f32 %v9692, 0.0
    %v9980 = vmax.f32 %v9695, 0.0
    %v9981 = vmax.f32 %v9697, 0.0
    %v9982 = vmax.f32 %v9700, 0.0
    %v9983 = vmax.f32 %v9702, 0.0
    %v9984 = vmax.f32 %v9705, 0.0
    %v9985 = vmax.f32 %v9707, 0.0
    %v9986 = vmax.f32 %v9710, 0.0
    %v9987 = vmax.f32 %v9712, 0.0
    %v9988 = vmax.f32 %v9715, 0.0
    %v9989 = vmax.f32 %v9717, 0.0
    %v9990 = vmax.f32 %v9720, 0.0
    %v9991 = vmax.f32 %v9722, 0.0
    %v9992 = vmax.f32 %v9725, 0.0
    %v9993 = vmax.f32 %v9727, 0.0
    %v9994 = vmax.f32 %v9730, 0.0
    %v9995 = vmax.f32 %v9732, 0.0
    %v9996 = vmax.f32 %v9735, 0.0
    %v9997 = vmax.f32 %v9737, 0.0
    %v9998 = vmax.f32 %v9740, 0.0
    %v9999 = vmax.f32 %v9742, 0.0
    %vm10000 = vcmask 523264
    %v10001 = vsel %vm10000, %v9744, -inf
    %v10002 = vsel %vm10000, %v9745, -inf
    %v10003 = vmax.f32 %v10001, %v10002
    %v10004 = vsel %vm10000, %v9746, -inf
    %v10005 = vmax.f32 %v10003, %v10004
    %v10006 = vsel %vm10000, %v9747, -inf
    %v10007 = vmax.f32 %v10005, %v10006
    %v10008 = vrot.slane %v10007, 4
    %v10009 = vmax.f32 %v10007, %v10008
    %v10010 = vrot.slane %v10009, 2
    %v10011 = vmax.f32 %v10009, %v10010
    %v10012 = vrot.slane %v10011, 1
    %v10013 = vmax.f32 %v10011, %v10012
    %v10014 = vsel %vm10000, %v9748, -inf
    %v10015 = vsel %vm10000, %v9749, -inf
    %v10016 = vmax.f32 %v10014, %v10015
    %v10017 = vsel %vm10000, %v9750, -inf
    %v10018 = vmax.f32 %v10016, %v10017
    %v10019 = vsel %vm10000, %v9751, -inf
    %v10020 = vmax.f32 %v10018, %v10019
    %v10021 = vrot.slane %v10020, 4
    %v10022 = vmax.f32 %v10020, %v10021
    %v10023 = vrot.slane %v10022, 2
    %v10024 = vmax.f32 %v10022, %v10023
    %v10025 = vrot.slane %v10024, 1
    %v10026 = vmax.f32 %v10024, %v10025
    %v10027 = vsel %vm10000, %v9752, -inf
    %v10028 = vsel %vm10000, %v9753, -inf
    %v10029 = vmax.f32 %v10027, %v10028
    %v10030 = vsel %vm10000, %v9754, -inf
    %v10031 = vmax.f32 %v10029, %v10030
    %v10032 = vsel %vm10000, %v9755, -inf
    %v10033 = vmax.f32 %v10031, %v10032
    %v10034 = vrot.slane %v10033, 4
    %v10035 = vmax.f32 %v10033, %v10034
    %v10036 = vrot.slane %v10035, 2
    %v10037 = vmax.f32 %v10035, %v10036
    %v10038 = vrot.slane %v10037, 1
    %v10039 = vmax.f32 %v10037, %v10038
    %v10040 = vsel %vm10000, %v9756, -inf
    %v10041 = vsel %vm10000, %v9757, -inf
    %v10042 = vmax.f32 %v10040, %v10041
    %v10043 = vsel %vm10000, %v9758, -inf
    %v10044 = vmax.f32 %v10042, %v10043
    %v10045 = vsel %vm10000, %v9759, -inf
    %v10046 = vmax.f32 %v10044, %v10045
    %v10047 = vrot.slane %v10046, 4
    %v10048 = vmax.f32 %v10046, %v10047
    %v10049 = vrot.slane %v10048, 2
    %v10050 = vmax.f32 %v10048, %v10049
    %v10051 = vrot.slane %v10050, 1
    %v10052 = vmax.f32 %v10050, %v10051
    %v10053 = vsel %vm10000, %v9760, -inf
    %v10054 = vsel %vm10000, %v9761, -inf
    %v10055 = vmax.f32 %v10053, %v10054
    %v10056 = vsel %vm10000, %v9762, -inf
    %v10057 = vmax.f32 %v10055, %v10056
    %v10058 = vsel %vm10000, %v9763, -inf
    %v10059 = vmax.f32 %v10057, %v10058
    %v10060 = vrot.slane %v10059, 4
    %v10061 = vmax.f32 %v10059, %v10060
    %v10062 = vrot.slane %v10061, 2
    %v10063 = vmax.f32 %v10061, %v10062
    %v10064 = vrot.slane %v10063, 1
    %v10065 = vmax.f32 %v10063, %v10064
    %v10066 = vsel %vm10000, %v9764, -inf
    %v10067 = vsel %vm10000, %v9765, -inf
    %v10068 = vmax.f32 %v10066, %v10067
    %v10069 = vsel %vm10000, %v9766, -inf
    %v10070 = vmax.f32 %v10068, %v10069
    %v10071 = vsel %vm10000, %v9767, -inf
    %v10072 = vmax.f32 %v10070, %v10071
    %v10073 = vrot.slane %v10072, 4
    %v10074 = vmax.f32 %v10072, %v10073
    %v10075 = vrot.slane %v10074, 2
    %v10076 = vmax.f32 %v10074, %v10075
    %v10077 = vrot.slane %v10076, 1
    %v10078 = vmax.f32 %v10076, %v10077
    %v10079 = vsel %vm10000, %v9768, -inf
    %v10080 = vsel %vm10000, %v9769, -inf
    %v10081 = vmax.f32 %v10079, %v10080
    %v10082 = vsel %vm10000, %v9770, -inf
    %v10083 = vmax.f32 %v10081, %v10082
    %v10084 = vsel %vm10000, %v9771, -inf
    %v10085 = vmax.f32 %v10083, %v10084
    %v10086 = vrot.slane %v10085, 4
    %v10087 = vmax.f32 %v10085, %v10086
    %v10088 = vrot.slane %v10087, 2
    %v10089 = vmax.f32 %v10087, %v10088
    %v10090 = vrot.slane %v10089, 1
    %v10091 = vmax.f32 %v10089, %v10090
    %v10092 = vsel %vm10000, %v9772, -inf
    %v10093 = vsel %vm10000, %v9773, -inf
    %v10094 = vmax.f32 %v10092, %v10093
    %v10095 = vsel %vm10000, %v9774, -inf
    %v10096 = vmax.f32 %v10094, %v10095
    %v10097 = vsel %vm10000, %v9775, -inf
    %v10098 = vmax.f32 %v10096, %v10097
    %v10099 = vrot.slane %v10098, 4
    %v10100 = vmax.f32 %v10098, %v10099
    %v10101 = vrot.slane %v10100, 2
    %v10102 = vmax.f32 %v10100, %v10101
    %v10103 = vrot.slane %v10102, 1
    %v10104 = vmax.f32 %v10102, %v10103
    %v10105 = vsel %vm10000, %v9776, -inf
    %v10106 = vsel %vm10000, %v9777, -inf
    %v10107 = vmax.f32 %v10105, %v10106
    %v10108 = vsel %vm10000, %v9778, -inf
    %v10109 = vmax.f32 %v10107, %v10108
    %v10110 = vsel %vm10000, %v9779, -inf
    %v10111 = vmax.f32 %v10109, %v10110
    %v10112 = vrot.slane %v10111, 4
    %v10113 = vmax.f32 %v10111, %v10112
    %v10114 = vrot.slane %v10113, 2
    %v10115 = vmax.f32 %v10113, %v10114
    %v10116 = vrot.slane %v10115, 1
    %v10117 = vmax.f32 %v10115, %v10116
    %v10118 = vsel %vm10000, %v9780, -inf
    %v10119 = vsel %vm10000, %v9781, -inf
    %v10120 = vmax.f32 %v10118, %v10119
    %v10121 = vsel %vm10000, %v9782, -inf
    %v10122 = vmax.f32 %v10120, %v10121
    %v10123 = vsel %vm10000, %v9783, -inf
    %v10124 = vmax.f32 %v10122, %v10123
    %v10125 = vrot.slane %v10124, 4
    %v10126 = vmax.f32 %v10124, %v10125
    %v10127 = vrot.slane %v10126, 2
    %v10128 = vmax.f32 %v10126, %v10127
    %v10129 = vrot.slane %v10128, 1
    %v10130 = vmax.f32 %v10128, %v10129
    %v10131 = vsel %vm10000, %v9784, -inf
    %v10132 = vsel %vm10000, %v9785, -inf
    %v10133 = vmax.f32 %v10131, %v10132
    %v10134 = vsel %vm10000, %v9786, -inf
    %v10135 = vmax.f32 %v10133, %v10134
    %v10136 = vsel %vm10000, %v9787, -inf
    %v10137 = vmax.f32 %v10135, %v10136
    %v10138 = vrot.slane %v10137, 4
    %v10139 = vmax.f32 %v10137, %v10138
    %v10140 = vrot.slane %v10139, 2
    %v10141 = vmax.f32 %v10139, %v10140
    %v10142 = vrot.slane %v10141, 1
    %v10143 = vmax.f32 %v10141, %v10142
    %v10144 = vsel %vm10000, %v9788, -inf
    %v10145 = vsel %vm10000, %v9789, -inf
    %v10146 = vmax.f32 %v10144, %v10145
    %v10147 = vsel %vm10000, %v9790, -inf
    %v10148 = vmax.f32 %v10146, %v10147
    %v10149 = vsel %vm10000, %v9791, -inf
    %v10150 = vmax.f32 %v10148, %v10149
    %v10151 = vrot.slane %v10150, 4
    %v10152 = vmax.f32 %v10150, %v10151
    %v10153 = vrot.slane %v10152, 2
    %v10154 = vmax.f32 %v10152, %v10153
    %v10155 = vrot.slane %v10154, 1
    %v10156 = vmax.f32 %v10154, %v10155
    %v10157 = vsel %vm10000, %v9792, -inf
    %v10158 = vsel %vm10000, %v9793, -inf
    %v10159 = vmax.f32 %v10157, %v10158
    %v10160 = vsel %vm10000, %v9794, -inf
    %v10161 = vmax.f32 %v10159, %v10160
    %v10162 = vsel %vm10000, %v9795, -inf
    %v10163 = vmax.f32 %v10161, %v10162
    %v10164 = vrot.slane %v10163, 4
    %v10165 = vmax.f32 %v10163, %v10164
    %v10166 = vrot.slane %v10165, 2
    %v10167 = vmax.f32 %v10165, %v10166
    %v10168 = vrot.slane %v10167, 1
    %v10169 = vmax.f32 %v10167, %v10168
    %v10170 = vsel %vm10000, %v9796, -inf
    %v10171 = vsel %vm10000, %v9797, -inf
    %v10172 = vmax.f32 %v10170, %v10171
    %v10173 = vsel %vm10000, %v9798, -inf
    %v10174 = vmax.f32 %v10172, %v10173
    %v10175 = vsel %vm10000, %v9799, -inf
    %v10176 = vmax.f32 %v10174, %v10175
    %v10177 = vrot.slane %v10176, 4
    %v10178 = vmax.f32 %v10176, %v10177
    %v10179 = vrot.slane %v10178, 2
    %v10180 = vmax.f32 %v10178, %v10179
    %v10181 = vrot.slane %v10180, 1
    %v10182 = vmax.f32 %v10180, %v10181
    %v10183 = vsel %vm10000, %v9800, -inf
    %v10184 = vsel %vm10000, %v9801, -inf
    %v10185 = vmax.f32 %v10183, %v10184
    %v10186 = vsel %vm10000, %v9802, -inf
    %v10187 = vmax.f32 %v10185, %v10186
    %v10188 = vsel %vm10000, %v9803, -inf
    %v10189 = vmax.f32 %v10187, %v10188
    %v10190 = vrot.slane %v10189, 4
    %v10191 = vmax.f32 %v10189, %v10190
    %v10192 = vrot.slane %v10191, 2
    %v10193 = vmax.f32 %v10191, %v10192
    %v10194 = vrot.slane %v10193, 1
    %v10195 = vmax.f32 %v10193, %v10194
    %v10196 = vsel %vm10000, %v9804, -inf
    %v10197 = vsel %vm10000, %v9805, -inf
    %v10198 = vmax.f32 %v10196, %v10197
    %v10199 = vsel %vm10000, %v9806, -inf
    %v10200 = vmax.f32 %v10198, %v10199
    %v10201 = vsel %vm10000, %v9807, -inf
    %v10202 = vmax.f32 %v10200, %v10201
    %v10203 = vrot.slane %v10202, 4
    %v10204 = vmax.f32 %v10202, %v10203
    %v10205 = vrot.slane %v10204, 2
    %v10206 = vmax.f32 %v10204, %v10205
    %v10207 = vrot.slane %v10206, 1
    %v10208 = vmax.f32 %v10206, %v10207
    %v10209 = vsel %vm10000, %v9808, -inf
    %v10210 = vsel %vm10000, %v9809, -inf
    %v10211 = vmax.f32 %v10209, %v10210
    %v10212 = vsel %vm10000, %v9810, -inf
    %v10213 = vmax.f32 %v10211, %v10212
    %v10214 = vsel %vm10000, %v9811, -inf
    %v10215 = vmax.f32 %v10213, %v10214
    %v10216 = vrot.slane %v10215, 4
    %v10217 = vmax.f32 %v10215, %v10216
    %v10218 = vrot.slane %v10217, 2
    %v10219 = vmax.f32 %v10217, %v10218
    %v10220 = vrot.slane %v10219, 1
    %v10221 = vmax.f32 %v10219, %v10220
    %v10222 = vsel %vm10000, %v9812, -inf
    %v10223 = vsel %vm10000, %v9813, -inf
    %v10224 = vmax.f32 %v10222, %v10223
    %v10225 = vsel %vm10000, %v9814, -inf
    %v10226 = vmax.f32 %v10224, %v10225
    %v10227 = vsel %vm10000, %v9815, -inf
    %v10228 = vmax.f32 %v10226, %v10227
    %v10229 = vrot.slane %v10228, 4
    %v10230 = vmax.f32 %v10228, %v10229
    %v10231 = vrot.slane %v10230, 2
    %v10232 = vmax.f32 %v10230, %v10231
    %v10233 = vrot.slane %v10232, 1
    %v10234 = vmax.f32 %v10232, %v10233
    %v10235 = vsel %vm10000, %v9816, -inf
    %v10236 = vsel %vm10000, %v9817, -inf
    %v10237 = vmax.f32 %v10235, %v10236
    %v10238 = vsel %vm10000, %v9818, -inf
    %v10239 = vmax.f32 %v10237, %v10238
    %v10240 = vsel %vm10000, %v9819, -inf
    %v10241 = vmax.f32 %v10239, %v10240
    %v10242 = vrot.slane %v10241, 4
    %v10243 = vmax.f32 %v10241, %v10242
    %v10244 = vrot.slane %v10243, 2
    %v10245 = vmax.f32 %v10243, %v10244
    %v10246 = vrot.slane %v10245, 1
    %v10247 = vmax.f32 %v10245, %v10246
    %v10248 = vsel %vm10000, %v9820, -inf
    %v10249 = vsel %vm10000, %v9821, -inf
    %v10250 = vmax.f32 %v10248, %v10249
    %v10251 = vsel %vm10000, %v9822, -inf
    %v10252 = vmax.f32 %v10250, %v10251
    %v10253 = vsel %vm10000, %v9823, -inf
    %v10254 = vmax.f32 %v10252, %v10253
    %v10255 = vrot.slane %v10254, 4
    %v10256 = vmax.f32 %v10254, %v10255
    %v10257 = vrot.slane %v10256, 2
    %v10258 = vmax.f32 %v10256, %v10257
    %v10259 = vrot.slane %v10258, 1
    %v10260 = vmax.f32 %v10258, %v10259
    %v10261 = vsel %vm10000, %v9824, -inf
    %v10262 = vsel %vm10000, %v9825, -inf
    %v10263 = vmax.f32 %v10261, %v10262
    %v10264 = vsel %vm10000, %v9826, -inf
    %v10265 = vmax.f32 %v10263, %v10264
    %v10266 = vsel %vm10000, %v9827, -inf
    %v10267 = vmax.f32 %v10265, %v10266
    %v10268 = vrot.slane %v10267, 4
    %v10269 = vmax.f32 %v10267, %v10268
    %v10270 = vrot.slane %v10269, 2
    %v10271 = vmax.f32 %v10269, %v10270
    %v10272 = vrot.slane %v10271, 1
    %v10273 = vmax.f32 %v10271, %v10272
    %v10274 = vsel %vm10000, %v9828, -inf
    %v10275 = vsel %vm10000, %v9829, -inf
    %v10276 = vmax.f32 %v10274, %v10275
    %v10277 = vsel %vm10000, %v9830, -inf
    %v10278 = vmax.f32 %v10276, %v10277
    %v10279 = vsel %vm10000, %v9831, -inf
    %v10280 = vmax.f32 %v10278, %v10279
    %v10281 = vrot.slane %v10280, 4
    %v10282 = vmax.f32 %v10280, %v10281
    %v10283 = vrot.slane %v10282, 2
    %v10284 = vmax.f32 %v10282, %v10283
    %v10285 = vrot.slane %v10284, 1
    %v10286 = vmax.f32 %v10284, %v10285
    %v10287 = vsel %vm10000, %v9832, -inf
    %v10288 = vsel %vm10000, %v9833, -inf
    %v10289 = vmax.f32 %v10287, %v10288
    %v10290 = vsel %vm10000, %v9834, -inf
    %v10291 = vmax.f32 %v10289, %v10290
    %v10292 = vsel %vm10000, %v9835, -inf
    %v10293 = vmax.f32 %v10291, %v10292
    %v10294 = vrot.slane %v10293, 4
    %v10295 = vmax.f32 %v10293, %v10294
    %v10296 = vrot.slane %v10295, 2
    %v10297 = vmax.f32 %v10295, %v10296
    %v10298 = vrot.slane %v10297, 1
    %v10299 = vmax.f32 %v10297, %v10298
    %v10300 = vsel %vm10000, %v9836, -inf
    %v10301 = vsel %vm10000, %v9837, -inf
    %v10302 = vmax.f32 %v10300, %v10301
    %v10303 = vsel %vm10000, %v9838, -inf
    %v10304 = vmax.f32 %v10302, %v10303
    %v10305 = vsel %vm10000, %v9839, -inf
    %v10306 = vmax.f32 %v10304, %v10305
    %v10307 = vrot.slane %v10306, 4
    %v10308 = vmax.f32 %v10306, %v10307
    %v10309 = vrot.slane %v10308, 2
    %v10310 = vmax.f32 %v10308, %v10309
    %v10311 = vrot.slane %v10310, 1
    %v10312 = vmax.f32 %v10310, %v10311
    %v10313 = vsel %vm10000, %v9840, -inf
    %v10314 = vsel %vm10000, %v9841, -inf
    %v10315 = vmax.f32 %v10313, %v10314
    %v10316 = vsel %vm10000, %v9842, -inf
    %v10317 = vmax.f32 %v10315, %v10316
    %v10318 = vsel %vm10000, %v9843, -inf
    %v10319 = vmax.f32 %v10317, %v10318
    %v10320 = vrot.slane %v10319, 4
    %v10321 = vmax.f32 %v10319, %v10320
    %v10322 = vrot.slane %v10321, 2
    %v10323 = vmax.f32 %v10321, %v10322
    %v10324 = vrot.slane %v10323, 1
    %v10325 = vmax.f32 %v10323, %v10324
    %v10326 = vsel %vm10000, %v9844, -inf
    %v10327 = vsel %vm10000, %v9845, -inf
    %v10328 = vmax.f32 %v10326, %v10327
    %v10329 = vsel %vm10000, %v9846, -inf
    %v10330 = vmax.f32 %v10328, %v10329
    %v10331 = vsel %vm10000, %v9847, -inf
    %v10332 = vmax.f32 %v10330, %v10331
    %v10333 = vrot.slane %v10332, 4
    %v10334 = vmax.f32 %v10332, %v10333
    %v10335 = vrot.slane %v10334, 2
    %v10336 = vmax.f32 %v10334, %v10335
    %v10337 = vrot.slane %v10336, 1
    %v10338 = vmax.f32 %v10336, %v10337
    %v10339 = vsel %vm10000, %v9848, -inf
    %v10340 = vsel %vm10000, %v9849, -inf
    %v10341 = vmax.f32 %v10339, %v10340
    %v10342 = vsel %vm10000, %v9850, -inf
    %v10343 = vmax.f32 %v10341, %v10342
    %v10344 = vsel %vm10000, %v9851, -inf
    %v10345 = vmax.f32 %v10343, %v10344
    %v10346 = vrot.slane %v10345, 4
    %v10347 = vmax.f32 %v10345, %v10346
    %v10348 = vrot.slane %v10347, 2
    %v10349 = vmax.f32 %v10347, %v10348
    %v10350 = vrot.slane %v10349, 1
    %v10351 = vmax.f32 %v10349, %v10350
    %v10352 = vsel %vm10000, %v9852, -inf
    %v10353 = vsel %vm10000, %v9853, -inf
    %v10354 = vmax.f32 %v10352, %v10353
    %v10355 = vsel %vm10000, %v9854, -inf
    %v10356 = vmax.f32 %v10354, %v10355
    %v10357 = vsel %vm10000, %v9855, -inf
    %v10358 = vmax.f32 %v10356, %v10357
    %v10359 = vrot.slane %v10358, 4
    %v10360 = vmax.f32 %v10358, %v10359
    %v10361 = vrot.slane %v10360, 2
    %v10362 = vmax.f32 %v10360, %v10361
    %v10363 = vrot.slane %v10362, 1
    %v10364 = vmax.f32 %v10362, %v10363
    %v10365 = vsel %vm10000, %v9856, -inf
    %v10366 = vsel %vm10000, %v9857, -inf
    %v10367 = vmax.f32 %v10365, %v10366
    %v10368 = vsel %vm10000, %v9858, -inf
    %v10369 = vmax.f32 %v10367, %v10368
    %v10370 = vsel %vm10000, %v9859, -inf
    %v10371 = vmax.f32 %v10369, %v10370
    %v10372 = vrot.slane %v10371, 4
    %v10373 = vmax.f32 %v10371, %v10372
    %v10374 = vrot.slane %v10373, 2
    %v10375 = vmax.f32 %v10373, %v10374
    %v10376 = vrot.slane %v10375, 1
    %v10377 = vmax.f32 %v10375, %v10376
    %v10378 = vsel %vm10000, %v9860, -inf
    %v10379 = vsel %vm10000, %v9861, -inf
    %v10380 = vmax.f32 %v10378, %v10379
    %v10381 = vsel %vm10000, %v9862, -inf
    %v10382 = vmax.f32 %v10380, %v10381
    %v10383 = vsel %vm10000, %v9863, -inf
    %v10384 = vmax.f32 %v10382, %v10383
    %v10385 = vrot.slane %v10384, 4
    %v10386 = vmax.f32 %v10384, %v10385
    %v10387 = vrot.slane %v10386, 2
    %v10388 = vmax.f32 %v10386, %v10387
    %v10389 = vrot.slane %v10388, 1
    %v10390 = vmax.f32 %v10388, %v10389
    %v10391 = vsel %vm10000, %v9864, -inf
    %v10392 = vsel %vm10000, %v9865, -inf
    %v10393 = vmax.f32 %v10391, %v10392
    %v10394 = vsel %vm10000, %v9866, -inf
    %v10395 = vmax.f32 %v10393, %v10394
    %v10396 = vsel %vm10000, %v9867, -inf
    %v10397 = vmax.f32 %v10395, %v10396
    %v10398 = vrot.slane %v10397, 4
    %v10399 = vmax.f32 %v10397, %v10398
    %v10400 = vrot.slane %v10399, 2
    %v10401 = vmax.f32 %v10399, %v10400
    %v10402 = vrot.slane %v10401, 1
    %v10403 = vmax.f32 %v10401, %v10402
    %v10404 = vsel %vm10000, %v9868, -inf
    %v10405 = vsel %vm10000, %v9869, -inf
    %v10406 = vmax.f32 %v10404, %v10405
    %v10407 = vsel %vm10000, %v9870, -inf
    %v10408 = vmax.f32 %v10406, %v10407
    %v10409 = vsel %vm10000, %v9871, -inf
    %v10410 = vmax.f32 %v10408, %v10409
    %v10411 = vrot.slane %v10410, 4
    %v10412 = vmax.f32 %v10410, %v10411
    %v10413 = vrot.slane %v10412, 2
    %v10414 = vmax.f32 %v10412, %v10413
    %v10415 = vrot.slane %v10414, 1
    %v10416 = vmax.f32 %v10414, %v10415
    %v10417 = vsel %vm10000, %v9872, -inf
    %v10418 = vsel %vm10000, %v9873, -inf
    %v10419 = vmax.f32 %v10417, %v10418
    %v10420 = vsel %vm10000, %v9874, -inf
    %v10421 = vmax.f32 %v10419, %v10420
    %v10422 = vsel %vm10000, %v9875, -inf
    %v10423 = vmax.f32 %v10421, %v10422
    %v10424 = vrot.slane %v10423, 4
    %v10425 = vmax.f32 %v10423, %v10424
    %v10426 = vrot.slane %v10425, 2
    %v10427 = vmax.f32 %v10425, %v10426
    %v10428 = vrot.slane %v10427, 1
    %v10429 = vmax.f32 %v10427, %v10428
    %v10430 = vsel %vm10000, %v9876, -inf
    %v10431 = vsel %vm10000, %v9877, -inf
    %v10432 = vmax.f32 %v10430, %v10431
    %v10433 = vsel %vm10000, %v9878, -inf
    %v10434 = vmax.f32 %v10432, %v10433
    %v10435 = vsel %vm10000, %v9879, -inf
    %v10436 = vmax.f32 %v10434, %v10435
    %v10437 = vrot.slane %v10436, 4
    %v10438 = vmax.f32 %v10436, %v10437
    %v10439 = vrot.slane %v10438, 2
    %v10440 = vmax.f32 %v10438, %v10439
    %v10441 = vrot.slane %v10440, 1
    %v10442 = vmax.f32 %v10440, %v10441
    %v10443 = vsel %vm10000, %v9880, -inf
    %v10444 = vsel %vm10000, %v9881, -inf
    %v10445 = vmax.f32 %v10443, %v10444
    %v10446 = vsel %vm10000, %v9882, -inf
    %v10447 = vmax.f32 %v10445, %v10446
    %v10448 = vsel %vm10000, %v9883, -inf
    %v10449 = vmax.f32 %v10447, %v10448
    %v10450 = vrot.slane %v10449, 4
    %v10451 = vmax.f32 %v10449, %v10450
    %v10452 = vrot.slane %v10451, 2
    %v10453 = vmax.f32 %v10451, %v10452
    %v10454 = vrot.slane %v10453, 1
    %v10455 = vmax.f32 %v10453, %v10454
    %v10456 = vsel %vm10000, %v9884, -inf
    %v10457 = vsel %vm10000, %v9885, -inf
    %v10458 = vmax.f32 %v10456, %v10457
    %v10459 = vsel %vm10000, %v9886, -inf
    %v10460 = vmax.f32 %v10458, %v10459
    %v10461 = vsel %vm10000, %v9887, -inf
    %v10462 = vmax.f32 %v10460, %v10461
    %v10463 = vrot.slane %v10462, 4
    %v10464 = vmax.f32 %v10462, %v10463
    %v10465 = vrot.slane %v10464, 2
    %v10466 = vmax.f32 %v10464, %v10465
    %v10467 = vrot.slane %v10466, 1
    %v10468 = vmax.f32 %v10466, %v10467
    %v10469 = vsel %vm10000, %v9888, -inf
    %v10470 = vsel %vm10000, %v9889, -inf
    %v10471 = vmax.f32 %v10469, %v10470
    %v10472 = vsel %vm10000, %v9890, -inf
    %v10473 = vmax.f32 %v10471, %v10472
    %v10474 = vsel %vm10000, %v9891, -inf
    %v10475 = vmax.f32 %v10473, %v10474
    %v10476 = vrot.slane %v10475, 4
    %v10477 = vmax.f32 %v10475, %v10476
    %v10478 = vrot.slane %v10477, 2
    %v10479 = vmax.f32 %v10477, %v10478
    %v10480 = vrot.slane %v10479, 1
    %v10481 = vmax.f32 %v10479, %v10480
    %v10482 = vsel %vm10000, %v9892, -inf
    %v10483 = vsel %vm10000, %v9893, -inf
    %v10484 = vmax.f32 %v10482, %v10483
    %v10485 = vsel %vm10000, %v9894, -inf
    %v10486 = vmax.f32 %v10484, %v10485
    %v10487 = vsel %vm10000, %v9895, -inf
    %v10488 = vmax.f32 %v10486, %v10487
    %v10489 = vrot.slane %v10488, 4
    %v10490 = vmax.f32 %v10488, %v10489
    %v10491 = vrot.slane %v10490, 2
    %v10492 = vmax.f32 %v10490, %v10491
    %v10493 = vrot.slane %v10492, 1
    %v10494 = vmax.f32 %v10492, %v10493
    %v10495 = vsel %vm10000, %v9896, -inf
    %v10496 = vsel %vm10000, %v9897, -inf
    %v10497 = vmax.f32 %v10495, %v10496
    %v10498 = vsel %vm10000, %v9898, -inf
    %v10499 = vmax.f32 %v10497, %v10498
    %v10500 = vsel %vm10000, %v9899, -inf
    %v10501 = vmax.f32 %v10499, %v10500
    %v10502 = vrot.slane %v10501, 4
    %v10503 = vmax.f32 %v10501, %v10502
    %v10504 = vrot.slane %v10503, 2
    %v10505 = vmax.f32 %v10503, %v10504
    %v10506 = vrot.slane %v10505, 1
    %v10507 = vmax.f32 %v10505, %v10506
    %v10508 = vsel %vm10000, %v9900, -inf
    %v10509 = vsel %vm10000, %v9901, -inf
    %v10510 = vmax.f32 %v10508, %v10509
    %v10511 = vsel %vm10000, %v9902, -inf
    %v10512 = vmax.f32 %v10510, %v10511
    %v10513 = vsel %vm10000, %v9903, -inf
    %v10514 = vmax.f32 %v10512, %v10513
    %v10515 = vrot.slane %v10514, 4
    %v10516 = vmax.f32 %v10514, %v10515
    %v10517 = vrot.slane %v10516, 2
    %v10518 = vmax.f32 %v10516, %v10517
    %v10519 = vrot.slane %v10518, 1
    %v10520 = vmax.f32 %v10518, %v10519
    %v10521 = vsel %vm10000, %v9904, -inf
    %v10522 = vsel %vm10000, %v9905, -inf
    %v10523 = vmax.f32 %v10521, %v10522
    %v10524 = vsel %vm10000, %v9906, -inf
    %v10525 = vmax.f32 %v10523, %v10524
    %v10526 = vsel %vm10000, %v9907, -inf
    %v10527 = vmax.f32 %v10525, %v10526
    %v10528 = vrot.slane %v10527, 4
    %v10529 = vmax.f32 %v10527, %v10528
    %v10530 = vrot.slane %v10529, 2
    %v10531 = vmax.f32 %v10529, %v10530
    %v10532 = vrot.slane %v10531, 1
    %v10533 = vmax.f32 %v10531, %v10532
    %v10534 = vsel %vm10000, %v9908, -inf
    %v10535 = vsel %vm10000, %v9909, -inf
    %v10536 = vmax.f32 %v10534, %v10535
    %v10537 = vsel %vm10000, %v9910, -inf
    %v10538 = vmax.f32 %v10536, %v10537
    %v10539 = vsel %vm10000, %v9911, -inf
    %v10540 = vmax.f32 %v10538, %v10539
    %v10541 = vrot.slane %v10540, 4
    %v10542 = vmax.f32 %v10540, %v10541
    %v10543 = vrot.slane %v10542, 2
    %v10544 = vmax.f32 %v10542, %v10543
    %v10545 = vrot.slane %v10544, 1
    %v10546 = vmax.f32 %v10544, %v10545
    %v10547 = vsel %vm10000, %v9912, -inf
    %v10548 = vsel %vm10000, %v9913, -inf
    %v10549 = vmax.f32 %v10547, %v10548
    %v10550 = vsel %vm10000, %v9914, -inf
    %v10551 = vmax.f32 %v10549, %v10550
    %v10552 = vsel %vm10000, %v9915, -inf
    %v10553 = vmax.f32 %v10551, %v10552
    %v10554 = vrot.slane %v10553, 4
    %v10555 = vmax.f32 %v10553, %v10554
    %v10556 = vrot.slane %v10555, 2
    %v10557 = vmax.f32 %v10555, %v10556
    %v10558 = vrot.slane %v10557, 1
    %v10559 = vmax.f32 %v10557, %v10558
    %v10560 = vsel %vm10000, %v9916, -inf
    %v10561 = vsel %vm10000, %v9917, -inf
    %v10562 = vmax.f32 %v10560, %v10561
    %v10563 = vsel %vm10000, %v9918, -inf
    %v10564 = vmax.f32 %v10562, %v10563
    %v10565 = vsel %vm10000, %v9919, -inf
    %v10566 = vmax.f32 %v10564, %v10565
    %v10567 = vrot.slane %v10566, 4
    %v10568 = vmax.f32 %v10566, %v10567
    %v10569 = vrot.slane %v10568, 2
    %v10570 = vmax.f32 %v10568, %v10569
    %v10571 = vrot.slane %v10570, 1
    %v10572 = vmax.f32 %v10570, %v10571
    %v10573 = vsel %vm10000, %v9920, -inf
    %v10574 = vsel %vm10000, %v9921, -inf
    %v10575 = vmax.f32 %v10573, %v10574
    %v10576 = vsel %vm10000, %v9922, -inf
    %v10577 = vmax.f32 %v10575, %v10576
    %v10578 = vsel %vm10000, %v9923, -inf
    %v10579 = vmax.f32 %v10577, %v10578
    %v10580 = vrot.slane %v10579, 4
    %v10581 = vmax.f32 %v10579, %v10580
    %v10582 = vrot.slane %v10581, 2
    %v10583 = vmax.f32 %v10581, %v10582
    %v10584 = vrot.slane %v10583, 1
    %v10585 = vmax.f32 %v10583, %v10584
    %v10586 = vsel %vm10000, %v9924, -inf
    %v10587 = vsel %vm10000, %v9925, -inf
    %v10588 = vmax.f32 %v10586, %v10587
    %v10589 = vsel %vm10000, %v9926, -inf
    %v10590 = vmax.f32 %v10588, %v10589
    %v10591 = vsel %vm10000, %v9927, -inf
    %v10592 = vmax.f32 %v10590, %v10591
    %v10593 = vrot.slane %v10592, 4
    %v10594 = vmax.f32 %v10592, %v10593
    %v10595 = vrot.slane %v10594, 2
    %v10596 = vmax.f32 %v10594, %v10595
    %v10597 = vrot.slane %v10596, 1
    %v10598 = vmax.f32 %v10596, %v10597
    %v10599 = vsel %vm10000, %v9928, -inf
    %v10600 = vsel %vm10000, %v9929, -inf
    %v10601 = vmax.f32 %v10599, %v10600
    %v10602 = vsel %vm10000, %v9930, -inf
    %v10603 = vmax.f32 %v10601, %v10602
    %v10604 = vsel %vm10000, %v9931, -inf
    %v10605 = vmax.f32 %v10603, %v10604
    %v10606 = vrot.slane %v10605, 4
    %v10607 = vmax.f32 %v10605, %v10606
    %v10608 = vrot.slane %v10607, 2
    %v10609 = vmax.f32 %v10607, %v10608
    %v10610 = vrot.slane %v10609, 1
    %v10611 = vmax.f32 %v10609, %v10610
    %v10612 = vsel %vm10000, %v9932, -inf
    %v10613 = vsel %vm10000, %v9933, -inf
    %v10614 = vmax.f32 %v10612, %v10613
    %v10615 = vsel %vm10000, %v9934, -inf
    %v10616 = vmax.f32 %v10614, %v10615
    %v10617 = vsel %vm10000, %v9935, -inf
    %v10618 = vmax.f32 %v10616, %v10617
    %v10619 = vrot.slane %v10618, 4
    %v10620 = vmax.f32 %v10618, %v10619
    %v10621 = vrot.slane %v10620, 2
    %v10622 = vmax.f32 %v10620, %v10621
    %v10623 = vrot.slane %v10622, 1
    %v10624 = vmax.f32 %v10622, %v10623
    %v10625 = vsel %vm10000, %v9936, -inf
    %v10626 = vsel %vm10000, %v9937, -inf
    %v10627 = vmax.f32 %v10625, %v10626
    %v10628 = vsel %vm10000, %v9938, -inf
    %v10629 = vmax.f32 %v10627, %v10628
    %v10630 = vsel %vm10000, %v9939, -inf
    %v10631 = vmax.f32 %v10629, %v10630
    %v10632 = vrot.slane %v10631, 4
    %v10633 = vmax.f32 %v10631, %v10632
    %v10634 = vrot.slane %v10633, 2
    %v10635 = vmax.f32 %v10633, %v10634
    %v10636 = vrot.slane %v10635, 1
    %v10637 = vmax.f32 %v10635, %v10636
    %v10638 = vsel %vm10000, %v9940, -inf
    %v10639 = vsel %vm10000, %v9941, -inf
    %v10640 = vmax.f32 %v10638, %v10639
    %v10641 = vsel %vm10000, %v9942, -inf
    %v10642 = vmax.f32 %v10640, %v10641
    %v10643 = vsel %vm10000, %v9943, -inf
    %v10644 = vmax.f32 %v10642, %v10643
    %v10645 = vrot.slane %v10644, 4
    %v10646 = vmax.f32 %v10644, %v10645
    %v10647 = vrot.slane %v10646, 2
    %v10648 = vmax.f32 %v10646, %v10647
    %v10649 = vrot.slane %v10648, 1
    %v10650 = vmax.f32 %v10648, %v10649
    %v10651 = vsel %vm10000, %v9944, -inf
    %v10652 = vsel %vm10000, %v9945, -inf
    %v10653 = vmax.f32 %v10651, %v10652
    %v10654 = vsel %vm10000, %v9946, -inf
    %v10655 = vmax.f32 %v10653, %v10654
    %v10656 = vsel %vm10000, %v9947, -inf
    %v10657 = vmax.f32 %v10655, %v10656
    %v10658 = vrot.slane %v10657, 4
    %v10659 = vmax.f32 %v10657, %v10658
    %v10660 = vrot.slane %v10659, 2
    %v10661 = vmax.f32 %v10659, %v10660
    %v10662 = vrot.slane %v10661, 1
    %v10663 = vmax.f32 %v10661, %v10662
    %v10664 = vsel %vm10000, %v9948, -inf
    %v10665 = vsel %vm10000, %v9949, -inf
    %v10666 = vmax.f32 %v10664, %v10665
    %v10667 = vsel %vm10000, %v9950, -inf
    %v10668 = vmax.f32 %v10666, %v10667
    %v10669 = vsel %vm10000, %v9951, -inf
    %v10670 = vmax.f32 %v10668, %v10669
    %v10671 = vrot.slane %v10670, 4
    %v10672 = vmax.f32 %v10670, %v10671
    %v10673 = vrot.slane %v10672, 2
    %v10674 = vmax.f32 %v10672, %v10673
    %v10675 = vrot.slane %v10674, 1
    %v10676 = vmax.f32 %v10674, %v10675
    %v10677 = vsel %vm10000, %v9952, -inf
    %v10678 = vsel %vm10000, %v9953, -inf
    %v10679 = vmax.f32 %v10677, %v10678
    %v10680 = vsel %vm10000, %v9954, -inf
    %v10681 = vmax.f32 %v10679, %v10680
    %v10682 = vsel %vm10000, %v9955, -inf
    %v10683 = vmax.f32 %v10681, %v10682
    %v10684 = vrot.slane %v10683, 4
    %v10685 = vmax.f32 %v10683, %v10684
    %v10686 = vrot.slane %v10685, 2
    %v10687 = vmax.f32 %v10685, %v10686
    %v10688 = vrot.slane %v10687, 1
    %v10689 = vmax.f32 %v10687, %v10688
    %v10690 = vsel %vm10000, %v9956, -inf
    %v10691 = vsel %vm10000, %v9957, -inf
    %v10692 = vmax.f32 %v10690, %v10691
    %v10693 = vsel %vm10000, %v9958, -inf
    %v10694 = vmax.f32 %v10692, %v10693
    %v10695 = vsel %vm10000, %v9959, -inf
    %v10696 = vmax.f32 %v10694, %v10695
    %v10697 = vrot.slane %v10696, 4
    %v10698 = vmax.f32 %v10696, %v10697
    %v10699 = vrot.slane %v10698, 2
    %v10700 = vmax.f32 %v10698, %v10699
    %v10701 = vrot.slane %v10700, 1
    %v10702 = vmax.f32 %v10700, %v10701
    %v10703 = vsel %vm10000, %v9960, -inf
    %v10704 = vsel %vm10000, %v9961, -inf
    %v10705 = vmax.f32 %v10703, %v10704
    %v10706 = vsel %vm10000, %v9962, -inf
    %v10707 = vmax.f32 %v10705, %v10706
    %v10708 = vsel %vm10000, %v9963, -inf
    %v10709 = vmax.f32 %v10707, %v10708
    %v10710 = vrot.slane %v10709, 4
    %v10711 = vmax.f32 %v10709, %v10710
    %v10712 = vrot.slane %v10711, 2
    %v10713 = vmax.f32 %v10711, %v10712
    %v10714 = vrot.slane %v10713, 1
    %v10715 = vmax.f32 %v10713, %v10714
    %v10716 = vsel %vm10000, %v9964, -inf
    %v10717 = vsel %vm10000, %v9965, -inf
    %v10718 = vmax.f32 %v10716, %v10717
    %v10719 = vsel %vm10000, %v9966, -inf
    %v10720 = vmax.f32 %v10718, %v10719
    %v10721 = vsel %vm10000, %v9967, -inf
    %v10722 = vmax.f32 %v10720, %v10721
    %v10723 = vrot.slane %v10722, 4
    %v10724 = vmax.f32 %v10722, %v10723
    %v10725 = vrot.slane %v10724, 2
    %v10726 = vmax.f32 %v10724, %v10725
    %v10727 = vrot.slane %v10726, 1
    %v10728 = vmax.f32 %v10726, %v10727
    %v10729 = vsel %vm10000, %v9968, -inf
    %v10730 = vsel %vm10000, %v9969, -inf
    %v10731 = vmax.f32 %v10729, %v10730
    %v10732 = vsel %vm10000, %v9970, -inf
    %v10733 = vmax.f32 %v10731, %v10732
    %v10734 = vsel %vm10000, %v9971, -inf
    %v10735 = vmax.f32 %v10733, %v10734
    %v10736 = vrot.slane %v10735, 4
    %v10737 = vmax.f32 %v10735, %v10736
    %v10738 = vrot.slane %v10737, 2
    %v10739 = vmax.f32 %v10737, %v10738
    %v10740 = vrot.slane %v10739, 1
    %v10741 = vmax.f32 %v10739, %v10740
    %v10742 = vsel %vm10000, %v9972, -inf
    %v10743 = vsel %vm10000, %v9973, -inf
    %v10744 = vmax.f32 %v10742, %v10743
    %v10745 = vsel %vm10000, %v9974, -inf
    %v10746 = vmax.f32 %v10744, %v10745
    %v10747 = vsel %vm10000, %v9975, -inf
    %v10748 = vmax.f32 %v10746, %v10747
    %v10749 = vrot.slane %v10748, 4
    %v10750 = vmax.f32 %v10748, %v10749
    %v10751 = vrot.slane %v10750, 2
    %v10752 = vmax.f32 %v10750, %v10751
    %v10753 = vrot.slane %v10752, 1
    %v10754 = vmax.f32 %v10752, %v10753
    %v10755 = vsel %vm10000, %v9976, -inf
    %v10756 = vsel %vm10000, %v9977, -inf
    %v10757 = vmax.f32 %v10755, %v10756
    %v10758 = vsel %vm10000, %v9978, -inf
    %v10759 = vmax.f32 %v10757, %v10758
    %v10760 = vsel %vm10000, %v9979, -inf
    %v10761 = vmax.f32 %v10759, %v10760
    %v10762 = vrot.slane %v10761, 4
    %v10763 = vmax.f32 %v10761, %v10762
    %v10764 = vrot.slane %v10763, 2
    %v10765 = vmax.f32 %v10763, %v10764
    %v10766 = vrot.slane %v10765, 1
    %v10767 = vmax.f32 %v10765, %v10766
    %v10768 = vsel %vm10000, %v9980, -inf
    %v10769 = vsel %vm10000, %v9981, -inf
    %v10770 = vmax.f32 %v10768, %v10769
    %v10771 = vsel %vm10000, %v9982, -inf
    %v10772 = vmax.f32 %v10770, %v10771
    %v10773 = vsel %vm10000, %v9983, -inf
    %v10774 = vmax.f32 %v10772, %v10773
    %v10775 = vrot.slane %v10774, 4
    %v10776 = vmax.f32 %v10774, %v10775
    %v10777 = vrot.slane %v10776, 2
    %v10778 = vmax.f32 %v10776, %v10777
    %v10779 = vrot.slane %v10778, 1
    %v10780 = vmax.f32 %v10778, %v10779
    %v10781 = vsel %vm10000, %v9984, -inf
    %v10782 = vsel %vm10000, %v9985, -inf
    %v10783 = vmax.f32 %v10781, %v10782
    %v10784 = vsel %vm10000, %v9986, -inf
    %v10785 = vmax.f32 %v10783, %v10784
    %v10786 = vsel %vm10000, %v9987, -inf
    %v10787 = vmax.f32 %v10785, %v10786
    %v10788 = vrot.slane %v10787, 4
    %v10789 = vmax.f32 %v10787, %v10788
    %v10790 = vrot.slane %v10789, 2
    %v10791 = vmax.f32 %v10789, %v10790
    %v10792 = vrot.slane %v10791, 1
    %v10793 = vmax.f32 %v10791, %v10792
    %v10794 = vsel %vm10000, %v9988, -inf
    %v10795 = vsel %vm10000, %v9989, -inf
    %v10796 = vmax.f32 %v10794, %v10795
    %v10797 = vsel %vm10000, %v9990, -inf
    %v10798 = vmax.f32 %v10796, %v10797
    %v10799 = vsel %vm10000, %v9991, -inf
    %v10800 = vmax.f32 %v10798, %v10799
    %v10801 = vrot.slane %v10800, 4
    %v10802 = vmax.f32 %v10800, %v10801
    %v10803 = vrot.slane %v10802, 2
    %v10804 = vmax.f32 %v10802, %v10803
    %v10805 = vrot.slane %v10804, 1
    %v10806 = vmax.f32 %v10804, %v10805
    %v10807 = vsel %vm10000, %v9992, -inf
    %v10808 = vsel %vm10000, %v9993, -inf
    %v10809 = vmax.f32 %v10807, %v10808
    %v10810 = vsel %vm10000, %v9994, -inf
    %v10811 = vmax.f32 %v10809, %v10810
    %v10812 = vsel %vm10000, %v9995, -inf
    %v10813 = vmax.f32 %v10811, %v10812
    %v10814 = vrot.slane %v10813, 4
    %v10815 = vmax.f32 %v10813, %v10814
    %v10816 = vrot.slane %v10815, 2
    %v10817 = vmax.f32 %v10815, %v10816
    %v10818 = vrot.slane %v10817, 1
    %v10819 = vmax.f32 %v10817, %v10818
    %v10820 = vsel %vm10000, %v9996, -inf
    %v10821 = vsel %vm10000, %v9997, -inf
    %v10822 = vmax.f32 %v10820, %v10821
    %v10823 = vsel %vm10000, %v9998, -inf
    %v10824 = vmax.f32 %v10822, %v10823
    %v10825 = vsel %vm10000, %v9999, -inf
    %v10826 = vmax.f32 %v10824, %v10825
    %v10827 = vrot.slane %v10826, 4
    %v10828 = vmax.f32 %v10826, %v10827
    %v10829 = vrot.slane %v10828, 2
    %v10830 = vmax.f32 %v10828, %v10829
    %v10831 = vrot.slane %v10830, 1
    %v10832 = vmax.f32 %v10830, %v10831
    %v10833 = vpack.c.bf16 %v10013, %v10013
    %v10834 = vpack.c.bf16 %v10026, %v10026
    %v10835 = vpack.c.bf16 %v10039, %v10039
    %v10836 = vpack.c.bf16 %v10052, %v10052
    %v10837 = vpack.c.bf16 %v10065, %v10065
    %v10838 = vpack.c.bf16 %v10078, %v10078
    %v10839 = vpack.c.bf16 %v10091, %v10091
    %v10840 = vpack.c.bf16 %v10104, %v10104
    %v10841 = vpack.c.bf16 %v10117, %v10117
    %v10842 = vpack.c.bf16 %v10130, %v10130
    %v10843 = vpack.c.bf16 %v10143, %v10143
    %v10844 = vpack.c.bf16 %v10156, %v10156
    %v10845 = vpack.c.bf16 %v10169, %v10169
    %v10846 = vpack.c.bf16 %v10182, %v10182
    %v10847 = vpack.c.bf16 %v10195, %v10195
    %v10848 = vpack.c.bf16 %v10208, %v10208
    %v10849 = vpack.c.bf16 %v10221, %v10221
    %v10850 = vpack.c.bf16 %v10234, %v10234
    %v10851 = vpack.c.bf16 %v10247, %v10247
    %v10852 = vpack.c.bf16 %v10260, %v10260
    %v10853 = vpack.c.bf16 %v10273, %v10273
    %v10854 = vpack.c.bf16 %v10286, %v10286
    %v10855 = vpack.c.bf16 %v10299, %v10299
    %v10856 = vpack.c.bf16 %v10312, %v10312
    %v10857 = vpack.c.bf16 %v10325, %v10325
    %v10858 = vpack.c.bf16 %v10338, %v10338
    %v10859 = vpack.c.bf16 %v10351, %v10351
    %v10860 = vpack.c.bf16 %v10364, %v10364
    %v10861 = vpack.c.bf16 %v10377, %v10377
    %v10862 = vpack.c.bf16 %v10390, %v10390
    %v10863 = vpack.c.bf16 %v10403, %v10403
    %v10864 = vpack.c.bf16 %v10416, %v10416
    %v10865 = vpack.c.bf16 %v10429, %v10429
    %v10866 = vpack.c.bf16 %v10442, %v10442
    %v10867 = vpack.c.bf16 %v10455, %v10455
    %v10868 = vpack.c.bf16 %v10468, %v10468
    %v10869 = vpack.c.bf16 %v10481, %v10481
    %v10870 = vpack.c.bf16 %v10494, %v10494
    %v10871 = vpack.c.bf16 %v10507, %v10507
    %v10872 = vpack.c.bf16 %v10520, %v10520
    %v10873 = vpack.c.bf16 %v10533, %v10533
    %v10874 = vpack.c.bf16 %v10546, %v10546
    %v10875 = vpack.c.bf16 %v10559, %v10559
    %v10876 = vpack.c.bf16 %v10572, %v10572
    %v10877 = vpack.c.bf16 %v10585, %v10585
    %v10878 = vpack.c.bf16 %v10598, %v10598
    %v10879 = vpack.c.bf16 %v10611, %v10611
    %v10880 = vpack.c.bf16 %v10624, %v10624
    %v10881 = vpack.c.bf16 %v10637, %v10637
    %v10882 = vpack.c.bf16 %v10650, %v10650
    %v10883 = vpack.c.bf16 %v10663, %v10663
    %v10884 = vpack.c.bf16 %v10676, %v10676
    %v10885 = vpack.c.bf16 %v10689, %v10689
    %v10886 = vpack.c.bf16 %v10702, %v10702
    %v10887 = vpack.c.bf16 %v10715, %v10715
    %v10888 = vpack.c.bf16 %v10728, %v10728
    %v10889 = vpack.c.bf16 %v10741, %v10741
    %v10890 = vpack.c.bf16 %v10754, %v10754
    %v10891 = vpack.c.bf16 %v10767, %v10767
    %v10892 = vpack.c.bf16 %v10780, %v10780
    %v10893 = vpack.c.bf16 %v10793, %v10793
    %v10894 = vpack.c.bf16 %v10806, %v10806
    %v10895 = vpack.c.bf16 %v10819, %v10819
    %v10896 = vpack.c.bf16 %v10832, %v10832
    %v10961 = vunpack.c.l.b16 %v10833
    %v10962 = vunpack.c.l.b16 %v10834
    %v10963 = vunpack.c.l.b16 %v10835
    %v10964 = vunpack.c.l.b16 %v10836
    %v10965 = vunpack.c.l.b16 %v10837
    %v10966 = vunpack.c.l.b16 %v10838
    %v10967 = vunpack.c.l.b16 %v10839
    %v10968 = vunpack.c.l.b16 %v10840
    %v10969 = vunpack.c.l.b16 %v10841
    %v10970 = vunpack.c.l.b16 %v10842
    %v10971 = vunpack.c.l.b16 %v10843
    %v10972 = vunpack.c.l.b16 %v10844
    %v10973 = vunpack.c.l.b16 %v10845
    %v10974 = vunpack.c.l.b16 %v10846
    %v10975 = vunpack.c.l.b16 %v10847
    %v10976 = vunpack.c.l.b16 %v10848
    %v10977 = vunpack.c.l.b16 %v10849
    %v10978 = vunpack.c.l.b16 %v10850
    %v10979 = vunpack.c.l.b16 %v10851
    %v10980 = vunpack.c.l.b16 %v10852
    %v10981 = vunpack.c.l.b16 %v10853
    %v10982 = vunpack.c.l.b16 %v10854
    %v10983 = vunpack.c.l.b16 %v10855
    %v10984 = vunpack.c.l.b16 %v10856
    %v10985 = vunpack.c.l.b16 %v10857
    %v10986 = vunpack.c.l.b16 %v10858
    %v10987 = vunpack.c.l.b16 %v10859
    %v10988 = vunpack.c.l.b16 %v10860
    %v10989 = vunpack.c.l.b16 %v10861
    %v10990 = vunpack.c.l.b16 %v10862
    %v10991 = vunpack.c.l.b16 %v10863
    %v10992 = vunpack.c.l.b16 %v10864
    %v10993 = vunpack.c.l.b16 %v10865
    %v10994 = vunpack.c.l.b16 %v10866
    %v10995 = vunpack.c.l.b16 %v10867
    %v10996 = vunpack.c.l.b16 %v10868
    %v10997 = vunpack.c.l.b16 %v10869
    %v10998 = vunpack.c.l.b16 %v10870
    %v10999 = vunpack.c.l.b16 %v10871
    %v11000 = vunpack.c.l.b16 %v10872
    %v11001 = vunpack.c.l.b16 %v10873
    %v11002 = vunpack.c.l.b16 %v10874
    %v11003 = vunpack.c.l.b16 %v10875
    %v11004 = vunpack.c.l.b16 %v10876
    %v11005 = vunpack.c.l.b16 %v10877
    %v11006 = vunpack.c.l.b16 %v10878
    %v11007 = vunpack.c.l.b16 %v10879
    %v11008 = vunpack.c.l.b16 %v10880
    %v11009 = vunpack.c.l.b16 %v10881
    %v11010 = vunpack.c.l.b16 %v10882
    %v11011 = vunpack.c.l.b16 %v10883
    %v11012 = vunpack.c.l.b16 %v10884
    %v11013 = vunpack.c.l.b16 %v10885
    %v11014 = vunpack.c.l.b16 %v10886
    %v11015 = vunpack.c.l.b16 %v10887
    %v11016 = vunpack.c.l.b16 %v10888
    %v11017 = vunpack.c.l.b16 %v10889
    %v11018 = vunpack.c.l.b16 %v10890
    %v11019 = vunpack.c.l.b16 %v10891
    %v11020 = vunpack.c.l.b16 %v10892
    %v11021 = vunpack.c.l.b16 %v10893
    %v11022 = vunpack.c.l.b16 %v10894
    %v11023 = vunpack.c.l.b16 %v10895
    %v11024 = vunpack.c.l.b16 %v10896
    %v11025 = vsel %vm6125, %v10962, %v10961
    %v11026 = vsel %vm6127, %v10963, %v11025
    %v11027 = vsel %vm6129, %v10964, %v11026
    %v11028 = vsel %vm6131, %v10965, %v11027
    %v11029 = vsel %vm6133, %v10966, %v11028
    %v11030 = vsel %vm6135, %v10967, %v11029
    %v11031 = vsel %vm6137, %v10968, %v11030
    %v11032 = vsel %vm6125, %v10970, %v10969
    %v11033 = vsel %vm6127, %v10971, %v11032
    %v11034 = vsel %vm6129, %v10972, %v11033
    %v11035 = vsel %vm6131, %v10973, %v11034
    %v11036 = vsel %vm6133, %v10974, %v11035
    %v11037 = vsel %vm6135, %v10975, %v11036
    %v11038 = vsel %vm6137, %v10976, %v11037
    %v11039 = vsel %vm6125, %v10978, %v10977
    %v11040 = vsel %vm6127, %v10979, %v11039
    %v11041 = vsel %vm6129, %v10980, %v11040
    %v11042 = vsel %vm6131, %v10981, %v11041
    %v11043 = vsel %vm6133, %v10982, %v11042
    %v11044 = vsel %vm6135, %v10983, %v11043
    %v11045 = vsel %vm6137, %v10984, %v11044
    %v11046 = vsel %vm6125, %v10986, %v10985
    %v11047 = vsel %vm6127, %v10987, %v11046
    %v11048 = vsel %vm6129, %v10988, %v11047
    %v11049 = vsel %vm6131, %v10989, %v11048
    %v11050 = vsel %vm6133, %v10990, %v11049
    %v11051 = vsel %vm6135, %v10991, %v11050
    %v11052 = vsel %vm6137, %v10992, %v11051
    %v11053 = vsel %vm6125, %v10994, %v10993
    %v11054 = vsel %vm6127, %v10995, %v11053
    %v11055 = vsel %vm6129, %v10996, %v11054
    %v11056 = vsel %vm6131, %v10997, %v11055
    %v11057 = vsel %vm6133, %v10998, %v11056
    %v11058 = vsel %vm6135, %v10999, %v11057
    %v11059 = vsel %vm6137, %v11000, %v11058
    %v11060 = vsel %vm6125, %v11002, %v11001
    %v11061 = vsel %vm6127, %v11003, %v11060
    %v11062 = vsel %vm6129, %v11004, %v11061
    %v11063 = vsel %vm6131, %v11005, %v11062
    %v11064 = vsel %vm6133, %v11006, %v11063
    %v11065 = vsel %vm6135, %v11007, %v11064
    %v11066 = vsel %vm6137, %v11008, %v11065
    %v11067 = vsel %vm6125, %v11010, %v11009
    %v11068 = vsel %vm6127, %v11011, %v11067
    %v11069 = vsel %vm6129, %v11012, %v11068
    %v11070 = vsel %vm6131, %v11013, %v11069
    %v11071 = vsel %vm6133, %v11014, %v11070
    %v11072 = vsel %vm6135, %v11015, %v11071
    %v11073 = vsel %vm6137, %v11016, %v11072
    %v11074 = vsel %vm6125, %v11018, %v11017
    %v11075 = vsel %vm6127, %v11019, %v11074
    %v11076 = vsel %vm6129, %v11020, %v11075
    %v11077 = vsel %vm6131, %v11021, %v11076
    %v11078 = vsel %vm6133, %v11022, %v11077
    %v11079 = vsel %vm6135, %v11023, %v11078
    %v11080 = vsel %vm6137, %v11024, %v11079
    %v11081 = vpack.c.b16 %v11031, %v11031
    %v11082 = vpack.c.b16 %v11038, %v11038
    %v11083 = vpack.c.b16 %v11045, %v11045
    %v11084 = vpack.c.b16 %v11052, %v11052
    %v11085 = vpack.c.b16 %v11059, %v11059
    %v11086 = vpack.c.b16 %v11066, %v11066
    %v11087 = vpack.c.b16 %v11073, %v11073
    %v11088 = vpack.c.b16 %v11080, %v11080
    %11089 = vrot.lane.b32.xlu0 %v11081, 32
    %v11090 = vpop.permute.xlu0 %11089
    %11091 = vrot.lane.b32.xlu0 %v11082, 32
    %v11092 = vpop.permute.xlu0 %11091
    %11093 = vrot.lane.b32.xlu0 %v11083, 32
    %v11094 = vpop.permute.xlu0 %11093
    %11095 = vrot.lane.b32.xlu0 %v11084, 32
    %v11096 = vpop.permute.xlu0 %11095
    %11097 = vrot.lane.b32.xlu0 %v11085, 32
    %v11098 = vpop.permute.xlu0 %11097
    %11099 = vrot.lane.b32.xlu0 %v11086, 32
    %v11100 = vpop.permute.xlu0 %11099
    %11101 = vrot.lane.b32.xlu0 %v11087, 32
    %v11102 = vpop.permute.xlu0 %11101
    %11103 = vrot.lane.b32.xlu0 %v11088, 32
    %v11104 = vpop.permute.xlu0 %11103
    %vm11113 = vcmask 781568
    %11114 = vst.msk [vmem:[#allocation2] sm:$0xf] %vm11113, %v11090
    %11115 = vst.msk [vmem:[#allocation2 + $0x4] sm:$0xf] %vm11113, %v11092
    %11116 = vst.msk [vmem:[#allocation2 + $0x8] sm:$0xf] %vm11113, %v11094
    %11117 = vst.msk [vmem:[#allocation2 + $0xc] sm:$0xf] %vm11113, %v11096
    %11118 = vst.msk [vmem:[#allocation2 + $0x10] sm:$0xf] %vm11113, %v11098
    %11119 = vst.msk [vmem:[#allocation2 + $0x14] sm:$0xf] %vm11113, %v11100
    %11120 = vst.msk [vmem:[#allocation2 + $0x18] sm:$0xf] %vm11113, %v11102
    %11121 = vst.msk [vmem:[#allocation2 + $0x1c] sm:$0xf] %vm11113, %v11104
    // Predicated region
    $region54: #{tpu_custom_call.1} parent=1 // pred_check
      _
    $region55: #{tpu_custom_call.1} parent=1 // pred_check_branch
      %11123 = sbr.rel (0) target = $region57
    $region56: #{tpu_custom_call.1} parent=1 // pred_region
      %11125 = vsyncadd [#allocation3], 0
      %s11126 = sshll.u32 [#allocation2], 4
      %s11127 = int_to_ptr.vmem [resolvable:$true] %s11126
      %s11128 = sshll.u32 %s13, 4
      %s11129 = int_to_ptr.hbm [resolvable:$true] %s11128
      %11134 = dma.vmem_to_hbm [thread:$0]  %s11127, 512, %s11129, [#allocation3], 64, 64, 4
    $region57: #{tpu_custom_call.1} parent=1 // pred_fallthru
      _
    // Predicated region
    $region58: #{tpu_custom_call.1} parent=1 // pred_check
      _
    $region59: #{tpu_custom_call.1} parent=1 // pred_check_branch
      %11136 = sbr.rel (0) target = $region61
    $region60: #{tpu_custom_call.1} parent=1 // pred_region
      %11138 = dma.done [#allocation3], 512
    $region61: #{tpu_custom_call.1} parent=1 // pred_fallthru
      _
    %11139 = vsyncpa [#allocation3], 1

</llo_original>
